<compile_context>
chip_gen: v7x
topology: tpu7x:2x2x1
jax: 0.10.0
libtpu: 0.0.40
codegen_flags: <defaults>
</compile_context>

<pallas_src>
import functools

import jax
import jax.numpy as jnp
import numpy as np
from jax import lax
from jax.experimental import pallas as pl
from jax.experimental.pallas import tpu as pltpu


# ----------------------------- helpers -------------------------------------

def _round_up(a, b):
    return (a + b - 1) // b * b


def _vmem_capacity_bytes():
    try:
        return int(pltpu.get_tpu_info().vmem_capacity_bytes)
    except Exception:
        return 64 * 1024 * 1024          # conservative fallback (v7x per-TC)


_VMEM_BYTES = _vmem_capacity_bytes()
_VMEM_LIMIT = min(_VMEM_BYTES // 2, 64 * 1024 * 1024)   # scoped VMEM request
_A_TILE_BUDGET = max(4 * 1024 * 1024, _VMEM_LIMIT // 8)  # per-buffer bf16 A tile


# ----------------------------- Pallas kernels ------------------------------

def _conv_epilogue(y, b_ref, o_ref, stats_ref, act):
    """Epilogue on the f32 matmul result: bias, BN partial stats, activation."""
    if b_ref is not None:
        y = y + b_ref[...]                                # (Cp,1) lane broadcast
    if stats_ref is not None:
        # Per-tile partial BN statistics, pre-activation, from the f32 result.
        s = jnp.sum(y, axis=1, keepdims=True)             # (Cp, 1)
        ss = jnp.sum(y * y, axis=1, keepdims=True)        # (Cp, 1)
        stats_ref[...] = jnp.concatenate([s, ss], axis=1)[None]   # (1, Cp, 2)
    if act == "leaky_relu":
        y = jnp.where(y >= 0, y, 0.2 * y)
    elif act == "sigmoid":
        # exp on EUP + approximate reciprocal on EUP: keeps the VALU slot free.
        y = pl.reciprocal(1.0 + jnp.exp(-y), approx=True)
    o_ref[...] = y.astype(o_ref.dtype)


def _conv_mm_kernel(w_ref, a_ref, *rest, has_bias, act, with_stats, multi_k):
    """out(Cp, TM) = W(Cp, TK) @ A(TK, TM) (+ fused epilogue).

    multi_k=False: K fits a single tile -> no scratch accumulator, single pass.
    multi_k=True : accumulate over the K grid axis in an f32 VMEM scratch.
    """
    idx = 0
    b_ref = None
    if has_bias:
        b_ref = rest[idx]
        idx += 1
    o_ref = rest[idx]
    idx += 1
    stats_ref = None
    if with_stats:
        stats_ref = rest[idx]
        idx += 1

    if not multi_k:
        y = jnp.dot(w_ref[...], a_ref[...], preferred_element_type=jnp.float32)
        _conv_epilogue(y, b_ref, o_ref, stats_ref, act)
    else:
        acc_ref = rest[idx]
        kk = pl.program_id(1)

        @pl.when(kk == 0)
        def _init():
            acc_ref[...] = jnp.zeros_like(acc_ref)

        acc_ref[...] += jnp.dot(w_ref[...], a_ref[...],
                                preferred_element_type=jnp.float32)

        @pl.when(kk == pl.num_programs(1) - 1)
        def _finalize():
            _conv_epilogue(acc_ref[...], b_ref, o_ref, stats_ref, act)


def _bn_lrelu_kernel(y_ref, ss_ref, o_ref):
    """o = LeakyReLU(y * scale + shift) with per-channel scale/shift (Cp, 2)."""
    y = y_ref[...].astype(jnp.float32)
    z = y * ss_ref[:, 0:1] + ss_ref[:, 1:2]
    o_ref[...] = jnp.where(z >= 0, z, 0.2 * z).astype(o_ref.dtype)


# ----------------------------- conv wrapper ---------------------------------

def _im2col_cf(x_cf, k, stride, padding):
    """x_cf: (C, N, D, H, W) -> cols (C*k^3, N*Do*Ho*Wo) channel-major K."""
    C, N, D, H, W = x_cf.shape
    xp = jnp.pad(x_cf, ((0, 0), (0, 0),
                        (padding,) * 2, (padding,) * 2, (padding,) * 2))
    Dp, Hp, Wp = D + 2 * padding, H + 2 * padding, W + 2 * padding
    Do = (Dp - k) // stride + 1
    Ho = (Hp - k) // stride + 1
    Wo = (Wp - k) // stride + 1
    taps = []
    for kd in range(k):
        for kh in range(k):
            for kw in range(k):
                taps.append(xp[:, :,
                               kd:kd + Do * stride:stride,
                               kh:kh + Ho * stride:stride,
                               kw:kw + Wo * stride:stride])
    cols = jnp.stack(taps, axis=1)                     # (C, k^3, N, Do, Ho, Wo)
    cols = cols.reshape(C * k ** 3, N * Do * Ho * Wo)  # (K, M), no transpose
    return cols, (N, Do, Ho, Wo)


def conv3d_cf(x_cf, w, b=None, *, stride, padding, act="none",
              with_stats=False, out_dtype=jnp.bfloat16, tm=2048):
    """3D conv on channel-first activations via lane-dense im2col matmul.

    x_cf: (Cin, N, D, H, W); w: (Cout, Cin, k, k, k) f32.
    Returns (y_pad (Cp, Mp), dims (Cout, N, Do, Ho, Wo), M, TM, stats|None).
    """
    Cout, Cin, k, _, _ = w.shape
    has_bias = b is not None
    # Zero M-padding is only stats-safe when the epilogue adds no bias.
    assert not (has_bias and with_stats), \
        "bias + batch stats would corrupt padded-column statistics"

    cols, (N, Do, Ho, Wo) = _im2col_cf(x_cf.astype(jnp.bfloat16),
                                       k, stride, padding)
    K, M = cols.shape

    Cp = _round_up(Cout, 8)                       # sublane-aligned channels
    Mp128 = _round_up(M, 128)
    TM = min(tm, Mp128)                           # lane-dense M tiles
    if TM == Mp128 and Mp128 >= 256:
        # Keep >=2 blocks on the parallel M axis (v7x dual-TensorCore sharding).
        TM = _round_up(Mp128 // 2, 128)
    Mp = _round_up(M, TM)

    # Cover all of K with one tile if the bf16 A tile fits the VMEM budget
    # (no reduction grid axis, no accumulator scratch); otherwise tile K.
    if K * TM * 2 <= _A_TILE_BUDGET:
        TK, Kp = K, K
    else:
        TK = max(128, (_A_TILE_BUDGET // (TM * 2)) // 128 * 128)
        Kp = _round_up(K, TK)
    GM, GK = Mp // TM, Kp // TK
    multi_k = GK > 1

    wm = w.reshape(Cout, K).astype(jnp.bfloat16)
    wm = jnp.pad(wm, ((0, Cp - Cout), (0, Kp - K)))
    cols = jnp.pad(cols, ((0, Kp - K), (0, Mp - M)))   # zero pad: stats-safe

    in_specs = [pl.BlockSpec((Cp, TK), lambda i, kk: (0, kk)),
                pl.BlockSpec((TK, TM), lambda i, kk: (kk, i))]
    operands = [wm, cols]
    if has_bias:
        bp = jnp.pad(b.astype(jnp.float32).reshape(Cout, 1),
                     ((0, Cp - Cout), (0, 0)))
        in_specs.append(pl.BlockSpec((Cp, 1), lambda i, kk: (0, 0)))
        operands.append(bp)

    out_shapes = [jax.ShapeDtypeStruct((Cp, Mp), out_dtype)]
    out_specs = [pl.BlockSpec((Cp, TM), lambda i, kk: (0, i))]
    if with_stats:
        out_shapes.append(jax.ShapeDtypeStruct((GM, Cp, 2), jnp.float32))
        out_specs.append(pl.BlockSpec((1, Cp, 2), lambda i, kk: (i, 0, 0)))

    scratch = [pltpu.VMEM((Cp, TM), jnp.float32)] if multi_k else []

    kernel = functools.partial(_conv_mm_kernel, has_bias=has_bias, act=act,
                               with_stats=with_stats, multi_k=multi_k)
    results = pl.pallas_call(
        kernel,
        out_shape=tuple(out_shapes),
        grid_spec=pltpu.PrefetchScalarGridSpec(
            num_scalar_prefetch=0,
            grid=(GM, GK),
            in_specs=in_specs,
            out_specs=tuple(out_specs),
            scratch_shapes=scratch),
        compiler_params=pltpu.CompilerParams(
            dimension_semantics=("parallel", "arbitrary"),
            vmem_limit_bytes=_VMEM_LIMIT),
    )(*operands)

    y_pad = results[0]
    stats = results[1] if with_stats else None
    return y_pad, (Cout, N, Do, Ho, Wo), M, TM, stats


def bn_lrelu(y_pad, stats, gamma, beta, M, tmb, eps=1e-5,
             out_dtype=jnp.bfloat16):
    """Training-mode BatchNorm (batch stats, biased var) + LeakyReLU(0.2)."""
    Cp, Mp = y_pad.shape
    Cout = gamma.shape[0]
    tot = jnp.sum(stats, axis=0)               # (Cp, 2): [sum, sumsq]
    mean = tot[:Cout, 0] / M
    # Single-pass E[y^2]-mean^2: fine at these magnitudes/M; clamp for safety.
    var = jnp.maximum(tot[:Cout, 1] / M - mean * mean, 0.0)
    scale = gamma * lax.rsqrt(var + eps)
    shift = beta - mean * scale
    sc = jnp.zeros((Cp,), jnp.float32).at[:Cout].set(scale)
    sh = jnp.zeros((Cp,), jnp.float32).at[:Cout].set(shift)
    ssarr = jnp.stack([sc, sh], axis=1)        # (Cp, 2)

    return pl.pallas_call(
        _bn_lrelu_kernel,
        out_shape=jax.ShapeDtypeStruct((Cp, Mp), out_dtype),
        grid_spec=pltpu.PrefetchScalarGridSpec(
            num_scalar_prefetch=0,
            grid=(Mp // tmb,),
            in_specs=[pl.BlockSpec((Cp, tmb), lambda i: (0, i)),
                      pl.BlockSpec((Cp, 2), lambda i: (0, 0))],
            out_specs=pl.BlockSpec((Cp, tmb), lambda i: (0, i))),
        compiler_params=pltpu.CompilerParams(
            dimension_semantics=("parallel",),
            vmem_limit_bytes=_VMEM_LIMIT),
    )(y_pad, ssarr)


def _col2act(y_pad, dims):
    """(Cp, Mp) padded matmul output -> (Cout, N, Do, Ho, Wo) activation."""
    Cout, N, Do, Ho, Wo = dims
    M = N * Do * Ho * Wo
    return y_pad[:Cout, :M].reshape(Cout, N, Do, Ho, Wo)


# ----------------------------- forward --------------------------------------

@jax.jit
def patch_discriminator_forward(x, params, eps=1e-5):
    """x: (N, input_nc, D, H, W) f32. Returns (sigmoid_out, last_layer), NCDHW."""
    xcf = jnp.transpose(x, (1, 0, 2, 3, 4))    # channel-first internal layout

    # [0] Conv3d(input_nc, ndf, 4, 2, 1, bias=True) + [1] LeakyReLU(0.2)
    y, dims, M, TM, _ = conv3d_cf(xcf, params["w0"], params["b0"],
                                  stride=2, padding=1, act="leaky_relu",
                                  out_dtype=jnp.bfloat16)
    h = _col2act(y, dims)

    # [2] Conv3d(ndf, 2ndf, 4, 2, 1, bias=False) + [3] BN + [4] LeakyReLU
    y, dims, M, TM, st = conv3d_cf(h, params["w1"], stride=2, padding=1,
                                   with_stats=True, out_dtype=jnp.bfloat16)
    h = _col2act(bn_lrelu(y, st, params["g1"], params["beta1"], M, TM, eps),
                 dims)

    # [5] Conv3d(2ndf, 4ndf, 4, 2, 1, bias=False) -> last_layer (pre-BN), f32
    y, dims, M, TM, st = conv3d_cf(h, params["w2"], stride=2, padding=1,
                                   with_stats=True, out_dtype=jnp.float32)
    last_layer_cf = _col2act(y, dims)
    # [6] BN + [7] LeakyReLU
    h = _col2act(bn_lrelu(y, st, params["g2"], params["beta2"], M, TM, eps),
                 dims)

    # [8] Conv3d(4ndf, 8ndf, 4, 1, 1, bias=False) + [9] BN + [10] LeakyReLU
    y, dims, M, TM, st = conv3d_cf(h, params["w3"], stride=1, padding=1,
                                   with_stats=True, out_dtype=jnp.bfloat16)
    h = _col2act(bn_lrelu(y, st, params["g3"], params["beta3"], M, TM, eps),
                 dims)

    # [11] Conv3d(8ndf, 1, 4, 1, 1, bias=True) + [12] Sigmoid  (f32 output)
    y, dims, M, TM, _ = conv3d_cf(h, params["w4"], params["b4"],
                                  stride=1, padding=1, act="sigmoid",
                                  out_dtype=jnp.float32)
    out_cf = _col2act(y, dims)

    out = jnp.transpose(out_cf, (1, 0, 2, 3, 4))
    last_layer = jnp.transpose(last_layer_cf, (1, 0, 2, 3, 4))
    return out, last_layer


# ----------------------------- pure-JAX reference ----------------------------

@jax.jit
def reference_forward(x, params, eps=1e-5):
    dn = ("NCDHW", "OIDHW", "NCDHW")

    def rb(t):  # same bf16 input rounding as the MXU path
        return t.astype(jnp.bfloat16).astype(jnp.float32)

    def conv(h, w, stride):
        return lax.conv_general_dilated(rb(h), rb(w), (stride,) * 3,
                                        [(1, 1)] * 3, dimension_numbers=dn,
                                        precision=lax.Precision.HIGHEST)

    def lrelu(t):
        return jnp.where(t >= 0, t, 0.2 * t)

    def bn(t, g, b):
        m = t.mean(axis=(0, 2, 3, 4), keepdims=True)
        v = jnp.square(t - m).mean(axis=(0, 2, 3, 4), keepdims=True)
        return ((t - m) * lax.rsqrt(v + eps) * g.reshape(1, -1, 1, 1, 1)
                + b.reshape(1, -1, 1, 1, 1))

    h = lrelu(conv(x, params["w0"], 2) + params["b0"].reshape(1, -1, 1, 1, 1))
    h = lrelu(bn(conv(h, params["w1"], 2), params["g1"], params["beta1"]))
    last = conv(h, params["w2"], 2)
    h = lrelu(bn(last, params["g2"], params["beta2"]))
    h = lrelu(bn(conv(h, params["w3"], 1), params["g3"], params["beta3"]))
    z = conv(h, params["w4"], 1) + params["b4"].reshape(1, -1, 1, 1, 1)
    out = 1.0 / (1.0 + jnp.exp(-z))
    return out, last


# ----------------------------------- main ------------------------------------

if __name__ == "__main__":
    input_nc, ndf, kw = 2, 8, 4
    N, D, H, W = 2, 32, 32, 32     # 3 stride-2 + 2 stride-1 convs need >=32

    key = jax.random.PRNGKey(0)
    ks = jax.random.split(key, 16)

    def w_init(i, shape):
        fan_in = shape[1] * kw ** 3
        return jax.random.normal(ks[i], shape, jnp.float32) / np.sqrt(fan_in)

    x = jax.random.normal(ks[0], (N, input_nc, D, H, W), jnp.float32)
    params = {
        "w0": w_init(1, (ndf, input_nc, kw, kw, kw)),
        "b0": 0.1 * jax.random.normal(ks[2], (ndf,), jnp.float32),
        "w1": w_init(3, (2 * ndf, ndf, kw, kw, kw)),
        "g1": 1.0 + 0.1 * jax.random.normal(ks[4], (2 * ndf,), jnp.float32),
        "beta1": 0.1 * jax.random.normal(ks[5], (2 * ndf,), jnp.float32),
        "w2": w_init(6, (4 * ndf, 2 * ndf, kw, kw, kw)),
        "g2": 1.0 + 0.1 * jax.random.normal(ks[7], (4 * ndf,), jnp.float32),
        "beta2": 0.1 * jax.random.normal(ks[8], (4 * ndf,), jnp.float32),
        "w3": w_init(9, (8 * ndf, 4 * ndf, kw, kw, kw)),
        "g3": 1.0 + 0.1 * jax.random.normal(ks[10], (8 * ndf,), jnp.float32),
        "beta3": 0.1 * jax.random.normal(ks[11], (8 * ndf,), jnp.float32),
        "w4": w_init(12, (1, 8 * ndf, kw, kw, kw)),
        "b4": 0.1 * jax.random.normal(ks[13], (1,), jnp.float32),
    }

    out, last = patch_discriminator_forward(x, params)
    out = jax.block_until_ready(out)
    last = jax.block_until_ready(last)

    ref_out, ref_last = reference_forward(x, params)
    ref_out = jax.block_until_ready(ref_out)
    ref_last = jax.block_until_ready(ref_last)

    assert out.shape == (N, 1, 2, 2, 2), out.shape
    assert last.shape == (N, 4 * ndf, 4, 4, 4), last.shape
    # bf16 MXU operands / bf16 intermediate activations loosen the tolerance
    # vs a pure-f32 pipeline (re-rounding of slightly different activations).
    np.testing.assert_allclose(np.asarray(out), np.asarray(ref_out),
                               rtol=1e-2, atol=1e-2)
    np.testing.assert_allclose(np.asarray(last), np.asarray(ref_last),
                               rtol=1e-2, atol=1e-2)
    print("KERNEL_OK")
</pallas_src>

<mosaic_0001>
module attributes {stable_mosaic.version = 11 : i64} {
  func.func @_conv_mm_kernel(%arg0: i32, %arg1: i32, %arg2: memref<8x128xbf16, #tpu.memory_space<vmem>>, %arg3: memref<128x2048xbf16, #tpu.memory_space<vmem>>, %arg4: memref<8x1xf32, #tpu.memory_space<vmem>>, %arg5: memref<8x2048xbf16, #tpu.memory_space<vmem>>) attributes {dimension_semantics = [#tpu.dimension_semantics<parallel>, #tpu.dimension_semantics<arbitrary>], iteration_bounds = array<i64: 4, 1>, scalar_prefetch = 0 : i64, scratch_operands = 0 : i64, tpu.core_type = #tpu.core_type<tc>, window_params = [{transform_indices = @transform_0, window_bounds = array<i64: 8, 128>}, {transform_indices = @transform_1, window_bounds = array<i64: 128, 2048>}, {pipeline_mode = #tpu.pipeline_mode<synchronous>, transform_indices = @transform_2, window_bounds = array<i64: 8, 1>}, {transform_indices = @transform_3, window_bounds = array<i64: 8, 2048>}]} {
    %c0 = arith.constant 0 : index
    %c0_0 = arith.constant 0 : index
    %0 = vector.load %arg2[%c0, %c0_0] : memref<8x128xbf16, #tpu.memory_space<vmem>>, vector<8x128xbf16>
    %c0_1 = arith.constant 0 : index
    %c0_2 = arith.constant 0 : index
    %1 = vector.load %arg3[%c0_1, %c0_2] : memref<128x2048xbf16, #tpu.memory_space<vmem>>, vector<128x2048xbf16>
    %cst = arith.constant dense<0.000000e+00> : vector<8x2048xf32>
    %2 = tpu.matmul %0, %1, %cst {dimension_numbers = #tpu.dot_dimension_numbers<[1], [0], [0], [1], [0, 0, 1, 1], [], []>} : vector<8x128xbf16>, vector<128x2048xbf16>, vector<8x2048xf32> -> vector<8x2048xf32>
    %c0_3 = arith.constant 0 : index
    %c0_4 = arith.constant 0 : index
    %3 = vector.load %arg4[%c0_3, %c0_4] : memref<8x1xf32, #tpu.memory_space<vmem>>, vector<8x1xf32>
    %4 = vector.broadcast %3 : vector<8x1xf32> to vector<8x2048xf32>
    %5 = arith.addf %2, %4 : vector<8x2048xf32>
    %cst_5 = arith.constant 0.000000e+00 : f32
    %6 = vector.broadcast %cst_5 : f32 to vector<8x2048xf32>
    %7 = arith.cmpf oge, %5, %6 : vector<8x2048xf32>
    %cst_6 = arith.constant 2.000000e-01 : f32
    %8 = vector.broadcast %cst_6 : f32 to vector<8x2048xf32>
    %9 = arith.mulf %8, %5 : vector<8x2048xf32>
    %10 = arith.select %7, %5, %9 : vector<8x2048xi1>, vector<8x2048xf32>
    %11 = arith.truncf %10 : vector<8x2048xf32> to vector<8x2048xbf16>
    %c0_7 = arith.constant 0 : index
    %c0_8 = arith.constant 0 : index
    %12 = vector.load %arg5[%c0_7, %c0_8] : memref<8x2048xbf16, #tpu.memory_space<vmem>>, vector<8x2048xbf16>
    tpu.vector_store %arg5[%c0_7, %c0_8], %11 {strides = array<i32>} : memref<8x2048xbf16, #tpu.memory_space<vmem>>, vector<8x2048xbf16>,
    return
  }
  func.func @transform_0(%arg0: i32, %arg1: i32) -> (i32, i32) {
    %c0_i32 = arith.constant 0 : i32
    %c0_i32_0 = arith.constant 0 : i32
    return %c0_i32, %arg1 : i32, i32
  }
  func.func @transform_1(%arg0: i32, %arg1: i32) -> (i32, i32) {
    %c0_i32 = arith.constant 0 : i32
    return %arg1, %arg0 : i32, i32
  }
  func.func @transform_2(%arg0: i32, %arg1: i32) -> (i32, i32) {
    %c0_i32 = arith.constant 0 : i32
    %c0_i32_0 = arith.constant 0 : i32
    %c0_i32_1 = arith.constant 0 : i32
    return %c0_i32, %c0_i32_0 : i32, i32
  }
  func.func @transform_3(%arg0: i32, %arg1: i32) -> (i32, i32) {
    %c0_i32 = arith.constant 0 : i32
    %c0_i32_0 = arith.constant 0 : i32
    return %c0_i32, %arg0 : i32, i32
  }
}

module attributes {stable_mosaic.version = 11 : i64} {
  func.func @_conv_mm_kernel(%arg0: i32, %arg1: i32, %arg2: memref<16x512xbf16, #tpu.memory_space<vmem>>, %arg3: memref<512x512xbf16, #tpu.memory_space<vmem>>, %arg4: memref<16x512xbf16, #tpu.memory_space<vmem>>, %arg5: memref<1x16x2xf32, #tpu.memory_space<vmem>>) attributes {dimension_semantics = [#tpu.dimension_semantics<parallel>, #tpu.dimension_semantics<arbitrary>], iteration_bounds = array<i64: 2, 1>, scalar_prefetch = 0 : i64, scratch_operands = 0 : i64, tpu.core_type = #tpu.core_type<tc>, window_params = [{transform_indices = @transform_0, window_bounds = array<i64: 16, 512>}, {transform_indices = @transform_1, window_bounds = array<i64: 512, 512>}, {transform_indices = @transform_2, window_bounds = array<i64: 16, 512>}, {transform_indices = @transform_3, window_bounds = array<i64: 1, 16, 2>}]} {
    %c0 = arith.constant 0 : index
    %c0_0 = arith.constant 0 : index
    %0 = vector.load %arg2[%c0, %c0_0] : memref<16x512xbf16, #tpu.memory_space<vmem>>, vector<16x512xbf16>
    %c0_1 = arith.constant 0 : index
    %c0_2 = arith.constant 0 : index
    %1 = vector.load %arg3[%c0_1, %c0_2] : memref<512x512xbf16, #tpu.memory_space<vmem>>, vector<512x512xbf16>
    %cst = arith.constant dense<0.000000e+00> : vector<16x512xf32>
    %2 = tpu.matmul %0, %1, %cst {dimension_numbers = #tpu.dot_dimension_numbers<[1], [0], [0], [1], [0, 0, 1, 1], [], []>} : vector<16x512xbf16>, vector<512x512xbf16>, vector<16x512xf32> -> vector<16x512xf32>
    %cst_3 = arith.constant dense<0.000000e+00> : vector<16xf32>
    %3 = vector.multi_reduction <add>, %2, %cst_3 [1] : vector<16x512xf32> to vector<16xf32>
    %4 = vector.shape_cast %3 : vector<16xf32> to vector<16x1xf32>
    %5 = arith.mulf %2, %2 : vector<16x512xf32>
    %cst_4 = arith.constant dense<0.000000e+00> : vector<16xf32>
    %6 = vector.multi_reduction <add>, %5, %cst_4 [1] : vector<16x512xf32> to vector<16xf32>
    %7 = vector.shape_cast %6 : vector<16xf32> to vector<16x1xf32>
    %8 = tpu.concatenate %4, %7 in 1 : vector<16x1xf32>, vector<16x1xf32> -> vector<16x2xf32>
    %9 = vector.shape_cast %8 : vector<16x2xf32> to vector<1x16x2xf32>
    %c0_5 = arith.constant 0 : index
    %c0_6 = arith.constant 0 : index
    %c0_7 = arith.constant 0 : index
    %10 = vector.load %arg5[%c0_5, %c0_6, %c0_7] : memref<1x16x2xf32, #tpu.memory_space<vmem>>, vector<1x16x2xf32>
    tpu.vector_store %arg5[%c0_5, %c0_6, %c0_7], %9 {strides = array<i32>} : memref<1x16x2xf32, #tpu.memory_space<vmem>>, vector<1x16x2xf32>,
    %11 = arith.truncf %2 : vector<16x512xf32> to vector<16x512xbf16>
    %c0_8 = arith.constant 0 : index
    %c0_9 = arith.constant 0 : index
    %12 = vector.load %arg4[%c0_8, %c0_9] : memref<16x512xbf16, #tpu.memory_space<vmem>>, vector<16x512xbf16>
    tpu.vector_store %arg4[%c0_8, %c0_9], %11 {strides = array<i32>} : memref<16x512xbf16, #tpu.memory_space<vmem>>, vector<16x512xbf16>,
    return
  }
  func.func @transform_0(%arg0: i32, %arg1: i32) -> (i32, i32) {
    %c0_i32 = arith.constant 0 : i32
    %c0_i32_0 = arith.constant 0 : i32
    return %c0_i32, %arg1 : i32, i32
  }
  func.func @transform_1(%arg0: i32, %arg1: i32) -> (i32, i32) {
    %c0_i32 = arith.constant 0 : i32
    return %arg1, %arg0 : i32, i32
  }
  func.func @transform_2(%arg0: i32, %arg1: i32) -> (i32, i32) {
    %c0_i32 = arith.constant 0 : i32
    %c0_i32_0 = arith.constant 0 : i32
    return %c0_i32, %arg0 : i32, i32
  }
  func.func @transform_3(%arg0: i32, %arg1: i32) -> (i32, i32, i32) {
    %c0_i32 = arith.constant 0 : i32
    %c0_i32_0 = arith.constant 0 : i32
    %c0_i32_1 = arith.constant 0 : i32
    return %arg0, %c0_i32, %c0_i32_0 : i32, i32, i32
  }
}

module attributes {stable_mosaic.version = 11 : i64} {
  func.func @_bn_lrelu_kernel(%arg0: i32, %arg1: memref<16x512xbf16, #tpu.memory_space<vmem>>, %arg2: memref<16x2xf32, #tpu.memory_space<vmem>>, %arg3: memref<16x512xbf16, #tpu.memory_space<vmem>>) attributes {dimension_semantics = [#tpu.dimension_semantics<parallel>], iteration_bounds = array<i64: 2>, scalar_prefetch = 0 : i64, scratch_operands = 0 : i64, tpu.core_type = #tpu.core_type<tc>, window_params = [{transform_indices = @transform_0, window_bounds = array<i64: 16, 512>}, {pipeline_mode = #tpu.pipeline_mode<synchronous>, transform_indices = @transform_1, window_bounds = array<i64: 16, 2>}, {transform_indices = @transform_2, window_bounds = array<i64: 16, 512>}]} {
    %c0 = arith.constant 0 : index
    %c0_0 = arith.constant 0 : index
    %0 = vector.load %arg1[%c0, %c0_0] : memref<16x512xbf16, #tpu.memory_space<vmem>>, vector<16x512xbf16>
    %1 = arith.extf %0 : vector<16x512xbf16> to vector<16x512xf32>
    %c0_1 = arith.constant 0 : index
    %c0_2 = arith.constant 0 : index
    %2 = vector.load %arg2[%c0_1, %c0_2] : memref<16x2xf32, #tpu.memory_space<vmem>>, vector<16x1xf32>
    %3 = vector.broadcast %2 : vector<16x1xf32> to vector<16x512xf32>
    %4 = arith.mulf %1, %3 : vector<16x512xf32>
    %c0_3 = arith.constant 0 : index
    %c1 = arith.constant 1 : index
    %5 = vector.load %arg2[%c0_3, %c1] : memref<16x2xf32, #tpu.memory_space<vmem>>, vector<16x1xf32>
    %6 = vector.broadcast %5 : vector<16x1xf32> to vector<16x512xf32>
    %7 = arith.addf %4, %6 : vector<16x512xf32>
    %cst = arith.constant 0.000000e+00 : f32
    %8 = vector.broadcast %cst : f32 to vector<16x512xf32>
    %9 = arith.cmpf oge, %7, %8 : vector<16x512xf32>
    %cst_4 = arith.constant 2.000000e-01 : f32
    %10 = vector.broadcast %cst_4 : f32 to vector<16x512xf32>
    %11 = arith.mulf %10, %7 : vector<16x512xf32>
    %12 = arith.select %9, %7, %11 : vector<16x512xi1>, vector<16x512xf32>
    %13 = arith.truncf %12 : vector<16x512xf32> to vector<16x512xbf16>
    %c0_5 = arith.constant 0 : index
    %c0_6 = arith.constant 0 : index
    %14 = vector.load %arg3[%c0_5, %c0_6] : memref<16x512xbf16, #tpu.memory_space<vmem>>, vector<16x512xbf16>
    tpu.vector_store %arg3[%c0_5, %c0_6], %13 {strides = array<i32>} : memref<16x512xbf16, #tpu.memory_space<vmem>>, vector<16x512xbf16>,
    return
  }
  func.func @transform_0(%arg0: i32) -> (i32, i32) {
    %c0_i32 = arith.constant 0 : i32
    %c0_i32_0 = arith.constant 0 : i32
    return %c0_i32, %arg0 : i32, i32
  }
  func.func @transform_1(%arg0: i32) -> (i32, i32) {
    %c0_i32 = arith.constant 0 : i32
    %c0_i32_0 = arith.constant 0 : i32
    %c0_i32_1 = arith.constant 0 : i32
    return %c0_i32, %c0_i32_0 : i32, i32
  }
  func.func @transform_2(%arg0: i32) -> (i32, i32) {
    %c0_i32 = arith.constant 0 : i32
    %c0_i32_0 = arith.constant 0 : i32
    return %c0_i32, %arg0 : i32, i32
  }
}

module attributes {stable_mosaic.version = 11 : i64} {
  func.func @_conv_mm_kernel(%arg0: i32, %arg1: i32, %arg2: memref<32x1024xbf16, #tpu.memory_space<vmem>>, %arg3: memref<1024x128xbf16, #tpu.memory_space<vmem>>, %arg4: memref<32x128xf32, #tpu.memory_space<vmem>>, %arg5: memref<1x32x2xf32, #tpu.memory_space<vmem>>) attributes {dimension_semantics = [#tpu.dimension_semantics<parallel>, #tpu.dimension_semantics<arbitrary>], iteration_bounds = array<i64: 1, 1>, scalar_prefetch = 0 : i64, scratch_operands = 0 : i64, tpu.core_type = #tpu.core_type<tc>, window_params = [{transform_indices = @transform_0, window_bounds = array<i64: 32, 1024>}, {transform_indices = @transform_1, window_bounds = array<i64: 1024, 128>}, {transform_indices = @transform_2, window_bounds = array<i64: 32, 128>}, {transform_indices = @transform_3, window_bounds = array<i64: 1, 32, 2>}]} {
    %c0 = arith.constant 0 : index
    %c0_0 = arith.constant 0 : index
    %0 = vector.load %arg2[%c0, %c0_0] : memref<32x1024xbf16, #tpu.memory_space<vmem>>, vector<32x1024xbf16>
    %c0_1 = arith.constant 0 : index
    %c0_2 = arith.constant 0 : index
    %1 = vector.load %arg3[%c0_1, %c0_2] : memref<1024x128xbf16, #tpu.memory_space<vmem>>, vector<1024x128xbf16>
    %cst = arith.constant dense<0.000000e+00> : vector<32x128xf32>
    %2 = tpu.matmul %0, %1, %cst {dimension_numbers = #tpu.dot_dimension_numbers<[1], [0], [0], [1], [0, 0, 1, 1], [], []>} : vector<32x1024xbf16>, vector<1024x128xbf16>, vector<32x128xf32> -> vector<32x128xf32>
    %cst_3 = arith.constant dense<0.000000e+00> : vector<32xf32>
    %3 = vector.multi_reduction <add>, %2, %cst_3 [1] : vector<32x128xf32> to vector<32xf32>
    %4 = vector.shape_cast %3 : vector<32xf32> to vector<32x1xf32>
    %5 = arith.mulf %2, %2 : vector<32x128xf32>
    %cst_4 = arith.constant dense<0.000000e+00> : vector<32xf32>
    %6 = vector.multi_reduction <add>, %5, %cst_4 [1] : vector<32x128xf32> to vector<32xf32>
    %7 = vector.shape_cast %6 : vector<32xf32> to vector<32x1xf32>
    %8 = tpu.concatenate %4, %7 in 1 : vector<32x1xf32>, vector<32x1xf32> -> vector<32x2xf32>
    %9 = vector.shape_cast %8 : vector<32x2xf32> to vector<1x32x2xf32>
    %c0_5 = arith.constant 0 : index
    %c0_6 = arith.constant 0 : index
    %c0_7 = arith.constant 0 : index
    %10 = vector.load %arg5[%c0_5, %c0_6, %c0_7] : memref<1x32x2xf32, #tpu.memory_space<vmem>>, vector<1x32x2xf32>
    tpu.vector_store %arg5[%c0_5, %c0_6, %c0_7], %9 {strides = array<i32>} : memref<1x32x2xf32, #tpu.memory_space<vmem>>, vector<1x32x2xf32>,
    %c0_8 = arith.constant 0 : index
    %c0_9 = arith.constant 0 : index
    %11 = vector.load %arg4[%c0_8, %c0_9] : memref<32x128xf32, #tpu.memory_space<vmem>>, vector<32x128xf32>
    tpu.vector_store %arg4[%c0_8, %c0_9], %2 {strides = array<i32>} : memref<32x128xf32, #tpu.memory_space<vmem>>, vector<32x128xf32>,
    return
  }
  func.func @transform_0(%arg0: i32, %arg1: i32) -> (i32, i32) {
    %c0_i32 = arith.constant 0 : i32
    %c0_i32_0 = arith.constant 0 : i32
    return %c0_i32, %arg1 : i32, i32
  }
  func.func @transform_1(%arg0: i32, %arg1: i32) -> (i32, i32) {
    %c0_i32 = arith.constant 0 : i32
    return %arg1, %arg0 : i32, i32
  }
  func.func @transform_2(%arg0: i32, %arg1: i32) -> (i32, i32) {
    %c0_i32 = arith.constant 0 : i32
    %c0_i32_0 = arith.constant 0 : i32
    return %c0_i32, %arg0 : i32, i32
  }
  func.func @transform_3(%arg0: i32, %arg1: i32) -> (i32, i32, i32) {
    %c0_i32 = arith.constant 0 : i32
    %c0_i32_0 = arith.constant 0 : i32
    %c0_i32_1 = arith.constant 0 : i32
    return %arg0, %c0_i32, %c0_i32_0 : i32, i32, i32
  }
}

module attributes {stable_mosaic.version = 11 : i64} {
  func.func @_bn_lrelu_kernel(%arg0: i32, %arg1: memref<32x128xf32, #tpu.memory_space<vmem>>, %arg2: memref<32x2xf32, #tpu.memory_space<vmem>>, %arg3: memref<32x128xbf16, #tpu.memory_space<vmem>>) attributes {dimension_semantics = [#tpu.dimension_semantics<parallel>], iteration_bounds = array<i64: 1>, scalar_prefetch = 0 : i64, scratch_operands = 0 : i64, tpu.core_type = #tpu.core_type<tc>, window_params = [{transform_indices = @transform_0, window_bounds = array<i64: 32, 128>}, {pipeline_mode = #tpu.pipeline_mode<synchronous>, transform_indices = @transform_1, window_bounds = array<i64: 32, 2>}, {transform_indices = @transform_2, window_bounds = array<i64: 32, 128>}]} {
    %c0 = arith.constant 0 : index
    %c0_0 = arith.constant 0 : index
    %0 = vector.load %arg1[%c0, %c0_0] : memref<32x128xf32, #tpu.memory_space<vmem>>, vector<32x128xf32>
    %c0_1 = arith.constant 0 : index
    %c0_2 = arith.constant 0 : index
    %1 = vector.load %arg2[%c0_1, %c0_2] : memref<32x2xf32, #tpu.memory_space<vmem>>, vector<32x1xf32>
    %2 = vector.broadcast %1 : vector<32x1xf32> to vector<32x128xf32>
    %3 = arith.mulf %0, %2 : vector<32x128xf32>
    %c0_3 = arith.constant 0 : index
    %c1 = arith.constant 1 : index
    %4 = vector.load %arg2[%c0_3, %c1] : memref<32x2xf32, #tpu.memory_space<vmem>>, vector<32x1xf32>
    %5 = vector.broadcast %4 : vector<32x1xf32> to vector<32x128xf32>
    %6 = arith.addf %3, %5 : vector<32x128xf32>
    %cst = arith.constant 0.000000e+00 : f32
    %7 = vector.broadcast %cst : f32 to vector<32x128xf32>
    %8 = arith.cmpf oge, %6, %7 : vector<32x128xf32>
    %cst_4 = arith.constant 2.000000e-01 : f32
    %9 = vector.broadcast %cst_4 : f32 to vector<32x128xf32>
    %10 = arith.mulf %9, %6 : vector<32x128xf32>
    %11 = arith.select %8, %6, %10 : vector<32x128xi1>, vector<32x128xf32>
    %12 = arith.truncf %11 : vector<32x128xf32> to vector<32x128xbf16>
    %c0_5 = arith.constant 0 : index
    %c0_6 = arith.constant 0 : index
    %13 = vector.load %arg3[%c0_5, %c0_6] : memref<32x128xbf16, #tpu.memory_space<vmem>>, vector<32x128xbf16>
    tpu.vector_store %arg3[%c0_5, %c0_6], %12 {strides = array<i32>} : memref<32x128xbf16, #tpu.memory_space<vmem>>, vector<32x128xbf16>,
    return
  }
  func.func @transform_0(%arg0: i32) -> (i32, i32) {
    %c0_i32 = arith.constant 0 : i32
    %c0_i32_0 = arith.constant 0 : i32
    return %c0_i32, %arg0 : i32, i32
  }
  func.func @transform_1(%arg0: i32) -> (i32, i32) {
    %c0_i32 = arith.constant 0 : i32
    %c0_i32_0 = arith.constant 0 : i32
    %c0_i32_1 = arith.constant 0 : i32
    return %c0_i32, %c0_i32_0 : i32, i32
  }
  func.func @transform_2(%arg0: i32) -> (i32, i32) {
    %c0_i32 = arith.constant 0 : i32
    %c0_i32_0 = arith.constant 0 : i32
    return %c0_i32, %arg0 : i32, i32
  }
}

module attributes {stable_mosaic.version = 11 : i64} {
  func.func @_conv_mm_kernel(%arg0: i32, %arg1: i32, %arg2: memref<64x2048xbf16, #tpu.memory_space<vmem>>, %arg3: memref<2048x128xbf16, #tpu.memory_space<vmem>>, %arg4: memref<64x128xbf16, #tpu.memory_space<vmem>>, %arg5: memref<1x64x2xf32, #tpu.memory_space<vmem>>) attributes {dimension_semantics = [#tpu.dimension_semantics<parallel>, #tpu.dimension_semantics<arbitrary>], iteration_bounds = array<i64: 1, 1>, scalar_prefetch = 0 : i64, scratch_operands = 0 : i64, tpu.core_type = #tpu.core_type<tc>, window_params = [{transform_indices = @transform_0, window_bounds = array<i64: 64, 2048>}, {transform_indices = @transform_1, window_bounds = array<i64: 2048, 128>}, {transform_indices = @transform_2, window_bounds = array<i64: 64, 128>}, {transform_indices = @transform_3, window_bounds = array<i64: 1, 64, 2>}]} {
    %c0 = arith.constant 0 : index
    %c0_0 = arith.constant 0 : index
    %0 = vector.load %arg2[%c0, %c0_0] : memref<64x2048xbf16, #tpu.memory_space<vmem>>, vector<64x2048xbf16>
    %c0_1 = arith.constant 0 : index
    %c0_2 = arith.constant 0 : index
    %1 = vector.load %arg3[%c0_1, %c0_2] : memref<2048x128xbf16, #tpu.memory_space<vmem>>, vector<2048x128xbf16>
    %cst = arith.constant dense<0.000000e+00> : vector<64x128xf32>
    %2 = tpu.matmul %0, %1, %cst {dimension_numbers = #tpu.dot_dimension_numbers<[1], [0], [0], [1], [0, 0, 1, 1], [], []>} : vector<64x2048xbf16>, vector<2048x128xbf16>, vector<64x128xf32> -> vector<64x128xf32>
    %cst_3 = arith.constant dense<0.000000e+00> : vector<64xf32>
    %3 = vector.multi_reduction <add>, %2, %cst_3 [1] : vector<64x128xf32> to vector<64xf32>
    %4 = vector.shape_cast %3 : vector<64xf32> to vector<64x1xf32>
    %5 = arith.mulf %2, %2 : vector<64x128xf32>
    %cst_4 = arith.constant dense<0.000000e+00> : vector<64xf32>
    %6 = vector.multi_reduction <add>, %5, %cst_4 [1] : vector<64x128xf32> to vector<64xf32>
    %7 = vector.shape_cast %6 : vector<64xf32> to vector<64x1xf32>
    %8 = tpu.concatenate %4, %7 in 1 : vector<64x1xf32>, vector<64x1xf32> -> vector<64x2xf32>
    %9 = vector.shape_cast %8 : vector<64x2xf32> to vector<1x64x2xf32>
    %c0_5 = arith.constant 0 : index
    %c0_6 = arith.constant 0 : index
    %c0_7 = arith.constant 0 : index
    %10 = vector.load %arg5[%c0_5, %c0_6, %c0_7] : memref<1x64x2xf32, #tpu.memory_space<vmem>>, vector<1x64x2xf32>
    tpu.vector_store %arg5[%c0_5, %c0_6, %c0_7], %9 {strides = array<i32>} : memref<1x64x2xf32, #tpu.memory_space<vmem>>, vector<1x64x2xf32>,
    %11 = arith.truncf %2 : vector<64x128xf32> to vector<64x128xbf16>
    %c0_8 = arith.constant 0 : index
    %c0_9 = arith.constant 0 : index
    %12 = vector.load %arg4[%c0_8, %c0_9] : memref<64x128xbf16, #tpu.memory_space<vmem>>, vector<64x128xbf16>
    tpu.vector_store %arg4[%c0_8, %c0_9], %11 {strides = array<i32>} : memref<64x128xbf16, #tpu.memory_space<vmem>>, vector<64x128xbf16>,
    return
  }
  func.func @transform_0(%arg0: i32, %arg1: i32) -> (i32, i32) {
    %c0_i32 = arith.constant 0 : i32
    %c0_i32_0 = arith.constant 0 : i32
    return %c0_i32, %arg1 : i32, i32
  }
  func.func @transform_1(%arg0: i32, %arg1: i32) -> (i32, i32) {
    %c0_i32 = arith.constant 0 : i32
    return %arg1, %arg0 : i32, i32
  }
  func.func @transform_2(%arg0: i32, %arg1: i32) -> (i32, i32) {
    %c0_i32 = arith.constant 0 : i32
    %c0_i32_0 = arith.constant 0 : i32
    return %c0_i32, %arg0 : i32, i32
  }
  func.func @transform_3(%arg0: i32, %arg1: i32) -> (i32, i32, i32) {
    %c0_i32 = arith.constant 0 : i32
    %c0_i32_0 = arith.constant 0 : i32
    %c0_i32_1 = arith.constant 0 : i32
    return %arg0, %c0_i32, %c0_i32_0 : i32, i32, i32
  }
}

module attributes {stable_mosaic.version = 11 : i64} {
  func.func @_bn_lrelu_kernel(%arg0: i32, %arg1: memref<64x128xbf16, #tpu.memory_space<vmem>>, %arg2: memref<64x2xf32, #tpu.memory_space<vmem>>, %arg3: memref<64x128xbf16, #tpu.memory_space<vmem>>) attributes {dimension_semantics = [#tpu.dimension_semantics<parallel>], iteration_bounds = array<i64: 1>, scalar_prefetch = 0 : i64, scratch_operands = 0 : i64, tpu.core_type = #tpu.core_type<tc>, window_params = [{transform_indices = @transform_0, window_bounds = array<i64: 64, 128>}, {pipeline_mode = #tpu.pipeline_mode<synchronous>, transform_indices = @transform_1, window_bounds = array<i64: 64, 2>}, {transform_indices = @transform_2, window_bounds = array<i64: 64, 128>}]} {
    %c0 = arith.constant 0 : index
    %c0_0 = arith.constant 0 : index
    %0 = vector.load %arg1[%c0, %c0_0] : memref<64x128xbf16, #tpu.memory_space<vmem>>, vector<64x128xbf16>
    %1 = arith.extf %0 : vector<64x128xbf16> to vector<64x128xf32>
    %c0_1 = arith.constant 0 : index
    %c0_2 = arith.constant 0 : index
    %2 = vector.load %arg2[%c0_1, %c0_2] : memref<64x2xf32, #tpu.memory_space<vmem>>, vector<64x1xf32>
    %3 = vector.broadcast %2 : vector<64x1xf32> to vector<64x128xf32>
    %4 = arith.mulf %1, %3 : vector<64x128xf32>
    %c0_3 = arith.constant 0 : index
    %c1 = arith.constant 1 : index
    %5 = vector.load %arg2[%c0_3, %c1] : memref<64x2xf32, #tpu.memory_space<vmem>>, vector<64x1xf32>
    %6 = vector.broadcast %5 : vector<64x1xf32> to vector<64x128xf32>
    %7 = arith.addf %4, %6 : vector<64x128xf32>
    %cst = arith.constant 0.000000e+00 : f32
    %8 = vector.broadcast %cst : f32 to vector<64x128xf32>
    %9 = arith.cmpf oge, %7, %8 : vector<64x128xf32>
    %cst_4 = arith.constant 2.000000e-01 : f32
    %10 = vector.broadcast %cst_4 : f32 to vector<64x128xf32>
    %11 = arith.mulf %10, %7 : vector<64x128xf32>
    %12 = arith.select %9, %7, %11 : vector<64x128xi1>, vector<64x128xf32>
    %13 = arith.truncf %12 : vector<64x128xf32> to vector<64x128xbf16>
    %c0_5 = arith.constant 0 : index
    %c0_6 = arith.constant 0 : index
    %14 = vector.load %arg3[%c0_5, %c0_6] : memref<64x128xbf16, #tpu.memory_space<vmem>>, vector<64x128xbf16>
    tpu.vector_store %arg3[%c0_5, %c0_6], %13 {strides = array<i32>} : memref<64x128xbf16, #tpu.memory_space<vmem>>, vector<64x128xbf16>,
    return
  }
  func.func @transform_0(%arg0: i32) -> (i32, i32) {
    %c0_i32 = arith.constant 0 : i32
    %c0_i32_0 = arith.constant 0 : i32
    return %c0_i32, %arg0 : i32, i32
  }
  func.func @transform_1(%arg0: i32) -> (i32, i32) {
    %c0_i32 = arith.constant 0 : i32
    %c0_i32_0 = arith.constant 0 : i32
    %c0_i32_1 = arith.constant 0 : i32
    return %c0_i32, %c0_i32_0 : i32, i32
  }
  func.func @transform_2(%arg0: i32) -> (i32, i32) {
    %c0_i32 = arith.constant 0 : i32
    %c0_i32_0 = arith.constant 0 : i32
    return %c0_i32, %arg0 : i32, i32
  }
}

module attributes {stable_mosaic.version = 11 : i64} {
  func.func @_conv_mm_kernel(%arg0: i32, %arg1: i32, %arg2: memref<8x4096xbf16, #tpu.memory_space<vmem>>, %arg3: memref<4096x128xbf16, #tpu.memory_space<vmem>>, %arg4: memref<8x1xf32, #tpu.memory_space<vmem>>, %arg5: memref<8x128xf32, #tpu.memory_space<vmem>>) attributes {dimension_semantics = [#tpu.dimension_semantics<parallel>, #tpu.dimension_semantics<arbitrary>], iteration_bounds = array<i64: 1, 1>, scalar_prefetch = 0 : i64, scratch_operands = 0 : i64, tpu.core_type = #tpu.core_type<tc>, window_params = [{transform_indices = @transform_0, window_bounds = array<i64: 8, 4096>}, {transform_indices = @transform_1, window_bounds = array<i64: 4096, 128>}, {pipeline_mode = #tpu.pipeline_mode<synchronous>, transform_indices = @transform_2, window_bounds = array<i64: 8, 1>}, {transform_indices = @transform_3, window_bounds = array<i64: 8, 128>}]} {
    %c0 = arith.constant 0 : index
    %c0_0 = arith.constant 0 : index
    %0 = vector.load %arg2[%c0, %c0_0] : memref<8x4096xbf16, #tpu.memory_space<vmem>>, vector<8x4096xbf16>
    %c0_1 = arith.constant 0 : index
    %c0_2 = arith.constant 0 : index
    %1 = vector.load %arg3[%c0_1, %c0_2] : memref<4096x128xbf16, #tpu.memory_space<vmem>>, vector<4096x128xbf16>
    %cst = arith.constant dense<0.000000e+00> : vector<8x128xf32>
    %2 = tpu.matmul %0, %1, %cst {dimension_numbers = #tpu.dot_dimension_numbers<[1], [0], [0], [1], [0, 0, 1, 1], [], []>} : vector<8x4096xbf16>, vector<4096x128xbf16>, vector<8x128xf32> -> vector<8x128xf32>
    %c0_3 = arith.constant 0 : index
    %c0_4 = arith.constant 0 : index
    %3 = vector.load %arg4[%c0_3, %c0_4] : memref<8x1xf32, #tpu.memory_space<vmem>>, vector<8x1xf32>
    %4 = vector.broadcast %3 : vector<8x1xf32> to vector<8x128xf32>
    %5 = arith.addf %2, %4 : vector<8x128xf32>
    %cst_5 = arith.constant 0.000000e+00 : f32
    %6 = vector.broadcast %cst_5 : f32 to vector<8x128xf32>
    %7 = arith.subf %6, %5 : vector<8x128xf32>
    %8 = math.exp %7 : vector<8x128xf32>
    %cst_6 = arith.constant 1.000000e+00 : f32
    %9 = vector.broadcast %cst_6 : f32 to vector<8x128xf32>
    %10 = arith.addf %9, %8 : vector<8x128xf32>
    %11 = tpu.reciprocal %10 {approx = true} : vector<8x128xf32> -> vector<8x128xf32>
    %c0_7 = arith.constant 0 : index
    %c0_8 = arith.constant 0 : index
    %12 = vector.load %arg5[%c0_7, %c0_8] : memref<8x128xf32, #tpu.memory_space<vmem>>, vector<8x128xf32>
    tpu.vector_store %arg5[%c0_7, %c0_8], %11 {strides = array<i32>} : memref<8x128xf32, #tpu.memory_space<vmem>>, vector<8x128xf32>,
    return
  }
  func.func @transform_0(%arg0: i32, %arg1: i32) -> (i32, i32) {
    %c0_i32 = arith.constant 0 : i32
    %c0_i32_0 = arith.constant 0 : i32
    return %c0_i32, %arg1 : i32, i32
  }
  func.func @transform_1(%arg0: i32, %arg1: i32) -> (i32, i32) {
    %c0_i32 = arith.constant 0 : i32
    return %arg1, %arg0 : i32, i32
  }
  func.func @transform_2(%arg0: i32, %arg1: i32) -> (i32, i32) {
    %c0_i32 = arith.constant 0 : i32
    %c0_i32_0 = arith.constant 0 : i32
    %c0_i32_1 = arith.constant 0 : i32
    return %c0_i32, %c0_i32_0 : i32, i32
  }
  func.func @transform_3(%arg0: i32, %arg1: i32) -> (i32, i32) {
    %c0_i32 = arith.constant 0 : i32
    %c0_i32_0 = arith.constant 0 : i32
    return %c0_i32, %arg0 : i32, i32
  }
}

</mosaic_0001>

<llo_original>
// kernel: patch_discriminator_forward.8
$region0: #{patch_discriminator_forward.8}
  #allocation0 [shape = 'u32[]', space=smem, size = 0x4, offset = 0x4, fixed_abs, tag = 'smem constant byte address 0x4 - core index']
  #allocation1 [shape = 'u32[144,128]{1,0:T(1,128)}', space=vmem, size = 0x12000, scoped, tag = 'internal scratch']
  %s0 = inlined_call_operand.vmem [shape: bf16[8,128], index: 0, kind: input, shape index: {}]
  %s1 = inlined_call_operand.vmem [shape: bf16[128,8192], index: 1, kind: input, shape index: {}]
  %s2 = inlined_call_operand.vmem [shape: f32[8,1], index: 2, kind: input, shape index: {}]
  %s3 = inlined_call_operand.vmem [shape: bf16[8,8192], index: 3, kind: output, shape index: {}]
  %s4 = sld [smem:[#allocation0]]
  $region68: #{patch_discriminator_forward.8} parent=0
    _
  %s6 = ssub.s32 1, %s4
  %s7 = scalar_select 0, %s6, %s4
  $region1: #{patch_discriminator_forward.8} parent=0
    #allocation2 [shape = 'u8[1048576]{0}', space=vmem, size = 0x100000, scoped, tag = 'input window, operand 1']
    loop: start=0, step=1, limit=6
    $region2: #{patch_discriminator_forward.8} parent=1 // loop_pre_header
      _
    $region3: #{patch_discriminator_forward.8} parent=1 // loop_header
      %s9 = sphi 0, %s13
      %p10 = scmp.ge.s32.totalorder %s9, 6
      %s16 = sphi 0, %s28
      %s17 = sphi 0, %s24
      %s18 = sphi 0, %s16
      %s19 = sphi 0, %s17
      %s20 = sphi 0, %s18
      %s21 = sphi 0, %s19
      %s31 = sphi 0, %s33
      %s34 = sphi 0, %s31
      %s35 = sphi 0, %s34
      %s51 = sphi 0, %s35
      %s59 = sphi 0, %s61
      %s62 = sphi 0, %s59
      %s63 = sphi 0, %s62
      %s79 = sphi 0, %s63
      %s83 = sphi 0, %s83
      %s85 = sphi 0, %s83
      %s86 = sphi 0, %s85
      %s100 = sphi 0, %s86
      %s106 = sphi 0, %s108
      %s109 = sphi 0, %s106
      %s110 = sphi 0, %s109
      %s126 = sphi 0, %s110
    $region4: #{patch_discriminator_forward.8} parent=1 // loop_header_branch
      %12 = sbr.rel (%p10) target = $region8
    $region5: #{patch_discriminator_forward.8} parent=1 // loop_body
      %s14 = ssub.s32 %s9, 1
      %s15 = ssub.s32 %s9, 2
      %s22 = sadd.s32 1, %s17
      %p23 = scmp.ge.s32.totalorder %s22, 1
      %s24 = scalar_select %p23, 0, %s22
      %s25 = sadd.s32 1, %s16
      %s26 = scalar_select %p23, %s25, %s16
      %p27 = scmp.ge.s32.totalorder %s26, 4
      %s28 = scalar_select %p27, 0, %s26
      %s29 = ssub.s32 %s17, %s24
      %p30 = scmp.eq.s32.totalorder %s29, 0
      %s32 = sadd.s32 %s31, 1
      %s33 = scalar_select %p30, %s31, %s32
      %p36 = pneg %p30
      %p37 = scmp.eq.s32.totalorder %s9, 3
      %p38 = por %p36, %p37
      %p39 = scmp.ne.s32.totalorder %s31, %s34
      %p40 = scmp.eq.s32.totalorder %s9, 0
      %p41 = por %p39, %p40
      %p42 = scmp.ne.s32.totalorder %s31, %s34
      %p43 = scmp.eq.s32.totalorder %s14, 3
      %p44 = por %p42, %p43
      %p45 = scmp.ne.s32.totalorder %s34, %s35
      %p46 = scmp.eq.s32.totalorder %s14, 0
      %p47 = por %p45, %p46
      %p48 = scmp.ne.s32.totalorder %s34, %s35
      %p49 = scmp.eq.s32.totalorder %s15, 3
      %p50 = por %p48, %p49
      %p52 = scmp.ne.s32.totalorder %s35, %s51
      %p53 = scmp.eq.s32.totalorder %s15, 0
      %p54 = por %p52, %p53
      %s55 = ssub.s32 %s17, %s24
      %s56 = ssub.s32 %s16, %s28
      %s57 = sor.u32 %s55, %s56
      %p58 = scmp.eq.s32.totalorder %s57, 0
      %s60 = sadd.s32 %s59, 1
      %s61 = scalar_select %p58, %s59, %s60
      %p64 = pneg %p58
      %p65 = scmp.eq.s32.totalorder %s9, 3
      %p66 = por %p64, %p65
      %p67 = scmp.ne.s32.totalorder %s59, %s62
      %p68 = scmp.eq.s32.totalorder %s9, 0
      %p69 = por %p67, %p68
      %p70 = scmp.ne.s32.totalorder %s59, %s62
      %p71 = scmp.eq.s32.totalorder %s14, 3
      %p72 = por %p70, %p71
      %p73 = scmp.ne.s32.totalorder %s62, %s63
      %p74 = scmp.eq.s32.totalorder %s14, 0
      %p75 = por %p73, %p74
      %p76 = scmp.ne.s32.totalorder %s62, %s63
      %p77 = scmp.eq.s32.totalorder %s15, 3
      %p78 = por %p76, %p77
      %p80 = scmp.ne.s32.totalorder %s63, %s79
      %p81 = scmp.eq.s32.totalorder %s15, 0
      %p82 = por %p80, %p81
      %s84 = sadd.s32 %s83, 1
      %p87 = scmp.eq.s32.totalorder %s9, 3
      %p88 = scmp.ne.s32.totalorder %s83, %s85
      %p89 = scmp.eq.s32.totalorder %s9, 0
      %p90 = por %p88, %p89
      %p91 = scmp.ne.s32.totalorder %s83, %s85
      %p92 = scmp.eq.s32.totalorder %s14, 3
      %p93 = por %p91, %p92
      %p94 = scmp.ne.s32.totalorder %s85, %s86
      %p95 = scmp.eq.s32.totalorder %s14, 0
      %p96 = por %p94, %p95
      %p97 = scmp.ne.s32.totalorder %s85, %s86
      %p98 = scmp.eq.s32.totalorder %s15, 3
      %p99 = por %p97, %p98
      %p101 = scmp.ne.s32.totalorder %s86, %s100
      %p102 = scmp.eq.s32.totalorder %s15, 0
      %p103 = por %p101, %p102
      %s104 = ssub.s32 %s16, %s28
      %p105 = scmp.eq.s32.totalorder %s104, 0
      %s107 = sadd.s32 %s106, 1
      %s108 = scalar_select %p105, %s106, %s107
      %p111 = pneg %p105
      %p112 = scmp.eq.s32.totalorder %s9, 3
      %p113 = por %p111, %p112
      %p114 = scmp.ne.s32.totalorder %s106, %s109
      %p115 = scmp.eq.s32.totalorder %s9, 0
      %p116 = por %p114, %p115
      %p117 = scmp.ne.s32.totalorder %s106, %s109
      %p118 = scmp.eq.s32.totalorder %s14, 3
      %p119 = por %p117, %p118
      %p120 = scmp.ne.s32.totalorder %s109, %s110
      %p121 = scmp.eq.s32.totalorder %s14, 0
      %p122 = por %p120, %p121
      %p123 = scmp.ne.s32.totalorder %s109, %s110
      %p124 = scmp.eq.s32.totalorder %s15, 3
      %p125 = por %p123, %p124
      %p127 = scmp.ne.s32.totalorder %s110, %s126
      %p128 = scmp.eq.s32.totalorder %s15, 0
      %p129 = por %p127, %p128
      %p130 = scmp.le.s32.totalorder 1, %s9
      %p131 = scmp.lt.s32.totalorder %s9, 5
      %p132 = pnand %p130, %p131
      %p133 = pneg %p132
      // Predicated region
      $region9: #{patch_discriminator_forward.8} parent=5 // pred_check
        _
      $region10: #{patch_discriminator_forward.8} parent=5 // pred_check_branch
        %135 = sbr.rel (%p132) target = $region12
      $region11: #{patch_discriminator_forward.8} parent=5 // pred_region
        %s136 = ssub.s32 %s9, 1
        // Predicated region
        $region13: #{patch_discriminator_forward.8} parent=11 // pred_check
          %p137 = pneg %p47
        $region14: #{patch_discriminator_forward.8} parent=11 // pred_check_branch
          %139 = sbr.rel (%p137) target = $region16
        $region15: #{patch_discriminator_forward.8} parent=11 // pred_region
          %p140 = scmp.lt.s32.totalorder %s19, 0
          %s141 = scalar_select %p140, %s19, 0
          %s142 = smul.addr %s141, 4
          %s143 = scalar_lea.vmem %s0, %s142
        $region16: #{patch_discriminator_forward.8} parent=11 // pred_fallthru
          _
        // Predicated region
        $region17: #{patch_discriminator_forward.8} parent=11 // pred_check
          %p144 = pneg %p96
        $region18: #{patch_discriminator_forward.8} parent=11 // pred_check_branch
          %146 = sbr.rel (%p144) target = $region20
        $region19: #{patch_discriminator_forward.8} parent=11 // pred_region
          _
        $region20: #{patch_discriminator_forward.8} parent=11 // pred_fallthru
          _
      $region12: #{patch_discriminator_forward.8} parent=5 // pred_fallthru
        _
      %p147 = scmp.lt.s32.totalorder %s9, 4
      // Predicated region
      $region21: #{patch_discriminator_forward.8} parent=5 // pred_check
        %p148 = pneg %p147
      $region22: #{patch_discriminator_forward.8} parent=5 // pred_check_branch
        %150 = sbr.rel (%p148) target = $region24
      $region23: #{patch_discriminator_forward.8} parent=5 // pred_region
        // Predicated region
        $region25: #{patch_discriminator_forward.8} parent=23 // pred_check
          %p151 = pneg %p69
        $region26: #{patch_discriminator_forward.8} parent=23 // pred_check_branch
          %153 = sbr.rel (%p151) target = $region28
        $region27: #{patch_discriminator_forward.8} parent=23 // pred_region
          %s154 = sand.u32 %s59, 1
          %s155 = sand.u32 %s59, 1
          %s156 = smul.addr %s155, 1024
          %s157 = scalar_lea.vmem [#allocation2], %s156
          %s158 = smul.u32 16, %s17
          %s159 = smul.u32 16, %s16
          %s160 = smul.addr %s158, 64
          %s161 = sadd.s32 %s159, %s160
          %s162 = smul.addr %s161, 4
          %s163 = scalar_lea.vmem %s1, %s162
          // Predicated region
          $region29: #{patch_discriminator_forward.8} parent=27 // pred_check
            _
          $region30: #{patch_discriminator_forward.8} parent=27 // pred_check_branch
            %165 = sbr.rel (0) target = $region32
          $region31: #{patch_discriminator_forward.8} parent=27 // pred_region
            // Predicated region
            $region33: #{patch_discriminator_forward.8} parent=31 // pred_check
              _
            $region34: #{patch_discriminator_forward.8} parent=31 // pred_check_branch
              %167 = sbr.rel (0) target = $region36
            $region35: #{patch_discriminator_forward.8} parent=31 // pred_region
              loop: start=0, step=1, limit=1
              $region37: #{patch_discriminator_forward.8} parent=35 // loop_pre_header
                _
              $region38: #{patch_discriminator_forward.8} parent=35 // loop_header
                %s169 = sphi 0, %s173
                %p170 = scmp.ge.s32.totalorder %s169, 1
                %s174 = sphi %s163, %s163
                %s175 = sphi %s157, %s157
              $region39: #{patch_discriminator_forward.8} parent=35 // loop_header_branch
                %172 = sbr.rel (%p170) target = $region43
              $region40: #{patch_discriminator_forward.8} parent=35 // loop_body
                %v176 = vld [vmem:[%s174] sm:$0xff]
                %177 = vst [vmem:[%s175] sm:$0xff] %v176
                %v178 = vld [vmem:[%s174 + $0x8] sm:$0xff]
                %179 = vst [vmem:[%s175 + $0x8] sm:$0xff] %v178
                %v180 = vld [vmem:[%s174 + $0x10] sm:$0xff]
                %181 = vst [vmem:[%s175 + $0x10] sm:$0xff] %v180
                %v182 = vld [vmem:[%s174 + $0x18] sm:$0xff]
                %183 = vst [vmem:[%s175 + $0x18] sm:$0xff] %v182
                %v184 = vld [vmem:[%s174 + $0x20] sm:$0xff]
                %185 = vst [vmem:[%s175 + $0x20] sm:$0xff] %v184
                %v186 = vld [vmem:[%s174 + $0x28] sm:$0xff]
                %187 = vst [vmem:[%s175 + $0x28] sm:$0xff] %v186
                %v188 = vld [vmem:[%s174 + $0x30] sm:$0xff]
                %189 = vst [vmem:[%s175 + $0x30] sm:$0xff] %v188
                %v190 = vld [vmem:[%s174 + $0x38] sm:$0xff]
                %191 = vst [vmem:[%s175 + $0x38] sm:$0xff] %v190
                %v192 = vld [vmem:[%s174 + $0x100] sm:$0xff]
                %193 = vst [vmem:[%s175 + $0x40] sm:$0xff] %v192
                %v194 = vld [vmem:[%s174 + $0x108] sm:$0xff]
                %195 = vst [vmem:[%s175 + $0x48] sm:$0xff] %v194
                %v196 = vld [vmem:[%s174 + $0x110] sm:$0xff]
                %197 = vst [vmem:[%s175 + $0x50] sm:$0xff] %v196
                %v198 = vld [vmem:[%s174 + $0x118] sm:$0xff]
                %199 = vst [vmem:[%s175 + $0x58] sm:$0xff] %v198
                %v200 = vld [vmem:[%s174 + $0x120] sm:$0xff]
                %201 = vst [vmem:[%s175 + $0x60] sm:$0xff] %v200
                %v202 = vld [vmem:[%s174 + $0x128] sm:$0xff]
                %203 = vst [vmem:[%s175 + $0x68] sm:$0xff] %v202
                %v204 = vld [vmem:[%s174 + $0x130] sm:$0xff]
                %205 = vst [vmem:[%s175 + $0x70] sm:$0xff] %v204
                %v206 = vld [vmem:[%s174 + $0x138] sm:$0xff]
                %207 = vst [vmem:[%s175 + $0x78] sm:$0xff] %v206
                %v208 = vld [vmem:[%s174 + $0x200] sm:$0xff]
                %209 = vst [vmem:[%s175 + $0x80] sm:$0xff] %v208
                %v210 = vld [vmem:[%s174 + $0x208] sm:$0xff]
                %211 = vst [vmem:[%s175 + $0x88] sm:$0xff] %v210
                %v212 = vld [vmem:[%s174 + $0x210] sm:$0xff]
                %213 = vst [vmem:[%s175 + $0x90] sm:$0xff] %v212
                %v214 = vld [vmem:[%s174 + $0x218] sm:$0xff]
                %215 = vst [vmem:[%s175 + $0x98] sm:$0xff] %v214
                %v216 = vld [vmem:[%s174 + $0x220] sm:$0xff]
                %217 = vst [vmem:[%s175 + $0xa0] sm:$0xff] %v216
                %v218 = vld [vmem:[%s174 + $0x228] sm:$0xff]
                %219 = vst [vmem:[%s175 + $0xa8] sm:$0xff] %v218
                %v220 = vld [vmem:[%s174 + $0x230] sm:$0xff]
                %221 = vst [vmem:[%s175 + $0xb0] sm:$0xff] %v220
                %v222 = vld [vmem:[%s174 + $0x238] sm:$0xff]
                %223 = vst [vmem:[%s175 + $0xb8] sm:$0xff] %v222
                %v224 = vld [vmem:[%s174 + $0x300] sm:$0xff]
                %225 = vst [vmem:[%s175 + $0xc0] sm:$0xff] %v224
                %v226 = vld [vmem:[%s174 + $0x308] sm:$0xff]
                %227 = vst [vmem:[%s175 + $0xc8] sm:$0xff] %v226
                %v228 = vld [vmem:[%s174 + $0x310] sm:$0xff]
                %229 = vst [vmem:[%s175 + $0xd0] sm:$0xff] %v228
                %v230 = vld [vmem:[%s174 + $0x318] sm:$0xff]
                %231 = vst [vmem:[%s175 + $0xd8] sm:$0xff] %v230
                %v232 = vld [vmem:[%s174 + $0x320] sm:$0xff]
                %233 = vst [vmem:[%s175 + $0xe0] sm:$0xff] %v232
                %v234 = vld [vmem:[%s174 + $0x328] sm:$0xff]
                %235 = vst [vmem:[%s175 + $0xe8] sm:$0xff] %v234
                %v236 = vld [vmem:[%s174 + $0x330] sm:$0xff]
                %237 = vst [vmem:[%s175 + $0xf0] sm:$0xff] %v236
                %v238 = vld [vmem:[%s174 + $0x338] sm:$0xff]
                %239 = vst [vmem:[%s175 + $0xf8] sm:$0xff] %v238
                %v240 = vld [vmem:[%s174 + $0x400] sm:$0xff]
                %241 = vst [vmem:[%s175 + $0x100] sm:$0xff] %v240
                %v242 = vld [vmem:[%s174 + $0x408] sm:$0xff]
                %243 = vst [vmem:[%s175 + $0x108] sm:$0xff] %v242
                %v244 = vld [vmem:[%s174 + $0x410] sm:$0xff]
                %245 = vst [vmem:[%s175 + $0x110] sm:$0xff] %v244
                %v246 = vld [vmem:[%s174 + $0x418] sm:$0xff]
                %247 = vst [vmem:[%s175 + $0x118] sm:$0xff] %v246
                %v248 = vld [vmem:[%s174 + $0x420] sm:$0xff]
                %249 = vst [vmem:[%s175 + $0x120] sm:$0xff] %v248
                %v250 = vld [vmem:[%s174 + $0x428] sm:$0xff]
                %251 = vst [vmem:[%s175 + $0x128] sm:$0xff] %v250
                %v252 = vld [vmem:[%s174 + $0x430] sm:$0xff]
                %253 = vst [vmem:[%s175 + $0x130] sm:$0xff] %v252
                %v254 = vld [vmem:[%s174 + $0x438] sm:$0xff]
                %255 = vst [vmem:[%s175 + $0x138] sm:$0xff] %v254
                %v256 = vld [vmem:[%s174 + $0x500] sm:$0xff]
                %257 = vst [vmem:[%s175 + $0x140] sm:$0xff] %v256
                %v258 = vld [vmem:[%s174 + $0x508] sm:$0xff]
                %259 = vst [vmem:[%s175 + $0x148] sm:$0xff] %v258
                %v260 = vld [vmem:[%s174 + $0x510] sm:$0xff]
                %261 = vst [vmem:[%s175 + $0x150] sm:$0xff] %v260
                %v262 = vld [vmem:[%s174 + $0x518] sm:$0xff]
                %263 = vst [vmem:[%s175 + $0x158] sm:$0xff] %v262
                %v264 = vld [vmem:[%s174 + $0x520] sm:$0xff]
                %265 = vst [vmem:[%s175 + $0x160] sm:$0xff] %v264
                %v266 = vld [vmem:[%s174 + $0x528] sm:$0xff]
                %267 = vst [vmem:[%s175 + $0x168] sm:$0xff] %v266
                %v268 = vld [vmem:[%s174 + $0x530] sm:$0xff]
                %269 = vst [vmem:[%s175 + $0x170] sm:$0xff] %v268
                %v270 = vld [vmem:[%s174 + $0x538] sm:$0xff]
                %271 = vst [vmem:[%s175 + $0x178] sm:$0xff] %v270
                %v272 = vld [vmem:[%s174 + $0x600] sm:$0xff]
                %273 = vst [vmem:[%s175 + $0x180] sm:$0xff] %v272
                %v274 = vld [vmem:[%s174 + $0x608] sm:$0xff]
                %275 = vst [vmem:[%s175 + $0x188] sm:$0xff] %v274
                %v276 = vld [vmem:[%s174 + $0x610] sm:$0xff]
                %277 = vst [vmem:[%s175 + $0x190] sm:$0xff] %v276
                %v278 = vld [vmem:[%s174 + $0x618] sm:$0xff]
                %279 = vst [vmem:[%s175 + $0x198] sm:$0xff] %v278
                %v280 = vld [vmem:[%s174 + $0x620] sm:$0xff]
                %281 = vst [vmem:[%s175 + $0x1a0] sm:$0xff] %v280
                %v282 = vld [vmem:[%s174 + $0x628] sm:$0xff]
                %283 = vst [vmem:[%s175 + $0x1a8] sm:$0xff] %v282
                %v284 = vld [vmem:[%s174 + $0x630] sm:$0xff]
                %285 = vst [vmem:[%s175 + $0x1b0] sm:$0xff] %v284
                %v286 = vld [vmem:[%s174 + $0x638] sm:$0xff]
                %287 = vst [vmem:[%s175 + $0x1b8] sm:$0xff] %v286
                %v288 = vld [vmem:[%s174 + $0x700] sm:$0xff]
                %289 = vst [vmem:[%s175 + $0x1c0] sm:$0xff] %v288
                %v290 = vld [vmem:[%s174 + $0x708] sm:$0xff]
                %291 = vst [vmem:[%s175 + $0x1c8] sm:$0xff] %v290
                %v292 = vld [vmem:[%s174 + $0x710] sm:$0xff]
                %293 = vst [vmem:[%s175 + $0x1d0] sm:$0xff] %v292
                %v294 = vld [vmem:[%s174 + $0x718] sm:$0xff]
                %295 = vst [vmem:[%s175 + $0x1d8] sm:$0xff] %v294
                %v296 = vld [vmem:[%s174 + $0x720] sm:$0xff]
                %297 = vst [vmem:[%s175 + $0x1e0] sm:$0xff] %v296
                %v298 = vld [vmem:[%s174 + $0x728] sm:$0xff]
                %299 = vst [vmem:[%s175 + $0x1e8] sm:$0xff] %v298
                %v300 = vld [vmem:[%s174 + $0x730] sm:$0xff]
                %301 = vst [vmem:[%s175 + $0x1f0] sm:$0xff] %v300
                %v302 = vld [vmem:[%s174 + $0x738] sm:$0xff]
                %303 = vst [vmem:[%s175 + $0x1f8] sm:$0xff] %v302
                %v304 = vld [vmem:[%s174 + $0x800] sm:$0xff]
                %305 = vst [vmem:[%s175 + $0x200] sm:$0xff] %v304
                %v306 = vld [vmem:[%s174 + $0x808] sm:$0xff]
                %307 = vst [vmem:[%s175 + $0x208] sm:$0xff] %v306
                %v308 = vld [vmem:[%s174 + $0x810] sm:$0xff]
                %309 = vst [vmem:[%s175 + $0x210] sm:$0xff] %v308
                %v310 = vld [vmem:[%s174 + $0x818] sm:$0xff]
                %311 = vst [vmem:[%s175 + $0x218] sm:$0xff] %v310
                %v312 = vld [vmem:[%s174 + $0x820] sm:$0xff]
                %313 = vst [vmem:[%s175 + $0x220] sm:$0xff] %v312
                %v314 = vld [vmem:[%s174 + $0x828] sm:$0xff]
                %315 = vst [vmem:[%s175 + $0x228] sm:$0xff] %v314
                %v316 = vld [vmem:[%s174 + $0x830] sm:$0xff]
                %317 = vst [vmem:[%s175 + $0x230] sm:$0xff] %v316
                %v318 = vld [vmem:[%s174 + $0x838] sm:$0xff]
                %319 = vst [vmem:[%s175 + $0x238] sm:$0xff] %v318
                %v320 = vld [vmem:[%s174 + $0x900] sm:$0xff]
                %321 = vst [vmem:[%s175 + $0x240] sm:$0xff] %v320
                %v322 = vld [vmem:[%s174 + $0x908] sm:$0xff]
                %323 = vst [vmem:[%s175 + $0x248] sm:$0xff] %v322
                %v324 = vld [vmem:[%s174 + $0x910] sm:$0xff]
                %325 = vst [vmem:[%s175 + $0x250] sm:$0xff] %v324
                %v326 = vld [vmem:[%s174 + $0x918] sm:$0xff]
                %327 = vst [vmem:[%s175 + $0x258] sm:$0xff] %v326
                %v328 = vld [vmem:[%s174 + $0x920] sm:$0xff]
                %329 = vst [vmem:[%s175 + $0x260] sm:$0xff] %v328
                %v330 = vld [vmem:[%s174 + $0x928] sm:$0xff]
                %331 = vst [vmem:[%s175 + $0x268] sm:$0xff] %v330
                %v332 = vld [vmem:[%s174 + $0x930] sm:$0xff]
                %333 = vst [vmem:[%s175 + $0x270] sm:$0xff] %v332
                %v334 = vld [vmem:[%s174 + $0x938] sm:$0xff]
                %335 = vst [vmem:[%s175 + $0x278] sm:$0xff] %v334
                %v336 = vld [vmem:[%s174 + $0xa00] sm:$0xff]
                %337 = vst [vmem:[%s175 + $0x280] sm:$0xff] %v336
                %v338 = vld [vmem:[%s174 + $0xa08] sm:$0xff]
                %339 = vst [vmem:[%s175 + $0x288] sm:$0xff] %v338
                %v340 = vld [vmem:[%s174 + $0xa10] sm:$0xff]
                %341 = vst [vmem:[%s175 + $0x290] sm:$0xff] %v340
                %v342 = vld [vmem:[%s174 + $0xa18] sm:$0xff]
                %343 = vst [vmem:[%s175 + $0x298] sm:$0xff] %v342
                %v344 = vld [vmem:[%s174 + $0xa20] sm:$0xff]
                %345 = vst [vmem:[%s175 + $0x2a0] sm:$0xff] %v344
                %v346 = vld [vmem:[%s174 + $0xa28] sm:$0xff]
                %347 = vst [vmem:[%s175 + $0x2a8] sm:$0xff] %v346
                %v348 = vld [vmem:[%s174 + $0xa30] sm:$0xff]
                %349 = vst [vmem:[%s175 + $0x2b0] sm:$0xff] %v348
                %v350 = vld [vmem:[%s174 + $0xa38] sm:$0xff]
                %351 = vst [vmem:[%s175 + $0x2b8] sm:$0xff] %v350
                %v352 = vld [vmem:[%s174 + $0xb00] sm:$0xff]
                %353 = vst [vmem:[%s175 + $0x2c0] sm:$0xff] %v352
                %v354 = vld [vmem:[%s174 + $0xb08] sm:$0xff]
                %355 = vst [vmem:[%s175 + $0x2c8] sm:$0xff] %v354
                %v356 = vld [vmem:[%s174 + $0xb10] sm:$0xff]
                %357 = vst [vmem:[%s175 + $0x2d0] sm:$0xff] %v356
                %v358 = vld [vmem:[%s174 + $0xb18] sm:$0xff]
                %359 = vst [vmem:[%s175 + $0x2d8] sm:$0xff] %v358
                %v360 = vld [vmem:[%s174 + $0xb20] sm:$0xff]
                %361 = vst [vmem:[%s175 + $0x2e0] sm:$0xff] %v360
                %v362 = vld [vmem:[%s174 + $0xb28] sm:$0xff]
                %363 = vst [vmem:[%s175 + $0x2e8] sm:$0xff] %v362
                %v364 = vld [vmem:[%s174 + $0xb30] sm:$0xff]
                %365 = vst [vmem:[%s175 + $0x2f0] sm:$0xff] %v364
                %v366 = vld [vmem:[%s174 + $0xb38] sm:$0xff]
                %367 = vst [vmem:[%s175 + $0x2f8] sm:$0xff] %v366
                %v368 = vld [vmem:[%s174 + $0xc00] sm:$0xff]
                %369 = vst [vmem:[%s175 + $0x300] sm:$0xff] %v368
                %v370 = vld [vmem:[%s174 + $0xc08] sm:$0xff]
                %371 = vst [vmem:[%s175 + $0x308] sm:$0xff] %v370
                %v372 = vld [vmem:[%s174 + $0xc10] sm:$0xff]
                %373 = vst [vmem:[%s175 + $0x310] sm:$0xff] %v372
                %v374 = vld [vmem:[%s174 + $0xc18] sm:$0xff]
                %375 = vst [vmem:[%s175 + $0x318] sm:$0xff] %v374
                %v376 = vld [vmem:[%s174 + $0xc20] sm:$0xff]
                %377 = vst [vmem:[%s175 + $0x320] sm:$0xff] %v376
                %v378 = vld [vmem:[%s174 + $0xc28] sm:$0xff]
                %379 = vst [vmem:[%s175 + $0x328] sm:$0xff] %v378
                %v380 = vld [vmem:[%s174 + $0xc30] sm:$0xff]
                %381 = vst [vmem:[%s175 + $0x330] sm:$0xff] %v380
                %v382 = vld [vmem:[%s174 + $0xc38] sm:$0xff]
                %383 = vst [vmem:[%s175 + $0x338] sm:$0xff] %v382
                %v384 = vld [vmem:[%s174 + $0xd00] sm:$0xff]
                %385 = vst [vmem:[%s175 + $0x340] sm:$0xff] %v384
                %v386 = vld [vmem:[%s174 + $0xd08] sm:$0xff]
                %387 = vst [vmem:[%s175 + $0x348] sm:$0xff] %v386
                %v388 = vld [vmem:[%s174 + $0xd10] sm:$0xff]
                %389 = vst [vmem:[%s175 + $0x350] sm:$0xff] %v388
                %v390 = vld [vmem:[%s174 + $0xd18] sm:$0xff]
                %391 = vst [vmem:[%s175 + $0x358] sm:$0xff] %v390
                %v392 = vld [vmem:[%s174 + $0xd20] sm:$0xff]
                %393 = vst [vmem:[%s175 + $0x360] sm:$0xff] %v392
                %v394 = vld [vmem:[%s174 + $0xd28] sm:$0xff]
                %395 = vst [vmem:[%s175 + $0x368] sm:$0xff] %v394
                %v396 = vld [vmem:[%s174 + $0xd30] sm:$0xff]
                %397 = vst [vmem:[%s175 + $0x370] sm:$0xff] %v396
                %v398 = vld [vmem:[%s174 + $0xd38] sm:$0xff]
                %399 = vst [vmem:[%s175 + $0x378] sm:$0xff] %v398
                %v400 = vld [vmem:[%s174 + $0xe00] sm:$0xff]
                %401 = vst [vmem:[%s175 + $0x380] sm:$0xff] %v400
                %v402 = vld [vmem:[%s174 + $0xe08] sm:$0xff]
                %403 = vst [vmem:[%s175 + $0x388] sm:$0xff] %v402
                %v404 = vld [vmem:[%s174 + $0xe10] sm:$0xff]
                %405 = vst [vmem:[%s175 + $0x390] sm:$0xff] %v404
                %v406 = vld [vmem:[%s174 + $0xe18] sm:$0xff]
                %407 = vst [vmem:[%s175 + $0x398] sm:$0xff] %v406
                %v408 = vld [vmem:[%s174 + $0xe20] sm:$0xff]
                %409 = vst [vmem:[%s175 + $0x3a0] sm:$0xff] %v408
                %v410 = vld [vmem:[%s174 + $0xe28] sm:$0xff]
                %411 = vst [vmem:[%s175 + $0x3a8] sm:$0xff] %v410
                %v412 = vld [vmem:[%s174 + $0xe30] sm:$0xff]
                %413 = vst [vmem:[%s175 + $0x3b0] sm:$0xff] %v412
                %v414 = vld [vmem:[%s174 + $0xe38] sm:$0xff]
                %415 = vst [vmem:[%s175 + $0x3b8] sm:$0xff] %v414
                %v416 = vld [vmem:[%s174 + $0xf00] sm:$0xff]
                %417 = vst [vmem:[%s175 + $0x3c0] sm:$0xff] %v416
                %v418 = vld [vmem:[%s174 + $0xf08] sm:$0xff]
                %419 = vst [vmem:[%s175 + $0x3c8] sm:$0xff] %v418
                %v420 = vld [vmem:[%s174 + $0xf10] sm:$0xff]
                %421 = vst [vmem:[%s175 + $0x3d0] sm:$0xff] %v420
                %v422 = vld [vmem:[%s174 + $0xf18] sm:$0xff]
                %423 = vst [vmem:[%s175 + $0x3d8] sm:$0xff] %v422
                %v424 = vld [vmem:[%s174 + $0xf20] sm:$0xff]
                %425 = vst [vmem:[%s175 + $0x3e0] sm:$0xff] %v424
                %v426 = vld [vmem:[%s174 + $0xf28] sm:$0xff]
                %427 = vst [vmem:[%s175 + $0x3e8] sm:$0xff] %v426
                %v428 = vld [vmem:[%s174 + $0xf30] sm:$0xff]
                %429 = vst [vmem:[%s175 + $0x3f0] sm:$0xff] %v428
                %v430 = vld [vmem:[%s174 + $0xf38] sm:$0xff]
                %431 = vst [vmem:[%s175 + $0x3f8] sm:$0xff] %v430
              $region41: #{patch_discriminator_forward.8} parent=35 // loop_footer
                %s173 = sadd.s32 1, %s169
              $region42: #{patch_discriminator_forward.8} parent=35 // loop_footer_branch
                %168 = sbr.rel target = $region38
              $region43: #{patch_discriminator_forward.8} parent=35 // loop_exit
                _
            $region36: #{patch_discriminator_forward.8} parent=31 // pred_fallthru
              _
            // Predicated region
            $region44: #{patch_discriminator_forward.8} parent=31 // pred_check
              _
            $region45: #{patch_discriminator_forward.8} parent=31 // pred_check_branch
              %433 = sbr.rel target = $region47
            $region46: #{patch_discriminator_forward.8} parent=31 // pred_region
              _
            $region47: #{patch_discriminator_forward.8} parent=31 // pred_fallthru
              _
          $region32: #{patch_discriminator_forward.8} parent=27 // pred_fallthru
            _
          %434 = vnop
        $region28: #{patch_discriminator_forward.8} parent=23 // pred_fallthru
          _
      $region24: #{patch_discriminator_forward.8} parent=5 // pred_fallthru
        _
      %p435 = scmp.le.s32.totalorder 1, %s9
      %p436 = scmp.lt.s32.totalorder %s9, 5
      %p437 = pnand %p435, %p436
      %p438 = pneg %p437
      // Predicated region
      $region48: #{patch_discriminator_forward.8} parent=5 // pred_check
        _
      $region49: #{patch_discriminator_forward.8} parent=5 // pred_check_branch
        %440 = sbr.rel (%p437) target = $region51
      $region50: #{patch_discriminator_forward.8} parent=5 // pred_region
        %s441 = ssub.s32 %s9, 1
        %s442 = sand.u32 %s62, 1
        %s443 = sand.u32 %s62, 1
        %s444 = smul.addr %s443, 1024
        %s445 = scalar_lea.vmem [#allocation2], %s444
        // Predicated region
        $region52: #{patch_discriminator_forward.8} parent=50 // pred_check
          %p446 = pneg %p75
        $region53: #{patch_discriminator_forward.8} parent=50 // pred_check_branch
          %448 = sbr.rel (%p446) target = $region55
        $region54: #{patch_discriminator_forward.8} parent=50 // pred_region
          _
        $region55: #{patch_discriminator_forward.8} parent=50 // pred_fallthru
          _
        %p449 = scmp.lt.s32.totalorder %s19, 0
        %s450 = scalar_select %p449, %s19, 0
        %s451 = smul.addr %s450, 4
        %s452 = scalar_lea.vmem %s0, %s451
        %p453 = pneg %p47
        %p454 = pneg %p44
        %s455 = sand.u32 %s62, 1
        %s456 = sand.u32 %s62, 1
        %s457 = smul.addr %s456, 1024
        %s458 = scalar_lea.vmem [#allocation2], %s457
        %p459 = pneg %p75
        %p460 = pneg %p72
        %p461 = pneg %p96
        %p462 = pneg %p93
        %p463 = pneg %p122
        %p464 = pneg %p119
        %s465 = smul.u32 16, %s18
        %p466 = scmp.lt.s32.totalorder %s465, 63
        %s467 = scalar_select %p466, %s465, 63
        %s468 = smul.addr %s467, 4
        %s469 = scalar_lea.vmem %s3, %s468
        %p470 = scmp.lt.s32.totalorder %s19, 0
        %s471 = scalar_select %p470, %s19, 0
        %s472 = smul.addr %s471, 4
        %s473 = scalar_lea.vmem %s0, %s472
        %s474 = smul.u32 16, %s19
        %s475 = smul.u32 16, %s18
        %s476 = smul.u32 16, %s18
        %p477 = scmp.lt.s32.totalorder %s476, 63
        %s478 = scalar_select %p477, %s476, 63
        %s479 = smul.addr %s478, 4
        %s480 = scalar_lea.vmem %s3, %s479
        %s481 = smul.u32 16, %s18
        %v483 = vld [vmem:[%s473] sm:$0xf]
        %v484 = vld [vmem:[%s445] sm:$0xff]
        %v485 = vld [vmem:[%s445 + $0x8] sm:$0xff]
        %v486 = vld [vmem:[%s445 + $0x10] sm:$0xff]
        %v487 = vld [vmem:[%s445 + $0x18] sm:$0xff]
        %v488 = vld [vmem:[%s445 + $0x20] sm:$0xff]
        %v489 = vld [vmem:[%s445 + $0x28] sm:$0xff]
        %v490 = vld [vmem:[%s445 + $0x30] sm:$0xff]
        %v491 = vld [vmem:[%s445 + $0x38] sm:$0xff]
        %v492 = vld [vmem:[%s445 + $0x40] sm:$0xff]
        %v493 = vld [vmem:[%s445 + $0x48] sm:$0xff]
        %v494 = vld [vmem:[%s445 + $0x50] sm:$0xff]
        %v495 = vld [vmem:[%s445 + $0x58] sm:$0xff]
        %v496 = vld [vmem:[%s445 + $0x60] sm:$0xff]
        %v497 = vld [vmem:[%s445 + $0x68] sm:$0xff]
        %v498 = vld [vmem:[%s445 + $0x70] sm:$0xff]
        %v499 = vld [vmem:[%s445 + $0x78] sm:$0xff]
        %v500 = vld [vmem:[%s445 + $0x80] sm:$0xff]
        %v501 = vld [vmem:[%s445 + $0x88] sm:$0xff]
        %v502 = vld [vmem:[%s445 + $0x90] sm:$0xff]
        %v503 = vld [vmem:[%s445 + $0x98] sm:$0xff]
        %v504 = vld [vmem:[%s445 + $0xa0] sm:$0xff]
        %v505 = vld [vmem:[%s445 + $0xa8] sm:$0xff]
        %v506 = vld [vmem:[%s445 + $0xb0] sm:$0xff]
        %v507 = vld [vmem:[%s445 + $0xb8] sm:$0xff]
        %v508 = vld [vmem:[%s445 + $0xc0] sm:$0xff]
        %v509 = vld [vmem:[%s445 + $0xc8] sm:$0xff]
        %v510 = vld [vmem:[%s445 + $0xd0] sm:$0xff]
        %v511 = vld [vmem:[%s445 + $0xd8] sm:$0xff]
        %v512 = vld [vmem:[%s445 + $0xe0] sm:$0xff]
        %v513 = vld [vmem:[%s445 + $0xe8] sm:$0xff]
        %v514 = vld [vmem:[%s445 + $0xf0] sm:$0xff]
        %v515 = vld [vmem:[%s445 + $0xf8] sm:$0xff]
        %v516 = vld [vmem:[%s445 + $0x100] sm:$0xff]
        %v517 = vld [vmem:[%s445 + $0x108] sm:$0xff]
        %v518 = vld [vmem:[%s445 + $0x110] sm:$0xff]
        %v519 = vld [vmem:[%s445 + $0x118] sm:$0xff]
        %v520 = vld [vmem:[%s445 + $0x120] sm:$0xff]
        %v521 = vld [vmem:[%s445 + $0x128] sm:$0xff]
        %v522 = vld [vmem:[%s445 + $0x130] sm:$0xff]
        %v523 = vld [vmem:[%s445 + $0x138] sm:$0xff]
        %v524 = vld [vmem:[%s445 + $0x140] sm:$0xff]
        %v525 = vld [vmem:[%s445 + $0x148] sm:$0xff]
        %v526 = vld [vmem:[%s445 + $0x150] sm:$0xff]
        %v527 = vld [vmem:[%s445 + $0x158] sm:$0xff]
        %v528 = vld [vmem:[%s445 + $0x160] sm:$0xff]
        %v529 = vld [vmem:[%s445 + $0x168] sm:$0xff]
        %v530 = vld [vmem:[%s445 + $0x170] sm:$0xff]
        %v531 = vld [vmem:[%s445 + $0x178] sm:$0xff]
        %v532 = vld [vmem:[%s445 + $0x180] sm:$0xff]
        %v533 = vld [vmem:[%s445 + $0x188] sm:$0xff]
        %v534 = vld [vmem:[%s445 + $0x190] sm:$0xff]
        %v535 = vld [vmem:[%s445 + $0x198] sm:$0xff]
        %v536 = vld [vmem:[%s445 + $0x1a0] sm:$0xff]
        %v537 = vld [vmem:[%s445 + $0x1a8] sm:$0xff]
        %v538 = vld [vmem:[%s445 + $0x1b0] sm:$0xff]
        %v539 = vld [vmem:[%s445 + $0x1b8] sm:$0xff]
        %v540 = vld [vmem:[%s445 + $0x1c0] sm:$0xff]
        %v541 = vld [vmem:[%s445 + $0x1c8] sm:$0xff]
        %v542 = vld [vmem:[%s445 + $0x1d0] sm:$0xff]
        %v543 = vld [vmem:[%s445 + $0x1d8] sm:$0xff]
        %v544 = vld [vmem:[%s445 + $0x1e0] sm:$0xff]
        %v545 = vld [vmem:[%s445 + $0x1e8] sm:$0xff]
        %v546 = vld [vmem:[%s445 + $0x1f0] sm:$0xff]
        %v547 = vld [vmem:[%s445 + $0x1f8] sm:$0xff]
        %v548 = vld [vmem:[%s445 + $0x200] sm:$0xff]
        %v549 = vld [vmem:[%s445 + $0x208] sm:$0xff]
        %v550 = vld [vmem:[%s445 + $0x210] sm:$0xff]
        %v551 = vld [vmem:[%s445 + $0x218] sm:$0xff]
        %v552 = vld [vmem:[%s445 + $0x220] sm:$0xff]
        %v553 = vld [vmem:[%s445 + $0x228] sm:$0xff]
        %v554 = vld [vmem:[%s445 + $0x230] sm:$0xff]
        %v555 = vld [vmem:[%s445 + $0x238] sm:$0xff]
        %v556 = vld [vmem:[%s445 + $0x240] sm:$0xff]
        %v557 = vld [vmem:[%s445 + $0x248] sm:$0xff]
        %v558 = vld [vmem:[%s445 + $0x250] sm:$0xff]
        %v559 = vld [vmem:[%s445 + $0x258] sm:$0xff]
        %v560 = vld [vmem:[%s445 + $0x260] sm:$0xff]
        %v561 = vld [vmem:[%s445 + $0x268] sm:$0xff]
        %v562 = vld [vmem:[%s445 + $0x270] sm:$0xff]
        %v563 = vld [vmem:[%s445 + $0x278] sm:$0xff]
        %v564 = vld [vmem:[%s445 + $0x280] sm:$0xff]
        %v565 = vld [vmem:[%s445 + $0x288] sm:$0xff]
        %v566 = vld [vmem:[%s445 + $0x290] sm:$0xff]
        %v567 = vld [vmem:[%s445 + $0x298] sm:$0xff]
        %v568 = vld [vmem:[%s445 + $0x2a0] sm:$0xff]
        %v569 = vld [vmem:[%s445 + $0x2a8] sm:$0xff]
        %v570 = vld [vmem:[%s445 + $0x2b0] sm:$0xff]
        %v571 = vld [vmem:[%s445 + $0x2b8] sm:$0xff]
        %v572 = vld [vmem:[%s445 + $0x2c0] sm:$0xff]
        %v573 = vld [vmem:[%s445 + $0x2c8] sm:$0xff]
        %v574 = vld [vmem:[%s445 + $0x2d0] sm:$0xff]
        %v575 = vld [vmem:[%s445 + $0x2d8] sm:$0xff]
        %v576 = vld [vmem:[%s445 + $0x2e0] sm:$0xff]
        %v577 = vld [vmem:[%s445 + $0x2e8] sm:$0xff]
        %v578 = vld [vmem:[%s445 + $0x2f0] sm:$0xff]
        %v579 = vld [vmem:[%s445 + $0x2f8] sm:$0xff]
        %v580 = vld [vmem:[%s445 + $0x300] sm:$0xff]
        %v581 = vld [vmem:[%s445 + $0x308] sm:$0xff]
        %v582 = vld [vmem:[%s445 + $0x310] sm:$0xff]
        %v583 = vld [vmem:[%s445 + $0x318] sm:$0xff]
        %v584 = vld [vmem:[%s445 + $0x320] sm:$0xff]
        %v585 = vld [vmem:[%s445 + $0x328] sm:$0xff]
        %v586 = vld [vmem:[%s445 + $0x330] sm:$0xff]
        %v587 = vld [vmem:[%s445 + $0x338] sm:$0xff]
        %v588 = vld [vmem:[%s445 + $0x340] sm:$0xff]
        %v589 = vld [vmem:[%s445 + $0x348] sm:$0xff]
        %v590 = vld [vmem:[%s445 + $0x350] sm:$0xff]
        %v591 = vld [vmem:[%s445 + $0x358] sm:$0xff]
        %v592 = vld [vmem:[%s445 + $0x360] sm:$0xff]
        %v593 = vld [vmem:[%s445 + $0x368] sm:$0xff]
        %v594 = vld [vmem:[%s445 + $0x370] sm:$0xff]
        %v595 = vld [vmem:[%s445 + $0x378] sm:$0xff]
        %v596 = vld [vmem:[%s445 + $0x380] sm:$0xff]
        %v597 = vld [vmem:[%s445 + $0x388] sm:$0xff]
        %v598 = vld [vmem:[%s445 + $0x390] sm:$0xff]
        %v599 = vld [vmem:[%s445 + $0x398] sm:$0xff]
        %v600 = vld [vmem:[%s445 + $0x3a0] sm:$0xff]
        %v601 = vld [vmem:[%s445 + $0x3a8] sm:$0xff]
        %v602 = vld [vmem:[%s445 + $0x3b0] sm:$0xff]
        %v603 = vld [vmem:[%s445 + $0x3b8] sm:$0xff]
        %v604 = vld [vmem:[%s445 + $0x3c0] sm:$0xff]
        %v605 = vld [vmem:[%s445 + $0x3c8] sm:$0xff]
        %v606 = vld [vmem:[%s445 + $0x3d0] sm:$0xff]
        %v607 = vld [vmem:[%s445 + $0x3d8] sm:$0xff]
        %v608 = vld [vmem:[%s445 + $0x3e0] sm:$0xff]
        %v609 = vld [vmem:[%s445 + $0x3e8] sm:$0xff]
        %v610 = vld [vmem:[%s445 + $0x3f0] sm:$0xff]
        %v611 = vld [vmem:[%s445 + $0x3f8] sm:$0xff]
        %v612 = vld [vmem:[%s2] sm:$0xff]
        %614 = vset.pattern.permute.xlu0 0
        %615 = vperm.xlu0 %614, %v612
        %v616 = vpop.permute.xlu0 %615
        %v746 = vunpack.c.l.b16 %v484
        %v747 = vunpack.c.h.b16 %v484
        %v748 = vunpack.c.l.b16 %v485
        %v749 = vunpack.c.h.b16 %v485
        %v750 = vunpack.c.l.b16 %v486
        %v751 = vunpack.c.h.b16 %v486
        %v752 = vunpack.c.l.b16 %v487
        %v753 = vunpack.c.h.b16 %v487
        %v754 = vunpack.c.l.b16 %v488
        %v755 = vunpack.c.h.b16 %v488
        %v756 = vunpack.c.l.b16 %v489
        %v757 = vunpack.c.h.b16 %v489
        %v758 = vunpack.c.l.b16 %v490
        %v759 = vunpack.c.h.b16 %v490
        %v760 = vunpack.c.l.b16 %v491
        %v761 = vunpack.c.h.b16 %v491
        %v762 = vunpack.c.l.b16 %v492
        %v763 = vunpack.c.h.b16 %v492
        %v764 = vunpack.c.l.b16 %v493
        %v765 = vunpack.c.h.b16 %v493
        %v766 = vunpack.c.l.b16 %v494
        %v767 = vunpack.c.h.b16 %v494
        %v768 = vunpack.c.l.b16 %v495
        %v769 = vunpack.c.h.b16 %v495
        %v770 = vunpack.c.l.b16 %v496
        %v771 = vunpack.c.h.b16 %v496
        %v772 = vunpack.c.l.b16 %v497
        %v773 = vunpack.c.h.b16 %v497
        %v774 = vunpack.c.l.b16 %v498
        %v775 = vunpack.c.h.b16 %v498
        %v776 = vunpack.c.l.b16 %v499
        %v777 = vunpack.c.h.b16 %v499
        %v778 = vunpack.c.l.b16 %v500
        %v779 = vunpack.c.h.b16 %v500
        %v780 = vunpack.c.l.b16 %v501
        %v781 = vunpack.c.h.b16 %v501
        %v782 = vunpack.c.l.b16 %v502
        %v783 = vunpack.c.h.b16 %v502
        %v784 = vunpack.c.l.b16 %v503
        %v785 = vunpack.c.h.b16 %v503
        %v786 = vunpack.c.l.b16 %v504
        %v787 = vunpack.c.h.b16 %v504
        %v788 = vunpack.c.l.b16 %v505
        %v789 = vunpack.c.h.b16 %v505
        %v790 = vunpack.c.l.b16 %v506
        %v791 = vunpack.c.h.b16 %v506
        %v792 = vunpack.c.l.b16 %v507
        %v793 = vunpack.c.h.b16 %v507
        %v794 = vunpack.c.l.b16 %v508
        %v795 = vunpack.c.h.b16 %v508
        %v796 = vunpack.c.l.b16 %v509
        %v797 = vunpack.c.h.b16 %v509
        %v798 = vunpack.c.l.b16 %v510
        %v799 = vunpack.c.h.b16 %v510
        %v800 = vunpack.c.l.b16 %v511
        %v801 = vunpack.c.h.b16 %v511
        %v802 = vunpack.c.l.b16 %v512
        %v803 = vunpack.c.h.b16 %v512
        %v804 = vunpack.c.l.b16 %v513
        %v805 = vunpack.c.h.b16 %v513
        %v806 = vunpack.c.l.b16 %v514
        %v807 = vunpack.c.h.b16 %v514
        %v808 = vunpack.c.l.b16 %v515
        %v809 = vunpack.c.h.b16 %v515
        %v810 = vunpack.c.l.b16 %v516
        %v811 = vunpack.c.h.b16 %v516
        %v812 = vunpack.c.l.b16 %v517
        %v813 = vunpack.c.h.b16 %v517
        %v814 = vunpack.c.l.b16 %v518
        %v815 = vunpack.c.h.b16 %v518
        %v816 = vunpack.c.l.b16 %v519
        %v817 = vunpack.c.h.b16 %v519
        %v818 = vunpack.c.l.b16 %v520
        %v819 = vunpack.c.h.b16 %v520
        %v820 = vunpack.c.l.b16 %v521
        %v821 = vunpack.c.h.b16 %v521
        %v822 = vunpack.c.l.b16 %v522
        %v823 = vunpack.c.h.b16 %v522
        %v824 = vunpack.c.l.b16 %v523
        %v825 = vunpack.c.h.b16 %v523
        %v826 = vunpack.c.l.b16 %v524
        %v827 = vunpack.c.h.b16 %v524
        %v828 = vunpack.c.l.b16 %v525
        %v829 = vunpack.c.h.b16 %v525
        %v830 = vunpack.c.l.b16 %v526
        %v831 = vunpack.c.h.b16 %v526
        %v832 = vunpack.c.l.b16 %v527
        %v833 = vunpack.c.h.b16 %v527
        %v834 = vunpack.c.l.b16 %v528
        %v835 = vunpack.c.h.b16 %v528
        %v836 = vunpack.c.l.b16 %v529
        %v837 = vunpack.c.h.b16 %v529
        %v838 = vunpack.c.l.b16 %v530
        %v839 = vunpack.c.h.b16 %v530
        %v840 = vunpack.c.l.b16 %v531
        %v841 = vunpack.c.h.b16 %v531
        %v842 = vunpack.c.l.b16 %v532
        %v843 = vunpack.c.h.b16 %v532
        %v844 = vunpack.c.l.b16 %v533
        %v845 = vunpack.c.h.b16 %v533
        %v846 = vunpack.c.l.b16 %v534
        %v847 = vunpack.c.h.b16 %v534
        %v848 = vunpack.c.l.b16 %v535
        %v849 = vunpack.c.h.b16 %v535
        %v850 = vunpack.c.l.b16 %v536
        %v851 = vunpack.c.h.b16 %v536
        %v852 = vunpack.c.l.b16 %v537
        %v853 = vunpack.c.h.b16 %v537
        %v854 = vunpack.c.l.b16 %v538
        %v855 = vunpack.c.h.b16 %v538
        %v856 = vunpack.c.l.b16 %v539
        %v857 = vunpack.c.h.b16 %v539
        %v858 = vunpack.c.l.b16 %v540
        %v859 = vunpack.c.h.b16 %v540
        %v860 = vunpack.c.l.b16 %v541
        %v861 = vunpack.c.h.b16 %v541
        %v862 = vunpack.c.l.b16 %v542
        %v863 = vunpack.c.h.b16 %v542
        %v864 = vunpack.c.l.b16 %v543
        %v865 = vunpack.c.h.b16 %v543
        %v866 = vunpack.c.l.b16 %v544
        %v867 = vunpack.c.h.b16 %v544
        %v868 = vunpack.c.l.b16 %v545
        %v869 = vunpack.c.h.b16 %v545
        %v870 = vunpack.c.l.b16 %v546
        %v871 = vunpack.c.h.b16 %v546
        %v872 = vunpack.c.l.b16 %v547
        %v873 = vunpack.c.h.b16 %v547
        %v874 = vunpack.c.l.b16 %v548
        %v875 = vunpack.c.h.b16 %v548
        %v876 = vunpack.c.l.b16 %v549
        %v877 = vunpack.c.h.b16 %v549
        %v878 = vunpack.c.l.b16 %v550
        %v879 = vunpack.c.h.b16 %v550
        %v880 = vunpack.c.l.b16 %v551
        %v881 = vunpack.c.h.b16 %v551
        %v882 = vunpack.c.l.b16 %v552
        %v883 = vunpack.c.h.b16 %v552
        %v884 = vunpack.c.l.b16 %v553
        %v885 = vunpack.c.h.b16 %v553
        %v886 = vunpack.c.l.b16 %v554
        %v887 = vunpack.c.h.b16 %v554
        %v888 = vunpack.c.l.b16 %v555
        %v889 = vunpack.c.h.b16 %v555
        %v890 = vunpack.c.l.b16 %v556
        %v891 = vunpack.c.h.b16 %v556
        %v892 = vunpack.c.l.b16 %v557
        %v893 = vunpack.c.h.b16 %v557
        %v894 = vunpack.c.l.b16 %v558
        %v895 = vunpack.c.h.b16 %v558
        %v896 = vunpack.c.l.b16 %v559
        %v897 = vunpack.c.h.b16 %v559
        %v898 = vunpack.c.l.b16 %v560
        %v899 = vunpack.c.h.b16 %v560
        %v900 = vunpack.c.l.b16 %v561
        %v901 = vunpack.c.h.b16 %v561
        %v902 = vunpack.c.l.b16 %v562
        %v903 = vunpack.c.h.b16 %v562
        %v904 = vunpack.c.l.b16 %v563
        %v905 = vunpack.c.h.b16 %v563
        %v906 = vunpack.c.l.b16 %v564
        %v907 = vunpack.c.h.b16 %v564
        %v908 = vunpack.c.l.b16 %v565
        %v909 = vunpack.c.h.b16 %v565
        %v910 = vunpack.c.l.b16 %v566
        %v911 = vunpack.c.h.b16 %v566
        %v912 = vunpack.c.l.b16 %v567
        %v913 = vunpack.c.h.b16 %v567
        %v914 = vunpack.c.l.b16 %v568
        %v915 = vunpack.c.h.b16 %v568
        %v916 = vunpack.c.l.b16 %v569
        %v917 = vunpack.c.h.b16 %v569
        %v918 = vunpack.c.l.b16 %v570
        %v919 = vunpack.c.h.b16 %v570
        %v920 = vunpack.c.l.b16 %v571
        %v921 = vunpack.c.h.b16 %v571
        %v922 = vunpack.c.l.b16 %v572
        %v923 = vunpack.c.h.b16 %v572
        %v924 = vunpack.c.l.b16 %v573
        %v925 = vunpack.c.h.b16 %v573
        %v926 = vunpack.c.l.b16 %v574
        %v927 = vunpack.c.h.b16 %v574
        %v928 = vunpack.c.l.b16 %v575
        %v929 = vunpack.c.h.b16 %v575
        %v930 = vunpack.c.l.b16 %v576
        %v931 = vunpack.c.h.b16 %v576
        %v932 = vunpack.c.l.b16 %v577
        %v933 = vunpack.c.h.b16 %v577
        %v934 = vunpack.c.l.b16 %v578
        %v935 = vunpack.c.h.b16 %v578
        %v936 = vunpack.c.l.b16 %v579
        %v937 = vunpack.c.h.b16 %v579
        %v938 = vunpack.c.l.b16 %v580
        %v939 = vunpack.c.h.b16 %v580
        %v940 = vunpack.c.l.b16 %v581
        %v941 = vunpack.c.h.b16 %v581
        %v942 = vunpack.c.l.b16 %v582
        %v943 = vunpack.c.h.b16 %v582
        %v944 = vunpack.c.l.b16 %v583
        %v945 = vunpack.c.h.b16 %v583
        %v946 = vunpack.c.l.b16 %v584
        %v947 = vunpack.c.h.b16 %v584
        %v948 = vunpack.c.l.b16 %v585
        %v949 = vunpack.c.h.b16 %v585
        %v950 = vunpack.c.l.b16 %v586
        %v951 = vunpack.c.h.b16 %v586
        %v952 = vunpack.c.l.b16 %v587
        %v953 = vunpack.c.h.b16 %v587
        %v954 = vunpack.c.l.b16 %v588
        %v955 = vunpack.c.h.b16 %v588
        %v956 = vunpack.c.l.b16 %v589
        %v957 = vunpack.c.h.b16 %v589
        %v958 = vunpack.c.l.b16 %v590
        %v959 = vunpack.c.h.b16 %v590
        %v960 = vunpack.c.l.b16 %v591
        %v961 = vunpack.c.h.b16 %v591
        %v962 = vunpack.c.l.b16 %v592
        %v963 = vunpack.c.h.b16 %v592
        %v964 = vunpack.c.l.b16 %v593
        %v965 = vunpack.c.h.b16 %v593
        %v966 = vunpack.c.l.b16 %v594
        %v967 = vunpack.c.h.b16 %v594
        %v968 = vunpack.c.l.b16 %v595
        %v969 = vunpack.c.h.b16 %v595
        %v970 = vunpack.c.l.b16 %v596
        %v971 = vunpack.c.h.b16 %v596
        %v972 = vunpack.c.l.b16 %v597
        %v973 = vunpack.c.h.b16 %v597
        %v974 = vunpack.c.l.b16 %v598
        %v975 = vunpack.c.h.b16 %v598
        %v976 = vunpack.c.l.b16 %v599
        %v977 = vunpack.c.h.b16 %v599
        %v978 = vunpack.c.l.b16 %v600
        %v979 = vunpack.c.h.b16 %v600
        %v980 = vunpack.c.l.b16 %v601
        %v981 = vunpack.c.h.b16 %v601
        %v982 = vunpack.c.l.b16 %v602
        %v983 = vunpack.c.h.b16 %v602
        %v984 = vunpack.c.l.b16 %v603
        %v985 = vunpack.c.h.b16 %v603
        %v986 = vunpack.c.l.b16 %v604
        %v987 = vunpack.c.h.b16 %v604
        %v988 = vunpack.c.l.b16 %v605
        %v989 = vunpack.c.h.b16 %v605
        %v990 = vunpack.c.l.b16 %v606
        %v991 = vunpack.c.h.b16 %v606
        %v992 = vunpack.c.l.b16 %v607
        %v993 = vunpack.c.h.b16 %v607
        %v994 = vunpack.c.l.b16 %v608
        %v995 = vunpack.c.h.b16 %v608
        %v996 = vunpack.c.l.b16 %v609
        %v997 = vunpack.c.h.b16 %v609
        %v998 = vunpack.c.l.b16 %v610
        %v999 = vunpack.c.h.b16 %v610
        %v1000 = vunpack.c.l.b16 %v611
        %v1001 = vunpack.c.h.b16 %v611
        %v1002 = vpack.c.b16 %v762, %v746
        %v1003 = vpack.c.b16 %v763, %v747
        %v1004 = vpack.c.b16 %v764, %v748
        %v1005 = vpack.c.b16 %v765, %v749
        %v1006 = vpack.c.b16 %v766, %v750
        %v1007 = vpack.c.b16 %v767, %v751
        %v1008 = vpack.c.b16 %v768, %v752
        %v1009 = vpack.c.b16 %v769, %v753
        %v1010 = vpack.c.b16 %v770, %v754
        %v1011 = vpack.c.b16 %v771, %v755
        %v1012 = vpack.c.b16 %v772, %v756
        %v1013 = vpack.c.b16 %v773, %v757
        %v1014 = vpack.c.b16 %v774, %v758
        %v1015 = vpack.c.b16 %v775, %v759
        %v1016 = vpack.c.b16 %v776, %v760
        %v1017 = vpack.c.b16 %v777, %v761
        %v1018 = vpack.c.b16 %v794, %v778
        %v1019 = vpack.c.b16 %v795, %v779
        %v1020 = vpack.c.b16 %v796, %v780
        %v1021 = vpack.c.b16 %v797, %v781
        %v1022 = vpack.c.b16 %v798, %v782
        %v1023 = vpack.c.b16 %v799, %v783
        %v1024 = vpack.c.b16 %v800, %v784
        %v1025 = vpack.c.b16 %v801, %v785
        %v1026 = vpack.c.b16 %v802, %v786
        %v1027 = vpack.c.b16 %v803, %v787
        %v1028 = vpack.c.b16 %v804, %v788
        %v1029 = vpack.c.b16 %v805, %v789
        %v1030 = vpack.c.b16 %v806, %v790
        %v1031 = vpack.c.b16 %v807, %v791
        %v1032 = vpack.c.b16 %v808, %v792
        %v1033 = vpack.c.b16 %v809, %v793
        %v1034 = vpack.c.b16 %v826, %v810
        %v1035 = vpack.c.b16 %v827, %v811
        %v1036 = vpack.c.b16 %v828, %v812
        %v1037 = vpack.c.b16 %v829, %v813
        %v1038 = vpack.c.b16 %v830, %v814
        %v1039 = vpack.c.b16 %v831, %v815
        %v1040 = vpack.c.b16 %v832, %v816
        %v1041 = vpack.c.b16 %v833, %v817
        %v1042 = vpack.c.b16 %v834, %v818
        %v1043 = vpack.c.b16 %v835, %v819
        %v1044 = vpack.c.b16 %v836, %v820
        %v1045 = vpack.c.b16 %v837, %v821
        %v1046 = vpack.c.b16 %v838, %v822
        %v1047 = vpack.c.b16 %v839, %v823
        %v1048 = vpack.c.b16 %v840, %v824
        %v1049 = vpack.c.b16 %v841, %v825
        %v1050 = vpack.c.b16 %v858, %v842
        %v1051 = vpack.c.b16 %v859, %v843
        %v1052 = vpack.c.b16 %v860, %v844
        %v1053 = vpack.c.b16 %v861, %v845
        %v1054 = vpack.c.b16 %v862, %v846
        %v1055 = vpack.c.b16 %v863, %v847
        %v1056 = vpack.c.b16 %v864, %v848
        %v1057 = vpack.c.b16 %v865, %v849
        %v1058 = vpack.c.b16 %v866, %v850
        %v1059 = vpack.c.b16 %v867, %v851
        %v1060 = vpack.c.b16 %v868, %v852
        %v1061 = vpack.c.b16 %v869, %v853
        %v1062 = vpack.c.b16 %v870, %v854
        %v1063 = vpack.c.b16 %v871, %v855
        %v1064 = vpack.c.b16 %v872, %v856
        %v1065 = vpack.c.b16 %v873, %v857
        %v1066 = vpack.c.b16 %v890, %v874
        %v1067 = vpack.c.b16 %v891, %v875
        %v1068 = vpack.c.b16 %v892, %v876
        %v1069 = vpack.c.b16 %v893, %v877
        %v1070 = vpack.c.b16 %v894, %v878
        %v1071 = vpack.c.b16 %v895, %v879
        %v1072 = vpack.c.b16 %v896, %v880
        %v1073 = vpack.c.b16 %v897, %v881
        %v1074 = vpack.c.b16 %v898, %v882
        %v1075 = vpack.c.b16 %v899, %v883
        %v1076 = vpack.c.b16 %v900, %v884
        %v1077 = vpack.c.b16 %v901, %v885
        %v1078 = vpack.c.b16 %v902, %v886
        %v1079 = vpack.c.b16 %v903, %v887
        %v1080 = vpack.c.b16 %v904, %v888
        %v1081 = vpack.c.b16 %v905, %v889
        %v1082 = vpack.c.b16 %v922, %v906
        %v1083 = vpack.c.b16 %v923, %v907
        %v1084 = vpack.c.b16 %v924, %v908
        %v1085 = vpack.c.b16 %v925, %v909
        %v1086 = vpack.c.b16 %v926, %v910
        %v1087 = vpack.c.b16 %v927, %v911
        %v1088 = vpack.c.b16 %v928, %v912
        %v1089 = vpack.c.b16 %v929, %v913
        %v1090 = vpack.c.b16 %v930, %v914
        %v1091 = vpack.c.b16 %v931, %v915
        %v1092 = vpack.c.b16 %v932, %v916
        %v1093 = vpack.c.b16 %v933, %v917
        %v1094 = vpack.c.b16 %v934, %v918
        %v1095 = vpack.c.b16 %v935, %v919
        %v1096 = vpack.c.b16 %v936, %v920
        %v1097 = vpack.c.b16 %v937, %v921
        %v1098 = vpack.c.b16 %v954, %v938
        %v1099 = vpack.c.b16 %v955, %v939
        %v1100 = vpack.c.b16 %v956, %v940
        %v1101 = vpack.c.b16 %v957, %v941
        %v1102 = vpack.c.b16 %v958, %v942
        %v1103 = vpack.c.b16 %v959, %v943
        %v1104 = vpack.c.b16 %v960, %v944
        %v1105 = vpack.c.b16 %v961, %v945
        %v1106 = vpack.c.b16 %v962, %v946
        %v1107 = vpack.c.b16 %v963, %v947
        %v1108 = vpack.c.b16 %v964, %v948
        %v1109 = vpack.c.b16 %v965, %v949
        %v1110 = vpack.c.b16 %v966, %v950
        %v1111 = vpack.c.b16 %v967, %v951
        %v1112 = vpack.c.b16 %v968, %v952
        %v1113 = vpack.c.b16 %v969, %v953
        %v1114 = vpack.c.b16 %v986, %v970
        %v1115 = vpack.c.b16 %v987, %v971
        %v1116 = vpack.c.b16 %v988, %v972
        %v1117 = vpack.c.b16 %v989, %v973
        %v1118 = vpack.c.b16 %v990, %v974
        %v1119 = vpack.c.b16 %v991, %v975
        %v1120 = vpack.c.b16 %v992, %v976
        %v1121 = vpack.c.b16 %v993, %v977
        %v1122 = vpack.c.b16 %v994, %v978
        %v1123 = vpack.c.b16 %v995, %v979
        %v1124 = vpack.c.b16 %v996, %v980
        %v1125 = vpack.c.b16 %v997, %v981
        %v1126 = vpack.c.b16 %v998, %v982
        %v1127 = vpack.c.b16 %v999, %v983
        %v1128 = vpack.c.b16 %v1000, %v984
        %v1129 = vpack.c.b16 %v1001, %v985
        %1258 = vmatprep.subr.bf16.mxu0 %v1003
        %1259 = vmatpush1.bf16.msra.mxu0 %v1002
        %1260 = vmatprep.subr.bf16.mxu0 %v1019
        %1261 = vmatpush1.bf16.msra.mxu0 %v1018
        %1262 = vmatprep.subr.bf16.mxu0 %v1035
        %1263 = vmatpush1.bf16.msra.mxu0 %v1034
        %1264 = vmatprep.subr.bf16.mxu0 %v1051
        %1265 = vmatpush1.bf16.msra.mxu0 %v1050
        %1266 = vmatprep.subr.bf16.mxu0 %v1067
        %1267 = vmatpush1.bf16.msra.mxu0 %v1066
        %1268 = vmatprep.subr.bf16.mxu0 %v1083
        %1269 = vmatpush1.bf16.msra.mxu0 %v1082
        %1270 = vmatprep.subr.bf16.mxu0 %v1099
        %1271 = vmatpush1.bf16.msra.mxu0 %v1098
        %1272 = vmatprep.subr.bf16.mxu0 %v1115
        %1273 = vmatpush1.bf16.msra.mxu0 %v1114
        %1274 = vmatprep.subr.bf16.mxu0 0
        %1275 = vmatpush1.bf16.msra.mxu0 0
        %1276 = vmatprep.subr.bf16.mxu0 0
        %1277 = vmatpush1.bf16.msra.mxu0 0
        %1278 = vmatprep.subr.bf16.mxu0 0
        %1279 = vmatpush1.bf16.msra.mxu0 0
        %1280 = vmatprep.subr.bf16.mxu0 0
        %1281 = vmatpush1.bf16.msra.mxu0 0
        %1282 = vmatprep.subr.bf16.mxu0 0
        %1283 = vmatpush1.bf16.msra.mxu0 0
        %1284 = vmatprep.subr.bf16.mxu0 0
        %1285 = vmatpush1.bf16.msra.mxu0 0
        %1286 = vmatprep.subr.bf16.mxu0 0
        %1287 = vmatpush1.bf16.msra.mxu0 0
        %1288 = vmatprep.subr.bf16.mxu0 0
        %1289 = vmatpush1.bf16.msra.mxu0 0
        %1290 = vmatprep.mubr.bf16.mxu0 0
        %1291 = vmatmul.mubr.bf16.gmra.mrb[0].mxu0 %v483
        %v1292 = vpop.f32.mrb[0].mxu0
        %v1293 = vadd.f32 %v616, %v1292
        %v1294 = vpop.f32.mrb[0].mxu0
        %v1295 = vadd.f32 %v616, %v1294
        %v1296 = vpop.f32.mrb[0].mxu0
        %v1297 = vpop.f32.mrb[0].mxu0
        %1298 = vdwg.mxu0
        %1299 = vmatprep.subr.bf16.mxu0 %v1005
        %1300 = vmatpush1.bf16.msra.mxu0 %v1004
        %1301 = vmatprep.subr.bf16.mxu0 %v1021
        %1302 = vmatpush1.bf16.msra.mxu0 %v1020
        %1303 = vmatprep.subr.bf16.mxu0 %v1037
        %1304 = vmatpush1.bf16.msra.mxu0 %v1036
        %1305 = vmatprep.subr.bf16.mxu0 %v1053
        %1306 = vmatpush1.bf16.msra.mxu0 %v1052
        %1307 = vmatprep.subr.bf16.mxu0 %v1069
        %1308 = vmatpush1.bf16.msra.mxu0 %v1068
        %1309 = vmatprep.subr.bf16.mxu0 %v1085
        %1310 = vmatpush1.bf16.msra.mxu0 %v1084
        %1311 = vmatprep.subr.bf16.mxu0 %v1101
        %1312 = vmatpush1.bf16.msra.mxu0 %v1100
        %1313 = vmatprep.subr.bf16.mxu0 %v1117
        %1314 = vmatpush1.bf16.msra.mxu0 %v1116
        %1315 = vmatprep.subr.bf16.mxu0 0
        %1316 = vmatpush1.bf16.msra.mxu0 0
        %1317 = vmatprep.subr.bf16.mxu0 0
        %1318 = vmatpush1.bf16.msra.mxu0 0
        %1319 = vmatprep.subr.bf16.mxu0 0
        %1320 = vmatpush1.bf16.msra.mxu0 0
        %1321 = vmatprep.subr.bf16.mxu0 0
        %1322 = vmatpush1.bf16.msra.mxu0 0
        %1323 = vmatprep.subr.bf16.mxu0 0
        %1324 = vmatpush1.bf16.msra.mxu0 0
        %1325 = vmatprep.subr.bf16.mxu0 0
        %1326 = vmatpush1.bf16.msra.mxu0 0
        %1327 = vmatprep.subr.bf16.mxu0 0
        %1328 = vmatpush1.bf16.msra.mxu0 0
        %1329 = vmatprep.subr.bf16.mxu0 0
        %1330 = vmatpush1.bf16.msra.mxu0 0
        %1331 = vmatprep.mubr.bf16.mxu0 0
        %1332 = vmatmul.mubr.bf16.gmra.mrb[0].mxu0 %v483
        %v1333 = vpop.f32.mrb[0].mxu0
        %v1334 = vadd.f32 %v616, %v1333
        %v1335 = vpop.f32.mrb[0].mxu0
        %v1336 = vadd.f32 %v616, %v1335
        %v1337 = vpop.f32.mrb[0].mxu0
        %v1338 = vpop.f32.mrb[0].mxu0
        %1339 = vdwg.mxu0
        %1340 = vmatprep.subr.bf16.mxu0 %v1007
        %1341 = vmatpush1.bf16.msra.mxu0 %v1006
        %1342 = vmatprep.subr.bf16.mxu0 %v1023
        %1343 = vmatpush1.bf16.msra.mxu0 %v1022
        %1344 = vmatprep.subr.bf16.mxu0 %v1039
        %1345 = vmatpush1.bf16.msra.mxu0 %v1038
        %1346 = vmatprep.subr.bf16.mxu0 %v1055
        %1347 = vmatpush1.bf16.msra.mxu0 %v1054
        %1348 = vmatprep.subr.bf16.mxu0 %v1071
        %1349 = vmatpush1.bf16.msra.mxu0 %v1070
        %1350 = vmatprep.subr.bf16.mxu0 %v1087
        %1351 = vmatpush1.bf16.msra.mxu0 %v1086
        %1352 = vmatprep.subr.bf16.mxu0 %v1103
        %1353 = vmatpush1.bf16.msra.mxu0 %v1102
        %1354 = vmatprep.subr.bf16.mxu0 %v1119
        %1355 = vmatpush1.bf16.msra.mxu0 %v1118
        %1356 = vmatprep.subr.bf16.mxu0 0
        %1357 = vmatpush1.bf16.msra.mxu0 0
        %1358 = vmatprep.subr.bf16.mxu0 0
        %1359 = vmatpush1.bf16.msra.mxu0 0
        %1360 = vmatprep.subr.bf16.mxu0 0
        %1361 = vmatpush1.bf16.msra.mxu0 0
        %1362 = vmatprep.subr.bf16.mxu0 0
        %1363 = vmatpush1.bf16.msra.mxu0 0
        %1364 = vmatprep.subr.bf16.mxu0 0
        %1365 = vmatpush1.bf16.msra.mxu0 0
        %1366 = vmatprep.subr.bf16.mxu0 0
        %1367 = vmatpush1.bf16.msra.mxu0 0
        %1368 = vmatprep.subr.bf16.mxu0 0
        %1369 = vmatpush1.bf16.msra.mxu0 0
        %1370 = vmatprep.subr.bf16.mxu0 0
        %1371 = vmatpush1.bf16.msra.mxu0 0
        %1372 = vmatprep.mubr.bf16.mxu0 0
        %1373 = vmatmul.mubr.bf16.gmra.mrb[0].mxu0 %v483
        %v1374 = vpop.f32.mrb[0].mxu0
        %v1375 = vadd.f32 %v616, %v1374
        %v1376 = vpop.f32.mrb[0].mxu0
        %v1377 = vadd.f32 %v616, %v1376
        %v1378 = vpop.f32.mrb[0].mxu0
        %v1379 = vpop.f32.mrb[0].mxu0
        %1380 = vdwg.mxu0
        %1381 = vmatprep.subr.bf16.mxu0 %v1009
        %1382 = vmatpush1.bf16.msra.mxu0 %v1008
        %1383 = vmatprep.subr.bf16.mxu0 %v1025
        %1384 = vmatpush1.bf16.msra.mxu0 %v1024
        %1385 = vmatprep.subr.bf16.mxu0 %v1041
        %1386 = vmatpush1.bf16.msra.mxu0 %v1040
        %1387 = vmatprep.subr.bf16.mxu0 %v1057
        %1388 = vmatpush1.bf16.msra.mxu0 %v1056
        %1389 = vmatprep.subr.bf16.mxu0 %v1073
        %1390 = vmatpush1.bf16.msra.mxu0 %v1072
        %1391 = vmatprep.subr.bf16.mxu0 %v1089
        %1392 = vmatpush1.bf16.msra.mxu0 %v1088
        %1393 = vmatprep.subr.bf16.mxu0 %v1105
        %1394 = vmatpush1.bf16.msra.mxu0 %v1104
        %1395 = vmatprep.subr.bf16.mxu0 %v1121
        %1396 = vmatpush1.bf16.msra.mxu0 %v1120
        %1397 = vmatprep.subr.bf16.mxu0 0
        %1398 = vmatpush1.bf16.msra.mxu0 0
        %1399 = vmatprep.subr.bf16.mxu0 0
        %1400 = vmatpush1.bf16.msra.mxu0 0
        %1401 = vmatprep.subr.bf16.mxu0 0
        %1402 = vmatpush1.bf16.msra.mxu0 0
        %1403 = vmatprep.subr.bf16.mxu0 0
        %1404 = vmatpush1.bf16.msra.mxu0 0
        %1405 = vmatprep.subr.bf16.mxu0 0
        %1406 = vmatpush1.bf16.msra.mxu0 0
        %1407 = vmatprep.subr.bf16.mxu0 0
        %1408 = vmatpush1.bf16.msra.mxu0 0
        %1409 = vmatprep.subr.bf16.mxu0 0
        %1410 = vmatpush1.bf16.msra.mxu0 0
        %1411 = vmatprep.subr.bf16.mxu0 0
        %1412 = vmatpush1.bf16.msra.mxu0 0
        %1413 = vmatprep.mubr.bf16.mxu0 0
        %1414 = vmatmul.mubr.bf16.gmra.mrb[0].mxu0 %v483
        %v1415 = vpop.f32.mrb[0].mxu0
        %v1416 = vadd.f32 %v616, %v1415
        %v1417 = vpop.f32.mrb[0].mxu0
        %v1418 = vadd.f32 %v616, %v1417
        %v1419 = vpop.f32.mrb[0].mxu0
        %v1420 = vpop.f32.mrb[0].mxu0
        %1421 = vdwg.mxu0
        %1422 = vmatprep.subr.bf16.mxu0 %v1011
        %1423 = vmatpush1.bf16.msra.mxu0 %v1010
        %1424 = vmatprep.subr.bf16.mxu0 %v1027
        %1425 = vmatpush1.bf16.msra.mxu0 %v1026
        %1426 = vmatprep.subr.bf16.mxu0 %v1043
        %1427 = vmatpush1.bf16.msra.mxu0 %v1042
        %1428 = vmatprep.subr.bf16.mxu0 %v1059
        %1429 = vmatpush1.bf16.msra.mxu0 %v1058
        %1430 = vmatprep.subr.bf16.mxu0 %v1075
        %1431 = vmatpush1.bf16.msra.mxu0 %v1074
        %1432 = vmatprep.subr.bf16.mxu0 %v1091
        %1433 = vmatpush1.bf16.msra.mxu0 %v1090
        %1434 = vmatprep.subr.bf16.mxu0 %v1107
        %1435 = vmatpush1.bf16.msra.mxu0 %v1106
        %1436 = vmatprep.subr.bf16.mxu0 %v1123
        %1437 = vmatpush1.bf16.msra.mxu0 %v1122
        %1438 = vmatprep.subr.bf16.mxu0 0
        %1439 = vmatpush1.bf16.msra.mxu0 0
        %1440 = vmatprep.subr.bf16.mxu0 0
        %1441 = vmatpush1.bf16.msra.mxu0 0
        %1442 = vmatprep.subr.bf16.mxu0 0
        %1443 = vmatpush1.bf16.msra.mxu0 0
        %1444 = vmatprep.subr.bf16.mxu0 0
        %1445 = vmatpush1.bf16.msra.mxu0 0
        %1446 = vmatprep.subr.bf16.mxu0 0
        %1447 = vmatpush1.bf16.msra.mxu0 0
        %1448 = vmatprep.subr.bf16.mxu0 0
        %1449 = vmatpush1.bf16.msra.mxu0 0
        %1450 = vmatprep.subr.bf16.mxu0 0
        %1451 = vmatpush1.bf16.msra.mxu0 0
        %1452 = vmatprep.subr.bf16.mxu0 0
        %1453 = vmatpush1.bf16.msra.mxu0 0
        %1454 = vmatprep.mubr.bf16.mxu0 0
        %1455 = vmatmul.mubr.bf16.gmra.mrb[0].mxu0 %v483
        %v1456 = vpop.f32.mrb[0].mxu0
        %v1457 = vadd.f32 %v616, %v1456
        %v1458 = vpop.f32.mrb[0].mxu0
        %v1459 = vadd.f32 %v616, %v1458
        %v1460 = vpop.f32.mrb[0].mxu0
        %v1461 = vpop.f32.mrb[0].mxu0
        %1462 = vdwg.mxu0
        %1463 = vmatprep.subr.bf16.mxu0 %v1013
        %1464 = vmatpush1.bf16.msra.mxu0 %v1012
        %1465 = vmatprep.subr.bf16.mxu0 %v1029
        %1466 = vmatpush1.bf16.msra.mxu0 %v1028
        %1467 = vmatprep.subr.bf16.mxu0 %v1045
        %1468 = vmatpush1.bf16.msra.mxu0 %v1044
        %1469 = vmatprep.subr.bf16.mxu0 %v1061
        %1470 = vmatpush1.bf16.msra.mxu0 %v1060
        %1471 = vmatprep.subr.bf16.mxu0 %v1077
        %1472 = vmatpush1.bf16.msra.mxu0 %v1076
        %1473 = vmatprep.subr.bf16.mxu0 %v1093
        %1474 = vmatpush1.bf16.msra.mxu0 %v1092
        %1475 = vmatprep.subr.bf16.mxu0 %v1109
        %1476 = vmatpush1.bf16.msra.mxu0 %v1108
        %1477 = vmatprep.subr.bf16.mxu0 %v1125
        %1478 = vmatpush1.bf16.msra.mxu0 %v1124
        %1479 = vmatprep.subr.bf16.mxu0 0
        %1480 = vmatpush1.bf16.msra.mxu0 0
        %1481 = vmatprep.subr.bf16.mxu0 0
        %1482 = vmatpush1.bf16.msra.mxu0 0
        %1483 = vmatprep.subr.bf16.mxu0 0
        %1484 = vmatpush1.bf16.msra.mxu0 0
        %1485 = vmatprep.subr.bf16.mxu0 0
        %1486 = vmatpush1.bf16.msra.mxu0 0
        %1487 = vmatprep.subr.bf16.mxu0 0
        %1488 = vmatpush1.bf16.msra.mxu0 0
        %1489 = vmatprep.subr.bf16.mxu0 0
        %1490 = vmatpush1.bf16.msra.mxu0 0
        %1491 = vmatprep.subr.bf16.mxu0 0
        %1492 = vmatpush1.bf16.msra.mxu0 0
        %1493 = vmatprep.subr.bf16.mxu0 0
        %1494 = vmatpush1.bf16.msra.mxu0 0
        %1495 = vmatprep.mubr.bf16.mxu0 0
        %1496 = vmatmul.mubr.bf16.gmra.mrb[0].mxu0 %v483
        %v1497 = vpop.f32.mrb[0].mxu0
        %v1498 = vadd.f32 %v616, %v1497
        %v1499 = vpop.f32.mrb[0].mxu0
        %v1500 = vadd.f32 %v616, %v1499
        %v1501 = vpop.f32.mrb[0].mxu0
        %v1502 = vpop.f32.mrb[0].mxu0
        %1503 = vdwg.mxu0
        %1504 = vmatprep.subr.bf16.mxu0 %v1015
        %1505 = vmatpush1.bf16.msra.mxu0 %v1014
        %1506 = vmatprep.subr.bf16.mxu0 %v1031
        %1507 = vmatpush1.bf16.msra.mxu0 %v1030
        %1508 = vmatprep.subr.bf16.mxu0 %v1047
        %1509 = vmatpush1.bf16.msra.mxu0 %v1046
        %1510 = vmatprep.subr.bf16.mxu0 %v1063
        %1511 = vmatpush1.bf16.msra.mxu0 %v1062
        %1512 = vmatprep.subr.bf16.mxu0 %v1079
        %1513 = vmatpush1.bf16.msra.mxu0 %v1078
        %1514 = vmatprep.subr.bf16.mxu0 %v1095
        %1515 = vmatpush1.bf16.msra.mxu0 %v1094
        %1516 = vmatprep.subr.bf16.mxu0 %v1111
        %1517 = vmatpush1.bf16.msra.mxu0 %v1110
        %1518 = vmatprep.subr.bf16.mxu0 %v1127
        %1519 = vmatpush1.bf16.msra.mxu0 %v1126
        %1520 = vmatprep.subr.bf16.mxu0 0
        %1521 = vmatpush1.bf16.msra.mxu0 0
        %1522 = vmatprep.subr.bf16.mxu0 0
        %1523 = vmatpush1.bf16.msra.mxu0 0
        %1524 = vmatprep.subr.bf16.mxu0 0
        %1525 = vmatpush1.bf16.msra.mxu0 0
        %1526 = vmatprep.subr.bf16.mxu0 0
        %1527 = vmatpush1.bf16.msra.mxu0 0
        %1528 = vmatprep.subr.bf16.mxu0 0
        %1529 = vmatpush1.bf16.msra.mxu0 0
        %1530 = vmatprep.subr.bf16.mxu0 0
        %1531 = vmatpush1.bf16.msra.mxu0 0
        %1532 = vmatprep.subr.bf16.mxu0 0
        %1533 = vmatpush1.bf16.msra.mxu0 0
        %1534 = vmatprep.subr.bf16.mxu0 0
        %1535 = vmatpush1.bf16.msra.mxu0 0
        %1536 = vmatprep.mubr.bf16.mxu0 0
        %1537 = vmatmul.mubr.bf16.gmra.mrb[0].mxu0 %v483
        %v1538 = vpop.f32.mrb[0].mxu0
        %v1539 = vadd.f32 %v616, %v1538
        %v1540 = vpop.f32.mrb[0].mxu0
        %v1541 = vadd.f32 %v616, %v1540
        %v1542 = vpop.f32.mrb[0].mxu0
        %v1543 = vpop.f32.mrb[0].mxu0
        %1544 = vdwg.mxu0
        %1545 = vmatprep.subr.bf16.mxu0 %v1017
        %1546 = vmatpush1.bf16.msra.mxu0 %v1016
        %1547 = vmatprep.subr.bf16.mxu0 %v1033
        %1548 = vmatpush1.bf16.msra.mxu0 %v1032
        %1549 = vmatprep.subr.bf16.mxu0 %v1049
        %1550 = vmatpush1.bf16.msra.mxu0 %v1048
        %1551 = vmatprep.subr.bf16.mxu0 %v1065
        %1552 = vmatpush1.bf16.msra.mxu0 %v1064
        %1553 = vmatprep.subr.bf16.mxu0 %v1081
        %1554 = vmatpush1.bf16.msra.mxu0 %v1080
        %1555 = vmatprep.subr.bf16.mxu0 %v1097
        %1556 = vmatpush1.bf16.msra.mxu0 %v1096
        %1557 = vmatprep.subr.bf16.mxu0 %v1113
        %1558 = vmatpush1.bf16.msra.mxu0 %v1112
        %1559 = vmatprep.subr.bf16.mxu0 %v1129
        %1560 = vmatpush1.bf16.msra.mxu0 %v1128
        %1561 = vmatprep.subr.bf16.mxu0 0
        %1562 = vmatpush1.bf16.msra.mxu0 0
        %1563 = vmatprep.subr.bf16.mxu0 0
        %1564 = vmatpush1.bf16.msra.mxu0 0
        %1565 = vmatprep.subr.bf16.mxu0 0
        %1566 = vmatpush1.bf16.msra.mxu0 0
        %1567 = vmatprep.subr.bf16.mxu0 0
        %1568 = vmatpush1.bf16.msra.mxu0 0
        %1569 = vmatprep.subr.bf16.mxu0 0
        %1570 = vmatpush1.bf16.msra.mxu0 0
        %1571 = vmatprep.subr.bf16.mxu0 0
        %1572 = vmatpush1.bf16.msra.mxu0 0
        %1573 = vmatprep.subr.bf16.mxu0 0
        %1574 = vmatpush1.bf16.msra.mxu0 0
        %1575 = vmatprep.subr.bf16.mxu0 0
        %1576 = vmatpush1.bf16.msra.mxu0 0
        %1577 = vmatprep.mubr.bf16.mxu0 0
        %1578 = vmatmul.mubr.bf16.gmra.mrb[0].mxu0 %v483
        %v1579 = vpop.f32.mrb[0].mxu0
        %v1580 = vadd.f32 %v616, %v1579
        %v1581 = vpop.f32.mrb[0].mxu0
        %v1582 = vadd.f32 %v616, %v1581
        %v1583 = vpop.f32.mrb[0].mxu0
        %v1584 = vpop.f32.mrb[0].mxu0
        %1585 = vdwg.mxu0
        %vm1586 = vcmp.ge.f32.partialorder %v1293, 0.0
        %vm1587 = vcmp.ge.f32.partialorder %v1295, 0.0
        %vm1588 = vcmp.ge.f32.partialorder %v1334, 0.0
        %vm1589 = vcmp.ge.f32.partialorder %v1336, 0.0
        %vm1590 = vcmp.ge.f32.partialorder %v1375, 0.0
        %vm1591 = vcmp.ge.f32.partialorder %v1377, 0.0
        %vm1592 = vcmp.ge.f32.partialorder %v1416, 0.0
        %vm1593 = vcmp.ge.f32.partialorder %v1418, 0.0
        %vm1594 = vcmp.ge.f32.partialorder %v1457, 0.0
        %vm1595 = vcmp.ge.f32.partialorder %v1459, 0.0
        %vm1596 = vcmp.ge.f32.partialorder %v1498, 0.0
        %vm1597 = vcmp.ge.f32.partialorder %v1500, 0.0
        %vm1598 = vcmp.ge.f32.partialorder %v1539, 0.0
        %vm1599 = vcmp.ge.f32.partialorder %v1541, 0.0
        %vm1600 = vcmp.ge.f32.partialorder %v1580, 0.0
        %vm1601 = vcmp.ge.f32.partialorder %v1582, 0.0
        %v1602 = vmul.f32 %v1293, 0.2
        %v1603 = vmul.f32 %v1295, 0.2
        %v1604 = vmul.f32 %v1334, 0.2
        %v1605 = vmul.f32 %v1336, 0.2
        %v1606 = vmul.f32 %v1375, 0.2
        %v1607 = vmul.f32 %v1377, 0.2
        %v1608 = vmul.f32 %v1416, 0.2
        %v1609 = vmul.f32 %v1418, 0.2
        %v1610 = vmul.f32 %v1457, 0.2
        %v1611 = vmul.f32 %v1459, 0.2
        %v1612 = vmul.f32 %v1498, 0.2
        %v1613 = vmul.f32 %v1500, 0.2
        %v1614 = vmul.f32 %v1539, 0.2
        %v1615 = vmul.f32 %v1541, 0.2
        %v1616 = vmul.f32 %v1580, 0.2
        %v1617 = vmul.f32 %v1582, 0.2
        %v1618 = vsel %vm1586, %v1293, %v1602
        %v1619 = vsel %vm1587, %v1295, %v1603
        %v1620 = vsel %vm1588, %v1334, %v1604
        %v1621 = vsel %vm1589, %v1336, %v1605
        %v1622 = vsel %vm1590, %v1375, %v1606
        %v1623 = vsel %vm1591, %v1377, %v1607
        %v1624 = vsel %vm1592, %v1416, %v1608
        %v1625 = vsel %vm1593, %v1418, %v1609
        %v1626 = vsel %vm1594, %v1457, %v1610
        %v1627 = vsel %vm1595, %v1459, %v1611
        %v1628 = vsel %vm1596, %v1498, %v1612
        %v1629 = vsel %vm1597, %v1500, %v1613
        %v1630 = vsel %vm1598, %v1539, %v1614
        %v1631 = vsel %vm1599, %v1541, %v1615
        %v1632 = vsel %vm1600, %v1580, %v1616
        %v1633 = vsel %vm1601, %v1582, %v1617
        %v1634 = vpack.c.bf16 %v1618, %v1618
        %v1635 = vpack.c.bf16 %v1619, %v1619
        %v1636 = vpack.c.bf16 %v1620, %v1620
        %v1637 = vpack.c.bf16 %v1621, %v1621
        %v1638 = vpack.c.bf16 %v1622, %v1622
        %v1639 = vpack.c.bf16 %v1623, %v1623
        %v1640 = vpack.c.bf16 %v1624, %v1624
        %v1641 = vpack.c.bf16 %v1625, %v1625
        %v1642 = vpack.c.bf16 %v1626, %v1626
        %v1643 = vpack.c.bf16 %v1627, %v1627
        %v1644 = vpack.c.bf16 %v1628, %v1628
        %v1645 = vpack.c.bf16 %v1629, %v1629
        %v1646 = vpack.c.bf16 %v1630, %v1630
        %v1647 = vpack.c.bf16 %v1631, %v1631
        %v1648 = vpack.c.bf16 %v1632, %v1632
        %v1649 = vpack.c.bf16 %v1633, %v1633
        %v1666 = vunpack.c.l.b16 %v1634
        %v1667 = vunpack.c.l.b16 %v1635
        %v1668 = vunpack.c.l.b16 %v1636
        %v1669 = vunpack.c.l.b16 %v1637
        %v1670 = vunpack.c.l.b16 %v1638
        %v1671 = vunpack.c.l.b16 %v1639
        %v1672 = vunpack.c.l.b16 %v1640
        %v1673 = vunpack.c.l.b16 %v1641
        %v1674 = vunpack.c.l.b16 %v1642
        %v1675 = vunpack.c.l.b16 %v1643
        %v1676 = vunpack.c.l.b16 %v1644
        %v1677 = vunpack.c.l.b16 %v1645
        %v1678 = vunpack.c.l.b16 %v1646
        %v1679 = vunpack.c.l.b16 %v1647
        %v1680 = vunpack.c.l.b16 %v1648
        %v1681 = vunpack.c.l.b16 %v1649
        %v1682 = vpack.c.b16 %v1667, %v1666
        %v1683 = vpack.c.b16 %v1669, %v1668
        %v1684 = vpack.c.b16 %v1671, %v1670
        %v1685 = vpack.c.b16 %v1673, %v1672
        %v1686 = vpack.c.b16 %v1675, %v1674
        %v1687 = vpack.c.b16 %v1677, %v1676
        %v1688 = vpack.c.b16 %v1679, %v1678
        %v1689 = vpack.c.b16 %v1681, %v1680
        %1698 = vst [vmem:[%s480] sm:$0xff] %v1682
        %1699 = vst [vmem:[%s480 + $0x8] sm:$0xff] %v1683
        %1700 = vst [vmem:[%s480 + $0x10] sm:$0xff] %v1684
        %1701 = vst [vmem:[%s480 + $0x18] sm:$0xff] %v1685
        %1702 = vst [vmem:[%s480 + $0x20] sm:$0xff] %v1686
        %1703 = vst [vmem:[%s480 + $0x28] sm:$0xff] %v1687
        %1704 = vst [vmem:[%s480 + $0x30] sm:$0xff] %v1688
        %1705 = vst [vmem:[%s480 + $0x38] sm:$0xff] %v1689
        %s1706 = smul.u32 16, %s18
        %p1707 = scmp.lt.s32.totalorder %s1706, 63
        %s1708 = scalar_select %p1707, %s1706, 63
        %s1709 = smul.addr %s1708, 4
        %s1710 = scalar_lea.vmem %s3, %s1709
        // Predicated region
        $region56: #{patch_discriminator_forward.8} parent=50 // pred_check
          %p1711 = pneg %p119
        $region57: #{patch_discriminator_forward.8} parent=50 // pred_check_branch
          %1713 = sbr.rel (%p1711) target = $region59
        $region58: #{patch_discriminator_forward.8} parent=50 // pred_region
          %s1714 = smul.u32 16, %s18
        $region59: #{patch_discriminator_forward.8} parent=50 // pred_fallthru
          _
      $region51: #{patch_discriminator_forward.8} parent=5 // pred_fallthru
        _
      %p1715 = scmp.le.s32.totalorder 2, %s9
      // Predicated region
      $region60: #{patch_discriminator_forward.8} parent=5 // pred_check
        %p1716 = pneg %p1715
      $region61: #{patch_discriminator_forward.8} parent=5 // pred_check_branch
        %1718 = sbr.rel (%p1716) target = $region63
      $region62: #{patch_discriminator_forward.8} parent=5 // pred_region
        %s1719 = ssub.s32 %s9, 2
        // Predicated region
        $region64: #{patch_discriminator_forward.8} parent=62 // pred_check
          %p1720 = pneg %p125
        $region65: #{patch_discriminator_forward.8} parent=62 // pred_check_branch
          %1722 = sbr.rel (%p1720) target = $region67
        $region66: #{patch_discriminator_forward.8} parent=62 // pred_region
          %s1723 = smul.u32 16, %s20
          %p1724 = scmp.lt.s32.totalorder %s1723, 63
          %s1725 = scalar_select %p1724, %s1723, 63
          %s1726 = smul.addr %s1725, 4
          %s1727 = scalar_lea.vmem %s3, %s1726
        $region67: #{patch_discriminator_forward.8} parent=62 // pred_fallthru
          _
      $region63: #{patch_discriminator_forward.8} parent=5 // pred_fallthru
        _
    $region6: #{patch_discriminator_forward.8} parent=1 // loop_footer
      %s13 = sadd.s32 1, %s9
    $region7: #{patch_discriminator_forward.8} parent=1 // loop_footer_branch
      %8 = sbr.rel target = $region3
    $region8: #{patch_discriminator_forward.8} parent=1 // loop_exit
      _

// kernel: patch_discriminator_forward.9
$region0: #{patch_discriminator_forward.9}
  #allocation0 [shape = 'u32[]', space=smem, size = 0x4, offset = 0x4, fixed_abs, tag = 'smem constant byte address 0x4 - core index']
  #allocation1 [shape = 'u32[144,128]{1,0:T(1,128)}', space=vmem, size = 0x12000, scoped, tag = 'internal scratch']
  %s0 = inlined_call_operand.vmem [shape: bf16[16,512], index: 0, kind: input, shape index: {}]
  %s1 = inlined_call_operand.vmem [shape: bf16[512,1024], index: 1, kind: input, shape index: {}]
  %s2 = inlined_call_operand.vmem [shape: bf16[16,1024], index: 2, kind: output, shape index: {0}]
  %s3 = inlined_call_operand.vmem [shape: f32[2,16,2], index: 3, kind: output, shape index: {1}]
  %4 = xla_tuple %s2, %s3
  %s5 = sld [smem:[#allocation0]]
  $region91: #{patch_discriminator_forward.9} parent=0
    _
  %s7 = ssub.s32 1, %s5
  %s8 = scalar_select 0, %s7, %s5
  $region1: #{patch_discriminator_forward.9} parent=0
    #allocation2 [shape = 'u8[1048576]{0}', space=vmem, size = 0x100000, scoped, tag = 'input window, operand 1']
    #allocation3 [shape = 'u8[32768]{0}', space=vmem, size = 0x8000, scoped, tag = 'output window, operand 0']
    loop: start=0, step=1, limit=4
    $region2: #{patch_discriminator_forward.9} parent=1 // loop_pre_header
      _
    $region3: #{patch_discriminator_forward.9} parent=1 // loop_header
      %s10 = sphi 0, %s14
      %p11 = scmp.ge.s32.totalorder %s10, 4
      %s17 = sphi 0, %s29
      %s18 = sphi 0, %s25
      %s19 = sphi 0, %s17
      %s20 = sphi 0, %s18
      %s21 = sphi 0, %s19
      %s22 = sphi 0, %s20
      %s32 = sphi 0, %s34
      %s35 = sphi 0, %s32
      %s36 = sphi 0, %s35
      %s52 = sphi 0, %s36
      %s60 = sphi 0, %s62
      %s63 = sphi 0, %s60
      %s64 = sphi 0, %s63
      %s80 = sphi 0, %s64
      %s86 = sphi 0, %s88
      %s89 = sphi 0, %s86
      %s90 = sphi 0, %s89
      %s106 = sphi 0, %s90
      %s112 = sphi 0, %s114
      %s115 = sphi 0, %s112
      %s116 = sphi 0, %s115
      %s132 = sphi 0, %s116
    $region4: #{patch_discriminator_forward.9} parent=1 // loop_header_branch
      %13 = sbr.rel (%p11) target = $region8
    $region5: #{patch_discriminator_forward.9} parent=1 // loop_body
      %s15 = ssub.s32 %s10, 1
      %s16 = ssub.s32 %s10, 2
      %s23 = sadd.s32 1, %s18
      %p24 = scmp.ge.s32.totalorder %s23, 1
      %s25 = scalar_select %p24, 0, %s23
      %s26 = sadd.s32 1, %s17
      %s27 = scalar_select %p24, %s26, %s17
      %p28 = scmp.ge.s32.totalorder %s27, 2
      %s29 = scalar_select %p28, 0, %s27
      %s30 = ssub.s32 %s18, %s25
      %p31 = scmp.eq.s32.totalorder %s30, 0
      %s33 = sadd.s32 %s32, 1
      %s34 = scalar_select %p31, %s32, %s33
      %p37 = pneg %p31
      %p38 = scmp.eq.s32.totalorder %s10, 1
      %p39 = por %p37, %p38
      %p40 = scmp.ne.s32.totalorder %s32, %s35
      %p41 = scmp.eq.s32.totalorder %s10, 0
      %p42 = por %p40, %p41
      %p43 = scmp.ne.s32.totalorder %s32, %s35
      %p44 = scmp.eq.s32.totalorder %s15, 1
      %p45 = por %p43, %p44
      %p46 = scmp.ne.s32.totalorder %s35, %s36
      %p47 = scmp.eq.s32.totalorder %s15, 0
      %p48 = por %p46, %p47
      %p49 = scmp.ne.s32.totalorder %s35, %s36
      %p50 = scmp.eq.s32.totalorder %s16, 1
      %p51 = por %p49, %p50
      %p53 = scmp.ne.s32.totalorder %s36, %s52
      %p54 = scmp.eq.s32.totalorder %s16, 0
      %p55 = por %p53, %p54
      %s56 = ssub.s32 %s18, %s25
      %s57 = ssub.s32 %s17, %s29
      %s58 = sor.u32 %s56, %s57
      %p59 = scmp.eq.s32.totalorder %s58, 0
      %s61 = sadd.s32 %s60, 1
      %s62 = scalar_select %p59, %s60, %s61
      %p65 = pneg %p59
      %p66 = scmp.eq.s32.totalorder %s10, 1
      %p67 = por %p65, %p66
      %p68 = scmp.ne.s32.totalorder %s60, %s63
      %p69 = scmp.eq.s32.totalorder %s10, 0
      %p70 = por %p68, %p69
      %p71 = scmp.ne.s32.totalorder %s60, %s63
      %p72 = scmp.eq.s32.totalorder %s15, 1
      %p73 = por %p71, %p72
      %p74 = scmp.ne.s32.totalorder %s63, %s64
      %p75 = scmp.eq.s32.totalorder %s15, 0
      %p76 = por %p74, %p75
      %p77 = scmp.ne.s32.totalorder %s63, %s64
      %p78 = scmp.eq.s32.totalorder %s16, 1
      %p79 = por %p77, %p78
      %p81 = scmp.ne.s32.totalorder %s64, %s80
      %p82 = scmp.eq.s32.totalorder %s16, 0
      %p83 = por %p81, %p82
      %s84 = ssub.s32 %s17, %s29
      %p85 = scmp.eq.s32.totalorder %s84, 0
      %s87 = sadd.s32 %s86, 1
      %s88 = scalar_select %p85, %s86, %s87
      %p91 = pneg %p85
      %p92 = scmp.eq.s32.totalorder %s10, 1
      %p93 = por %p91, %p92
      %p94 = scmp.ne.s32.totalorder %s86, %s89
      %p95 = scmp.eq.s32.totalorder %s10, 0
      %p96 = por %p94, %p95
      %p97 = scmp.ne.s32.totalorder %s86, %s89
      %p98 = scmp.eq.s32.totalorder %s15, 1
      %p99 = por %p97, %p98
      %p100 = scmp.ne.s32.totalorder %s89, %s90
      %p101 = scmp.eq.s32.totalorder %s15, 0
      %p102 = por %p100, %p101
      %p103 = scmp.ne.s32.totalorder %s89, %s90
      %p104 = scmp.eq.s32.totalorder %s16, 1
      %p105 = por %p103, %p104
      %p107 = scmp.ne.s32.totalorder %s90, %s106
      %p108 = scmp.eq.s32.totalorder %s16, 0
      %p109 = por %p107, %p108
      %s110 = ssub.s32 %s17, %s29
      %p111 = scmp.eq.s32.totalorder %s110, 0
      %s113 = sadd.s32 %s112, 1
      %s114 = scalar_select %p111, %s112, %s113
      %p117 = pneg %p111
      %p118 = scmp.eq.s32.totalorder %s10, 1
      %p119 = por %p117, %p118
      %p120 = scmp.ne.s32.totalorder %s112, %s115
      %p121 = scmp.eq.s32.totalorder %s10, 0
      %p122 = por %p120, %p121
      %p123 = scmp.ne.s32.totalorder %s112, %s115
      %p124 = scmp.eq.s32.totalorder %s15, 1
      %p125 = por %p123, %p124
      %p126 = scmp.ne.s32.totalorder %s115, %s116
      %p127 = scmp.eq.s32.totalorder %s15, 0
      %p128 = por %p126, %p127
      %p129 = scmp.ne.s32.totalorder %s115, %s116
      %p130 = scmp.eq.s32.totalorder %s16, 1
      %p131 = por %p129, %p130
      %p133 = scmp.ne.s32.totalorder %s116, %s132
      %p134 = scmp.eq.s32.totalorder %s16, 0
      %p135 = por %p133, %p134
      %p136 = scmp.le.s32.totalorder 1, %s10
      %p137 = scmp.lt.s32.totalorder %s10, 3
      %p138 = pnand %p136, %p137
      %p139 = pneg %p138
      // Predicated region
      $region9: #{patch_discriminator_forward.9} parent=5 // pred_check
        _
      $region10: #{patch_discriminator_forward.9} parent=5 // pred_check_branch
        %141 = sbr.rel (%p138) target = $region12
      $region11: #{patch_discriminator_forward.9} parent=5 // pred_region
        %s142 = ssub.s32 %s10, 1
        // Predicated region
        $region13: #{patch_discriminator_forward.9} parent=11 // pred_check
          %p143 = pneg %p48
        $region14: #{patch_discriminator_forward.9} parent=11 // pred_check_branch
          %145 = sbr.rel (%p143) target = $region16
        $region15: #{patch_discriminator_forward.9} parent=11 // pred_region
          %s146 = smul.u32 4, %s20
          %p147 = scmp.lt.s32.totalorder %s146, 3
          %s148 = scalar_select %p147, %s146, 3
          %s149 = smul.addr %s148, 4
          %s150 = scalar_lea.vmem %s0, %s149
          %s151 = smul.u32 4, %s20
        $region16: #{patch_discriminator_forward.9} parent=11 // pred_fallthru
          _
      $region12: #{patch_discriminator_forward.9} parent=5 // pred_fallthru
        _
      %p152 = scmp.lt.s32.totalorder %s10, 2
      // Predicated region
      $region17: #{patch_discriminator_forward.9} parent=5 // pred_check
        %p153 = pneg %p152
      $region18: #{patch_discriminator_forward.9} parent=5 // pred_check_branch
        %155 = sbr.rel (%p153) target = $region20
      $region19: #{patch_discriminator_forward.9} parent=5 // pred_region
        // Predicated region
        $region21: #{patch_discriminator_forward.9} parent=19 // pred_check
          %p156 = pneg %p70
        $region22: #{patch_discriminator_forward.9} parent=19 // pred_check_branch
          %158 = sbr.rel (%p156) target = $region24
        $region23: #{patch_discriminator_forward.9} parent=19 // pred_region
          %s159 = sand.u32 %s60, 1
          %s160 = sand.u32 %s60, 1
          %s161 = smul.addr %s160, 1024
          %s162 = scalar_lea.vmem [#allocation2], %s161
          %s163 = smul.u32 64, %s18
          %s164 = smul.u32 4, %s17
          %s165 = smul.addr %s163, 8
          %s166 = sadd.s32 %s164, %s165
          %s167 = smul.addr %s166, 4
          %s168 = scalar_lea.vmem %s1, %s167
          // Predicated region
          $region25: #{patch_discriminator_forward.9} parent=23 // pred_check
            _
          $region26: #{patch_discriminator_forward.9} parent=23 // pred_check_branch
            %170 = sbr.rel (0) target = $region28
          $region27: #{patch_discriminator_forward.9} parent=23 // pred_region
            // Predicated region
            $region29: #{patch_discriminator_forward.9} parent=27 // pred_check
              _
            $region30: #{patch_discriminator_forward.9} parent=27 // pred_check_branch
              %172 = sbr.rel (0) target = $region32
            $region31: #{patch_discriminator_forward.9} parent=27 // pred_region
              loop: start=0, step=1, limit=1
              $region33: #{patch_discriminator_forward.9} parent=31 // loop_pre_header
                _
              $region34: #{patch_discriminator_forward.9} parent=31 // loop_header
                %s174 = sphi 0, %s178
                %p175 = scmp.ge.s32.totalorder %s174, 1
                %s179 = sphi %s168, %s168
                %s180 = sphi %s162, %s162
              $region35: #{patch_discriminator_forward.9} parent=31 // loop_header_branch
                %177 = sbr.rel (%p175) target = $region39
              $region36: #{patch_discriminator_forward.9} parent=31 // loop_body
                %v181 = vld [vmem:[%s179] sm:$0xff]
                %182 = vst [vmem:[%s180] sm:$0xff] %v181
                %v183 = vld [vmem:[%s179 + $0x8] sm:$0xff]
                %184 = vst [vmem:[%s180 + $0x8] sm:$0xff] %v183
                %v185 = vld [vmem:[%s179 + $0x20] sm:$0xff]
                %186 = vst [vmem:[%s180 + $0x10] sm:$0xff] %v185
                %v187 = vld [vmem:[%s179 + $0x28] sm:$0xff]
                %188 = vst [vmem:[%s180 + $0x18] sm:$0xff] %v187
                %v189 = vld [vmem:[%s179 + $0x40] sm:$0xff]
                %190 = vst [vmem:[%s180 + $0x20] sm:$0xff] %v189
                %v191 = vld [vmem:[%s179 + $0x48] sm:$0xff]
                %192 = vst [vmem:[%s180 + $0x28] sm:$0xff] %v191
                %v193 = vld [vmem:[%s179 + $0x60] sm:$0xff]
                %194 = vst [vmem:[%s180 + $0x30] sm:$0xff] %v193
                %v195 = vld [vmem:[%s179 + $0x68] sm:$0xff]
                %196 = vst [vmem:[%s180 + $0x38] sm:$0xff] %v195
                %v197 = vld [vmem:[%s179 + $0x80] sm:$0xff]
                %198 = vst [vmem:[%s180 + $0x40] sm:$0xff] %v197
                %v199 = vld [vmem:[%s179 + $0x88] sm:$0xff]
                %200 = vst [vmem:[%s180 + $0x48] sm:$0xff] %v199
                %v201 = vld [vmem:[%s179 + $0xa0] sm:$0xff]
                %202 = vst [vmem:[%s180 + $0x50] sm:$0xff] %v201
                %v203 = vld [vmem:[%s179 + $0xa8] sm:$0xff]
                %204 = vst [vmem:[%s180 + $0x58] sm:$0xff] %v203
                %v205 = vld [vmem:[%s179 + $0xc0] sm:$0xff]
                %206 = vst [vmem:[%s180 + $0x60] sm:$0xff] %v205
                %v207 = vld [vmem:[%s179 + $0xc8] sm:$0xff]
                %208 = vst [vmem:[%s180 + $0x68] sm:$0xff] %v207
                %v209 = vld [vmem:[%s179 + $0xe0] sm:$0xff]
                %210 = vst [vmem:[%s180 + $0x70] sm:$0xff] %v209
                %v211 = vld [vmem:[%s179 + $0xe8] sm:$0xff]
                %212 = vst [vmem:[%s180 + $0x78] sm:$0xff] %v211
                %v213 = vld [vmem:[%s179 + $0x100] sm:$0xff]
                %214 = vst [vmem:[%s180 + $0x80] sm:$0xff] %v213
                %v215 = vld [vmem:[%s179 + $0x108] sm:$0xff]
                %216 = vst [vmem:[%s180 + $0x88] sm:$0xff] %v215
                %v217 = vld [vmem:[%s179 + $0x120] sm:$0xff]
                %218 = vst [vmem:[%s180 + $0x90] sm:$0xff] %v217
                %v219 = vld [vmem:[%s179 + $0x128] sm:$0xff]
                %220 = vst [vmem:[%s180 + $0x98] sm:$0xff] %v219
                %v221 = vld [vmem:[%s179 + $0x140] sm:$0xff]
                %222 = vst [vmem:[%s180 + $0xa0] sm:$0xff] %v221
                %v223 = vld [vmem:[%s179 + $0x148] sm:$0xff]
                %224 = vst [vmem:[%s180 + $0xa8] sm:$0xff] %v223
                %v225 = vld [vmem:[%s179 + $0x160] sm:$0xff]
                %226 = vst [vmem:[%s180 + $0xb0] sm:$0xff] %v225
                %v227 = vld [vmem:[%s179 + $0x168] sm:$0xff]
                %228 = vst [vmem:[%s180 + $0xb8] sm:$0xff] %v227
                %v229 = vld [vmem:[%s179 + $0x180] sm:$0xff]
                %230 = vst [vmem:[%s180 + $0xc0] sm:$0xff] %v229
                %v231 = vld [vmem:[%s179 + $0x188] sm:$0xff]
                %232 = vst [vmem:[%s180 + $0xc8] sm:$0xff] %v231
                %v233 = vld [vmem:[%s179 + $0x1a0] sm:$0xff]
                %234 = vst [vmem:[%s180 + $0xd0] sm:$0xff] %v233
                %v235 = vld [vmem:[%s179 + $0x1a8] sm:$0xff]
                %236 = vst [vmem:[%s180 + $0xd8] sm:$0xff] %v235
                %v237 = vld [vmem:[%s179 + $0x1c0] sm:$0xff]
                %238 = vst [vmem:[%s180 + $0xe0] sm:$0xff] %v237
                %v239 = vld [vmem:[%s179 + $0x1c8] sm:$0xff]
                %240 = vst [vmem:[%s180 + $0xe8] sm:$0xff] %v239
                %v241 = vld [vmem:[%s179 + $0x1e0] sm:$0xff]
                %242 = vst [vmem:[%s180 + $0xf0] sm:$0xff] %v241
                %v243 = vld [vmem:[%s179 + $0x1e8] sm:$0xff]
                %244 = vst [vmem:[%s180 + $0xf8] sm:$0xff] %v243
                %v245 = vld [vmem:[%s179 + $0x200] sm:$0xff]
                %246 = vst [vmem:[%s180 + $0x100] sm:$0xff] %v245
                %v247 = vld [vmem:[%s179 + $0x208] sm:$0xff]
                %248 = vst [vmem:[%s180 + $0x108] sm:$0xff] %v247
                %v249 = vld [vmem:[%s179 + $0x220] sm:$0xff]
                %250 = vst [vmem:[%s180 + $0x110] sm:$0xff] %v249
                %v251 = vld [vmem:[%s179 + $0x228] sm:$0xff]
                %252 = vst [vmem:[%s180 + $0x118] sm:$0xff] %v251
                %v253 = vld [vmem:[%s179 + $0x240] sm:$0xff]
                %254 = vst [vmem:[%s180 + $0x120] sm:$0xff] %v253
                %v255 = vld [vmem:[%s179 + $0x248] sm:$0xff]
                %256 = vst [vmem:[%s180 + $0x128] sm:$0xff] %v255
                %v257 = vld [vmem:[%s179 + $0x260] sm:$0xff]
                %258 = vst [vmem:[%s180 + $0x130] sm:$0xff] %v257
                %v259 = vld [vmem:[%s179 + $0x268] sm:$0xff]
                %260 = vst [vmem:[%s180 + $0x138] sm:$0xff] %v259
                %v261 = vld [vmem:[%s179 + $0x280] sm:$0xff]
                %262 = vst [vmem:[%s180 + $0x140] sm:$0xff] %v261
                %v263 = vld [vmem:[%s179 + $0x288] sm:$0xff]
                %264 = vst [vmem:[%s180 + $0x148] sm:$0xff] %v263
                %v265 = vld [vmem:[%s179 + $0x2a0] sm:$0xff]
                %266 = vst [vmem:[%s180 + $0x150] sm:$0xff] %v265
                %v267 = vld [vmem:[%s179 + $0x2a8] sm:$0xff]
                %268 = vst [vmem:[%s180 + $0x158] sm:$0xff] %v267
                %v269 = vld [vmem:[%s179 + $0x2c0] sm:$0xff]
                %270 = vst [vmem:[%s180 + $0x160] sm:$0xff] %v269
                %v271 = vld [vmem:[%s179 + $0x2c8] sm:$0xff]
                %272 = vst [vmem:[%s180 + $0x168] sm:$0xff] %v271
                %v273 = vld [vmem:[%s179 + $0x2e0] sm:$0xff]
                %274 = vst [vmem:[%s180 + $0x170] sm:$0xff] %v273
                %v275 = vld [vmem:[%s179 + $0x2e8] sm:$0xff]
                %276 = vst [vmem:[%s180 + $0x178] sm:$0xff] %v275
                %v277 = vld [vmem:[%s179 + $0x300] sm:$0xff]
                %278 = vst [vmem:[%s180 + $0x180] sm:$0xff] %v277
                %v279 = vld [vmem:[%s179 + $0x308] sm:$0xff]
                %280 = vst [vmem:[%s180 + $0x188] sm:$0xff] %v279
                %v281 = vld [vmem:[%s179 + $0x320] sm:$0xff]
                %282 = vst [vmem:[%s180 + $0x190] sm:$0xff] %v281
                %v283 = vld [vmem:[%s179 + $0x328] sm:$0xff]
                %284 = vst [vmem:[%s180 + $0x198] sm:$0xff] %v283
                %v285 = vld [vmem:[%s179 + $0x340] sm:$0xff]
                %286 = vst [vmem:[%s180 + $0x1a0] sm:$0xff] %v285
                %v287 = vld [vmem:[%s179 + $0x348] sm:$0xff]
                %288 = vst [vmem:[%s180 + $0x1a8] sm:$0xff] %v287
                %v289 = vld [vmem:[%s179 + $0x360] sm:$0xff]
                %290 = vst [vmem:[%s180 + $0x1b0] sm:$0xff] %v289
                %v291 = vld [vmem:[%s179 + $0x368] sm:$0xff]
                %292 = vst [vmem:[%s180 + $0x1b8] sm:$0xff] %v291
                %v293 = vld [vmem:[%s179 + $0x380] sm:$0xff]
                %294 = vst [vmem:[%s180 + $0x1c0] sm:$0xff] %v293
                %v295 = vld [vmem:[%s179 + $0x388] sm:$0xff]
                %296 = vst [vmem:[%s180 + $0x1c8] sm:$0xff] %v295
                %v297 = vld [vmem:[%s179 + $0x3a0] sm:$0xff]
                %298 = vst [vmem:[%s180 + $0x1d0] sm:$0xff] %v297
                %v299 = vld [vmem:[%s179 + $0x3a8] sm:$0xff]
                %300 = vst [vmem:[%s180 + $0x1d8] sm:$0xff] %v299
                %v301 = vld [vmem:[%s179 + $0x3c0] sm:$0xff]
                %302 = vst [vmem:[%s180 + $0x1e0] sm:$0xff] %v301
                %v303 = vld [vmem:[%s179 + $0x3c8] sm:$0xff]
                %304 = vst [vmem:[%s180 + $0x1e8] sm:$0xff] %v303
                %v305 = vld [vmem:[%s179 + $0x3e0] sm:$0xff]
                %306 = vst [vmem:[%s180 + $0x1f0] sm:$0xff] %v305
                %v307 = vld [vmem:[%s179 + $0x3e8] sm:$0xff]
                %308 = vst [vmem:[%s180 + $0x1f8] sm:$0xff] %v307
                %v309 = vld [vmem:[%s179 + $0x400] sm:$0xff]
                %310 = vst [vmem:[%s180 + $0x200] sm:$0xff] %v309
                %v311 = vld [vmem:[%s179 + $0x408] sm:$0xff]
                %312 = vst [vmem:[%s180 + $0x208] sm:$0xff] %v311
                %v313 = vld [vmem:[%s179 + $0x420] sm:$0xff]
                %314 = vst [vmem:[%s180 + $0x210] sm:$0xff] %v313
                %v315 = vld [vmem:[%s179 + $0x428] sm:$0xff]
                %316 = vst [vmem:[%s180 + $0x218] sm:$0xff] %v315
                %v317 = vld [vmem:[%s179 + $0x440] sm:$0xff]
                %318 = vst [vmem:[%s180 + $0x220] sm:$0xff] %v317
                %v319 = vld [vmem:[%s179 + $0x448] sm:$0xff]
                %320 = vst [vmem:[%s180 + $0x228] sm:$0xff] %v319
                %v321 = vld [vmem:[%s179 + $0x460] sm:$0xff]
                %322 = vst [vmem:[%s180 + $0x230] sm:$0xff] %v321
                %v323 = vld [vmem:[%s179 + $0x468] sm:$0xff]
                %324 = vst [vmem:[%s180 + $0x238] sm:$0xff] %v323
                %v325 = vld [vmem:[%s179 + $0x480] sm:$0xff]
                %326 = vst [vmem:[%s180 + $0x240] sm:$0xff] %v325
                %v327 = vld [vmem:[%s179 + $0x488] sm:$0xff]
                %328 = vst [vmem:[%s180 + $0x248] sm:$0xff] %v327
                %v329 = vld [vmem:[%s179 + $0x4a0] sm:$0xff]
                %330 = vst [vmem:[%s180 + $0x250] sm:$0xff] %v329
                %v331 = vld [vmem:[%s179 + $0x4a8] sm:$0xff]
                %332 = vst [vmem:[%s180 + $0x258] sm:$0xff] %v331
                %v333 = vld [vmem:[%s179 + $0x4c0] sm:$0xff]
                %334 = vst [vmem:[%s180 + $0x260] sm:$0xff] %v333
                %v335 = vld [vmem:[%s179 + $0x4c8] sm:$0xff]
                %336 = vst [vmem:[%s180 + $0x268] sm:$0xff] %v335
                %v337 = vld [vmem:[%s179 + $0x4e0] sm:$0xff]
                %338 = vst [vmem:[%s180 + $0x270] sm:$0xff] %v337
                %v339 = vld [vmem:[%s179 + $0x4e8] sm:$0xff]
                %340 = vst [vmem:[%s180 + $0x278] sm:$0xff] %v339
                %v341 = vld [vmem:[%s179 + $0x500] sm:$0xff]
                %342 = vst [vmem:[%s180 + $0x280] sm:$0xff] %v341
                %v343 = vld [vmem:[%s179 + $0x508] sm:$0xff]
                %344 = vst [vmem:[%s180 + $0x288] sm:$0xff] %v343
                %v345 = vld [vmem:[%s179 + $0x520] sm:$0xff]
                %346 = vst [vmem:[%s180 + $0x290] sm:$0xff] %v345
                %v347 = vld [vmem:[%s179 + $0x528] sm:$0xff]
                %348 = vst [vmem:[%s180 + $0x298] sm:$0xff] %v347
                %v349 = vld [vmem:[%s179 + $0x540] sm:$0xff]
                %350 = vst [vmem:[%s180 + $0x2a0] sm:$0xff] %v349
                %v351 = vld [vmem:[%s179 + $0x548] sm:$0xff]
                %352 = vst [vmem:[%s180 + $0x2a8] sm:$0xff] %v351
                %v353 = vld [vmem:[%s179 + $0x560] sm:$0xff]
                %354 = vst [vmem:[%s180 + $0x2b0] sm:$0xff] %v353
                %v355 = vld [vmem:[%s179 + $0x568] sm:$0xff]
                %356 = vst [vmem:[%s180 + $0x2b8] sm:$0xff] %v355
                %v357 = vld [vmem:[%s179 + $0x580] sm:$0xff]
                %358 = vst [vmem:[%s180 + $0x2c0] sm:$0xff] %v357
                %v359 = vld [vmem:[%s179 + $0x588] sm:$0xff]
                %360 = vst [vmem:[%s180 + $0x2c8] sm:$0xff] %v359
                %v361 = vld [vmem:[%s179 + $0x5a0] sm:$0xff]
                %362 = vst [vmem:[%s180 + $0x2d0] sm:$0xff] %v361
                %v363 = vld [vmem:[%s179 + $0x5a8] sm:$0xff]
                %364 = vst [vmem:[%s180 + $0x2d8] sm:$0xff] %v363
                %v365 = vld [vmem:[%s179 + $0x5c0] sm:$0xff]
                %366 = vst [vmem:[%s180 + $0x2e0] sm:$0xff] %v365
                %v367 = vld [vmem:[%s179 + $0x5c8] sm:$0xff]
                %368 = vst [vmem:[%s180 + $0x2e8] sm:$0xff] %v367
                %v369 = vld [vmem:[%s179 + $0x5e0] sm:$0xff]
                %370 = vst [vmem:[%s180 + $0x2f0] sm:$0xff] %v369
                %v371 = vld [vmem:[%s179 + $0x5e8] sm:$0xff]
                %372 = vst [vmem:[%s180 + $0x2f8] sm:$0xff] %v371
                %v373 = vld [vmem:[%s179 + $0x600] sm:$0xff]
                %374 = vst [vmem:[%s180 + $0x300] sm:$0xff] %v373
                %v375 = vld [vmem:[%s179 + $0x608] sm:$0xff]
                %376 = vst [vmem:[%s180 + $0x308] sm:$0xff] %v375
                %v377 = vld [vmem:[%s179 + $0x620] sm:$0xff]
                %378 = vst [vmem:[%s180 + $0x310] sm:$0xff] %v377
                %v379 = vld [vmem:[%s179 + $0x628] sm:$0xff]
                %380 = vst [vmem:[%s180 + $0x318] sm:$0xff] %v379
                %v381 = vld [vmem:[%s179 + $0x640] sm:$0xff]
                %382 = vst [vmem:[%s180 + $0x320] sm:$0xff] %v381
                %v383 = vld [vmem:[%s179 + $0x648] sm:$0xff]
                %384 = vst [vmem:[%s180 + $0x328] sm:$0xff] %v383
                %v385 = vld [vmem:[%s179 + $0x660] sm:$0xff]
                %386 = vst [vmem:[%s180 + $0x330] sm:$0xff] %v385
                %v387 = vld [vmem:[%s179 + $0x668] sm:$0xff]
                %388 = vst [vmem:[%s180 + $0x338] sm:$0xff] %v387
                %v389 = vld [vmem:[%s179 + $0x680] sm:$0xff]
                %390 = vst [vmem:[%s180 + $0x340] sm:$0xff] %v389
                %v391 = vld [vmem:[%s179 + $0x688] sm:$0xff]
                %392 = vst [vmem:[%s180 + $0x348] sm:$0xff] %v391
                %v393 = vld [vmem:[%s179 + $0x6a0] sm:$0xff]
                %394 = vst [vmem:[%s180 + $0x350] sm:$0xff] %v393
                %v395 = vld [vmem:[%s179 + $0x6a8] sm:$0xff]
                %396 = vst [vmem:[%s180 + $0x358] sm:$0xff] %v395
                %v397 = vld [vmem:[%s179 + $0x6c0] sm:$0xff]
                %398 = vst [vmem:[%s180 + $0x360] sm:$0xff] %v397
                %v399 = vld [vmem:[%s179 + $0x6c8] sm:$0xff]
                %400 = vst [vmem:[%s180 + $0x368] sm:$0xff] %v399
                %v401 = vld [vmem:[%s179 + $0x6e0] sm:$0xff]
                %402 = vst [vmem:[%s180 + $0x370] sm:$0xff] %v401
                %v403 = vld [vmem:[%s179 + $0x6e8] sm:$0xff]
                %404 = vst [vmem:[%s180 + $0x378] sm:$0xff] %v403
                %v405 = vld [vmem:[%s179 + $0x700] sm:$0xff]
                %406 = vst [vmem:[%s180 + $0x380] sm:$0xff] %v405
                %v407 = vld [vmem:[%s179 + $0x708] sm:$0xff]
                %408 = vst [vmem:[%s180 + $0x388] sm:$0xff] %v407
                %v409 = vld [vmem:[%s179 + $0x720] sm:$0xff]
                %410 = vst [vmem:[%s180 + $0x390] sm:$0xff] %v409
                %v411 = vld [vmem:[%s179 + $0x728] sm:$0xff]
                %412 = vst [vmem:[%s180 + $0x398] sm:$0xff] %v411
                %v413 = vld [vmem:[%s179 + $0x740] sm:$0xff]
                %414 = vst [vmem:[%s180 + $0x3a0] sm:$0xff] %v413
                %v415 = vld [vmem:[%s179 + $0x748] sm:$0xff]
                %416 = vst [vmem:[%s180 + $0x3a8] sm:$0xff] %v415
                %v417 = vld [vmem:[%s179 + $0x760] sm:$0xff]
                %418 = vst [vmem:[%s180 + $0x3b0] sm:$0xff] %v417
                %v419 = vld [vmem:[%s179 + $0x768] sm:$0xff]
                %420 = vst [vmem:[%s180 + $0x3b8] sm:$0xff] %v419
                %v421 = vld [vmem:[%s179 + $0x780] sm:$0xff]
                %422 = vst [vmem:[%s180 + $0x3c0] sm:$0xff] %v421
                %v423 = vld [vmem:[%s179 + $0x788] sm:$0xff]
                %424 = vst [vmem:[%s180 + $0x3c8] sm:$0xff] %v423
                %v425 = vld [vmem:[%s179 + $0x7a0] sm:$0xff]
                %426 = vst [vmem:[%s180 + $0x3d0] sm:$0xff] %v425
                %v427 = vld [vmem:[%s179 + $0x7a8] sm:$0xff]
                %428 = vst [vmem:[%s180 + $0x3d8] sm:$0xff] %v427
                %v429 = vld [vmem:[%s179 + $0x7c0] sm:$0xff]
                %430 = vst [vmem:[%s180 + $0x3e0] sm:$0xff] %v429
                %v431 = vld [vmem:[%s179 + $0x7c8] sm:$0xff]
                %432 = vst [vmem:[%s180 + $0x3e8] sm:$0xff] %v431
                %v433 = vld [vmem:[%s179 + $0x7e0] sm:$0xff]
                %434 = vst [vmem:[%s180 + $0x3f0] sm:$0xff] %v433
                %v435 = vld [vmem:[%s179 + $0x7e8] sm:$0xff]
                %436 = vst [vmem:[%s180 + $0x3f8] sm:$0xff] %v435
              $region37: #{patch_discriminator_forward.9} parent=31 // loop_footer
                %s178 = sadd.s32 1, %s174
              $region38: #{patch_discriminator_forward.9} parent=31 // loop_footer_branch
                %173 = sbr.rel target = $region34
              $region39: #{patch_discriminator_forward.9} parent=31 // loop_exit
                _
            $region32: #{patch_discriminator_forward.9} parent=27 // pred_fallthru
              _
            // Predicated region
            $region40: #{patch_discriminator_forward.9} parent=27 // pred_check
              _
            $region41: #{patch_discriminator_forward.9} parent=27 // pred_check_branch
              %438 = sbr.rel target = $region43
            $region42: #{patch_discriminator_forward.9} parent=27 // pred_region
              _
            $region43: #{patch_discriminator_forward.9} parent=27 // pred_fallthru
              _
          $region28: #{patch_discriminator_forward.9} parent=23 // pred_fallthru
            _
          %439 = vnop
        $region24: #{patch_discriminator_forward.9} parent=19 // pred_fallthru
          _
      $region20: #{patch_discriminator_forward.9} parent=5 // pred_fallthru
        _
      %p440 = scmp.le.s32.totalorder 1, %s10
      %p441 = scmp.lt.s32.totalorder %s10, 3
      %p442 = pnand %p440, %p441
      %p443 = pneg %p442
      // Predicated region
      $region44: #{patch_discriminator_forward.9} parent=5 // pred_check
        _
      $region45: #{patch_discriminator_forward.9} parent=5 // pred_check_branch
        %445 = sbr.rel (%p442) target = $region47
      $region46: #{patch_discriminator_forward.9} parent=5 // pred_region
        %s446 = ssub.s32 %s10, 1
        %s447 = sand.u32 %s63, 1
        %s448 = sand.u32 %s63, 1
        %s449 = smul.addr %s448, 1024
        %s450 = scalar_lea.vmem [#allocation2], %s449
        // Predicated region
        $region48: #{patch_discriminator_forward.9} parent=46 // pred_check
          %p451 = pneg %p76
        $region49: #{patch_discriminator_forward.9} parent=46 // pred_check_branch
          %453 = sbr.rel (%p451) target = $region51
        $region50: #{patch_discriminator_forward.9} parent=46 // pred_region
          _
        $region51: #{patch_discriminator_forward.9} parent=46 // pred_fallthru
          _
        %s454 = smul.u32 4, %s20
        %p455 = scmp.lt.s32.totalorder %s454, 3
        %s456 = scalar_select %p455, %s454, 3
        %s457 = smul.addr %s456, 4
        %s458 = scalar_lea.vmem %s0, %s457
        %p459 = pneg %p48
        %p460 = pneg %p45
        %s461 = sand.u32 %s63, 1
        %s462 = sand.u32 %s63, 1
        %s463 = smul.addr %s462, 1024
        %s464 = scalar_lea.vmem [#allocation2], %s463
        %p465 = pneg %p76
        %p466 = pneg %p73
        %p467 = pneg %p102
        %p468 = pneg %p99
        %s469 = sand.u32 %s89, 1
        %s470 = sand.u32 %s89, 1
        %s471 = smul.addr %s470, 32
        %s472 = scalar_lea.vmem [#allocation3], %s471
        %p473 = pneg %p128
        %p474 = pneg %p125
        %p475 = scmp.lt.s32.totalorder %s19, 1
        %s476 = scalar_select %p475, %s19, 1
        %s477 = smul.addr %s476, 2
        %s478 = smul.addr %s477, 8
        %s479 = scalar_lea.vmem %s3, %s478
        %s480 = smul.u32 4, %s20
        %p481 = scmp.lt.s32.totalorder %s480, 3
        %s482 = scalar_select %p481, %s480, 3
        %s483 = smul.addr %s482, 4
        %s484 = scalar_lea.vmem %s0, %s483
        %s485 = smul.u32 4, %s20
        %s486 = smul.u32 64, %s20
        %s487 = smul.u32 4, %s19
        %s488 = smul.u32 4, %s19
        %p489 = scmp.lt.s32.totalorder %s19, 1
        %s490 = scalar_select %p489, %s19, 1
        %s491 = smul.addr %s490, 2
        %s492 = smul.addr %s491, 8
        %s493 = scalar_lea.vmem %s3, %s492
        %v494 = vld [vmem:[%s484] sm:$0xff]
        %v495 = vld [vmem:[%s484 + $0x8] sm:$0xff]
        %v496 = vld [vmem:[%s484 + $0x10] sm:$0xff]
        %v497 = vld [vmem:[%s484 + $0x18] sm:$0xff]
        %v498 = vld [vmem:[%s450] sm:$0xff]
        %v499 = vld [vmem:[%s450 + $0x8] sm:$0xff]
        %v500 = vld [vmem:[%s450 + $0x10] sm:$0xff]
        %v501 = vld [vmem:[%s450 + $0x18] sm:$0xff]
        %v502 = vld [vmem:[%s450 + $0x20] sm:$0xff]
        %v503 = vld [vmem:[%s450 + $0x28] sm:$0xff]
        %v504 = vld [vmem:[%s450 + $0x30] sm:$0xff]
        %v505 = vld [vmem:[%s450 + $0x38] sm:$0xff]
        %v506 = vld [vmem:[%s450 + $0x40] sm:$0xff]
        %v507 = vld [vmem:[%s450 + $0x48] sm:$0xff]
        %v508 = vld [vmem:[%s450 + $0x50] sm:$0xff]
        %v509 = vld [vmem:[%s450 + $0x58] sm:$0xff]
        %v510 = vld [vmem:[%s450 + $0x60] sm:$0xff]
        %v511 = vld [vmem:[%s450 + $0x68] sm:$0xff]
        %v512 = vld [vmem:[%s450 + $0x70] sm:$0xff]
        %v513 = vld [vmem:[%s450 + $0x78] sm:$0xff]
        %v514 = vld [vmem:[%s450 + $0x80] sm:$0xff]
        %v515 = vld [vmem:[%s450 + $0x88] sm:$0xff]
        %v516 = vld [vmem:[%s450 + $0x90] sm:$0xff]
        %v517 = vld [vmem:[%s450 + $0x98] sm:$0xff]
        %v518 = vld [vmem:[%s450 + $0xa0] sm:$0xff]
        %v519 = vld [vmem:[%s450 + $0xa8] sm:$0xff]
        %v520 = vld [vmem:[%s450 + $0xb0] sm:$0xff]
        %v521 = vld [vmem:[%s450 + $0xb8] sm:$0xff]
        %v522 = vld [vmem:[%s450 + $0xc0] sm:$0xff]
        %v523 = vld [vmem:[%s450 + $0xc8] sm:$0xff]
        %v524 = vld [vmem:[%s450 + $0xd0] sm:$0xff]
        %v525 = vld [vmem:[%s450 + $0xd8] sm:$0xff]
        %v526 = vld [vmem:[%s450 + $0xe0] sm:$0xff]
        %v527 = vld [vmem:[%s450 + $0xe8] sm:$0xff]
        %v528 = vld [vmem:[%s450 + $0xf0] sm:$0xff]
        %v529 = vld [vmem:[%s450 + $0xf8] sm:$0xff]
        %v530 = vld [vmem:[%s450 + $0x100] sm:$0xff]
        %v531 = vld [vmem:[%s450 + $0x108] sm:$0xff]
        %v532 = vld [vmem:[%s450 + $0x110] sm:$0xff]
        %v533 = vld [vmem:[%s450 + $0x118] sm:$0xff]
        %v534 = vld [vmem:[%s450 + $0x120] sm:$0xff]
        %v535 = vld [vmem:[%s450 + $0x128] sm:$0xff]
        %v536 = vld [vmem:[%s450 + $0x130] sm:$0xff]
        %v537 = vld [vmem:[%s450 + $0x138] sm:$0xff]
        %v538 = vld [vmem:[%s450 + $0x140] sm:$0xff]
        %v539 = vld [vmem:[%s450 + $0x148] sm:$0xff]
        %v540 = vld [vmem:[%s450 + $0x150] sm:$0xff]
        %v541 = vld [vmem:[%s450 + $0x158] sm:$0xff]
        %v542 = vld [vmem:[%s450 + $0x160] sm:$0xff]
        %v543 = vld [vmem:[%s450 + $0x168] sm:$0xff]
        %v544 = vld [vmem:[%s450 + $0x170] sm:$0xff]
        %v545 = vld [vmem:[%s450 + $0x178] sm:$0xff]
        %v546 = vld [vmem:[%s450 + $0x180] sm:$0xff]
        %v547 = vld [vmem:[%s450 + $0x188] sm:$0xff]
        %v548 = vld [vmem:[%s450 + $0x190] sm:$0xff]
        %v549 = vld [vmem:[%s450 + $0x198] sm:$0xff]
        %v550 = vld [vmem:[%s450 + $0x1a0] sm:$0xff]
        %v551 = vld [vmem:[%s450 + $0x1a8] sm:$0xff]
        %v552 = vld [vmem:[%s450 + $0x1b0] sm:$0xff]
        %v553 = vld [vmem:[%s450 + $0x1b8] sm:$0xff]
        %v554 = vld [vmem:[%s450 + $0x1c0] sm:$0xff]
        %v555 = vld [vmem:[%s450 + $0x1c8] sm:$0xff]
        %v556 = vld [vmem:[%s450 + $0x1d0] sm:$0xff]
        %v557 = vld [vmem:[%s450 + $0x1d8] sm:$0xff]
        %v558 = vld [vmem:[%s450 + $0x1e0] sm:$0xff]
        %v559 = vld [vmem:[%s450 + $0x1e8] sm:$0xff]
        %v560 = vld [vmem:[%s450 + $0x1f0] sm:$0xff]
        %v561 = vld [vmem:[%s450 + $0x1f8] sm:$0xff]
        %v562 = vld [vmem:[%s450 + $0x200] sm:$0xff]
        %v563 = vld [vmem:[%s450 + $0x208] sm:$0xff]
        %v564 = vld [vmem:[%s450 + $0x210] sm:$0xff]
        %v565 = vld [vmem:[%s450 + $0x218] sm:$0xff]
        %v566 = vld [vmem:[%s450 + $0x220] sm:$0xff]
        %v567 = vld [vmem:[%s450 + $0x228] sm:$0xff]
        %v568 = vld [vmem:[%s450 + $0x230] sm:$0xff]
        %v569 = vld [vmem:[%s450 + $0x238] sm:$0xff]
        %v570 = vld [vmem:[%s450 + $0x240] sm:$0xff]
        %v571 = vld [vmem:[%s450 + $0x248] sm:$0xff]
        %v572 = vld [vmem:[%s450 + $0x250] sm:$0xff]
        %v573 = vld [vmem:[%s450 + $0x258] sm:$0xff]
        %v574 = vld [vmem:[%s450 + $0x260] sm:$0xff]
        %v575 = vld [vmem:[%s450 + $0x268] sm:$0xff]
        %v576 = vld [vmem:[%s450 + $0x270] sm:$0xff]
        %v577 = vld [vmem:[%s450 + $0x278] sm:$0xff]
        %v578 = vld [vmem:[%s450 + $0x280] sm:$0xff]
        %v579 = vld [vmem:[%s450 + $0x288] sm:$0xff]
        %v580 = vld [vmem:[%s450 + $0x290] sm:$0xff]
        %v581 = vld [vmem:[%s450 + $0x298] sm:$0xff]
        %v582 = vld [vmem:[%s450 + $0x2a0] sm:$0xff]
        %v583 = vld [vmem:[%s450 + $0x2a8] sm:$0xff]
        %v584 = vld [vmem:[%s450 + $0x2b0] sm:$0xff]
        %v585 = vld [vmem:[%s450 + $0x2b8] sm:$0xff]
        %v586 = vld [vmem:[%s450 + $0x2c0] sm:$0xff]
        %v587 = vld [vmem:[%s450 + $0x2c8] sm:$0xff]
        %v588 = vld [vmem:[%s450 + $0x2d0] sm:$0xff]
        %v589 = vld [vmem:[%s450 + $0x2d8] sm:$0xff]
        %v590 = vld [vmem:[%s450 + $0x2e0] sm:$0xff]
        %v591 = vld [vmem:[%s450 + $0x2e8] sm:$0xff]
        %v592 = vld [vmem:[%s450 + $0x2f0] sm:$0xff]
        %v593 = vld [vmem:[%s450 + $0x2f8] sm:$0xff]
        %v594 = vld [vmem:[%s450 + $0x300] sm:$0xff]
        %v595 = vld [vmem:[%s450 + $0x308] sm:$0xff]
        %v596 = vld [vmem:[%s450 + $0x310] sm:$0xff]
        %v597 = vld [vmem:[%s450 + $0x318] sm:$0xff]
        %v598 = vld [vmem:[%s450 + $0x320] sm:$0xff]
        %v599 = vld [vmem:[%s450 + $0x328] sm:$0xff]
        %v600 = vld [vmem:[%s450 + $0x330] sm:$0xff]
        %v601 = vld [vmem:[%s450 + $0x338] sm:$0xff]
        %v602 = vld [vmem:[%s450 + $0x340] sm:$0xff]
        %v603 = vld [vmem:[%s450 + $0x348] sm:$0xff]
        %v604 = vld [vmem:[%s450 + $0x350] sm:$0xff]
        %v605 = vld [vmem:[%s450 + $0x358] sm:$0xff]
        %v606 = vld [vmem:[%s450 + $0x360] sm:$0xff]
        %v607 = vld [vmem:[%s450 + $0x368] sm:$0xff]
        %v608 = vld [vmem:[%s450 + $0x370] sm:$0xff]
        %v609 = vld [vmem:[%s450 + $0x378] sm:$0xff]
        %v610 = vld [vmem:[%s450 + $0x380] sm:$0xff]
        %v611 = vld [vmem:[%s450 + $0x388] sm:$0xff]
        %v612 = vld [vmem:[%s450 + $0x390] sm:$0xff]
        %v613 = vld [vmem:[%s450 + $0x398] sm:$0xff]
        %v614 = vld [vmem:[%s450 + $0x3a0] sm:$0xff]
        %v615 = vld [vmem:[%s450 + $0x3a8] sm:$0xff]
        %v616 = vld [vmem:[%s450 + $0x3b0] sm:$0xff]
        %v617 = vld [vmem:[%s450 + $0x3b8] sm:$0xff]
        %v618 = vld [vmem:[%s450 + $0x3c0] sm:$0xff]
        %v619 = vld [vmem:[%s450 + $0x3c8] sm:$0xff]
        %v620 = vld [vmem:[%s450 + $0x3d0] sm:$0xff]
        %v621 = vld [vmem:[%s450 + $0x3d8] sm:$0xff]
        %v622 = vld [vmem:[%s450 + $0x3e0] sm:$0xff]
        %v623 = vld [vmem:[%s450 + $0x3e8] sm:$0xff]
        %v624 = vld [vmem:[%s450 + $0x3f0] sm:$0xff]
        %v625 = vld [vmem:[%s450 + $0x3f8] sm:$0xff]
        %v630 = vunpack.c.l.b16 %v494
        %v631 = vunpack.c.h.b16 %v494
        %v632 = vunpack.c.l.b16 %v495
        %v633 = vunpack.c.h.b16 %v495
        %v634 = vunpack.c.l.b16 %v496
        %v635 = vunpack.c.h.b16 %v496
        %v636 = vunpack.c.l.b16 %v497
        %v637 = vunpack.c.h.b16 %v497
        %v638 = vpack.c.b16 %v634, %v630
        %v639 = vpack.c.b16 %v635, %v631
        %v640 = vpack.c.b16 %v636, %v632
        %v641 = vpack.c.b16 %v637, %v633
        %v774 = vunpack.c.l.b16 %v498
        %v775 = vunpack.c.h.b16 %v498
        %v776 = vunpack.c.l.b16 %v499
        %v777 = vunpack.c.h.b16 %v499
        %v778 = vunpack.c.l.b16 %v500
        %v779 = vunpack.c.h.b16 %v500
        %v780 = vunpack.c.l.b16 %v501
        %v781 = vunpack.c.h.b16 %v501
        %v782 = vunpack.c.l.b16 %v502
        %v783 = vunpack.c.h.b16 %v502
        %v784 = vunpack.c.l.b16 %v503
        %v785 = vunpack.c.h.b16 %v503
        %v786 = vunpack.c.l.b16 %v504
        %v787 = vunpack.c.h.b16 %v504
        %v788 = vunpack.c.l.b16 %v505
        %v789 = vunpack.c.h.b16 %v505
        %v790 = vunpack.c.l.b16 %v506
        %v791 = vunpack.c.h.b16 %v506
        %v792 = vunpack.c.l.b16 %v507
        %v793 = vunpack.c.h.b16 %v507
        %v794 = vunpack.c.l.b16 %v508
        %v795 = vunpack.c.h.b16 %v508
        %v796 = vunpack.c.l.b16 %v509
        %v797 = vunpack.c.h.b16 %v509
        %v798 = vunpack.c.l.b16 %v510
        %v799 = vunpack.c.h.b16 %v510
        %v800 = vunpack.c.l.b16 %v511
        %v801 = vunpack.c.h.b16 %v511
        %v802 = vunpack.c.l.b16 %v512
        %v803 = vunpack.c.h.b16 %v512
        %v804 = vunpack.c.l.b16 %v513
        %v805 = vunpack.c.h.b16 %v513
        %v806 = vunpack.c.l.b16 %v514
        %v807 = vunpack.c.h.b16 %v514
        %v808 = vunpack.c.l.b16 %v515
        %v809 = vunpack.c.h.b16 %v515
        %v810 = vunpack.c.l.b16 %v516
        %v811 = vunpack.c.h.b16 %v516
        %v812 = vunpack.c.l.b16 %v517
        %v813 = vunpack.c.h.b16 %v517
        %v814 = vunpack.c.l.b16 %v518
        %v815 = vunpack.c.h.b16 %v518
        %v816 = vunpack.c.l.b16 %v519
        %v817 = vunpack.c.h.b16 %v519
        %v818 = vunpack.c.l.b16 %v520
        %v819 = vunpack.c.h.b16 %v520
        %v820 = vunpack.c.l.b16 %v521
        %v821 = vunpack.c.h.b16 %v521
        %v822 = vunpack.c.l.b16 %v522
        %v823 = vunpack.c.h.b16 %v522
        %v824 = vunpack.c.l.b16 %v523
        %v825 = vunpack.c.h.b16 %v523
        %v826 = vunpack.c.l.b16 %v524
        %v827 = vunpack.c.h.b16 %v524
        %v828 = vunpack.c.l.b16 %v525
        %v829 = vunpack.c.h.b16 %v525
        %v830 = vunpack.c.l.b16 %v526
        %v831 = vunpack.c.h.b16 %v526
        %v832 = vunpack.c.l.b16 %v527
        %v833 = vunpack.c.h.b16 %v527
        %v834 = vunpack.c.l.b16 %v528
        %v835 = vunpack.c.h.b16 %v528
        %v836 = vunpack.c.l.b16 %v529
        %v837 = vunpack.c.h.b16 %v529
        %v838 = vunpack.c.l.b16 %v530
        %v839 = vunpack.c.h.b16 %v530
        %v840 = vunpack.c.l.b16 %v531
        %v841 = vunpack.c.h.b16 %v531
        %v842 = vunpack.c.l.b16 %v532
        %v843 = vunpack.c.h.b16 %v532
        %v844 = vunpack.c.l.b16 %v533
        %v845 = vunpack.c.h.b16 %v533
        %v846 = vunpack.c.l.b16 %v534
        %v847 = vunpack.c.h.b16 %v534
        %v848 = vunpack.c.l.b16 %v535
        %v849 = vunpack.c.h.b16 %v535
        %v850 = vunpack.c.l.b16 %v536
        %v851 = vunpack.c.h.b16 %v536
        %v852 = vunpack.c.l.b16 %v537
        %v853 = vunpack.c.h.b16 %v537
        %v854 = vunpack.c.l.b16 %v538
        %v855 = vunpack.c.h.b16 %v538
        %v856 = vunpack.c.l.b16 %v539
        %v857 = vunpack.c.h.b16 %v539
        %v858 = vunpack.c.l.b16 %v540
        %v859 = vunpack.c.h.b16 %v540
        %v860 = vunpack.c.l.b16 %v541
        %v861 = vunpack.c.h.b16 %v541
        %v862 = vunpack.c.l.b16 %v542
        %v863 = vunpack.c.h.b16 %v542
        %v864 = vunpack.c.l.b16 %v543
        %v865 = vunpack.c.h.b16 %v543
        %v866 = vunpack.c.l.b16 %v544
        %v867 = vunpack.c.h.b16 %v544
        %v868 = vunpack.c.l.b16 %v545
        %v869 = vunpack.c.h.b16 %v545
        %v870 = vunpack.c.l.b16 %v546
        %v871 = vunpack.c.h.b16 %v546
        %v872 = vunpack.c.l.b16 %v547
        %v873 = vunpack.c.h.b16 %v547
        %v874 = vunpack.c.l.b16 %v548
        %v875 = vunpack.c.h.b16 %v548
        %v876 = vunpack.c.l.b16 %v549
        %v877 = vunpack.c.h.b16 %v549
        %v878 = vunpack.c.l.b16 %v550
        %v879 = vunpack.c.h.b16 %v550
        %v880 = vunpack.c.l.b16 %v551
        %v881 = vunpack.c.h.b16 %v551
        %v882 = vunpack.c.l.b16 %v552
        %v883 = vunpack.c.h.b16 %v552
        %v884 = vunpack.c.l.b16 %v553
        %v885 = vunpack.c.h.b16 %v553
        %v886 = vunpack.c.l.b16 %v554
        %v887 = vunpack.c.h.b16 %v554
        %v888 = vunpack.c.l.b16 %v555
        %v889 = vunpack.c.h.b16 %v555
        %v890 = vunpack.c.l.b16 %v556
        %v891 = vunpack.c.h.b16 %v556
        %v892 = vunpack.c.l.b16 %v557
        %v893 = vunpack.c.h.b16 %v557
        %v894 = vunpack.c.l.b16 %v558
        %v895 = vunpack.c.h.b16 %v558
        %v896 = vunpack.c.l.b16 %v559
        %v897 = vunpack.c.h.b16 %v559
        %v898 = vunpack.c.l.b16 %v560
        %v899 = vunpack.c.h.b16 %v560
        %v900 = vunpack.c.l.b16 %v561
        %v901 = vunpack.c.h.b16 %v561
        %v902 = vunpack.c.l.b16 %v562
        %v903 = vunpack.c.h.b16 %v562
        %v904 = vunpack.c.l.b16 %v563
        %v905 = vunpack.c.h.b16 %v563
        %v906 = vunpack.c.l.b16 %v564
        %v907 = vunpack.c.h.b16 %v564
        %v908 = vunpack.c.l.b16 %v565
        %v909 = vunpack.c.h.b16 %v565
        %v910 = vunpack.c.l.b16 %v566
        %v911 = vunpack.c.h.b16 %v566
        %v912 = vunpack.c.l.b16 %v567
        %v913 = vunpack.c.h.b16 %v567
        %v914 = vunpack.c.l.b16 %v568
        %v915 = vunpack.c.h.b16 %v568
        %v916 = vunpack.c.l.b16 %v569
        %v917 = vunpack.c.h.b16 %v569
        %v918 = vunpack.c.l.b16 %v570
        %v919 = vunpack.c.h.b16 %v570
        %v920 = vunpack.c.l.b16 %v571
        %v921 = vunpack.c.h.b16 %v571
        %v922 = vunpack.c.l.b16 %v572
        %v923 = vunpack.c.h.b16 %v572
        %v924 = vunpack.c.l.b16 %v573
        %v925 = vunpack.c.h.b16 %v573
        %v926 = vunpack.c.l.b16 %v574
        %v927 = vunpack.c.h.b16 %v574
        %v928 = vunpack.c.l.b16 %v575
        %v929 = vunpack.c.h.b16 %v575
        %v930 = vunpack.c.l.b16 %v576
        %v931 = vunpack.c.h.b16 %v576
        %v932 = vunpack.c.l.b16 %v577
        %v933 = vunpack.c.h.b16 %v577
        %v934 = vunpack.c.l.b16 %v578
        %v935 = vunpack.c.h.b16 %v578
        %v936 = vunpack.c.l.b16 %v579
        %v937 = vunpack.c.h.b16 %v579
        %v938 = vunpack.c.l.b16 %v580
        %v939 = vunpack.c.h.b16 %v580
        %v940 = vunpack.c.l.b16 %v581
        %v941 = vunpack.c.h.b16 %v581
        %v942 = vunpack.c.l.b16 %v582
        %v943 = vunpack.c.h.b16 %v582
        %v944 = vunpack.c.l.b16 %v583
        %v945 = vunpack.c.h.b16 %v583
        %v946 = vunpack.c.l.b16 %v584
        %v947 = vunpack.c.h.b16 %v584
        %v948 = vunpack.c.l.b16 %v585
        %v949 = vunpack.c.h.b16 %v585
        %v950 = vunpack.c.l.b16 %v586
        %v951 = vunpack.c.h.b16 %v586
        %v952 = vunpack.c.l.b16 %v587
        %v953 = vunpack.c.h.b16 %v587
        %v954 = vunpack.c.l.b16 %v588
        %v955 = vunpack.c.h.b16 %v588
        %v956 = vunpack.c.l.b16 %v589
        %v957 = vunpack.c.h.b16 %v589
        %v958 = vunpack.c.l.b16 %v590
        %v959 = vunpack.c.h.b16 %v590
        %v960 = vunpack.c.l.b16 %v591
        %v961 = vunpack.c.h.b16 %v591
        %v962 = vunpack.c.l.b16 %v592
        %v963 = vunpack.c.h.b16 %v592
        %v964 = vunpack.c.l.b16 %v593
        %v965 = vunpack.c.h.b16 %v593
        %v966 = vunpack.c.l.b16 %v594
        %v967 = vunpack.c.h.b16 %v594
        %v968 = vunpack.c.l.b16 %v595
        %v969 = vunpack.c.h.b16 %v595
        %v970 = vunpack.c.l.b16 %v596
        %v971 = vunpack.c.h.b16 %v596
        %v972 = vunpack.c.l.b16 %v597
        %v973 = vunpack.c.h.b16 %v597
        %v974 = vunpack.c.l.b16 %v598
        %v975 = vunpack.c.h.b16 %v598
        %v976 = vunpack.c.l.b16 %v599
        %v977 = vunpack.c.h.b16 %v599
        %v978 = vunpack.c.l.b16 %v600
        %v979 = vunpack.c.h.b16 %v600
        %v980 = vunpack.c.l.b16 %v601
        %v981 = vunpack.c.h.b16 %v601
        %v982 = vunpack.c.l.b16 %v602
        %v983 = vunpack.c.h.b16 %v602
        %v984 = vunpack.c.l.b16 %v603
        %v985 = vunpack.c.h.b16 %v603
        %v986 = vunpack.c.l.b16 %v604
        %v987 = vunpack.c.h.b16 %v604
        %v988 = vunpack.c.l.b16 %v605
        %v989 = vunpack.c.h.b16 %v605
        %v990 = vunpack.c.l.b16 %v606
        %v991 = vunpack.c.h.b16 %v606
        %v992 = vunpack.c.l.b16 %v607
        %v993 = vunpack.c.h.b16 %v607
        %v994 = vunpack.c.l.b16 %v608
        %v995 = vunpack.c.h.b16 %v608
        %v996 = vunpack.c.l.b16 %v609
        %v997 = vunpack.c.h.b16 %v609
        %v998 = vunpack.c.l.b16 %v610
        %v999 = vunpack.c.h.b16 %v610
        %v1000 = vunpack.c.l.b16 %v611
        %v1001 = vunpack.c.h.b16 %v611
        %v1002 = vunpack.c.l.b16 %v612
        %v1003 = vunpack.c.h.b16 %v612
        %v1004 = vunpack.c.l.b16 %v613
        %v1005 = vunpack.c.h.b16 %v613
        %v1006 = vunpack.c.l.b16 %v614
        %v1007 = vunpack.c.h.b16 %v614
        %v1008 = vunpack.c.l.b16 %v615
        %v1009 = vunpack.c.h.b16 %v615
        %v1010 = vunpack.c.l.b16 %v616
        %v1011 = vunpack.c.h.b16 %v616
        %v1012 = vunpack.c.l.b16 %v617
        %v1013 = vunpack.c.h.b16 %v617
        %v1014 = vunpack.c.l.b16 %v618
        %v1015 = vunpack.c.h.b16 %v618
        %v1016 = vunpack.c.l.b16 %v619
        %v1017 = vunpack.c.h.b16 %v619
        %v1018 = vunpack.c.l.b16 %v620
        %v1019 = vunpack.c.h.b16 %v620
        %v1020 = vunpack.c.l.b16 %v621
        %v1021 = vunpack.c.h.b16 %v621
        %v1022 = vunpack.c.l.b16 %v622
        %v1023 = vunpack.c.h.b16 %v622
        %v1024 = vunpack.c.l.b16 %v623
        %v1025 = vunpack.c.h.b16 %v623
        %v1026 = vunpack.c.l.b16 %v624
        %v1027 = vunpack.c.h.b16 %v624
        %v1028 = vunpack.c.l.b16 %v625
        %v1029 = vunpack.c.h.b16 %v625
        %v1030 = vpack.c.b16 %v778, %v774
        %v1031 = vpack.c.b16 %v779, %v775
        %v1032 = vpack.c.b16 %v780, %v776
        %v1033 = vpack.c.b16 %v781, %v777
        %v1034 = vpack.c.b16 %v786, %v782
        %v1035 = vpack.c.b16 %v787, %v783
        %v1036 = vpack.c.b16 %v788, %v784
        %v1037 = vpack.c.b16 %v789, %v785
        %v1038 = vpack.c.b16 %v794, %v790
        %v1039 = vpack.c.b16 %v795, %v791
        %v1040 = vpack.c.b16 %v796, %v792
        %v1041 = vpack.c.b16 %v797, %v793
        %v1042 = vpack.c.b16 %v802, %v798
        %v1043 = vpack.c.b16 %v803, %v799
        %v1044 = vpack.c.b16 %v804, %v800
        %v1045 = vpack.c.b16 %v805, %v801
        %v1046 = vpack.c.b16 %v810, %v806
        %v1047 = vpack.c.b16 %v811, %v807
        %v1048 = vpack.c.b16 %v812, %v808
        %v1049 = vpack.c.b16 %v813, %v809
        %v1050 = vpack.c.b16 %v818, %v814
        %v1051 = vpack.c.b16 %v819, %v815
        %v1052 = vpack.c.b16 %v820, %v816
        %v1053 = vpack.c.b16 %v821, %v817
        %v1054 = vpack.c.b16 %v826, %v822
        %v1055 = vpack.c.b16 %v827, %v823
        %v1056 = vpack.c.b16 %v828, %v824
        %v1057 = vpack.c.b16 %v829, %v825
        %v1058 = vpack.c.b16 %v834, %v830
        %v1059 = vpack.c.b16 %v835, %v831
        %v1060 = vpack.c.b16 %v836, %v832
        %v1061 = vpack.c.b16 %v837, %v833
        %v1062 = vpack.c.b16 %v842, %v838
        %v1063 = vpack.c.b16 %v843, %v839
        %v1064 = vpack.c.b16 %v844, %v840
        %v1065 = vpack.c.b16 %v845, %v841
        %v1066 = vpack.c.b16 %v850, %v846
        %v1067 = vpack.c.b16 %v851, %v847
        %v1068 = vpack.c.b16 %v852, %v848
        %v1069 = vpack.c.b16 %v853, %v849
        %v1070 = vpack.c.b16 %v858, %v854
        %v1071 = vpack.c.b16 %v859, %v855
        %v1072 = vpack.c.b16 %v860, %v856
        %v1073 = vpack.c.b16 %v861, %v857
        %v1074 = vpack.c.b16 %v866, %v862
        %v1075 = vpack.c.b16 %v867, %v863
        %v1076 = vpack.c.b16 %v868, %v864
        %v1077 = vpack.c.b16 %v869, %v865
        %v1078 = vpack.c.b16 %v874, %v870
        %v1079 = vpack.c.b16 %v875, %v871
        %v1080 = vpack.c.b16 %v876, %v872
        %v1081 = vpack.c.b16 %v877, %v873
        %v1082 = vpack.c.b16 %v882, %v878
        %v1083 = vpack.c.b16 %v883, %v879
        %v1084 = vpack.c.b16 %v884, %v880
        %v1085 = vpack.c.b16 %v885, %v881
        %v1086 = vpack.c.b16 %v890, %v886
        %v1087 = vpack.c.b16 %v891, %v887
        %v1088 = vpack.c.b16 %v892, %v888
        %v1089 = vpack.c.b16 %v893, %v889
        %v1090 = vpack.c.b16 %v898, %v894
        %v1091 = vpack.c.b16 %v899, %v895
        %v1092 = vpack.c.b16 %v900, %v896
        %v1093 = vpack.c.b16 %v901, %v897
        %v1094 = vpack.c.b16 %v906, %v902
        %v1095 = vpack.c.b16 %v907, %v903
        %v1096 = vpack.c.b16 %v908, %v904
        %v1097 = vpack.c.b16 %v909, %v905
        %v1098 = vpack.c.b16 %v914, %v910
        %v1099 = vpack.c.b16 %v915, %v911
        %v1100 = vpack.c.b16 %v916, %v912
        %v1101 = vpack.c.b16 %v917, %v913
        %v1102 = vpack.c.b16 %v922, %v918
        %v1103 = vpack.c.b16 %v923, %v919
        %v1104 = vpack.c.b16 %v924, %v920
        %v1105 = vpack.c.b16 %v925, %v921
        %v1106 = vpack.c.b16 %v930, %v926
        %v1107 = vpack.c.b16 %v931, %v927
        %v1108 = vpack.c.b16 %v932, %v928
        %v1109 = vpack.c.b16 %v933, %v929
        %v1110 = vpack.c.b16 %v938, %v934
        %v1111 = vpack.c.b16 %v939, %v935
        %v1112 = vpack.c.b16 %v940, %v936
        %v1113 = vpack.c.b16 %v941, %v937
        %v1114 = vpack.c.b16 %v946, %v942
        %v1115 = vpack.c.b16 %v947, %v943
        %v1116 = vpack.c.b16 %v948, %v944
        %v1117 = vpack.c.b16 %v949, %v945
        %v1118 = vpack.c.b16 %v954, %v950
        %v1119 = vpack.c.b16 %v955, %v951
        %v1120 = vpack.c.b16 %v956, %v952
        %v1121 = vpack.c.b16 %v957, %v953
        %v1122 = vpack.c.b16 %v962, %v958
        %v1123 = vpack.c.b16 %v963, %v959
        %v1124 = vpack.c.b16 %v964, %v960
        %v1125 = vpack.c.b16 %v965, %v961
        %v1126 = vpack.c.b16 %v970, %v966
        %v1127 = vpack.c.b16 %v971, %v967
        %v1128 = vpack.c.b16 %v972, %v968
        %v1129 = vpack.c.b16 %v973, %v969
        %v1130 = vpack.c.b16 %v978, %v974
        %v1131 = vpack.c.b16 %v979, %v975
        %v1132 = vpack.c.b16 %v980, %v976
        %v1133 = vpack.c.b16 %v981, %v977
        %v1134 = vpack.c.b16 %v986, %v982
        %v1135 = vpack.c.b16 %v987, %v983
        %v1136 = vpack.c.b16 %v988, %v984
        %v1137 = vpack.c.b16 %v989, %v985
        %v1138 = vpack.c.b16 %v994, %v990
        %v1139 = vpack.c.b16 %v995, %v991
        %v1140 = vpack.c.b16 %v996, %v992
        %v1141 = vpack.c.b16 %v997, %v993
        %v1142 = vpack.c.b16 %v1002, %v998
        %v1143 = vpack.c.b16 %v1003, %v999
        %v1144 = vpack.c.b16 %v1004, %v1000
        %v1145 = vpack.c.b16 %v1005, %v1001
        %v1146 = vpack.c.b16 %v1010, %v1006
        %v1147 = vpack.c.b16 %v1011, %v1007
        %v1148 = vpack.c.b16 %v1012, %v1008
        %v1149 = vpack.c.b16 %v1013, %v1009
        %v1150 = vpack.c.b16 %v1018, %v1014
        %v1151 = vpack.c.b16 %v1019, %v1015
        %v1152 = vpack.c.b16 %v1020, %v1016
        %v1153 = vpack.c.b16 %v1021, %v1017
        %v1154 = vpack.c.b16 %v1026, %v1022
        %v1155 = vpack.c.b16 %v1027, %v1023
        %v1156 = vpack.c.b16 %v1028, %v1024
        %v1157 = vpack.c.b16 %v1029, %v1025
        %1286 = vmatprep.subr.bf16.mxu0 %v1031
        %1287 = vmatpush1.bf16.msra.mxu0 %v1030
        %1288 = vmatprep.subr.bf16.mxu0 %v1035
        %1289 = vmatpush1.bf16.msra.mxu0 %v1034
        %1290 = vmatprep.subr.bf16.mxu0 %v1039
        %1291 = vmatpush1.bf16.msra.mxu0 %v1038
        %1292 = vmatprep.subr.bf16.mxu0 %v1043
        %1293 = vmatpush1.bf16.msra.mxu0 %v1042
        %1294 = vmatprep.subr.bf16.mxu0 %v1047
        %1295 = vmatpush1.bf16.msra.mxu0 %v1046
        %1296 = vmatprep.subr.bf16.mxu0 %v1051
        %1297 = vmatpush1.bf16.msra.mxu0 %v1050
        %1298 = vmatprep.subr.bf16.mxu0 %v1055
        %1299 = vmatpush1.bf16.msra.mxu0 %v1054
        %1300 = vmatprep.subr.bf16.mxu0 %v1059
        %1301 = vmatpush1.bf16.msra.mxu0 %v1058
        %1302 = vmatprep.subr.bf16.mxu0 %v1063
        %1303 = vmatpush1.bf16.msra.mxu0 %v1062
        %1304 = vmatprep.subr.bf16.mxu0 %v1067
        %1305 = vmatpush1.bf16.msra.mxu0 %v1066
        %1306 = vmatprep.subr.bf16.mxu0 %v1071
        %1307 = vmatpush1.bf16.msra.mxu0 %v1070
        %1308 = vmatprep.subr.bf16.mxu0 %v1075
        %1309 = vmatpush1.bf16.msra.mxu0 %v1074
        %1310 = vmatprep.subr.bf16.mxu0 %v1079
        %1311 = vmatpush1.bf16.msra.mxu0 %v1078
        %1312 = vmatprep.subr.bf16.mxu0 %v1083
        %1313 = vmatpush1.bf16.msra.mxu0 %v1082
        %1314 = vmatprep.subr.bf16.mxu0 %v1087
        %1315 = vmatpush1.bf16.msra.mxu0 %v1086
        %1316 = vmatprep.subr.bf16.mxu0 %v1091
        %1317 = vmatpush1.bf16.msra.mxu0 %v1090
        %1318 = vmatprep.mubr.bf16.mxu0 %v639
        %1319 = vmatmul.mubr.bf16.gmra.mrb[0].mxu0 %v638
        %v1320 = vpop.f32.mrb[0].mxu0
        %v1321 = vadd.f32 0.0, %v1320
        %v1322 = vpop.f32.mrb[0].mxu0
        %v1323 = vadd.f32 0.0, %v1322
        %v1324 = vpop.f32.mrb[0].mxu0
        %v1325 = vadd.f32 0.0, %v1324
        %v1326 = vpop.f32.mrb[0].mxu0
        %v1327 = vadd.f32 0.0, %v1326
        %1328 = vdwg.mxu0
        %1329 = vmatprep.subr.bf16.mxu0 %v1095
        %1330 = vmatpush1.bf16.msra.mxu0 %v1094
        %1331 = vmatprep.subr.bf16.mxu0 %v1099
        %1332 = vmatpush1.bf16.msra.mxu0 %v1098
        %1333 = vmatprep.subr.bf16.mxu0 %v1103
        %1334 = vmatpush1.bf16.msra.mxu0 %v1102
        %1335 = vmatprep.subr.bf16.mxu0 %v1107
        %1336 = vmatpush1.bf16.msra.mxu0 %v1106
        %1337 = vmatprep.subr.bf16.mxu0 %v1111
        %1338 = vmatpush1.bf16.msra.mxu0 %v1110
        %1339 = vmatprep.subr.bf16.mxu0 %v1115
        %1340 = vmatpush1.bf16.msra.mxu0 %v1114
        %1341 = vmatprep.subr.bf16.mxu0 %v1119
        %1342 = vmatpush1.bf16.msra.mxu0 %v1118
        %1343 = vmatprep.subr.bf16.mxu0 %v1123
        %1344 = vmatpush1.bf16.msra.mxu0 %v1122
        %1345 = vmatprep.subr.bf16.mxu0 %v1127
        %1346 = vmatpush1.bf16.msra.mxu0 %v1126
        %1347 = vmatprep.subr.bf16.mxu0 %v1131
        %1348 = vmatpush1.bf16.msra.mxu0 %v1130
        %1349 = vmatprep.subr.bf16.mxu0 %v1135
        %1350 = vmatpush1.bf16.msra.mxu0 %v1134
        %1351 = vmatprep.subr.bf16.mxu0 %v1139
        %1352 = vmatpush1.bf16.msra.mxu0 %v1138
        %1353 = vmatprep.subr.bf16.mxu0 %v1143
        %1354 = vmatpush1.bf16.msra.mxu0 %v1142
        %1355 = vmatprep.subr.bf16.mxu0 %v1147
        %1356 = vmatpush1.bf16.msra.mxu0 %v1146
        %1357 = vmatprep.subr.bf16.mxu0 %v1151
        %1358 = vmatpush1.bf16.msra.mxu0 %v1150
        %1359 = vmatprep.subr.bf16.mxu0 %v1155
        %1360 = vmatpush1.bf16.msra.mxu0 %v1154
        %1361 = vmatprep.mubr.bf16.mxu0 %v641
        %1362 = vmatmul.mubr.bf16.gmra.mrb[0].mxu0 %v640
        %v1363 = vpop.f32.mrb[0].mxu0
        %v1364 = vadd.f32 %v1321, %v1363
        %v1365 = vpop.f32.mrb[0].mxu0
        %v1366 = vadd.f32 %v1323, %v1365
        %v1367 = vpop.f32.mrb[0].mxu0
        %v1368 = vadd.f32 %v1325, %v1367
        %v1369 = vpop.f32.mrb[0].mxu0
        %v1370 = vadd.f32 %v1327, %v1369
        %1371 = vdwg.mxu0
        %1372 = vmatprep.subr.bf16.mxu0 %v1033
        %1373 = vmatpush1.bf16.msra.mxu0 %v1032
        %1374 = vmatprep.subr.bf16.mxu0 %v1037
        %1375 = vmatpush1.bf16.msra.mxu0 %v1036
        %1376 = vmatprep.subr.bf16.mxu0 %v1041
        %1377 = vmatpush1.bf16.msra.mxu0 %v1040
        %1378 = vmatprep.subr.bf16.mxu0 %v1045
        %1379 = vmatpush1.bf16.msra.mxu0 %v1044
        %1380 = vmatprep.subr.bf16.mxu0 %v1049
        %1381 = vmatpush1.bf16.msra.mxu0 %v1048
        %1382 = vmatprep.subr.bf16.mxu0 %v1053
        %1383 = vmatpush1.bf16.msra.mxu0 %v1052
        %1384 = vmatprep.subr.bf16.mxu0 %v1057
        %1385 = vmatpush1.bf16.msra.mxu0 %v1056
        %1386 = vmatprep.subr.bf16.mxu0 %v1061
        %1387 = vmatpush1.bf16.msra.mxu0 %v1060
        %1388 = vmatprep.subr.bf16.mxu0 %v1065
        %1389 = vmatpush1.bf16.msra.mxu0 %v1064
        %1390 = vmatprep.subr.bf16.mxu0 %v1069
        %1391 = vmatpush1.bf16.msra.mxu0 %v1068
        %1392 = vmatprep.subr.bf16.mxu0 %v1073
        %1393 = vmatpush1.bf16.msra.mxu0 %v1072
        %1394 = vmatprep.subr.bf16.mxu0 %v1077
        %1395 = vmatpush1.bf16.msra.mxu0 %v1076
        %1396 = vmatprep.subr.bf16.mxu0 %v1081
        %1397 = vmatpush1.bf16.msra.mxu0 %v1080
        %1398 = vmatprep.subr.bf16.mxu0 %v1085
        %1399 = vmatpush1.bf16.msra.mxu0 %v1084
        %1400 = vmatprep.subr.bf16.mxu0 %v1089
        %1401 = vmatpush1.bf16.msra.mxu0 %v1088
        %1402 = vmatprep.subr.bf16.mxu0 %v1093
        %1403 = vmatpush1.bf16.msra.mxu0 %v1092
        %1404 = vmatprep.mubr.bf16.mxu0 %v639
        %1405 = vmatmul.mubr.bf16.gmra.mrb[0].mxu0 %v638
        %v1406 = vpop.f32.mrb[0].mxu0
        %v1407 = vadd.f32 0.0, %v1406
        %v1408 = vpop.f32.mrb[0].mxu0
        %v1409 = vadd.f32 0.0, %v1408
        %v1410 = vpop.f32.mrb[0].mxu0
        %v1411 = vadd.f32 0.0, %v1410
        %v1412 = vpop.f32.mrb[0].mxu0
        %v1413 = vadd.f32 0.0, %v1412
        %1414 = vdwg.mxu0
        %1415 = vmatprep.subr.bf16.mxu0 %v1097
        %1416 = vmatpush1.bf16.msra.mxu0 %v1096
        %1417 = vmatprep.subr.bf16.mxu0 %v1101
        %1418 = vmatpush1.bf16.msra.mxu0 %v1100
        %1419 = vmatprep.subr.bf16.mxu0 %v1105
        %1420 = vmatpush1.bf16.msra.mxu0 %v1104
        %1421 = vmatprep.subr.bf16.mxu0 %v1109
        %1422 = vmatpush1.bf16.msra.mxu0 %v1108
        %1423 = vmatprep.subr.bf16.mxu0 %v1113
        %1424 = vmatpush1.bf16.msra.mxu0 %v1112
        %1425 = vmatprep.subr.bf16.mxu0 %v1117
        %1426 = vmatpush1.bf16.msra.mxu0 %v1116
        %1427 = vmatprep.subr.bf16.mxu0 %v1121
        %1428 = vmatpush1.bf16.msra.mxu0 %v1120
        %1429 = vmatprep.subr.bf16.mxu0 %v1125
        %1430 = vmatpush1.bf16.msra.mxu0 %v1124
        %1431 = vmatprep.subr.bf16.mxu0 %v1129
        %1432 = vmatpush1.bf16.msra.mxu0 %v1128
        %1433 = vmatprep.subr.bf16.mxu0 %v1133
        %1434 = vmatpush1.bf16.msra.mxu0 %v1132
        %1435 = vmatprep.subr.bf16.mxu0 %v1137
        %1436 = vmatpush1.bf16.msra.mxu0 %v1136
        %1437 = vmatprep.subr.bf16.mxu0 %v1141
        %1438 = vmatpush1.bf16.msra.mxu0 %v1140
        %1439 = vmatprep.subr.bf16.mxu0 %v1145
        %1440 = vmatpush1.bf16.msra.mxu0 %v1144
        %1441 = vmatprep.subr.bf16.mxu0 %v1149
        %1442 = vmatpush1.bf16.msra.mxu0 %v1148
        %1443 = vmatprep.subr.bf16.mxu0 %v1153
        %1444 = vmatpush1.bf16.msra.mxu0 %v1152
        %1445 = vmatprep.subr.bf16.mxu0 %v1157
        %1446 = vmatpush1.bf16.msra.mxu0 %v1156
        %1447 = vmatprep.mubr.bf16.mxu0 %v641
        %1448 = vmatmul.mubr.bf16.gmra.mrb[0].mxu0 %v640
        %v1449 = vpop.f32.mrb[0].mxu0
        %v1450 = vadd.f32 %v1407, %v1449
        %v1451 = vpop.f32.mrb[0].mxu0
        %v1452 = vadd.f32 %v1409, %v1451
        %v1453 = vpop.f32.mrb[0].mxu0
        %v1454 = vadd.f32 %v1411, %v1453
        %v1455 = vpop.f32.mrb[0].mxu0
        %v1456 = vadd.f32 %v1413, %v1455
        %1457 = vdwg.mxu0
        %v1458 = vadd.f32 %v1364, %v1366
        %v1459 = vadd.f32 %v1458, %v1450
        %v1460 = vadd.f32 %v1459, %v1452
        %1461 = vadd.xlane.f32.xlu0 %v1460
        %v1462 = vpop.xlane.xlu0 %1461
        %v1463 = vadd.f32 %v1368, %v1370
        %v1464 = vadd.f32 %v1463, %v1454
        %v1465 = vadd.f32 %v1464, %v1456
        %1466 = vadd.xlane.f32.xlu0 %v1465
        %v1467 = vpop.xlane.xlu0 %1466
        %v1468 = vmul.f32 %v1364, %v1364
        %v1469 = vmul.f32 %v1366, %v1366
        %v1470 = vmul.f32 %v1450, %v1450
        %v1471 = vmul.f32 %v1452, %v1452
        %v1472 = vmul.f32 %v1368, %v1368
        %v1473 = vmul.f32 %v1370, %v1370
        %v1474 = vmul.f32 %v1454, %v1454
        %v1475 = vmul.f32 %v1456, %v1456
        %v1476 = vadd.f32 %v1468, %v1469
        %v1477 = vadd.f32 %v1476, %v1470
        %v1478 = vadd.f32 %v1477, %v1471
        %1479 = vadd.xlane.f32.xlu0 %v1478
        %v1480 = vpop.xlane.xlu0 %1479
        %v1481 = vadd.f32 %v1472, %v1473
        %v1482 = vadd.f32 %v1481, %v1474
        %v1483 = vadd.f32 %v1482, %v1475
        %1484 = vadd.xlane.f32.xlu0 %v1483
        %v1485 = vpop.xlane.xlu0 %1484
        %vm1486 = vcmask 7168
        %v1487 = vsel %vm1486, %v1462, %v1480
        %v1488 = vsel %vm1486, %v1467, %v1485
        %vm1489 = vcmask 15360
        %1490 = vst.msk [vmem:[%s493] sm:$0xff] %vm1489, %v1487
        %1491 = vst.msk [vmem:[%s493 + $0x8] sm:$0xff] %vm1489, %v1488
        %v1492 = vpack.c.bf16 %v1368, %v1364
        %v1493 = vpack.c.bf16 %v1370, %v1366
        %v1494 = vpack.c.bf16 %v1454, %v1450
        %v1495 = vpack.c.bf16 %v1456, %v1452
        %v1500 = vunpack.c.l.b16 %v1492
        %v1501 = vunpack.c.l.b16 %v1493
        %v1502 = vunpack.c.l.b16 %v1494
        %v1503 = vunpack.c.l.b16 %v1495
        %v1504 = vunpack.c.h.b16 %v1492
        %v1505 = vunpack.c.h.b16 %v1493
        %v1506 = vunpack.c.h.b16 %v1494
        %v1507 = vunpack.c.h.b16 %v1495
        %v1508 = vpack.c.b16 %v1501, %v1500
        %v1509 = vpack.c.b16 %v1503, %v1502
        %v1510 = vpack.c.b16 %v1505, %v1504
        %v1511 = vpack.c.b16 %v1507, %v1506
        %1516 = vst [vmem:[%s472] sm:$0xff] %v1508
        %1517 = vst [vmem:[%s472 + $0x8] sm:$0xff] %v1509
        %1518 = vst [vmem:[%s472 + $0x10] sm:$0xff] %v1510
        %1519 = vst [vmem:[%s472 + $0x18] sm:$0xff] %v1511
        %s1520 = sand.u32 %s89, 1
        %s1521 = sand.u32 %s89, 1
        %s1522 = smul.addr %s1521, 32
        %s1523 = scalar_lea.vmem [#allocation3], %s1522
        %p1524 = scmp.lt.s32.totalorder %s19, 1
        %s1525 = scalar_select %p1524, %s19, 1
        %s1526 = smul.addr %s1525, 2
        %s1527 = smul.addr %s1526, 8
        %s1528 = scalar_lea.vmem %s3, %s1527
        // Predicated region
        $region52: #{patch_discriminator_forward.9} parent=46 // pred_check
          %p1529 = pneg %p99
        $region53: #{patch_discriminator_forward.9} parent=46 // pred_check_branch
          %1531 = sbr.rel (%p1529) target = $region55
        $region54: #{patch_discriminator_forward.9} parent=46 // pred_region
          %s1532 = smul.u32 4, %s19
          %s1533 = smul.addr %s1532, 4
          %s1534 = scalar_lea.vmem %s2, %s1533
          // Predicated region
          $region56: #{patch_discriminator_forward.9} parent=54 // pred_check
            _
          $region57: #{patch_discriminator_forward.9} parent=54 // pred_check_branch
            %1536 = sbr.rel (0) target = $region59
          $region58: #{patch_discriminator_forward.9} parent=54 // pred_region
            // Predicated region
            $region60: #{patch_discriminator_forward.9} parent=58 // pred_check
              _
            $region61: #{patch_discriminator_forward.9} parent=58 // pred_check_branch
              %1538 = sbr.rel (0) target = $region63
            $region62: #{patch_discriminator_forward.9} parent=58 // pred_region
              loop: start=0, step=1, limit=1
              $region64: #{patch_discriminator_forward.9} parent=62 // loop_pre_header
                _
              $region65: #{patch_discriminator_forward.9} parent=62 // loop_header
                %s1540 = sphi 0, %s1544
                %p1541 = scmp.ge.s32.totalorder %s1540, 1
                %s1545 = sphi %s1523, %s1523
                %s1546 = sphi %s1534, %s1534
              $region66: #{patch_discriminator_forward.9} parent=62 // loop_header_branch
                %1543 = sbr.rel (%p1541) target = $region70
              $region67: #{patch_discriminator_forward.9} parent=62 // loop_body
                %v1547 = vld [vmem:[%s1545] sm:$0xff]
                %1548 = vst [vmem:[%s1546] sm:$0xff] %v1547
                %v1549 = vld [vmem:[%s1545 + $0x8] sm:$0xff]
                %1550 = vst [vmem:[%s1546 + $0x8] sm:$0xff] %v1549
                %v1551 = vld [vmem:[%s1545 + $0x10] sm:$0xff]
                %1552 = vst [vmem:[%s1546 + $0x20] sm:$0xff] %v1551
                %v1553 = vld [vmem:[%s1545 + $0x18] sm:$0xff]
                %1554 = vst [vmem:[%s1546 + $0x28] sm:$0xff] %v1553
              $region68: #{patch_discriminator_forward.9} parent=62 // loop_footer
                %s1544 = sadd.s32 1, %s1540
              $region69: #{patch_discriminator_forward.9} parent=62 // loop_footer_branch
                %1539 = sbr.rel target = $region65
              $region70: #{patch_discriminator_forward.9} parent=62 // loop_exit
                _
            $region63: #{patch_discriminator_forward.9} parent=58 // pred_fallthru
              _
            // Predicated region
            $region71: #{patch_discriminator_forward.9} parent=58 // pred_check
              _
            $region72: #{patch_discriminator_forward.9} parent=58 // pred_check_branch
              %1556 = sbr.rel target = $region74
            $region73: #{patch_discriminator_forward.9} parent=58 // pred_region
              _
            $region74: #{patch_discriminator_forward.9} parent=58 // pred_fallthru
              _
          $region59: #{patch_discriminator_forward.9} parent=54 // pred_fallthru
            _
          %1557 = vnop
        $region55: #{patch_discriminator_forward.9} parent=46 // pred_fallthru
          _
        // Predicated region
        $region75: #{patch_discriminator_forward.9} parent=46 // pred_check
          %p1558 = pneg %p125
        $region76: #{patch_discriminator_forward.9} parent=46 // pred_check_branch
          %1560 = sbr.rel (%p1558) target = $region78
        $region77: #{patch_discriminator_forward.9} parent=46 // pred_region
          _
        $region78: #{patch_discriminator_forward.9} parent=46 // pred_fallthru
          _
      $region47: #{patch_discriminator_forward.9} parent=5 // pred_fallthru
        _
      %p1561 = scmp.le.s32.totalorder 2, %s10
      // Predicated region
      $region79: #{patch_discriminator_forward.9} parent=5 // pred_check
        %p1562 = pneg %p1561
      $region80: #{patch_discriminator_forward.9} parent=5 // pred_check_branch
        %1564 = sbr.rel (%p1562) target = $region82
      $region81: #{patch_discriminator_forward.9} parent=5 // pred_region
        %s1565 = ssub.s32 %s10, 2
        // Predicated region
        $region83: #{patch_discriminator_forward.9} parent=81 // pred_check
          %p1566 = pneg %p105
        $region84: #{patch_discriminator_forward.9} parent=81 // pred_check_branch
          %1568 = sbr.rel (%p1566) target = $region86
        $region85: #{patch_discriminator_forward.9} parent=81 // pred_region
          %s1569 = sand.u32 %s90, 1
          %s1570 = sand.u32 %s90, 1
          %s1571 = smul.addr %s1570, 32
          %s1572 = scalar_lea.vmem [#allocation3], %s1571
        $region86: #{patch_discriminator_forward.9} parent=81 // pred_fallthru
          _
        // Predicated region
        $region87: #{patch_discriminator_forward.9} parent=81 // pred_check
          %p1573 = pneg %p131
        $region88: #{patch_discriminator_forward.9} parent=81 // pred_check_branch
          %1575 = sbr.rel (%p1573) target = $region90
        $region89: #{patch_discriminator_forward.9} parent=81 // pred_region
          %p1576 = scmp.lt.s32.totalorder %s21, 1
          %s1577 = scalar_select %p1576, %s21, 1
          %s1578 = smul.addr %s1577, 2
          %s1579 = smul.addr %s1578, 8
          %s1580 = scalar_lea.vmem %s3, %s1579
        $region90: #{patch_discriminator_forward.9} parent=81 // pred_fallthru
          _
      $region82: #{patch_discriminator_forward.9} parent=5 // pred_fallthru
        _
    $region6: #{patch_discriminator_forward.9} parent=1 // loop_footer
      %s14 = sadd.s32 1, %s10
    $region7: #{patch_discriminator_forward.9} parent=1 // loop_footer_branch
      %9 = sbr.rel target = $region3
    $region8: #{patch_discriminator_forward.9} parent=1 // loop_exit
      _

// kernel: patch_discriminator_forward.10
$region0: #{patch_discriminator_forward.10}
  #allocation0 [shape = 'u32[]', space=smem, size = 0x4, offset = 0x4, fixed_abs, tag = 'smem constant byte address 0x4 - core index']
  #allocation1 [shape = 'u32[144,128]{1,0:T(1,128)}', space=vmem, size = 0x12000, scoped, tag = 'internal scratch']
  %s0 = inlined_call_operand.vmem [shape: bf16[16,1024], index: 0, kind: input, shape index: {}]
  %s1 = inlined_call_operand.vmem [shape: f32[16,2], index: 1, kind: input, shape index: {}]
  %s2 = inlined_call_operand.vmem [shape: bf16[16,1024], index: 2, kind: output, shape index: {}]
  %s3 = sld [smem:[#allocation0]]
  $region83: #{patch_discriminator_forward.10} parent=0
    _
  %s5 = ssub.s32 1, %s3
  %s6 = scalar_select 0, %s5, %s3
  $region1: #{patch_discriminator_forward.10} parent=0
    #allocation2 [shape = 'u8[32768]{0}', space=vmem, size = 0x8000, scoped, tag = 'input window, operand 0']
    #allocation3 [shape = 'u8[32768]{0}', space=vmem, size = 0x8000, scoped, tag = 'output window, operand 0']
    loop: start=0, step=1, limit=4
    $region2: #{patch_discriminator_forward.10} parent=1 // loop_pre_header
      _
    $region3: #{patch_discriminator_forward.10} parent=1 // loop_header
      %s8 = sphi 0, %s12
      %p9 = scmp.ge.s32.totalorder %s8, 4
      %s18 = sphi 0, %s20
      %s21 = sphi 0, %s18
      %s22 = sphi 0, %s21
      %s38 = sphi 0, %s22
      %s42 = sphi 0, %s42
      %s44 = sphi 0, %s42
      %s45 = sphi 0, %s44
      %s59 = sphi 0, %s45
      %s65 = sphi 0, %s67
      %s68 = sphi 0, %s65
      %s69 = sphi 0, %s68
      %s85 = sphi 0, %s69
    $region4: #{patch_discriminator_forward.10} parent=1 // loop_header_branch
      %11 = sbr.rel (%p9) target = $region8
    $region5: #{patch_discriminator_forward.10} parent=1 // loop_body
      %s13 = ssub.s32 %s8, 1
      %s14 = ssub.s32 %s8, 2
      %s15 = sadd.s32 %s8, 1
      %s16 = ssub.s32 %s8, %s15
      %p17 = scmp.eq.s32.totalorder %s16, 0
      %s19 = sadd.s32 %s18, 1
      %s20 = scalar_select %p17, %s18, %s19
      %p23 = pneg %p17
      %p24 = scmp.eq.s32.totalorder %s8, 1
      %p25 = por %p23, %p24
      %p26 = scmp.ne.s32.totalorder %s18, %s21
      %p27 = scmp.eq.s32.totalorder %s8, 0
      %p28 = por %p26, %p27
      %p29 = scmp.ne.s32.totalorder %s18, %s21
      %p30 = scmp.eq.s32.totalorder %s13, 1
      %p31 = por %p29, %p30
      %p32 = scmp.ne.s32.totalorder %s21, %s22
      %p33 = scmp.eq.s32.totalorder %s13, 0
      %p34 = por %p32, %p33
      %p35 = scmp.ne.s32.totalorder %s21, %s22
      %p36 = scmp.eq.s32.totalorder %s14, 1
      %p37 = por %p35, %p36
      %p39 = scmp.ne.s32.totalorder %s22, %s38
      %p40 = scmp.eq.s32.totalorder %s14, 0
      %p41 = por %p39, %p40
      %s43 = sadd.s32 %s42, 1
      %p46 = scmp.eq.s32.totalorder %s8, 1
      %p47 = scmp.ne.s32.totalorder %s42, %s44
      %p48 = scmp.eq.s32.totalorder %s8, 0
      %p49 = por %p47, %p48
      %p50 = scmp.ne.s32.totalorder %s42, %s44
      %p51 = scmp.eq.s32.totalorder %s13, 1
      %p52 = por %p50, %p51
      %p53 = scmp.ne.s32.totalorder %s44, %s45
      %p54 = scmp.eq.s32.totalorder %s13, 0
      %p55 = por %p53, %p54
      %p56 = scmp.ne.s32.totalorder %s44, %s45
      %p57 = scmp.eq.s32.totalorder %s14, 1
      %p58 = por %p56, %p57
      %p60 = scmp.ne.s32.totalorder %s45, %s59
      %p61 = scmp.eq.s32.totalorder %s14, 0
      %p62 = por %p60, %p61
      %s63 = ssub.s32 %s8, %s15
      %p64 = scmp.eq.s32.totalorder %s63, 0
      %s66 = sadd.s32 %s65, 1
      %s67 = scalar_select %p64, %s65, %s66
      %p70 = pneg %p64
      %p71 = scmp.eq.s32.totalorder %s8, 1
      %p72 = por %p70, %p71
      %p73 = scmp.ne.s32.totalorder %s65, %s68
      %p74 = scmp.eq.s32.totalorder %s8, 0
      %p75 = por %p73, %p74
      %p76 = scmp.ne.s32.totalorder %s65, %s68
      %p77 = scmp.eq.s32.totalorder %s13, 1
      %p78 = por %p76, %p77
      %p79 = scmp.ne.s32.totalorder %s68, %s69
      %p80 = scmp.eq.s32.totalorder %s13, 0
      %p81 = por %p79, %p80
      %p82 = scmp.ne.s32.totalorder %s68, %s69
      %p83 = scmp.eq.s32.totalorder %s14, 1
      %p84 = por %p82, %p83
      %p86 = scmp.ne.s32.totalorder %s69, %s85
      %p87 = scmp.eq.s32.totalorder %s14, 0
      %p88 = por %p86, %p87
      %p89 = scmp.le.s32.totalorder 1, %s8
      %p90 = scmp.lt.s32.totalorder %s8, 3
      %p91 = pnand %p89, %p90
      %p92 = pneg %p91
      // Predicated region
      $region9: #{patch_discriminator_forward.10} parent=5 // pred_check
        _
      $region10: #{patch_discriminator_forward.10} parent=5 // pred_check_branch
        %94 = sbr.rel (%p91) target = $region12
      $region11: #{patch_discriminator_forward.10} parent=5 // pred_region
        %s95 = ssub.s32 %s8, 1
        // Predicated region
        $region13: #{patch_discriminator_forward.10} parent=11 // pred_check
          %p96 = pneg %p55
        $region14: #{patch_discriminator_forward.10} parent=11 // pred_check_branch
          %98 = sbr.rel (%p96) target = $region16
        $region15: #{patch_discriminator_forward.10} parent=11 // pred_region
          _
        $region16: #{patch_discriminator_forward.10} parent=11 // pred_fallthru
          _
      $region12: #{patch_discriminator_forward.10} parent=5 // pred_fallthru
        _
      %p99 = scmp.lt.s32.totalorder %s8, 2
      // Predicated region
      $region17: #{patch_discriminator_forward.10} parent=5 // pred_check
        %p100 = pneg %p99
      $region18: #{patch_discriminator_forward.10} parent=5 // pred_check_branch
        %102 = sbr.rel (%p100) target = $region20
      $region19: #{patch_discriminator_forward.10} parent=5 // pred_region
        // Predicated region
        $region21: #{patch_discriminator_forward.10} parent=19 // pred_check
          %p103 = pneg %p28
        $region22: #{patch_discriminator_forward.10} parent=19 // pred_check_branch
          %105 = sbr.rel (%p103) target = $region24
        $region23: #{patch_discriminator_forward.10} parent=19 // pred_region
          %s106 = sand.u32 %s18, 1
          %s107 = sand.u32 %s18, 1
          %s108 = smul.addr %s107, 32
          %s109 = scalar_lea.vmem [#allocation2], %s108
          %s110 = smul.u32 4, %s8
          %s111 = smul.addr %s110, 4
          %s112 = scalar_lea.vmem %s0, %s111
          // Predicated region
          $region25: #{patch_discriminator_forward.10} parent=23 // pred_check
            _
          $region26: #{patch_discriminator_forward.10} parent=23 // pred_check_branch
            %114 = sbr.rel (0) target = $region28
          $region27: #{patch_discriminator_forward.10} parent=23 // pred_region
            // Predicated region
            $region29: #{patch_discriminator_forward.10} parent=27 // pred_check
              _
            $region30: #{patch_discriminator_forward.10} parent=27 // pred_check_branch
              %116 = sbr.rel (0) target = $region32
            $region31: #{patch_discriminator_forward.10} parent=27 // pred_region
              loop: start=0, step=1, limit=1
              $region33: #{patch_discriminator_forward.10} parent=31 // loop_pre_header
                _
              $region34: #{patch_discriminator_forward.10} parent=31 // loop_header
                %s118 = sphi 0, %s122
                %p119 = scmp.ge.s32.totalorder %s118, 1
                %s123 = sphi %s112, %s112
                %s124 = sphi %s109, %s109
              $region35: #{patch_discriminator_forward.10} parent=31 // loop_header_branch
                %121 = sbr.rel (%p119) target = $region39
              $region36: #{patch_discriminator_forward.10} parent=31 // loop_body
                %v125 = vld [vmem:[%s123] sm:$0xff]
                %126 = vst [vmem:[%s124] sm:$0xff] %v125
                %v127 = vld [vmem:[%s123 + $0x8] sm:$0xff]
                %128 = vst [vmem:[%s124 + $0x8] sm:$0xff] %v127
                %v129 = vld [vmem:[%s123 + $0x20] sm:$0xff]
                %130 = vst [vmem:[%s124 + $0x10] sm:$0xff] %v129
                %v131 = vld [vmem:[%s123 + $0x28] sm:$0xff]
                %132 = vst [vmem:[%s124 + $0x18] sm:$0xff] %v131
              $region37: #{patch_discriminator_forward.10} parent=31 // loop_footer
                %s122 = sadd.s32 1, %s118
              $region38: #{patch_discriminator_forward.10} parent=31 // loop_footer_branch
                %117 = sbr.rel target = $region34
              $region39: #{patch_discriminator_forward.10} parent=31 // loop_exit
                _
            $region32: #{patch_discriminator_forward.10} parent=27 // pred_fallthru
              _
            // Predicated region
            $region40: #{patch_discriminator_forward.10} parent=27 // pred_check
              _
            $region41: #{patch_discriminator_forward.10} parent=27 // pred_check_branch
              %134 = sbr.rel target = $region43
            $region42: #{patch_discriminator_forward.10} parent=27 // pred_region
              _
            $region43: #{patch_discriminator_forward.10} parent=27 // pred_fallthru
              _
          $region28: #{patch_discriminator_forward.10} parent=23 // pred_fallthru
            _
          %135 = vnop
        $region24: #{patch_discriminator_forward.10} parent=19 // pred_fallthru
          _
      $region20: #{patch_discriminator_forward.10} parent=5 // pred_fallthru
        _
      %p136 = scmp.le.s32.totalorder 1, %s8
      %p137 = scmp.lt.s32.totalorder %s8, 3
      %p138 = pnand %p136, %p137
      %p139 = pneg %p138
      // Predicated region
      $region44: #{patch_discriminator_forward.10} parent=5 // pred_check
        _
      $region45: #{patch_discriminator_forward.10} parent=5 // pred_check_branch
        %141 = sbr.rel (%p138) target = $region47
      $region46: #{patch_discriminator_forward.10} parent=5 // pred_region
        %s142 = ssub.s32 %s8, 1
        %s143 = sand.u32 %s21, 1
        %s144 = sand.u32 %s21, 1
        %s145 = smul.addr %s144, 32
        %s146 = scalar_lea.vmem [#allocation2], %s145
        // Predicated region
        $region48: #{patch_discriminator_forward.10} parent=46 // pred_check
          %p147 = pneg %p34
        $region49: #{patch_discriminator_forward.10} parent=46 // pred_check_branch
          %149 = sbr.rel (%p147) target = $region51
        $region50: #{patch_discriminator_forward.10} parent=46 // pred_region
          _
        $region51: #{patch_discriminator_forward.10} parent=46 // pred_fallthru
          _
        %s150 = sand.u32 %s21, 1
        %s151 = sand.u32 %s21, 1
        %s152 = smul.addr %s151, 32
        %s153 = scalar_lea.vmem [#allocation2], %s152
        %p154 = pneg %p34
        %p155 = pneg %p31
        %p156 = pneg %p55
        %p157 = pneg %p52
        %p158 = pneg %p81
        %p159 = pneg %p78
        %s160 = sand.u32 %s68, 1
        %s161 = sand.u32 %s68, 1
        %s162 = smul.addr %s161, 32
        %s163 = scalar_lea.vmem [#allocation3], %s162
        %s164 = smul.u32 4, %s13
        %s165 = smul.u32 4, %s13
        %v166 = vld [vmem:[%s146] sm:$0xff]
        %v167 = vld [vmem:[%s146 + $0x8] sm:$0xff]
        %v168 = vld [vmem:[%s146 + $0x10] sm:$0xff]
        %v169 = vld [vmem:[%s146 + $0x18] sm:$0xff]
        %v170 = vunpack.c.l.bf16 %v166
        %v171 = vunpack.c.h.bf16 %v166
        %v172 = vunpack.c.l.bf16 %v167
        %v173 = vunpack.c.h.bf16 %v167
        %v174 = vunpack.c.l.bf16 %v168
        %v175 = vunpack.c.h.bf16 %v168
        %v176 = vunpack.c.l.bf16 %v169
        %v177 = vunpack.c.h.bf16 %v169
        %v178 = vld [vmem:[%s1] sm:$0xff]
        %v179 = vld [vmem:[%s1 + $0x8] sm:$0xff]
        %181 = vset.pattern.permute.xlu0 0
        %182 = vperm.xlu0 %181, %v178
        %v183 = vpop.permute.xlu0 %182
        %186 = vset.pattern.permute.xlu0 0
        %187 = vperm.xlu0 %186, %v179
        %v188 = vpop.permute.xlu0 %187
        %v190 = vmul.f32 %v170, %v183
        %v191 = vmul.f32 %v171, %v183
        %v192 = vmul.f32 %v172, %v183
        %v193 = vmul.f32 %v173, %v183
        %v194 = vmul.f32 %v174, %v188
        %v195 = vmul.f32 %v175, %v188
        %v196 = vmul.f32 %v176, %v188
        %v197 = vmul.f32 %v177, %v188
        %198 = vset.pattern.permute.xlu0 1
        %199 = vperm.xlu0 %198, %v178
        %v200 = vpop.permute.xlu0 %199
        %202 = vset.pattern.permute.xlu0 1
        %203 = vperm.xlu0 %202, %v179
        %v204 = vpop.permute.xlu0 %203
        %v206 = vadd.f32 %v190, %v200
        %v207 = vadd.f32 %v191, %v200
        %v208 = vadd.f32 %v192, %v200
        %v209 = vadd.f32 %v193, %v200
        %v210 = vadd.f32 %v194, %v204
        %v211 = vadd.f32 %v195, %v204
        %v212 = vadd.f32 %v196, %v204
        %v213 = vadd.f32 %v197, %v204
        %vm214 = vcmp.ge.f32.partialorder %v206, 0.0
        %vm215 = vcmp.ge.f32.partialorder %v207, 0.0
        %vm216 = vcmp.ge.f32.partialorder %v208, 0.0
        %vm217 = vcmp.ge.f32.partialorder %v209, 0.0
        %vm218 = vcmp.ge.f32.partialorder %v210, 0.0
        %vm219 = vcmp.ge.f32.partialorder %v211, 0.0
        %vm220 = vcmp.ge.f32.partialorder %v212, 0.0
        %vm221 = vcmp.ge.f32.partialorder %v213, 0.0
        %v222 = vmul.f32 %v206, 0.2
        %v223 = vmul.f32 %v207, 0.2
        %v224 = vmul.f32 %v208, 0.2
        %v225 = vmul.f32 %v209, 0.2
        %v226 = vmul.f32 %v210, 0.2
        %v227 = vmul.f32 %v211, 0.2
        %v228 = vmul.f32 %v212, 0.2
        %v229 = vmul.f32 %v213, 0.2
        %v230 = vsel %vm214, %v206, %v222
        %v231 = vsel %vm215, %v207, %v223
        %v232 = vsel %vm216, %v208, %v224
        %v233 = vsel %vm217, %v209, %v225
        %v234 = vsel %vm218, %v210, %v226
        %v235 = vsel %vm219, %v211, %v227
        %v236 = vsel %vm220, %v212, %v228
        %v237 = vsel %vm221, %v213, %v229
        %v238 = vpack.c.bf16 %v234, %v230
        %v239 = vpack.c.bf16 %v235, %v231
        %v240 = vpack.c.bf16 %v236, %v232
        %v241 = vpack.c.bf16 %v237, %v233
        %v246 = vunpack.c.l.b16 %v238
        %v247 = vunpack.c.l.b16 %v239
        %v248 = vunpack.c.l.b16 %v240
        %v249 = vunpack.c.l.b16 %v241
        %v250 = vunpack.c.h.b16 %v238
        %v251 = vunpack.c.h.b16 %v239
        %v252 = vunpack.c.h.b16 %v240
        %v253 = vunpack.c.h.b16 %v241
        %v254 = vpack.c.b16 %v247, %v246
        %v255 = vpack.c.b16 %v249, %v248
        %v256 = vpack.c.b16 %v251, %v250
        %v257 = vpack.c.b16 %v253, %v252
        %262 = vst [vmem:[%s163] sm:$0xff] %v254
        %263 = vst [vmem:[%s163 + $0x8] sm:$0xff] %v255
        %264 = vst [vmem:[%s163 + $0x10] sm:$0xff] %v256
        %265 = vst [vmem:[%s163 + $0x18] sm:$0xff] %v257
        %s266 = sand.u32 %s68, 1
        %s267 = sand.u32 %s68, 1
        %s268 = smul.addr %s267, 32
        %s269 = scalar_lea.vmem [#allocation3], %s268
        // Predicated region
        $region52: #{patch_discriminator_forward.10} parent=46 // pred_check
          %p270 = pneg %p78
        $region53: #{patch_discriminator_forward.10} parent=46 // pred_check_branch
          %272 = sbr.rel (%p270) target = $region55
        $region54: #{patch_discriminator_forward.10} parent=46 // pred_region
          %s273 = smul.u32 4, %s13
          %s274 = smul.addr %s273, 4
          %s275 = scalar_lea.vmem %s2, %s274
          // Predicated region
          $region56: #{patch_discriminator_forward.10} parent=54 // pred_check
            _
          $region57: #{patch_discriminator_forward.10} parent=54 // pred_check_branch
            %277 = sbr.rel (0) target = $region59
          $region58: #{patch_discriminator_forward.10} parent=54 // pred_region
            // Predicated region
            $region60: #{patch_discriminator_forward.10} parent=58 // pred_check
              _
            $region61: #{patch_discriminator_forward.10} parent=58 // pred_check_branch
              %279 = sbr.rel (0) target = $region63
            $region62: #{patch_discriminator_forward.10} parent=58 // pred_region
              loop: start=0, step=1, limit=1
              $region64: #{patch_discriminator_forward.10} parent=62 // loop_pre_header
                _
              $region65: #{patch_discriminator_forward.10} parent=62 // loop_header
                %s281 = sphi 0, %s285
                %p282 = scmp.ge.s32.totalorder %s281, 1
                %s286 = sphi %s269, %s269
                %s287 = sphi %s275, %s275
              $region66: #{patch_discriminator_forward.10} parent=62 // loop_header_branch
                %284 = sbr.rel (%p282) target = $region70
              $region67: #{patch_discriminator_forward.10} parent=62 // loop_body
                %v288 = vld [vmem:[%s286] sm:$0xff]
                %289 = vst [vmem:[%s287] sm:$0xff] %v288
                %v290 = vld [vmem:[%s286 + $0x8] sm:$0xff]
                %291 = vst [vmem:[%s287 + $0x8] sm:$0xff] %v290
                %v292 = vld [vmem:[%s286 + $0x10] sm:$0xff]
                %293 = vst [vmem:[%s287 + $0x20] sm:$0xff] %v292
                %v294 = vld [vmem:[%s286 + $0x18] sm:$0xff]
                %295 = vst [vmem:[%s287 + $0x28] sm:$0xff] %v294
              $region68: #{patch_discriminator_forward.10} parent=62 // loop_footer
                %s285 = sadd.s32 1, %s281
              $region69: #{patch_discriminator_forward.10} parent=62 // loop_footer_branch
                %280 = sbr.rel target = $region65
              $region70: #{patch_discriminator_forward.10} parent=62 // loop_exit
                _
            $region63: #{patch_discriminator_forward.10} parent=58 // pred_fallthru
              _
            // Predicated region
            $region71: #{patch_discriminator_forward.10} parent=58 // pred_check
              _
            $region72: #{patch_discriminator_forward.10} parent=58 // pred_check_branch
              %297 = sbr.rel target = $region74
            $region73: #{patch_discriminator_forward.10} parent=58 // pred_region
              _
            $region74: #{patch_discriminator_forward.10} parent=58 // pred_fallthru
              _
          $region59: #{patch_discriminator_forward.10} parent=54 // pred_fallthru
            _
          %298 = vnop
        $region55: #{patch_discriminator_forward.10} parent=46 // pred_fallthru
          _
      $region47: #{patch_discriminator_forward.10} parent=5 // pred_fallthru
        _
      %p299 = scmp.le.s32.totalorder 2, %s8
      // Predicated region
      $region75: #{patch_discriminator_forward.10} parent=5 // pred_check
        %p300 = pneg %p299
      $region76: #{patch_discriminator_forward.10} parent=5 // pred_check_branch
        %302 = sbr.rel (%p300) target = $region78
      $region77: #{patch_discriminator_forward.10} parent=5 // pred_region
        %s303 = ssub.s32 %s8, 2
        // Predicated region
        $region79: #{patch_discriminator_forward.10} parent=77 // pred_check
          %p304 = pneg %p84
        $region80: #{patch_discriminator_forward.10} parent=77 // pred_check_branch
          %306 = sbr.rel (%p304) target = $region82
        $region81: #{patch_discriminator_forward.10} parent=77 // pred_region
          %s307 = sand.u32 %s69, 1
          %s308 = sand.u32 %s69, 1
          %s309 = smul.addr %s308, 32
          %s310 = scalar_lea.vmem [#allocation3], %s309
        $region82: #{patch_discriminator_forward.10} parent=77 // pred_fallthru
          _
      $region78: #{patch_discriminator_forward.10} parent=5 // pred_fallthru
        _
    $region6: #{patch_discriminator_forward.10} parent=1 // loop_footer
      %s12 = sadd.s32 1, %s8
    $region7: #{patch_discriminator_forward.10} parent=1 // loop_footer_branch
      %7 = sbr.rel target = $region3
    $region8: #{patch_discriminator_forward.10} parent=1 // loop_exit
      _

// kernel: patch_discriminator_forward.12
$region0: #{patch_discriminator_forward.12}
  #allocation0 [shape = 'u32[]', space=smem, size = 0x4, offset = 0x4, fixed_abs, tag = 'smem constant byte address 0x4 - core index']
  #allocation1 [shape = 'u32[144,128]{1,0:T(1,128)}', space=vmem, size = 0x12000, scoped, tag = 'internal scratch']
  %s0 = inlined_call_operand.vmem [shape: f32[32,128], index: 0, kind: input, shape index: {}]
  %s1 = inlined_call_operand.vmem [shape: f32[32,2], index: 1, kind: input, shape index: {}]
  %s2 = inlined_call_operand.vmem [shape: bf16[32,128], index: 2, kind: output, shape index: {}]
  %s3 = sld [smem:[#allocation0]]
  $region18: #{patch_discriminator_forward.12} parent=0
    _
  %s5 = ssub.s32 1, %s3
  %s6 = scalar_select 0, %s5, %s3
  // Predicated region
  $region2: #{patch_discriminator_forward.12} parent=0 // pred_check
    _
  $region3: #{patch_discriminator_forward.12} parent=0 // pred_check_branch
    %8 = sbr.rel (0) target = $region5
  $region4: #{patch_discriminator_forward.12} parent=0 // pred_region
    _
  $region5: #{patch_discriminator_forward.12} parent=0 // pred_fallthru
    _
  // Predicated region
  $region6: #{patch_discriminator_forward.12} parent=0 // pred_check
    _
  $region7: #{patch_discriminator_forward.12} parent=0 // pred_check_branch
    %10 = sbr.rel (0) target = $region9
  $region8: #{patch_discriminator_forward.12} parent=0 // pred_region
    _
  $region9: #{patch_discriminator_forward.12} parent=0 // pred_fallthru
    _
  %v11 = vld [vmem:[%s0] sm:$0xff]
  %v12 = vld [vmem:[%s0 + $0x8] sm:$0xff]
  %v13 = vld [vmem:[%s0 + $0x10] sm:$0xff]
  %v14 = vld [vmem:[%s0 + $0x18] sm:$0xff]
  %v15 = vld [vmem:[%s1] sm:$0xff]
  %v16 = vld [vmem:[%s1 + $0x8] sm:$0xff]
  %v17 = vld [vmem:[%s1 + $0x10] sm:$0xff]
  %v18 = vld [vmem:[%s1 + $0x18] sm:$0xff]
  %20 = vset.pattern.permute.xlu0 0
  %21 = vperm.xlu0 %20, %v15
  %v22 = vpop.permute.xlu0 %21
  %25 = vset.pattern.permute.xlu0 0
  %26 = vperm.xlu0 %25, %v16
  %v27 = vpop.permute.xlu0 %26
  %30 = vset.pattern.permute.xlu0 0
  %31 = vperm.xlu0 %30, %v17
  %v32 = vpop.permute.xlu0 %31
  %35 = vset.pattern.permute.xlu0 0
  %36 = vperm.xlu0 %35, %v18
  %v37 = vpop.permute.xlu0 %36
  %v39 = vmul.f32 %v11, %v22
  %v40 = vmul.f32 %v12, %v27
  %v41 = vmul.f32 %v13, %v32
  %v42 = vmul.f32 %v14, %v37
  %43 = vset.pattern.permute.xlu0 1
  %44 = vperm.xlu0 %43, %v15
  %v45 = vpop.permute.xlu0 %44
  %47 = vset.pattern.permute.xlu0 1
  %48 = vperm.xlu0 %47, %v16
  %v49 = vpop.permute.xlu0 %48
  %51 = vset.pattern.permute.xlu0 1
  %52 = vperm.xlu0 %51, %v17
  %v53 = vpop.permute.xlu0 %52
  %55 = vset.pattern.permute.xlu0 1
  %56 = vperm.xlu0 %55, %v18
  %v57 = vpop.permute.xlu0 %56
  %v59 = vadd.f32 %v39, %v45
  %v60 = vadd.f32 %v40, %v49
  %v61 = vadd.f32 %v41, %v53
  %v62 = vadd.f32 %v42, %v57
  %vm63 = vcmp.ge.f32.partialorder %v59, 0.0
  %vm64 = vcmp.ge.f32.partialorder %v60, 0.0
  %vm65 = vcmp.ge.f32.partialorder %v61, 0.0
  %vm66 = vcmp.ge.f32.partialorder %v62, 0.0
  %v67 = vmul.f32 %v59, 0.2
  %v68 = vmul.f32 %v60, 0.2
  %v69 = vmul.f32 %v61, 0.2
  %v70 = vmul.f32 %v62, 0.2
  %v71 = vsel %vm63, %v59, %v67
  %v72 = vsel %vm64, %v60, %v68
  %v73 = vsel %vm65, %v61, %v69
  %v74 = vsel %vm66, %v62, %v70
  %v75 = vpack.c.bf16 %v72, %v71
  %v76 = vpack.c.bf16 %v74, %v73
  %v79 = vunpack.c.l.b16 %v75
  %v80 = vunpack.c.h.b16 %v75
  %v81 = vunpack.c.l.b16 %v76
  %v82 = vunpack.c.h.b16 %v76
  %v83 = vpack.c.b16 %v79, %v79
  %v84 = vpack.c.b16 %v80, %v80
  %v85 = vpack.c.b16 %v81, %v81
  %v86 = vpack.c.b16 %v82, %v82
  %91 = vst [vmem:[%s2] sm:$0xf] %v83
  %92 = vst [vmem:[%s2 + $0x4] sm:$0xf] %v84
  %93 = vst [vmem:[%s2 + $0x8] sm:$0xf] %v85
  %94 = vst [vmem:[%s2 + $0xc] sm:$0xf] %v86
  // Predicated region
  $region10: #{patch_discriminator_forward.12} parent=0 // pred_check
    _
  $region11: #{patch_discriminator_forward.12} parent=0 // pred_check_branch
    %96 = sbr.rel (0) target = $region13
  $region12: #{patch_discriminator_forward.12} parent=0 // pred_region
    _
  $region13: #{patch_discriminator_forward.12} parent=0 // pred_fallthru
    _
  // Predicated region
  $region14: #{patch_discriminator_forward.12} parent=0 // pred_check
    _
  $region15: #{patch_discriminator_forward.12} parent=0 // pred_check_branch
    %98 = sbr.rel (0) target = $region17
  $region16: #{patch_discriminator_forward.12} parent=0 // pred_region
    _
  $region17: #{patch_discriminator_forward.12} parent=0 // pred_fallthru
    _

// kernel: patch_discriminator_forward.11
$region0: #{patch_discriminator_forward.11}
  #allocation0 [shape = 'u32[]', space=smem, size = 0x4, offset = 0x4, fixed_abs, tag = 'smem constant byte address 0x4 - core index']
  #allocation1 [shape = 'u32[144,128]{1,0:T(1,128)}', space=vmem, size = 0x12000, scoped, tag = 'internal scratch']
  %s0 = inlined_call_operand.vmem [shape: bf16[32,1024], index: 0, kind: input, shape index: {}]
  %s1 = inlined_call_operand.vmem [shape: bf16[1024,128], index: 1, kind: input, shape index: {}]
  %s2 = inlined_call_operand.vmem [shape: f32[32,128], index: 2, kind: output, shape index: {0}]
  %s3 = inlined_call_operand.vmem [shape: f32[1,32,2], index: 3, kind: output, shape index: {1}]
  %4 = xla_tuple %s2, %s3
  %s5 = sld [smem:[#allocation0]]
  $region26: #{patch_discriminator_forward.11} parent=0
    _
  %s7 = ssub.s32 1, %s5
  %s8 = scalar_select 0, %s7, %s5
  // Predicated region
  $region2: #{patch_discriminator_forward.11} parent=0 // pred_check
    _
  $region3: #{patch_discriminator_forward.11} parent=0 // pred_check_branch
    %10 = sbr.rel (0) target = $region5
  $region4: #{patch_discriminator_forward.11} parent=0 // pred_region
    _
  $region5: #{patch_discriminator_forward.11} parent=0 // pred_fallthru
    _
  // Predicated region
  $region6: #{patch_discriminator_forward.11} parent=0 // pred_check
    _
  $region7: #{patch_discriminator_forward.11} parent=0 // pred_check_branch
    %12 = sbr.rel (0) target = $region9
  $region8: #{patch_discriminator_forward.11} parent=0 // pred_region
    _
  $region9: #{patch_discriminator_forward.11} parent=0 // pred_fallthru
    _
  %v14 = vld [vmem:[%s0] sm:$0xff]
  %v15 = vld [vmem:[%s0 + $0x8] sm:$0xff]
  %v16 = vld [vmem:[%s0 + $0x10] sm:$0xff]
  %v17 = vld [vmem:[%s0 + $0x18] sm:$0xff]
  %v18 = vld [vmem:[%s0 + $0x20] sm:$0xff]
  %v19 = vld [vmem:[%s0 + $0x28] sm:$0xff]
  %v20 = vld [vmem:[%s0 + $0x30] sm:$0xff]
  %v21 = vld [vmem:[%s0 + $0x38] sm:$0xff]
  %v22 = vld [vmem:[%s0 + $0x40] sm:$0xff]
  %v23 = vld [vmem:[%s0 + $0x48] sm:$0xff]
  %v24 = vld [vmem:[%s0 + $0x50] sm:$0xff]
  %v25 = vld [vmem:[%s0 + $0x58] sm:$0xff]
  %v26 = vld [vmem:[%s0 + $0x60] sm:$0xff]
  %v27 = vld [vmem:[%s0 + $0x68] sm:$0xff]
  %v28 = vld [vmem:[%s0 + $0x70] sm:$0xff]
  %v29 = vld [vmem:[%s0 + $0x78] sm:$0xff]
  %v30 = vld [vmem:[%s1] sm:$0xf]
  %v31 = vld [vmem:[%s1 + $0x4] sm:$0xf]
  %v32 = vld [vmem:[%s1 + $0x8] sm:$0xf]
  %v33 = vld [vmem:[%s1 + $0xc] sm:$0xf]
  %v34 = vld [vmem:[%s1 + $0x10] sm:$0xf]
  %v35 = vld [vmem:[%s1 + $0x14] sm:$0xf]
  %v36 = vld [vmem:[%s1 + $0x18] sm:$0xf]
  %v37 = vld [vmem:[%s1 + $0x1c] sm:$0xf]
  %v38 = vld [vmem:[%s1 + $0x20] sm:$0xf]
  %v39 = vld [vmem:[%s1 + $0x24] sm:$0xf]
  %v40 = vld [vmem:[%s1 + $0x28] sm:$0xf]
  %v41 = vld [vmem:[%s1 + $0x2c] sm:$0xf]
  %v42 = vld [vmem:[%s1 + $0x30] sm:$0xf]
  %v43 = vld [vmem:[%s1 + $0x34] sm:$0xf]
  %v44 = vld [vmem:[%s1 + $0x38] sm:$0xf]
  %v45 = vld [vmem:[%s1 + $0x3c] sm:$0xf]
  %v46 = vld [vmem:[%s1 + $0x40] sm:$0xf]
  %v47 = vld [vmem:[%s1 + $0x44] sm:$0xf]
  %v48 = vld [vmem:[%s1 + $0x48] sm:$0xf]
  %v49 = vld [vmem:[%s1 + $0x4c] sm:$0xf]
  %v50 = vld [vmem:[%s1 + $0x50] sm:$0xf]
  %v51 = vld [vmem:[%s1 + $0x54] sm:$0xf]
  %v52 = vld [vmem:[%s1 + $0x58] sm:$0xf]
  %v53 = vld [vmem:[%s1 + $0x5c] sm:$0xf]
  %v54 = vld [vmem:[%s1 + $0x60] sm:$0xf]
  %v55 = vld [vmem:[%s1 + $0x64] sm:$0xf]
  %v56 = vld [vmem:[%s1 + $0x68] sm:$0xf]
  %v57 = vld [vmem:[%s1 + $0x6c] sm:$0xf]
  %v58 = vld [vmem:[%s1 + $0x70] sm:$0xf]
  %v59 = vld [vmem:[%s1 + $0x74] sm:$0xf]
  %v60 = vld [vmem:[%s1 + $0x78] sm:$0xf]
  %v61 = vld [vmem:[%s1 + $0x7c] sm:$0xf]
  %v62 = vld [vmem:[%s1 + $0x80] sm:$0xf]
  %v63 = vld [vmem:[%s1 + $0x84] sm:$0xf]
  %v64 = vld [vmem:[%s1 + $0x88] sm:$0xf]
  %v65 = vld [vmem:[%s1 + $0x8c] sm:$0xf]
  %v66 = vld [vmem:[%s1 + $0x90] sm:$0xf]
  %v67 = vld [vmem:[%s1 + $0x94] sm:$0xf]
  %v68 = vld [vmem:[%s1 + $0x98] sm:$0xf]
  %v69 = vld [vmem:[%s1 + $0x9c] sm:$0xf]
  %v70 = vld [vmem:[%s1 + $0xa0] sm:$0xf]
  %v71 = vld [vmem:[%s1 + $0xa4] sm:$0xf]
  %v72 = vld [vmem:[%s1 + $0xa8] sm:$0xf]
  %v73 = vld [vmem:[%s1 + $0xac] sm:$0xf]
  %v74 = vld [vmem:[%s1 + $0xb0] sm:$0xf]
  %v75 = vld [vmem:[%s1 + $0xb4] sm:$0xf]
  %v76 = vld [vmem:[%s1 + $0xb8] sm:$0xf]
  %v77 = vld [vmem:[%s1 + $0xbc] sm:$0xf]
  %v78 = vld [vmem:[%s1 + $0xc0] sm:$0xf]
  %v79 = vld [vmem:[%s1 + $0xc4] sm:$0xf]
  %v80 = vld [vmem:[%s1 + $0xc8] sm:$0xf]
  %v81 = vld [vmem:[%s1 + $0xcc] sm:$0xf]
  %v82 = vld [vmem:[%s1 + $0xd0] sm:$0xf]
  %v83 = vld [vmem:[%s1 + $0xd4] sm:$0xf]
  %v84 = vld [vmem:[%s1 + $0xd8] sm:$0xf]
  %v85 = vld [vmem:[%s1 + $0xdc] sm:$0xf]
  %v86 = vld [vmem:[%s1 + $0xe0] sm:$0xf]
  %v87 = vld [vmem:[%s1 + $0xe4] sm:$0xf]
  %v88 = vld [vmem:[%s1 + $0xe8] sm:$0xf]
  %v89 = vld [vmem:[%s1 + $0xec] sm:$0xf]
  %v90 = vld [vmem:[%s1 + $0xf0] sm:$0xf]
  %v91 = vld [vmem:[%s1 + $0xf4] sm:$0xf]
  %v92 = vld [vmem:[%s1 + $0xf8] sm:$0xf]
  %v93 = vld [vmem:[%s1 + $0xfc] sm:$0xf]
  %v94 = vld [vmem:[%s1 + $0x100] sm:$0xf]
  %v95 = vld [vmem:[%s1 + $0x104] sm:$0xf]
  %v96 = vld [vmem:[%s1 + $0x108] sm:$0xf]
  %v97 = vld [vmem:[%s1 + $0x10c] sm:$0xf]
  %v98 = vld [vmem:[%s1 + $0x110] sm:$0xf]
  %v99 = vld [vmem:[%s1 + $0x114] sm:$0xf]
  %v100 = vld [vmem:[%s1 + $0x118] sm:$0xf]
  %v101 = vld [vmem:[%s1 + $0x11c] sm:$0xf]
  %v102 = vld [vmem:[%s1 + $0x120] sm:$0xf]
  %v103 = vld [vmem:[%s1 + $0x124] sm:$0xf]
  %v104 = vld [vmem:[%s1 + $0x128] sm:$0xf]
  %v105 = vld [vmem:[%s1 + $0x12c] sm:$0xf]
  %v106 = vld [vmem:[%s1 + $0x130] sm:$0xf]
  %v107 = vld [vmem:[%s1 + $0x134] sm:$0xf]
  %v108 = vld [vmem:[%s1 + $0x138] sm:$0xf]
  %v109 = vld [vmem:[%s1 + $0x13c] sm:$0xf]
  %v110 = vld [vmem:[%s1 + $0x140] sm:$0xf]
  %v111 = vld [vmem:[%s1 + $0x144] sm:$0xf]
  %v112 = vld [vmem:[%s1 + $0x148] sm:$0xf]
  %v113 = vld [vmem:[%s1 + $0x14c] sm:$0xf]
  %v114 = vld [vmem:[%s1 + $0x150] sm:$0xf]
  %v115 = vld [vmem:[%s1 + $0x154] sm:$0xf]
  %v116 = vld [vmem:[%s1 + $0x158] sm:$0xf]
  %v117 = vld [vmem:[%s1 + $0x15c] sm:$0xf]
  %v118 = vld [vmem:[%s1 + $0x160] sm:$0xf]
  %v119 = vld [vmem:[%s1 + $0x164] sm:$0xf]
  %v120 = vld [vmem:[%s1 + $0x168] sm:$0xf]
  %v121 = vld [vmem:[%s1 + $0x16c] sm:$0xf]
  %v122 = vld [vmem:[%s1 + $0x170] sm:$0xf]
  %v123 = vld [vmem:[%s1 + $0x174] sm:$0xf]
  %v124 = vld [vmem:[%s1 + $0x178] sm:$0xf]
  %v125 = vld [vmem:[%s1 + $0x17c] sm:$0xf]
  %v126 = vld [vmem:[%s1 + $0x180] sm:$0xf]
  %v127 = vld [vmem:[%s1 + $0x184] sm:$0xf]
  %v128 = vld [vmem:[%s1 + $0x188] sm:$0xf]
  %v129 = vld [vmem:[%s1 + $0x18c] sm:$0xf]
  %v130 = vld [vmem:[%s1 + $0x190] sm:$0xf]
  %v131 = vld [vmem:[%s1 + $0x194] sm:$0xf]
  %v132 = vld [vmem:[%s1 + $0x198] sm:$0xf]
  %v133 = vld [vmem:[%s1 + $0x19c] sm:$0xf]
  %v134 = vld [vmem:[%s1 + $0x1a0] sm:$0xf]
  %v135 = vld [vmem:[%s1 + $0x1a4] sm:$0xf]
  %v136 = vld [vmem:[%s1 + $0x1a8] sm:$0xf]
  %v137 = vld [vmem:[%s1 + $0x1ac] sm:$0xf]
  %v138 = vld [vmem:[%s1 + $0x1b0] sm:$0xf]
  %v139 = vld [vmem:[%s1 + $0x1b4] sm:$0xf]
  %v140 = vld [vmem:[%s1 + $0x1b8] sm:$0xf]
  %v141 = vld [vmem:[%s1 + $0x1bc] sm:$0xf]
  %v142 = vld [vmem:[%s1 + $0x1c0] sm:$0xf]
  %v143 = vld [vmem:[%s1 + $0x1c4] sm:$0xf]
  %v144 = vld [vmem:[%s1 + $0x1c8] sm:$0xf]
  %v145 = vld [vmem:[%s1 + $0x1cc] sm:$0xf]
  %v146 = vld [vmem:[%s1 + $0x1d0] sm:$0xf]
  %v147 = vld [vmem:[%s1 + $0x1d4] sm:$0xf]
  %v148 = vld [vmem:[%s1 + $0x1d8] sm:$0xf]
  %v149 = vld [vmem:[%s1 + $0x1dc] sm:$0xf]
  %v150 = vld [vmem:[%s1 + $0x1e0] sm:$0xf]
  %v151 = vld [vmem:[%s1 + $0x1e4] sm:$0xf]
  %v152 = vld [vmem:[%s1 + $0x1e8] sm:$0xf]
  %v153 = vld [vmem:[%s1 + $0x1ec] sm:$0xf]
  %v154 = vld [vmem:[%s1 + $0x1f0] sm:$0xf]
  %v155 = vld [vmem:[%s1 + $0x1f4] sm:$0xf]
  %v156 = vld [vmem:[%s1 + $0x1f8] sm:$0xf]
  %v157 = vld [vmem:[%s1 + $0x1fc] sm:$0xf]
  %v174 = vunpack.c.l.b16 %v14
  %v175 = vunpack.c.h.b16 %v14
  %v176 = vunpack.c.l.b16 %v15
  %v177 = vunpack.c.h.b16 %v15
  %v178 = vunpack.c.l.b16 %v16
  %v179 = vunpack.c.h.b16 %v16
  %v180 = vunpack.c.l.b16 %v17
  %v181 = vunpack.c.h.b16 %v17
  %v182 = vunpack.c.l.b16 %v18
  %v183 = vunpack.c.h.b16 %v18
  %v184 = vunpack.c.l.b16 %v19
  %v185 = vunpack.c.h.b16 %v19
  %v186 = vunpack.c.l.b16 %v20
  %v187 = vunpack.c.h.b16 %v20
  %v188 = vunpack.c.l.b16 %v21
  %v189 = vunpack.c.h.b16 %v21
  %v190 = vunpack.c.l.b16 %v22
  %v191 = vunpack.c.h.b16 %v22
  %v192 = vunpack.c.l.b16 %v23
  %v193 = vunpack.c.h.b16 %v23
  %v194 = vunpack.c.l.b16 %v24
  %v195 = vunpack.c.h.b16 %v24
  %v196 = vunpack.c.l.b16 %v25
  %v197 = vunpack.c.h.b16 %v25
  %v198 = vunpack.c.l.b16 %v26
  %v199 = vunpack.c.h.b16 %v26
  %v200 = vunpack.c.l.b16 %v27
  %v201 = vunpack.c.h.b16 %v27
  %v202 = vunpack.c.l.b16 %v28
  %v203 = vunpack.c.h.b16 %v28
  %v204 = vunpack.c.l.b16 %v29
  %v205 = vunpack.c.h.b16 %v29
  %v206 = vpack.c.b16 %v182, %v174
  %v207 = vpack.c.b16 %v183, %v175
  %v208 = vpack.c.b16 %v184, %v176
  %v209 = vpack.c.b16 %v185, %v177
  %v210 = vpack.c.b16 %v186, %v178
  %v211 = vpack.c.b16 %v187, %v179
  %v212 = vpack.c.b16 %v188, %v180
  %v213 = vpack.c.b16 %v189, %v181
  %v214 = vpack.c.b16 %v198, %v190
  %v215 = vpack.c.b16 %v199, %v191
  %v216 = vpack.c.b16 %v200, %v192
  %v217 = vpack.c.b16 %v201, %v193
  %v218 = vpack.c.b16 %v202, %v194
  %v219 = vpack.c.b16 %v203, %v195
  %v220 = vpack.c.b16 %v204, %v196
  %v221 = vpack.c.b16 %v205, %v197
  %v366 = vunpack.c.l.b16 %v30
  %v367 = vunpack.c.l.b16 %v31
  %v368 = vunpack.c.l.b16 %v32
  %v369 = vunpack.c.l.b16 %v33
  %v370 = vunpack.c.l.b16 %v34
  %v371 = vunpack.c.l.b16 %v35
  %v372 = vunpack.c.l.b16 %v36
  %v373 = vunpack.c.l.b16 %v37
  %v374 = vunpack.c.l.b16 %v38
  %v375 = vunpack.c.l.b16 %v39
  %v376 = vunpack.c.l.b16 %v40
  %v377 = vunpack.c.l.b16 %v41
  %v378 = vunpack.c.l.b16 %v42
  %v379 = vunpack.c.l.b16 %v43
  %v380 = vunpack.c.l.b16 %v44
  %v381 = vunpack.c.l.b16 %v45
  %v382 = vunpack.c.l.b16 %v46
  %v383 = vunpack.c.l.b16 %v47
  %v384 = vunpack.c.l.b16 %v48
  %v385 = vunpack.c.l.b16 %v49
  %v386 = vunpack.c.l.b16 %v50
  %v387 = vunpack.c.l.b16 %v51
  %v388 = vunpack.c.l.b16 %v52
  %v389 = vunpack.c.l.b16 %v53
  %v390 = vunpack.c.l.b16 %v54
  %v391 = vunpack.c.l.b16 %v55
  %v392 = vunpack.c.l.b16 %v56
  %v393 = vunpack.c.l.b16 %v57
  %v394 = vunpack.c.l.b16 %v58
  %v395 = vunpack.c.l.b16 %v59
  %v396 = vunpack.c.l.b16 %v60
  %v397 = vunpack.c.l.b16 %v61
  %v398 = vunpack.c.l.b16 %v62
  %v399 = vunpack.c.l.b16 %v63
  %v400 = vunpack.c.l.b16 %v64
  %v401 = vunpack.c.l.b16 %v65
  %v402 = vunpack.c.l.b16 %v66
  %v403 = vunpack.c.l.b16 %v67
  %v404 = vunpack.c.l.b16 %v68
  %v405 = vunpack.c.l.b16 %v69
  %v406 = vunpack.c.l.b16 %v70
  %v407 = vunpack.c.l.b16 %v71
  %v408 = vunpack.c.l.b16 %v72
  %v409 = vunpack.c.l.b16 %v73
  %v410 = vunpack.c.l.b16 %v74
  %v411 = vunpack.c.l.b16 %v75
  %v412 = vunpack.c.l.b16 %v76
  %v413 = vunpack.c.l.b16 %v77
  %v414 = vunpack.c.l.b16 %v78
  %v415 = vunpack.c.l.b16 %v79
  %v416 = vunpack.c.l.b16 %v80
  %v417 = vunpack.c.l.b16 %v81
  %v418 = vunpack.c.l.b16 %v82
  %v419 = vunpack.c.l.b16 %v83
  %v420 = vunpack.c.l.b16 %v84
  %v421 = vunpack.c.l.b16 %v85
  %v422 = vunpack.c.l.b16 %v86
  %v423 = vunpack.c.l.b16 %v87
  %v424 = vunpack.c.l.b16 %v88
  %v425 = vunpack.c.l.b16 %v89
  %v426 = vunpack.c.l.b16 %v90
  %v427 = vunpack.c.l.b16 %v91
  %v428 = vunpack.c.l.b16 %v92
  %v429 = vunpack.c.l.b16 %v93
  %v430 = vunpack.c.l.b16 %v94
  %v431 = vunpack.c.l.b16 %v95
  %v432 = vunpack.c.l.b16 %v96
  %v433 = vunpack.c.l.b16 %v97
  %v434 = vunpack.c.l.b16 %v98
  %v435 = vunpack.c.l.b16 %v99
  %v436 = vunpack.c.l.b16 %v100
  %v437 = vunpack.c.l.b16 %v101
  %v438 = vunpack.c.l.b16 %v102
  %v439 = vunpack.c.l.b16 %v103
  %v440 = vunpack.c.l.b16 %v104
  %v441 = vunpack.c.l.b16 %v105
  %v442 = vunpack.c.l.b16 %v106
  %v443 = vunpack.c.l.b16 %v107
  %v444 = vunpack.c.l.b16 %v108
  %v445 = vunpack.c.l.b16 %v109
  %v446 = vunpack.c.l.b16 %v110
  %v447 = vunpack.c.l.b16 %v111
  %v448 = vunpack.c.l.b16 %v112
  %v449 = vunpack.c.l.b16 %v113
  %v450 = vunpack.c.l.b16 %v114
  %v451 = vunpack.c.l.b16 %v115
  %v452 = vunpack.c.l.b16 %v116
  %v453 = vunpack.c.l.b16 %v117
  %v454 = vunpack.c.l.b16 %v118
  %v455 = vunpack.c.l.b16 %v119
  %v456 = vunpack.c.l.b16 %v120
  %v457 = vunpack.c.l.b16 %v121
  %v458 = vunpack.c.l.b16 %v122
  %v459 = vunpack.c.l.b16 %v123
  %v460 = vunpack.c.l.b16 %v124
  %v461 = vunpack.c.l.b16 %v125
  %v462 = vunpack.c.l.b16 %v126
  %v463 = vunpack.c.l.b16 %v127
  %v464 = vunpack.c.l.b16 %v128
  %v465 = vunpack.c.l.b16 %v129
  %v466 = vunpack.c.l.b16 %v130
  %v467 = vunpack.c.l.b16 %v131
  %v468 = vunpack.c.l.b16 %v132
  %v469 = vunpack.c.l.b16 %v133
  %v470 = vunpack.c.l.b16 %v134
  %v471 = vunpack.c.l.b16 %v135
  %v472 = vunpack.c.l.b16 %v136
  %v473 = vunpack.c.l.b16 %v137
  %v474 = vunpack.c.l.b16 %v138
  %v475 = vunpack.c.l.b16 %v139
  %v476 = vunpack.c.l.b16 %v140
  %v477 = vunpack.c.l.b16 %v141
  %v478 = vunpack.c.l.b16 %v142
  %v479 = vunpack.c.l.b16 %v143
  %v480 = vunpack.c.l.b16 %v144
  %v481 = vunpack.c.l.b16 %v145
  %v482 = vunpack.c.l.b16 %v146
  %v483 = vunpack.c.l.b16 %v147
  %v484 = vunpack.c.l.b16 %v148
  %v485 = vunpack.c.l.b16 %v149
  %v486 = vunpack.c.l.b16 %v150
  %v487 = vunpack.c.l.b16 %v151
  %v488 = vunpack.c.l.b16 %v152
  %v489 = vunpack.c.l.b16 %v153
  %v490 = vunpack.c.l.b16 %v154
  %v491 = vunpack.c.l.b16 %v155
  %v492 = vunpack.c.l.b16 %v156
  %v493 = vunpack.c.l.b16 %v157
  %v494 = vpack.c.b16 %v367, %v366
  %v495 = vpack.c.b16 %v369, %v368
  %v496 = vpack.c.b16 %v371, %v370
  %v497 = vpack.c.b16 %v373, %v372
  %v498 = vpack.c.b16 %v375, %v374
  %v499 = vpack.c.b16 %v377, %v376
  %v500 = vpack.c.b16 %v379, %v378
  %v501 = vpack.c.b16 %v381, %v380
  %v502 = vpack.c.b16 %v383, %v382
  %v503 = vpack.c.b16 %v385, %v384
  %v504 = vpack.c.b16 %v387, %v386
  %v505 = vpack.c.b16 %v389, %v388
  %v506 = vpack.c.b16 %v391, %v390
  %v507 = vpack.c.b16 %v393, %v392
  %v508 = vpack.c.b16 %v395, %v394
  %v509 = vpack.c.b16 %v397, %v396
  %v510 = vpack.c.b16 %v399, %v398
  %v511 = vpack.c.b16 %v401, %v400
  %v512 = vpack.c.b16 %v403, %v402
  %v513 = vpack.c.b16 %v405, %v404
  %v514 = vpack.c.b16 %v407, %v406
  %v515 = vpack.c.b16 %v409, %v408
  %v516 = vpack.c.b16 %v411, %v410
  %v517 = vpack.c.b16 %v413, %v412
  %v518 = vpack.c.b16 %v415, %v414
  %v519 = vpack.c.b16 %v417, %v416
  %v520 = vpack.c.b16 %v419, %v418
  %v521 = vpack.c.b16 %v421, %v420
  %v522 = vpack.c.b16 %v423, %v422
  %v523 = vpack.c.b16 %v425, %v424
  %v524 = vpack.c.b16 %v427, %v426
  %v525 = vpack.c.b16 %v429, %v428
  %v526 = vpack.c.b16 %v431, %v430
  %v527 = vpack.c.b16 %v433, %v432
  %v528 = vpack.c.b16 %v435, %v434
  %v529 = vpack.c.b16 %v437, %v436
  %v530 = vpack.c.b16 %v439, %v438
  %v531 = vpack.c.b16 %v441, %v440
  %v532 = vpack.c.b16 %v443, %v442
  %v533 = vpack.c.b16 %v445, %v444
  %v534 = vpack.c.b16 %v447, %v446
  %v535 = vpack.c.b16 %v449, %v448
  %v536 = vpack.c.b16 %v451, %v450
  %v537 = vpack.c.b16 %v453, %v452
  %v538 = vpack.c.b16 %v455, %v454
  %v539 = vpack.c.b16 %v457, %v456
  %v540 = vpack.c.b16 %v459, %v458
  %v541 = vpack.c.b16 %v461, %v460
  %v542 = vpack.c.b16 %v463, %v462
  %v543 = vpack.c.b16 %v465, %v464
  %v544 = vpack.c.b16 %v467, %v466
  %v545 = vpack.c.b16 %v469, %v468
  %v546 = vpack.c.b16 %v471, %v470
  %v547 = vpack.c.b16 %v473, %v472
  %v548 = vpack.c.b16 %v475, %v474
  %v549 = vpack.c.b16 %v477, %v476
  %v550 = vpack.c.b16 %v479, %v478
  %v551 = vpack.c.b16 %v481, %v480
  %v552 = vpack.c.b16 %v483, %v482
  %v553 = vpack.c.b16 %v485, %v484
  %v554 = vpack.c.b16 %v487, %v486
  %v555 = vpack.c.b16 %v489, %v488
  %v556 = vpack.c.b16 %v491, %v490
  %v557 = vpack.c.b16 %v493, %v492
  %622 = vmatprep.subr.bf16.mxu0 0
  %623 = vmatpush1.bf16.msra.mxu0 %v494
  %624 = vmatprep.subr.bf16.mxu0 0
  %625 = vmatpush1.bf16.msra.mxu0 %v495
  %626 = vmatprep.subr.bf16.mxu0 0
  %627 = vmatpush1.bf16.msra.mxu0 %v496
  %628 = vmatprep.subr.bf16.mxu0 0
  %629 = vmatpush1.bf16.msra.mxu0 %v497
  %630 = vmatprep.subr.bf16.mxu0 0
  %631 = vmatpush1.bf16.msra.mxu0 %v498
  %632 = vmatprep.subr.bf16.mxu0 0
  %633 = vmatpush1.bf16.msra.mxu0 %v499
  %634 = vmatprep.subr.bf16.mxu0 0
  %635 = vmatpush1.bf16.msra.mxu0 %v500
  %636 = vmatprep.subr.bf16.mxu0 0
  %637 = vmatpush1.bf16.msra.mxu0 %v501
  %638 = vmatprep.subr.bf16.mxu0 0
  %639 = vmatpush1.bf16.msra.mxu0 %v502
  %640 = vmatprep.subr.bf16.mxu0 0
  %641 = vmatpush1.bf16.msra.mxu0 %v503
  %642 = vmatprep.subr.bf16.mxu0 0
  %643 = vmatpush1.bf16.msra.mxu0 %v504
  %644 = vmatprep.subr.bf16.mxu0 0
  %645 = vmatpush1.bf16.msra.mxu0 %v505
  %646 = vmatprep.subr.bf16.mxu0 0
  %647 = vmatpush1.bf16.msra.mxu0 %v506
  %648 = vmatprep.subr.bf16.mxu0 0
  %649 = vmatpush1.bf16.msra.mxu0 %v507
  %650 = vmatprep.subr.bf16.mxu0 0
  %651 = vmatpush1.bf16.msra.mxu0 %v508
  %652 = vmatprep.subr.bf16.mxu0 0
  %653 = vmatpush1.bf16.msra.mxu0 %v509
  %654 = vmatprep.mubr.bf16.mxu0 %v207
  %655 = vmatmul.mubr.bf16.gmra.mrb[0].mxu0 %v206
  %v656 = vpop.f32.mrb[0].mxu0
  %v657 = vadd.f32 0.0, %v656
  %v658 = vpop.f32.mrb[0].mxu0
  %v659 = vpop.f32.mrb[0].mxu0
  %v660 = vadd.f32 0.0, %v659
  %v661 = vpop.f32.mrb[0].mxu0
  %662 = vmatprep.mubr.bf16.mxu0 %v215
  %663 = vmatmul.mubr.bf16.gmra.mrb[0].mxu0 %v214
  %v664 = vpop.f32.mrb[0].mxu0
  %v665 = vadd.f32 0.0, %v664
  %v666 = vpop.f32.mrb[0].mxu0
  %v667 = vpop.f32.mrb[0].mxu0
  %v668 = vadd.f32 0.0, %v667
  %v669 = vpop.f32.mrb[0].mxu0
  %670 = vdwg.mxu0
  %671 = vmatprep.subr.bf16.mxu0 0
  %672 = vmatpush1.bf16.msra.mxu0 %v510
  %673 = vmatprep.subr.bf16.mxu0 0
  %674 = vmatpush1.bf16.msra.mxu0 %v511
  %675 = vmatprep.subr.bf16.mxu0 0
  %676 = vmatpush1.bf16.msra.mxu0 %v512
  %677 = vmatprep.subr.bf16.mxu0 0
  %678 = vmatpush1.bf16.msra.mxu0 %v513
  %679 = vmatprep.subr.bf16.mxu0 0
  %680 = vmatpush1.bf16.msra.mxu0 %v514
  %681 = vmatprep.subr.bf16.mxu0 0
  %682 = vmatpush1.bf16.msra.mxu0 %v515
  %683 = vmatprep.subr.bf16.mxu0 0
  %684 = vmatpush1.bf16.msra.mxu0 %v516
  %685 = vmatprep.subr.bf16.mxu0 0
  %686 = vmatpush1.bf16.msra.mxu0 %v517
  %687 = vmatprep.subr.bf16.mxu0 0
  %688 = vmatpush1.bf16.msra.mxu0 %v518
  %689 = vmatprep.subr.bf16.mxu0 0
  %690 = vmatpush1.bf16.msra.mxu0 %v519
  %691 = vmatprep.subr.bf16.mxu0 0
  %692 = vmatpush1.bf16.msra.mxu0 %v520
  %693 = vmatprep.subr.bf16.mxu0 0
  %694 = vmatpush1.bf16.msra.mxu0 %v521
  %695 = vmatprep.subr.bf16.mxu0 0
  %696 = vmatpush1.bf16.msra.mxu0 %v522
  %697 = vmatprep.subr.bf16.mxu0 0
  %698 = vmatpush1.bf16.msra.mxu0 %v523
  %699 = vmatprep.subr.bf16.mxu0 0
  %700 = vmatpush1.bf16.msra.mxu0 %v524
  %701 = vmatprep.subr.bf16.mxu0 0
  %702 = vmatpush1.bf16.msra.mxu0 %v525
  %703 = vmatprep.mubr.bf16.mxu0 %v209
  %704 = vmatmul.mubr.bf16.gmra.mrb[0].mxu0 %v208
  %v705 = vpop.f32.mrb[0].mxu0
  %v706 = vadd.f32 %v657, %v705
  %v707 = vpop.f32.mrb[0].mxu0
  %v708 = vpop.f32.mrb[0].mxu0
  %v709 = vadd.f32 %v660, %v708
  %v710 = vpop.f32.mrb[0].mxu0
  %711 = vmatprep.mubr.bf16.mxu0 %v217
  %712 = vmatmul.mubr.bf16.gmra.mrb[0].mxu0 %v216
  %v713 = vpop.f32.mrb[0].mxu0
  %v714 = vadd.f32 %v665, %v713
  %v715 = vpop.f32.mrb[0].mxu0
  %v716 = vpop.f32.mrb[0].mxu0
  %v717 = vadd.f32 %v668, %v716
  %v718 = vpop.f32.mrb[0].mxu0
  %719 = vdwg.mxu0
  %720 = vmatprep.subr.bf16.mxu0 0
  %721 = vmatpush1.bf16.msra.mxu0 %v526
  %722 = vmatprep.subr.bf16.mxu0 0
  %723 = vmatpush1.bf16.msra.mxu0 %v527
  %724 = vmatprep.subr.bf16.mxu0 0
  %725 = vmatpush1.bf16.msra.mxu0 %v528
  %726 = vmatprep.subr.bf16.mxu0 0
  %727 = vmatpush1.bf16.msra.mxu0 %v529
  %728 = vmatprep.subr.bf16.mxu0 0
  %729 = vmatpush1.bf16.msra.mxu0 %v530
  %730 = vmatprep.subr.bf16.mxu0 0
  %731 = vmatpush1.bf16.msra.mxu0 %v531
  %732 = vmatprep.subr.bf16.mxu0 0
  %733 = vmatpush1.bf16.msra.mxu0 %v532
  %734 = vmatprep.subr.bf16.mxu0 0
  %735 = vmatpush1.bf16.msra.mxu0 %v533
  %736 = vmatprep.subr.bf16.mxu0 0
  %737 = vmatpush1.bf16.msra.mxu0 %v534
  %738 = vmatprep.subr.bf16.mxu0 0
  %739 = vmatpush1.bf16.msra.mxu0 %v535
  %740 = vmatprep.subr.bf16.mxu0 0
  %741 = vmatpush1.bf16.msra.mxu0 %v536
  %742 = vmatprep.subr.bf16.mxu0 0
  %743 = vmatpush1.bf16.msra.mxu0 %v537
  %744 = vmatprep.subr.bf16.mxu0 0
  %745 = vmatpush1.bf16.msra.mxu0 %v538
  %746 = vmatprep.subr.bf16.mxu0 0
  %747 = vmatpush1.bf16.msra.mxu0 %v539
  %748 = vmatprep.subr.bf16.mxu0 0
  %749 = vmatpush1.bf16.msra.mxu0 %v540
  %750 = vmatprep.subr.bf16.mxu0 0
  %751 = vmatpush1.bf16.msra.mxu0 %v541
  %752 = vmatprep.mubr.bf16.mxu0 %v211
  %753 = vmatmul.mubr.bf16.gmra.mrb[0].mxu0 %v210
  %v754 = vpop.f32.mrb[0].mxu0
  %v755 = vadd.f32 %v706, %v754
  %v756 = vpop.f32.mrb[0].mxu0
  %v757 = vpop.f32.mrb[0].mxu0
  %v758 = vadd.f32 %v709, %v757
  %v759 = vpop.f32.mrb[0].mxu0
  %760 = vmatprep.mubr.bf16.mxu0 %v219
  %761 = vmatmul.mubr.bf16.gmra.mrb[0].mxu0 %v218
  %v762 = vpop.f32.mrb[0].mxu0
  %v763 = vadd.f32 %v714, %v762
  %v764 = vpop.f32.mrb[0].mxu0
  %v765 = vpop.f32.mrb[0].mxu0
  %v766 = vadd.f32 %v717, %v765
  %v767 = vpop.f32.mrb[0].mxu0
  %768 = vdwg.mxu0
  %769 = vmatprep.subr.bf16.mxu0 0
  %770 = vmatpush1.bf16.msra.mxu0 %v542
  %771 = vmatprep.subr.bf16.mxu0 0
  %772 = vmatpush1.bf16.msra.mxu0 %v543
  %773 = vmatprep.subr.bf16.mxu0 0
  %774 = vmatpush1.bf16.msra.mxu0 %v544
  %775 = vmatprep.subr.bf16.mxu0 0
  %776 = vmatpush1.bf16.msra.mxu0 %v545
  %777 = vmatprep.subr.bf16.mxu0 0
  %778 = vmatpush1.bf16.msra.mxu0 %v546
  %779 = vmatprep.subr.bf16.mxu0 0
  %780 = vmatpush1.bf16.msra.mxu0 %v547
  %781 = vmatprep.subr.bf16.mxu0 0
  %782 = vmatpush1.bf16.msra.mxu0 %v548
  %783 = vmatprep.subr.bf16.mxu0 0
  %784 = vmatpush1.bf16.msra.mxu0 %v549
  %785 = vmatprep.subr.bf16.mxu0 0
  %786 = vmatpush1.bf16.msra.mxu0 %v550
  %787 = vmatprep.subr.bf16.mxu0 0
  %788 = vmatpush1.bf16.msra.mxu0 %v551
  %789 = vmatprep.subr.bf16.mxu0 0
  %790 = vmatpush1.bf16.msra.mxu0 %v552
  %791 = vmatprep.subr.bf16.mxu0 0
  %792 = vmatpush1.bf16.msra.mxu0 %v553
  %793 = vmatprep.subr.bf16.mxu0 0
  %794 = vmatpush1.bf16.msra.mxu0 %v554
  %795 = vmatprep.subr.bf16.mxu0 0
  %796 = vmatpush1.bf16.msra.mxu0 %v555
  %797 = vmatprep.subr.bf16.mxu0 0
  %798 = vmatpush1.bf16.msra.mxu0 %v556
  %799 = vmatprep.subr.bf16.mxu0 0
  %800 = vmatpush1.bf16.msra.mxu0 %v557
  %801 = vmatprep.mubr.bf16.mxu0 %v213
  %802 = vmatmul.mubr.bf16.gmra.mrb[0].mxu0 %v212
  %v803 = vpop.f32.mrb[0].mxu0
  %v804 = vadd.f32 %v755, %v803
  %v805 = vpop.f32.mrb[0].mxu0
  %v806 = vpop.f32.mrb[0].mxu0
  %v807 = vadd.f32 %v758, %v806
  %v808 = vpop.f32.mrb[0].mxu0
  %809 = vmatprep.mubr.bf16.mxu0 %v221
  %810 = vmatmul.mubr.bf16.gmra.mrb[0].mxu0 %v220
  %v811 = vpop.f32.mrb[0].mxu0
  %v812 = vadd.f32 %v763, %v811
  %v813 = vpop.f32.mrb[0].mxu0
  %v814 = vpop.f32.mrb[0].mxu0
  %v815 = vadd.f32 %v766, %v814
  %v816 = vpop.f32.mrb[0].mxu0
  %817 = vdwg.mxu0
  %818 = vadd.xlane.f32.xlu0 %v804
  %v819 = vpop.xlane.xlu0 %818
  %820 = vadd.xlane.f32.xlu0 %v807
  %v821 = vpop.xlane.xlu0 %820
  %822 = vadd.xlane.f32.xlu0 %v812
  %v823 = vpop.xlane.xlu0 %822
  %824 = vadd.xlane.f32.xlu0 %v815
  %v825 = vpop.xlane.xlu0 %824
  %v826 = vmul.f32 %v804, %v804
  %v827 = vmul.f32 %v807, %v807
  %v828 = vmul.f32 %v812, %v812
  %v829 = vmul.f32 %v815, %v815
  %830 = vadd.xlane.f32.xlu0 %v826
  %v831 = vpop.xlane.xlu0 %830
  %832 = vadd.xlane.f32.xlu0 %v827
  %v833 = vpop.xlane.xlu0 %832
  %834 = vadd.xlane.f32.xlu0 %v828
  %v835 = vpop.xlane.xlu0 %834
  %836 = vadd.xlane.f32.xlu0 %v829
  %v837 = vpop.xlane.xlu0 %836
  %vm838 = vcmask 7168
  %v839 = vsel %vm838, %v819, %v831
  %v840 = vsel %vm838, %v821, %v833
  %v841 = vsel %vm838, %v823, %v835
  %v842 = vsel %vm838, %v825, %v837
  %vm843 = vcmask 15360
  %844 = vst.msk [vmem:[%s3] sm:$0xff] %vm843, %v839
  %845 = vst.msk [vmem:[%s3 + $0x8] sm:$0xff] %vm843, %v840
  %846 = vst.msk [vmem:[%s3 + $0x10] sm:$0xff] %vm843, %v841
  %847 = vst.msk [vmem:[%s3 + $0x18] sm:$0xff] %vm843, %v842
  %848 = vst [vmem:[%s2] sm:$0xff] %v804
  %849 = vst [vmem:[%s2 + $0x8] sm:$0xff] %v807
  %850 = vst [vmem:[%s2 + $0x10] sm:$0xff] %v812
  %851 = vst [vmem:[%s2 + $0x18] sm:$0xff] %v815
  // Predicated region
  $region10: #{patch_discriminator_forward.11} parent=0 // pred_check
    _
  $region11: #{patch_discriminator_forward.11} parent=0 // pred_check_branch
    %853 = sbr.rel (0) target = $region13
  $region12: #{patch_discriminator_forward.11} parent=0 // pred_region
    _
  $region13: #{patch_discriminator_forward.11} parent=0 // pred_fallthru
    _
  // Predicated region
  $region14: #{patch_discriminator_forward.11} parent=0 // pred_check
    _
  $region15: #{patch_discriminator_forward.11} parent=0 // pred_check_branch
    %855 = sbr.rel (0) target = $region17
  $region16: #{patch_discriminator_forward.11} parent=0 // pred_region
    _
  $region17: #{patch_discriminator_forward.11} parent=0 // pred_fallthru
    _
  // Predicated region
  $region18: #{patch_discriminator_forward.11} parent=0 // pred_check
    _
  $region19: #{patch_discriminator_forward.11} parent=0 // pred_check_branch
    %857 = sbr.rel (0) target = $region21
  $region20: #{patch_discriminator_forward.11} parent=0 // pred_region
    _
  $region21: #{patch_discriminator_forward.11} parent=0 // pred_fallthru
    _
  // Predicated region
  $region22: #{patch_discriminator_forward.11} parent=0 // pred_check
    _
  $region23: #{patch_discriminator_forward.11} parent=0 // pred_check_branch
    %859 = sbr.rel (0) target = $region25
  $region24: #{patch_discriminator_forward.11} parent=0 // pred_region
    _
  $region25: #{patch_discriminator_forward.11} parent=0 // pred_fallthru
    _

// kernel: patch_discriminator_forward.14
$region0: #{patch_discriminator_forward.14}
  #allocation0 [shape = 'u32[]', space=smem, size = 0x4, offset = 0x4, fixed_abs, tag = 'smem constant byte address 0x4 - core index']
  #allocation1 [shape = 'u32[144,128]{1,0:T(1,128)}', space=vmem, size = 0x12000, scoped, tag = 'internal scratch']
  %s0 = inlined_call_operand.vmem [shape: bf16[64,128], index: 0, kind: input, shape index: {}]
  %s1 = inlined_call_operand.vmem [shape: f32[64,2], index: 1, kind: input, shape index: {}]
  %s2 = inlined_call_operand.vmem [shape: bf16[64,128], index: 2, kind: output, shape index: {}]
  %s3 = sld [smem:[#allocation0]]
  $region18: #{patch_discriminator_forward.14} parent=0
    _
  %s5 = ssub.s32 1, %s3
  %s6 = scalar_select 0, %s5, %s3
  // Predicated region
  $region2: #{patch_discriminator_forward.14} parent=0 // pred_check
    _
  $region3: #{patch_discriminator_forward.14} parent=0 // pred_check_branch
    %8 = sbr.rel (0) target = $region5
  $region4: #{patch_discriminator_forward.14} parent=0 // pred_region
    _
  $region5: #{patch_discriminator_forward.14} parent=0 // pred_fallthru
    _
  // Predicated region
  $region6: #{patch_discriminator_forward.14} parent=0 // pred_check
    _
  $region7: #{patch_discriminator_forward.14} parent=0 // pred_check_branch
    %10 = sbr.rel (0) target = $region9
  $region8: #{patch_discriminator_forward.14} parent=0 // pred_region
    _
  $region9: #{patch_discriminator_forward.14} parent=0 // pred_fallthru
    _
  %v11 = vld [vmem:[%s0] sm:$0xf]
  %v12 = vld [vmem:[%s0 + $0x4] sm:$0xf]
  %v13 = vld [vmem:[%s0 + $0x8] sm:$0xf]
  %v14 = vld [vmem:[%s0 + $0xc] sm:$0xf]
  %v15 = vld [vmem:[%s0 + $0x10] sm:$0xf]
  %v16 = vld [vmem:[%s0 + $0x14] sm:$0xf]
  %v17 = vld [vmem:[%s0 + $0x18] sm:$0xf]
  %v18 = vld [vmem:[%s0 + $0x1c] sm:$0xf]
  %v19 = vunpack.c.l.bf16 %v11
  %v20 = vunpack.c.l.bf16 %v12
  %v21 = vunpack.c.l.bf16 %v13
  %v22 = vunpack.c.l.bf16 %v14
  %v23 = vunpack.c.l.bf16 %v15
  %v24 = vunpack.c.l.bf16 %v16
  %v25 = vunpack.c.l.bf16 %v17
  %v26 = vunpack.c.l.bf16 %v18
  %v27 = vld [vmem:[%s1] sm:$0xff]
  %v28 = vld [vmem:[%s1 + $0x8] sm:$0xff]
  %v29 = vld [vmem:[%s1 + $0x10] sm:$0xff]
  %v30 = vld [vmem:[%s1 + $0x18] sm:$0xff]
  %v31 = vld [vmem:[%s1 + $0x20] sm:$0xff]
  %v32 = vld [vmem:[%s1 + $0x28] sm:$0xff]
  %v33 = vld [vmem:[%s1 + $0x30] sm:$0xff]
  %v34 = vld [vmem:[%s1 + $0x38] sm:$0xff]
  %36 = vset.pattern.permute.xlu0 0
  %37 = vperm.xlu0 %36, %v27
  %v38 = vpop.permute.xlu0 %37
  %41 = vset.pattern.permute.xlu0 0
  %42 = vperm.xlu0 %41, %v28
  %v43 = vpop.permute.xlu0 %42
  %46 = vset.pattern.permute.xlu0 0
  %47 = vperm.xlu0 %46, %v29
  %v48 = vpop.permute.xlu0 %47
  %51 = vset.pattern.permute.xlu0 0
  %52 = vperm.xlu0 %51, %v30
  %v53 = vpop.permute.xlu0 %52
  %56 = vset.pattern.permute.xlu0 0
  %57 = vperm.xlu0 %56, %v31
  %v58 = vpop.permute.xlu0 %57
  %61 = vset.pattern.permute.xlu0 0
  %62 = vperm.xlu0 %61, %v32
  %v63 = vpop.permute.xlu0 %62
  %66 = vset.pattern.permute.xlu0 0
  %67 = vperm.xlu0 %66, %v33
  %v68 = vpop.permute.xlu0 %67
  %71 = vset.pattern.permute.xlu0 0
  %72 = vperm.xlu0 %71, %v34
  %v73 = vpop.permute.xlu0 %72
  %v75 = vmul.f32 %v19, %v38
  %v76 = vmul.f32 %v20, %v43
  %v77 = vmul.f32 %v21, %v48
  %v78 = vmul.f32 %v22, %v53
  %v79 = vmul.f32 %v23, %v58
  %v80 = vmul.f32 %v24, %v63
  %v81 = vmul.f32 %v25, %v68
  %v82 = vmul.f32 %v26, %v73
  %83 = vset.pattern.permute.xlu0 1
  %84 = vperm.xlu0 %83, %v27
  %v85 = vpop.permute.xlu0 %84
  %87 = vset.pattern.permute.xlu0 1
  %88 = vperm.xlu0 %87, %v28
  %v89 = vpop.permute.xlu0 %88
  %91 = vset.pattern.permute.xlu0 1
  %92 = vperm.xlu0 %91, %v29
  %v93 = vpop.permute.xlu0 %92
  %95 = vset.pattern.permute.xlu0 1
  %96 = vperm.xlu0 %95, %v30
  %v97 = vpop.permute.xlu0 %96
  %99 = vset.pattern.permute.xlu0 1
  %100 = vperm.xlu0 %99, %v31
  %v101 = vpop.permute.xlu0 %100
  %103 = vset.pattern.permute.xlu0 1
  %104 = vperm.xlu0 %103, %v32
  %v105 = vpop.permute.xlu0 %104
  %107 = vset.pattern.permute.xlu0 1
  %108 = vperm.xlu0 %107, %v33
  %v109 = vpop.permute.xlu0 %108
  %111 = vset.pattern.permute.xlu0 1
  %112 = vperm.xlu0 %111, %v34
  %v113 = vpop.permute.xlu0 %112
  %v115 = vadd.f32 %v75, %v85
  %v116 = vadd.f32 %v76, %v89
  %v117 = vadd.f32 %v77, %v93
  %v118 = vadd.f32 %v78, %v97
  %v119 = vadd.f32 %v79, %v101
  %v120 = vadd.f32 %v80, %v105
  %v121 = vadd.f32 %v81, %v109
  %v122 = vadd.f32 %v82, %v113
  %vm123 = vcmp.ge.f32.partialorder %v115, 0.0
  %vm124 = vcmp.ge.f32.partialorder %v116, 0.0
  %vm125 = vcmp.ge.f32.partialorder %v117, 0.0
  %vm126 = vcmp.ge.f32.partialorder %v118, 0.0
  %vm127 = vcmp.ge.f32.partialorder %v119, 0.0
  %vm128 = vcmp.ge.f32.partialorder %v120, 0.0
  %vm129 = vcmp.ge.f32.partialorder %v121, 0.0
  %vm130 = vcmp.ge.f32.partialorder %v122, 0.0
  %v131 = vmul.f32 %v115, 0.2
  %v132 = vmul.f32 %v116, 0.2
  %v133 = vmul.f32 %v117, 0.2
  %v134 = vmul.f32 %v118, 0.2
  %v135 = vmul.f32 %v119, 0.2
  %v136 = vmul.f32 %v120, 0.2
  %v137 = vmul.f32 %v121, 0.2
  %v138 = vmul.f32 %v122, 0.2
  %v139 = vsel %vm123, %v115, %v131
  %v140 = vsel %vm124, %v116, %v132
  %v141 = vsel %vm125, %v117, %v133
  %v142 = vsel %vm126, %v118, %v134
  %v143 = vsel %vm127, %v119, %v135
  %v144 = vsel %vm128, %v120, %v136
  %v145 = vsel %vm129, %v121, %v137
  %v146 = vsel %vm130, %v122, %v138
  %v147 = vpack.c.bf16 %v140, %v139
  %v148 = vpack.c.bf16 %v142, %v141
  %v149 = vpack.c.bf16 %v144, %v143
  %v150 = vpack.c.bf16 %v146, %v145
  %v155 = vunpack.c.l.b16 %v147
  %v156 = vunpack.c.h.b16 %v147
  %v157 = vunpack.c.l.b16 %v148
  %v158 = vunpack.c.h.b16 %v148
  %v159 = vunpack.c.l.b16 %v149
  %v160 = vunpack.c.h.b16 %v149
  %v161 = vunpack.c.l.b16 %v150
  %v162 = vunpack.c.h.b16 %v150
  %v163 = vpack.c.b16 %v155, %v155
  %v164 = vpack.c.b16 %v156, %v156
  %v165 = vpack.c.b16 %v157, %v157
  %v166 = vpack.c.b16 %v158, %v158
  %v167 = vpack.c.b16 %v159, %v159
  %v168 = vpack.c.b16 %v160, %v160
  %v169 = vpack.c.b16 %v161, %v161
  %v170 = vpack.c.b16 %v162, %v162
  %179 = vst [vmem:[%s2] sm:$0xf] %v163
  %180 = vst [vmem:[%s2 + $0x4] sm:$0xf] %v164
  %181 = vst [vmem:[%s2 + $0x8] sm:$0xf] %v165
  %182 = vst [vmem:[%s2 + $0xc] sm:$0xf] %v166
  %183 = vst [vmem:[%s2 + $0x10] sm:$0xf] %v167
  %184 = vst [vmem:[%s2 + $0x14] sm:$0xf] %v168
  %185 = vst [vmem:[%s2 + $0x18] sm:$0xf] %v169
  %186 = vst [vmem:[%s2 + $0x1c] sm:$0xf] %v170
  // Predicated region
  $region10: #{patch_discriminator_forward.14} parent=0 // pred_check
    _
  $region11: #{patch_discriminator_forward.14} parent=0 // pred_check_branch
    %188 = sbr.rel (0) target = $region13
  $region12: #{patch_discriminator_forward.14} parent=0 // pred_region
    _
  $region13: #{patch_discriminator_forward.14} parent=0 // pred_fallthru
    _
  // Predicated region
  $region14: #{patch_discriminator_forward.14} parent=0 // pred_check
    _
  $region15: #{patch_discriminator_forward.14} parent=0 // pred_check_branch
    %190 = sbr.rel (0) target = $region17
  $region16: #{patch_discriminator_forward.14} parent=0 // pred_region
    _
  $region17: #{patch_discriminator_forward.14} parent=0 // pred_fallthru
    _

// kernel: patch_discriminator_forward.13
$region0: #{patch_discriminator_forward.13}
  #allocation0 [shape = 'u32[]', space=smem, size = 0x4, offset = 0x4, fixed_abs, tag = 'smem constant byte address 0x4 - core index']
  #allocation1 [shape = 'u32[144,128]{1,0:T(1,128)}', space=vmem, size = 0x12000, scoped, tag = 'internal scratch']
  %s0 = inlined_call_operand.vmem [shape: bf16[64,2048], index: 0, kind: input, shape index: {}]
  %s1 = inlined_call_operand.vmem [shape: bf16[2048,128], index: 1, kind: input, shape index: {}]
  %s2 = inlined_call_operand.vmem [shape: bf16[64,128], index: 2, kind: output, shape index: {0}]
  %s3 = inlined_call_operand.vmem [shape: f32[1,64,2], index: 3, kind: output, shape index: {1}]
  %4 = xla_tuple %s2, %s3
  %s5 = sld [smem:[#allocation0]]
  $region26: #{patch_discriminator_forward.13} parent=0
    _
  %s7 = ssub.s32 1, %s5
  %s8 = scalar_select 0, %s7, %s5
  // Predicated region
  $region2: #{patch_discriminator_forward.13} parent=0 // pred_check
    _
  $region3: #{patch_discriminator_forward.13} parent=0 // pred_check_branch
    %10 = sbr.rel (0) target = $region5
  $region4: #{patch_discriminator_forward.13} parent=0 // pred_region
    _
  $region5: #{patch_discriminator_forward.13} parent=0 // pred_fallthru
    _
  // Predicated region
  $region6: #{patch_discriminator_forward.13} parent=0 // pred_check
    _
  $region7: #{patch_discriminator_forward.13} parent=0 // pred_check_branch
    %12 = sbr.rel (0) target = $region9
  $region8: #{patch_discriminator_forward.13} parent=0 // pred_region
    _
  $region9: #{patch_discriminator_forward.13} parent=0 // pred_fallthru
    _
  %v14 = vld [vmem:[%s0] sm:$0xff]
  %v15 = vld [vmem:[%s0 + $0x8] sm:$0xff]
  %v16 = vld [vmem:[%s0 + $0x10] sm:$0xff]
  %v17 = vld [vmem:[%s0 + $0x18] sm:$0xff]
  %v18 = vld [vmem:[%s0 + $0x20] sm:$0xff]
  %v19 = vld [vmem:[%s0 + $0x28] sm:$0xff]
  %v20 = vld [vmem:[%s0 + $0x30] sm:$0xff]
  %v21 = vld [vmem:[%s0 + $0x38] sm:$0xff]
  %v22 = vld [vmem:[%s0 + $0x40] sm:$0xff]
  %v23 = vld [vmem:[%s0 + $0x48] sm:$0xff]
  %v24 = vld [vmem:[%s0 + $0x50] sm:$0xff]
  %v25 = vld [vmem:[%s0 + $0x58] sm:$0xff]
  %v26 = vld [vmem:[%s0 + $0x60] sm:$0xff]
  %v27 = vld [vmem:[%s0 + $0x68] sm:$0xff]
  %v28 = vld [vmem:[%s0 + $0x70] sm:$0xff]
  %v29 = vld [vmem:[%s0 + $0x78] sm:$0xff]
  %v30 = vld [vmem:[%s0 + $0x80] sm:$0xff]
  %v31 = vld [vmem:[%s0 + $0x88] sm:$0xff]
  %v32 = vld [vmem:[%s0 + $0x90] sm:$0xff]
  %v33 = vld [vmem:[%s0 + $0x98] sm:$0xff]
  %v34 = vld [vmem:[%s0 + $0xa0] sm:$0xff]
  %v35 = vld [vmem:[%s0 + $0xa8] sm:$0xff]
  %v36 = vld [vmem:[%s0 + $0xb0] sm:$0xff]
  %v37 = vld [vmem:[%s0 + $0xb8] sm:$0xff]
  %v38 = vld [vmem:[%s0 + $0xc0] sm:$0xff]
  %v39 = vld [vmem:[%s0 + $0xc8] sm:$0xff]
  %v40 = vld [vmem:[%s0 + $0xd0] sm:$0xff]
  %v41 = vld [vmem:[%s0 + $0xd8] sm:$0xff]
  %v42 = vld [vmem:[%s0 + $0xe0] sm:$0xff]
  %v43 = vld [vmem:[%s0 + $0xe8] sm:$0xff]
  %v44 = vld [vmem:[%s0 + $0xf0] sm:$0xff]
  %v45 = vld [vmem:[%s0 + $0xf8] sm:$0xff]
  %v46 = vld [vmem:[%s0 + $0x100] sm:$0xff]
  %v47 = vld [vmem:[%s0 + $0x108] sm:$0xff]
  %v48 = vld [vmem:[%s0 + $0x110] sm:$0xff]
  %v49 = vld [vmem:[%s0 + $0x118] sm:$0xff]
  %v50 = vld [vmem:[%s0 + $0x120] sm:$0xff]
  %v51 = vld [vmem:[%s0 + $0x128] sm:$0xff]
  %v52 = vld [vmem:[%s0 + $0x130] sm:$0xff]
  %v53 = vld [vmem:[%s0 + $0x138] sm:$0xff]
  %v54 = vld [vmem:[%s0 + $0x140] sm:$0xff]
  %v55 = vld [vmem:[%s0 + $0x148] sm:$0xff]
  %v56 = vld [vmem:[%s0 + $0x150] sm:$0xff]
  %v57 = vld [vmem:[%s0 + $0x158] sm:$0xff]
  %v58 = vld [vmem:[%s0 + $0x160] sm:$0xff]
  %v59 = vld [vmem:[%s0 + $0x168] sm:$0xff]
  %v60 = vld [vmem:[%s0 + $0x170] sm:$0xff]
  %v61 = vld [vmem:[%s0 + $0x178] sm:$0xff]
  %v62 = vld [vmem:[%s0 + $0x180] sm:$0xff]
  %v63 = vld [vmem:[%s0 + $0x188] sm:$0xff]
  %v64 = vld [vmem:[%s0 + $0x190] sm:$0xff]
  %v65 = vld [vmem:[%s0 + $0x198] sm:$0xff]
  %v66 = vld [vmem:[%s0 + $0x1a0] sm:$0xff]
  %v67 = vld [vmem:[%s0 + $0x1a8] sm:$0xff]
  %v68 = vld [vmem:[%s0 + $0x1b0] sm:$0xff]
  %v69 = vld [vmem:[%s0 + $0x1b8] sm:$0xff]
  %v70 = vld [vmem:[%s0 + $0x1c0] sm:$0xff]
  %v71 = vld [vmem:[%s0 + $0x1c8] sm:$0xff]
  %v72 = vld [vmem:[%s0 + $0x1d0] sm:$0xff]
  %v73 = vld [vmem:[%s0 + $0x1d8] sm:$0xff]
  %v74 = vld [vmem:[%s0 + $0x1e0] sm:$0xff]
  %v75 = vld [vmem:[%s0 + $0x1e8] sm:$0xff]
  %v76 = vld [vmem:[%s0 + $0x1f0] sm:$0xff]
  %v77 = vld [vmem:[%s0 + $0x1f8] sm:$0xff]
  %v78 = vld [vmem:[%s1] sm:$0xf]
  %v79 = vld [vmem:[%s1 + $0x4] sm:$0xf]
  %v80 = vld [vmem:[%s1 + $0x8] sm:$0xf]
  %v81 = vld [vmem:[%s1 + $0xc] sm:$0xf]
  %v82 = vld [vmem:[%s1 + $0x10] sm:$0xf]
  %v83 = vld [vmem:[%s1 + $0x14] sm:$0xf]
  %v84 = vld [vmem:[%s1 + $0x18] sm:$0xf]
  %v85 = vld [vmem:[%s1 + $0x1c] sm:$0xf]
  %v86 = vld [vmem:[%s1 + $0x20] sm:$0xf]
  %v87 = vld [vmem:[%s1 + $0x24] sm:$0xf]
  %v88 = vld [vmem:[%s1 + $0x28] sm:$0xf]
  %v89 = vld [vmem:[%s1 + $0x2c] sm:$0xf]
  %v90 = vld [vmem:[%s1 + $0x30] sm:$0xf]
  %v91 = vld [vmem:[%s1 + $0x34] sm:$0xf]
  %v92 = vld [vmem:[%s1 + $0x38] sm:$0xf]
  %v93 = vld [vmem:[%s1 + $0x3c] sm:$0xf]
  %v94 = vld [vmem:[%s1 + $0x40] sm:$0xf]
  %v95 = vld [vmem:[%s1 + $0x44] sm:$0xf]
  %v96 = vld [vmem:[%s1 + $0x48] sm:$0xf]
  %v97 = vld [vmem:[%s1 + $0x4c] sm:$0xf]
  %v98 = vld [vmem:[%s1 + $0x50] sm:$0xf]
  %v99 = vld [vmem:[%s1 + $0x54] sm:$0xf]
  %v100 = vld [vmem:[%s1 + $0x58] sm:$0xf]
  %v101 = vld [vmem:[%s1 + $0x5c] sm:$0xf]
  %v102 = vld [vmem:[%s1 + $0x60] sm:$0xf]
  %v103 = vld [vmem:[%s1 + $0x64] sm:$0xf]
  %v104 = vld [vmem:[%s1 + $0x68] sm:$0xf]
  %v105 = vld [vmem:[%s1 + $0x6c] sm:$0xf]
  %v106 = vld [vmem:[%s1 + $0x70] sm:$0xf]
  %v107 = vld [vmem:[%s1 + $0x74] sm:$0xf]
  %v108 = vld [vmem:[%s1 + $0x78] sm:$0xf]
  %v109 = vld [vmem:[%s1 + $0x7c] sm:$0xf]
  %v110 = vld [vmem:[%s1 + $0x80] sm:$0xf]
  %v111 = vld [vmem:[%s1 + $0x84] sm:$0xf]
  %v112 = vld [vmem:[%s1 + $0x88] sm:$0xf]
  %v113 = vld [vmem:[%s1 + $0x8c] sm:$0xf]
  %v114 = vld [vmem:[%s1 + $0x90] sm:$0xf]
  %v115 = vld [vmem:[%s1 + $0x94] sm:$0xf]
  %v116 = vld [vmem:[%s1 + $0x98] sm:$0xf]
  %v117 = vld [vmem:[%s1 + $0x9c] sm:$0xf]
  %v118 = vld [vmem:[%s1 + $0xa0] sm:$0xf]
  %v119 = vld [vmem:[%s1 + $0xa4] sm:$0xf]
  %v120 = vld [vmem:[%s1 + $0xa8] sm:$0xf]
  %v121 = vld [vmem:[%s1 + $0xac] sm:$0xf]
  %v122 = vld [vmem:[%s1 + $0xb0] sm:$0xf]
  %v123 = vld [vmem:[%s1 + $0xb4] sm:$0xf]
  %v124 = vld [vmem:[%s1 + $0xb8] sm:$0xf]
  %v125 = vld [vmem:[%s1 + $0xbc] sm:$0xf]
  %v126 = vld [vmem:[%s1 + $0xc0] sm:$0xf]
  %v127 = vld [vmem:[%s1 + $0xc4] sm:$0xf]
  %v128 = vld [vmem:[%s1 + $0xc8] sm:$0xf]
  %v129 = vld [vmem:[%s1 + $0xcc] sm:$0xf]
  %v130 = vld [vmem:[%s1 + $0xd0] sm:$0xf]
  %v131 = vld [vmem:[%s1 + $0xd4] sm:$0xf]
  %v132 = vld [vmem:[%s1 + $0xd8] sm:$0xf]
  %v133 = vld [vmem:[%s1 + $0xdc] sm:$0xf]
  %v134 = vld [vmem:[%s1 + $0xe0] sm:$0xf]
  %v135 = vld [vmem:[%s1 + $0xe4] sm:$0xf]
  %v136 = vld [vmem:[%s1 + $0xe8] sm:$0xf]
  %v137 = vld [vmem:[%s1 + $0xec] sm:$0xf]
  %v138 = vld [vmem:[%s1 + $0xf0] sm:$0xf]
  %v139 = vld [vmem:[%s1 + $0xf4] sm:$0xf]
  %v140 = vld [vmem:[%s1 + $0xf8] sm:$0xf]
  %v141 = vld [vmem:[%s1 + $0xfc] sm:$0xf]
  %v142 = vld [vmem:[%s1 + $0x100] sm:$0xf]
  %v143 = vld [vmem:[%s1 + $0x104] sm:$0xf]
  %v144 = vld [vmem:[%s1 + $0x108] sm:$0xf]
  %v145 = vld [vmem:[%s1 + $0x10c] sm:$0xf]
  %v146 = vld [vmem:[%s1 + $0x110] sm:$0xf]
  %v147 = vld [vmem:[%s1 + $0x114] sm:$0xf]
  %v148 = vld [vmem:[%s1 + $0x118] sm:$0xf]
  %v149 = vld [vmem:[%s1 + $0x11c] sm:$0xf]
  %v150 = vld [vmem:[%s1 + $0x120] sm:$0xf]
  %v151 = vld [vmem:[%s1 + $0x124] sm:$0xf]
  %v152 = vld [vmem:[%s1 + $0x128] sm:$0xf]
  %v153 = vld [vmem:[%s1 + $0x12c] sm:$0xf]
  %v154 = vld [vmem:[%s1 + $0x130] sm:$0xf]
  %v155 = vld [vmem:[%s1 + $0x134] sm:$0xf]
  %v156 = vld [vmem:[%s1 + $0x138] sm:$0xf]
  %v157 = vld [vmem:[%s1 + $0x13c] sm:$0xf]
  %v158 = vld [vmem:[%s1 + $0x140] sm:$0xf]
  %v159 = vld [vmem:[%s1 + $0x144] sm:$0xf]
  %v160 = vld [vmem:[%s1 + $0x148] sm:$0xf]
  %v161 = vld [vmem:[%s1 + $0x14c] sm:$0xf]
  %v162 = vld [vmem:[%s1 + $0x150] sm:$0xf]
  %v163 = vld [vmem:[%s1 + $0x154] sm:$0xf]
  %v164 = vld [vmem:[%s1 + $0x158] sm:$0xf]
  %v165 = vld [vmem:[%s1 + $0x15c] sm:$0xf]
  %v166 = vld [vmem:[%s1 + $0x160] sm:$0xf]
  %v167 = vld [vmem:[%s1 + $0x164] sm:$0xf]
  %v168 = vld [vmem:[%s1 + $0x168] sm:$0xf]
  %v169 = vld [vmem:[%s1 + $0x16c] sm:$0xf]
  %v170 = vld [vmem:[%s1 + $0x170] sm:$0xf]
  %v171 = vld [vmem:[%s1 + $0x174] sm:$0xf]
  %v172 = vld [vmem:[%s1 + $0x178] sm:$0xf]
  %v173 = vld [vmem:[%s1 + $0x17c] sm:$0xf]
  %v174 = vld [vmem:[%s1 + $0x180] sm:$0xf]
  %v175 = vld [vmem:[%s1 + $0x184] sm:$0xf]
  %v176 = vld [vmem:[%s1 + $0x188] sm:$0xf]
  %v177 = vld [vmem:[%s1 + $0x18c] sm:$0xf]
  %v178 = vld [vmem:[%s1 + $0x190] sm:$0xf]
  %v179 = vld [vmem:[%s1 + $0x194] sm:$0xf]
  %v180 = vld [vmem:[%s1 + $0x198] sm:$0xf]
  %v181 = vld [vmem:[%s1 + $0x19c] sm:$0xf]
  %v182 = vld [vmem:[%s1 + $0x1a0] sm:$0xf]
  %v183 = vld [vmem:[%s1 + $0x1a4] sm:$0xf]
  %v184 = vld [vmem:[%s1 + $0x1a8] sm:$0xf]
  %v185 = vld [vmem:[%s1 + $0x1ac] sm:$0xf]
  %v186 = vld [vmem:[%s1 + $0x1b0] sm:$0xf]
  %v187 = vld [vmem:[%s1 + $0x1b4] sm:$0xf]
  %v188 = vld [vmem:[%s1 + $0x1b8] sm:$0xf]
  %v189 = vld [vmem:[%s1 + $0x1bc] sm:$0xf]
  %v190 = vld [vmem:[%s1 + $0x1c0] sm:$0xf]
  %v191 = vld [vmem:[%s1 + $0x1c4] sm:$0xf]
  %v192 = vld [vmem:[%s1 + $0x1c8] sm:$0xf]
  %v193 = vld [vmem:[%s1 + $0x1cc] sm:$0xf]
  %v194 = vld [vmem:[%s1 + $0x1d0] sm:$0xf]
  %v195 = vld [vmem:[%s1 + $0x1d4] sm:$0xf]
  %v196 = vld [vmem:[%s1 + $0x1d8] sm:$0xf]
  %v197 = vld [vmem:[%s1 + $0x1dc] sm:$0xf]
  %v198 = vld [vmem:[%s1 + $0x1e0] sm:$0xf]
  %v199 = vld [vmem:[%s1 + $0x1e4] sm:$0xf]
  %v200 = vld [vmem:[%s1 + $0x1e8] sm:$0xf]
  %v201 = vld [vmem:[%s1 + $0x1ec] sm:$0xf]
  %v202 = vld [vmem:[%s1 + $0x1f0] sm:$0xf]
  %v203 = vld [vmem:[%s1 + $0x1f4] sm:$0xf]
  %v204 = vld [vmem:[%s1 + $0x1f8] sm:$0xf]
  %v205 = vld [vmem:[%s1 + $0x1fc] sm:$0xf]
  %v206 = vld [vmem:[%s1 + $0x200] sm:$0xf]
  %v207 = vld [vmem:[%s1 + $0x204] sm:$0xf]
  %v208 = vld [vmem:[%s1 + $0x208] sm:$0xf]
  %v209 = vld [vmem:[%s1 + $0x20c] sm:$0xf]
  %v210 = vld [vmem:[%s1 + $0x210] sm:$0xf]
  %v211 = vld [vmem:[%s1 + $0x214] sm:$0xf]
  %v212 = vld [vmem:[%s1 + $0x218] sm:$0xf]
  %v213 = vld [vmem:[%s1 + $0x21c] sm:$0xf]
  %v214 = vld [vmem:[%s1 + $0x220] sm:$0xf]
  %v215 = vld [vmem:[%s1 + $0x224] sm:$0xf]
  %v216 = vld [vmem:[%s1 + $0x228] sm:$0xf]
  %v217 = vld [vmem:[%s1 + $0x22c] sm:$0xf]
  %v218 = vld [vmem:[%s1 + $0x230] sm:$0xf]
  %v219 = vld [vmem:[%s1 + $0x234] sm:$0xf]
  %v220 = vld [vmem:[%s1 + $0x238] sm:$0xf]
  %v221 = vld [vmem:[%s1 + $0x23c] sm:$0xf]
  %v222 = vld [vmem:[%s1 + $0x240] sm:$0xf]
  %v223 = vld [vmem:[%s1 + $0x244] sm:$0xf]
  %v224 = vld [vmem:[%s1 + $0x248] sm:$0xf]
  %v225 = vld [vmem:[%s1 + $0x24c] sm:$0xf]
  %v226 = vld [vmem:[%s1 + $0x250] sm:$0xf]
  %v227 = vld [vmem:[%s1 + $0x254] sm:$0xf]
  %v228 = vld [vmem:[%s1 + $0x258] sm:$0xf]
  %v229 = vld [vmem:[%s1 + $0x25c] sm:$0xf]
  %v230 = vld [vmem:[%s1 + $0x260] sm:$0xf]
  %v231 = vld [vmem:[%s1 + $0x264] sm:$0xf]
  %v232 = vld [vmem:[%s1 + $0x268] sm:$0xf]
  %v233 = vld [vmem:[%s1 + $0x26c] sm:$0xf]
  %v234 = vld [vmem:[%s1 + $0x270] sm:$0xf]
  %v235 = vld [vmem:[%s1 + $0x274] sm:$0xf]
  %v236 = vld [vmem:[%s1 + $0x278] sm:$0xf]
  %v237 = vld [vmem:[%s1 + $0x27c] sm:$0xf]
  %v238 = vld [vmem:[%s1 + $0x280] sm:$0xf]
  %v239 = vld [vmem:[%s1 + $0x284] sm:$0xf]
  %v240 = vld [vmem:[%s1 + $0x288] sm:$0xf]
  %v241 = vld [vmem:[%s1 + $0x28c] sm:$0xf]
  %v242 = vld [vmem:[%s1 + $0x290] sm:$0xf]
  %v243 = vld [vmem:[%s1 + $0x294] sm:$0xf]
  %v244 = vld [vmem:[%s1 + $0x298] sm:$0xf]
  %v245 = vld [vmem:[%s1 + $0x29c] sm:$0xf]
  %v246 = vld [vmem:[%s1 + $0x2a0] sm:$0xf]
  %v247 = vld [vmem:[%s1 + $0x2a4] sm:$0xf]
  %v248 = vld [vmem:[%s1 + $0x2a8] sm:$0xf]
  %v249 = vld [vmem:[%s1 + $0x2ac] sm:$0xf]
  %v250 = vld [vmem:[%s1 + $0x2b0] sm:$0xf]
  %v251 = vld [vmem:[%s1 + $0x2b4] sm:$0xf]
  %v252 = vld [vmem:[%s1 + $0x2b8] sm:$0xf]
  %v253 = vld [vmem:[%s1 + $0x2bc] sm:$0xf]
  %v254 = vld [vmem:[%s1 + $0x2c0] sm:$0xf]
  %v255 = vld [vmem:[%s1 + $0x2c4] sm:$0xf]
  %v256 = vld [vmem:[%s1 + $0x2c8] sm:$0xf]
  %v257 = vld [vmem:[%s1 + $0x2cc] sm:$0xf]
  %v258 = vld [vmem:[%s1 + $0x2d0] sm:$0xf]
  %v259 = vld [vmem:[%s1 + $0x2d4] sm:$0xf]
  %v260 = vld [vmem:[%s1 + $0x2d8] sm:$0xf]
  %v261 = vld [vmem:[%s1 + $0x2dc] sm:$0xf]
  %v262 = vld [vmem:[%s1 + $0x2e0] sm:$0xf]
  %v263 = vld [vmem:[%s1 + $0x2e4] sm:$0xf]
  %v264 = vld [vmem:[%s1 + $0x2e8] sm:$0xf]
  %v265 = vld [vmem:[%s1 + $0x2ec] sm:$0xf]
  %v266 = vld [vmem:[%s1 + $0x2f0] sm:$0xf]
  %v267 = vld [vmem:[%s1 + $0x2f4] sm:$0xf]
  %v268 = vld [vmem:[%s1 + $0x2f8] sm:$0xf]
  %v269 = vld [vmem:[%s1 + $0x2fc] sm:$0xf]
  %v270 = vld [vmem:[%s1 + $0x300] sm:$0xf]
  %v271 = vld [vmem:[%s1 + $0x304] sm:$0xf]
  %v272 = vld [vmem:[%s1 + $0x308] sm:$0xf]
  %v273 = vld [vmem:[%s1 + $0x30c] sm:$0xf]
  %v274 = vld [vmem:[%s1 + $0x310] sm:$0xf]
  %v275 = vld [vmem:[%s1 + $0x314] sm:$0xf]
  %v276 = vld [vmem:[%s1 + $0x318] sm:$0xf]
  %v277 = vld [vmem:[%s1 + $0x31c] sm:$0xf]
  %v278 = vld [vmem:[%s1 + $0x320] sm:$0xf]
  %v279 = vld [vmem:[%s1 + $0x324] sm:$0xf]
  %v280 = vld [vmem:[%s1 + $0x328] sm:$0xf]
  %v281 = vld [vmem:[%s1 + $0x32c] sm:$0xf]
  %v282 = vld [vmem:[%s1 + $0x330] sm:$0xf]
  %v283 = vld [vmem:[%s1 + $0x334] sm:$0xf]
  %v284 = vld [vmem:[%s1 + $0x338] sm:$0xf]
  %v285 = vld [vmem:[%s1 + $0x33c] sm:$0xf]
  %v286 = vld [vmem:[%s1 + $0x340] sm:$0xf]
  %v287 = vld [vmem:[%s1 + $0x344] sm:$0xf]
  %v288 = vld [vmem:[%s1 + $0x348] sm:$0xf]
  %v289 = vld [vmem:[%s1 + $0x34c] sm:$0xf]
  %v290 = vld [vmem:[%s1 + $0x350] sm:$0xf]
  %v291 = vld [vmem:[%s1 + $0x354] sm:$0xf]
  %v292 = vld [vmem:[%s1 + $0x358] sm:$0xf]
  %v293 = vld [vmem:[%s1 + $0x35c] sm:$0xf]
  %v294 = vld [vmem:[%s1 + $0x360] sm:$0xf]
  %v295 = vld [vmem:[%s1 + $0x364] sm:$0xf]
  %v296 = vld [vmem:[%s1 + $0x368] sm:$0xf]
  %v297 = vld [vmem:[%s1 + $0x36c] sm:$0xf]
  %v298 = vld [vmem:[%s1 + $0x370] sm:$0xf]
  %v299 = vld [vmem:[%s1 + $0x374] sm:$0xf]
  %v300 = vld [vmem:[%s1 + $0x378] sm:$0xf]
  %v301 = vld [vmem:[%s1 + $0x37c] sm:$0xf]
  %v302 = vld [vmem:[%s1 + $0x380] sm:$0xf]
  %v303 = vld [vmem:[%s1 + $0x384] sm:$0xf]
  %v304 = vld [vmem:[%s1 + $0x388] sm:$0xf]
  %v305 = vld [vmem:[%s1 + $0x38c] sm:$0xf]
  %v306 = vld [vmem:[%s1 + $0x390] sm:$0xf]
  %v307 = vld [vmem:[%s1 + $0x394] sm:$0xf]
  %v308 = vld [vmem:[%s1 + $0x398] sm:$0xf]
  %v309 = vld [vmem:[%s1 + $0x39c] sm:$0xf]
  %v310 = vld [vmem:[%s1 + $0x3a0] sm:$0xf]
  %v311 = vld [vmem:[%s1 + $0x3a4] sm:$0xf]
  %v312 = vld [vmem:[%s1 + $0x3a8] sm:$0xf]
  %v313 = vld [vmem:[%s1 + $0x3ac] sm:$0xf]
  %v314 = vld [vmem:[%s1 + $0x3b0] sm:$0xf]
  %v315 = vld [vmem:[%s1 + $0x3b4] sm:$0xf]
  %v316 = vld [vmem:[%s1 + $0x3b8] sm:$0xf]
  %v317 = vld [vmem:[%s1 + $0x3bc] sm:$0xf]
  %v318 = vld [vmem:[%s1 + $0x3c0] sm:$0xf]
  %v319 = vld [vmem:[%s1 + $0x3c4] sm:$0xf]
  %v320 = vld [vmem:[%s1 + $0x3c8] sm:$0xf]
  %v321 = vld [vmem:[%s1 + $0x3cc] sm:$0xf]
  %v322 = vld [vmem:[%s1 + $0x3d0] sm:$0xf]
  %v323 = vld [vmem:[%s1 + $0x3d4] sm:$0xf]
  %v324 = vld [vmem:[%s1 + $0x3d8] sm:$0xf]
  %v325 = vld [vmem:[%s1 + $0x3dc] sm:$0xf]
  %v326 = vld [vmem:[%s1 + $0x3e0] sm:$0xf]
  %v327 = vld [vmem:[%s1 + $0x3e4] sm:$0xf]
  %v328 = vld [vmem:[%s1 + $0x3e8] sm:$0xf]
  %v329 = vld [vmem:[%s1 + $0x3ec] sm:$0xf]
  %v330 = vld [vmem:[%s1 + $0x3f0] sm:$0xf]
  %v331 = vld [vmem:[%s1 + $0x3f4] sm:$0xf]
  %v332 = vld [vmem:[%s1 + $0x3f8] sm:$0xf]
  %v333 = vld [vmem:[%s1 + $0x3fc] sm:$0xf]
  %v398 = vunpack.c.l.b16 %v14
  %v399 = vunpack.c.h.b16 %v14
  %v400 = vunpack.c.l.b16 %v15
  %v401 = vunpack.c.h.b16 %v15
  %v402 = vunpack.c.l.b16 %v16
  %v403 = vunpack.c.h.b16 %v16
  %v404 = vunpack.c.l.b16 %v17
  %v405 = vunpack.c.h.b16 %v17
  %v406 = vunpack.c.l.b16 %v18
  %v407 = vunpack.c.h.b16 %v18
  %v408 = vunpack.c.l.b16 %v19
  %v409 = vunpack.c.h.b16 %v19
  %v410 = vunpack.c.l.b16 %v20
  %v411 = vunpack.c.h.b16 %v20
  %v412 = vunpack.c.l.b16 %v21
  %v413 = vunpack.c.h.b16 %v21
  %v414 = vunpack.c.l.b16 %v22
  %v415 = vunpack.c.h.b16 %v22
  %v416 = vunpack.c.l.b16 %v23
  %v417 = vunpack.c.h.b16 %v23
  %v418 = vunpack.c.l.b16 %v24
  %v419 = vunpack.c.h.b16 %v24
  %v420 = vunpack.c.l.b16 %v25
  %v421 = vunpack.c.h.b16 %v25
  %v422 = vunpack.c.l.b16 %v26
  %v423 = vunpack.c.h.b16 %v26
  %v424 = vunpack.c.l.b16 %v27
  %v425 = vunpack.c.h.b16 %v27
  %v426 = vunpack.c.l.b16 %v28
  %v427 = vunpack.c.h.b16 %v28
  %v428 = vunpack.c.l.b16 %v29
  %v429 = vunpack.c.h.b16 %v29
  %v430 = vunpack.c.l.b16 %v30
  %v431 = vunpack.c.h.b16 %v30
  %v432 = vunpack.c.l.b16 %v31
  %v433 = vunpack.c.h.b16 %v31
  %v434 = vunpack.c.l.b16 %v32
  %v435 = vunpack.c.h.b16 %v32
  %v436 = vunpack.c.l.b16 %v33
  %v437 = vunpack.c.h.b16 %v33
  %v438 = vunpack.c.l.b16 %v34
  %v439 = vunpack.c.h.b16 %v34
  %v440 = vunpack.c.l.b16 %v35
  %v441 = vunpack.c.h.b16 %v35
  %v442 = vunpack.c.l.b16 %v36
  %v443 = vunpack.c.h.b16 %v36
  %v444 = vunpack.c.l.b16 %v37
  %v445 = vunpack.c.h.b16 %v37
  %v446 = vunpack.c.l.b16 %v38
  %v447 = vunpack.c.h.b16 %v38
  %v448 = vunpack.c.l.b16 %v39
  %v449 = vunpack.c.h.b16 %v39
  %v450 = vunpack.c.l.b16 %v40
  %v451 = vunpack.c.h.b16 %v40
  %v452 = vunpack.c.l.b16 %v41
  %v453 = vunpack.c.h.b16 %v41
  %v454 = vunpack.c.l.b16 %v42
  %v455 = vunpack.c.h.b16 %v42
  %v456 = vunpack.c.l.b16 %v43
  %v457 = vunpack.c.h.b16 %v43
  %v458 = vunpack.c.l.b16 %v44
  %v459 = vunpack.c.h.b16 %v44
  %v460 = vunpack.c.l.b16 %v45
  %v461 = vunpack.c.h.b16 %v45
  %v462 = vunpack.c.l.b16 %v46
  %v463 = vunpack.c.h.b16 %v46
  %v464 = vunpack.c.l.b16 %v47
  %v465 = vunpack.c.h.b16 %v47
  %v466 = vunpack.c.l.b16 %v48
  %v467 = vunpack.c.h.b16 %v48
  %v468 = vunpack.c.l.b16 %v49
  %v469 = vunpack.c.h.b16 %v49
  %v470 = vunpack.c.l.b16 %v50
  %v471 = vunpack.c.h.b16 %v50
  %v472 = vunpack.c.l.b16 %v51
  %v473 = vunpack.c.h.b16 %v51
  %v474 = vunpack.c.l.b16 %v52
  %v475 = vunpack.c.h.b16 %v52
  %v476 = vunpack.c.l.b16 %v53
  %v477 = vunpack.c.h.b16 %v53
  %v478 = vunpack.c.l.b16 %v54
  %v479 = vunpack.c.h.b16 %v54
  %v480 = vunpack.c.l.b16 %v55
  %v481 = vunpack.c.h.b16 %v55
  %v482 = vunpack.c.l.b16 %v56
  %v483 = vunpack.c.h.b16 %v56
  %v484 = vunpack.c.l.b16 %v57
  %v485 = vunpack.c.h.b16 %v57
  %v486 = vunpack.c.l.b16 %v58
  %v487 = vunpack.c.h.b16 %v58
  %v488 = vunpack.c.l.b16 %v59
  %v489 = vunpack.c.h.b16 %v59
  %v490 = vunpack.c.l.b16 %v60
  %v491 = vunpack.c.h.b16 %v60
  %v492 = vunpack.c.l.b16 %v61
  %v493 = vunpack.c.h.b16 %v61
  %v494 = vunpack.c.l.b16 %v62
  %v495 = vunpack.c.h.b16 %v62
  %v496 = vunpack.c.l.b16 %v63
  %v497 = vunpack.c.h.b16 %v63
  %v498 = vunpack.c.l.b16 %v64
  %v499 = vunpack.c.h.b16 %v64
  %v500 = vunpack.c.l.b16 %v65
  %v501 = vunpack.c.h.b16 %v65
  %v502 = vunpack.c.l.b16 %v66
  %v503 = vunpack.c.h.b16 %v66
  %v504 = vunpack.c.l.b16 %v67
  %v505 = vunpack.c.h.b16 %v67
  %v506 = vunpack.c.l.b16 %v68
  %v507 = vunpack.c.h.b16 %v68
  %v508 = vunpack.c.l.b16 %v69
  %v509 = vunpack.c.h.b16 %v69
  %v510 = vunpack.c.l.b16 %v70
  %v511 = vunpack.c.h.b16 %v70
  %v512 = vunpack.c.l.b16 %v71
  %v513 = vunpack.c.h.b16 %v71
  %v514 = vunpack.c.l.b16 %v72
  %v515 = vunpack.c.h.b16 %v72
  %v516 = vunpack.c.l.b16 %v73
  %v517 = vunpack.c.h.b16 %v73
  %v518 = vunpack.c.l.b16 %v74
  %v519 = vunpack.c.h.b16 %v74
  %v520 = vunpack.c.l.b16 %v75
  %v521 = vunpack.c.h.b16 %v75
  %v522 = vunpack.c.l.b16 %v76
  %v523 = vunpack.c.h.b16 %v76
  %v524 = vunpack.c.l.b16 %v77
  %v525 = vunpack.c.h.b16 %v77
  %v526 = vpack.c.b16 %v414, %v398
  %v527 = vpack.c.b16 %v415, %v399
  %v528 = vpack.c.b16 %v416, %v400
  %v529 = vpack.c.b16 %v417, %v401
  %v530 = vpack.c.b16 %v418, %v402
  %v531 = vpack.c.b16 %v419, %v403
  %v532 = vpack.c.b16 %v420, %v404
  %v533 = vpack.c.b16 %v421, %v405
  %v534 = vpack.c.b16 %v422, %v406
  %v535 = vpack.c.b16 %v423, %v407
  %v536 = vpack.c.b16 %v424, %v408
  %v537 = vpack.c.b16 %v425, %v409
  %v538 = vpack.c.b16 %v426, %v410
  %v539 = vpack.c.b16 %v427, %v411
  %v540 = vpack.c.b16 %v428, %v412
  %v541 = vpack.c.b16 %v429, %v413
  %v542 = vpack.c.b16 %v446, %v430
  %v543 = vpack.c.b16 %v447, %v431
  %v544 = vpack.c.b16 %v448, %v432
  %v545 = vpack.c.b16 %v449, %v433
  %v546 = vpack.c.b16 %v450, %v434
  %v547 = vpack.c.b16 %v451, %v435
  %v548 = vpack.c.b16 %v452, %v436
  %v549 = vpack.c.b16 %v453, %v437
  %v550 = vpack.c.b16 %v454, %v438
  %v551 = vpack.c.b16 %v455, %v439
  %v552 = vpack.c.b16 %v456, %v440
  %v553 = vpack.c.b16 %v457, %v441
  %v554 = vpack.c.b16 %v458, %v442
  %v555 = vpack.c.b16 %v459, %v443
  %v556 = vpack.c.b16 %v460, %v444
  %v557 = vpack.c.b16 %v461, %v445
  %v558 = vpack.c.b16 %v478, %v462
  %v559 = vpack.c.b16 %v479, %v463
  %v560 = vpack.c.b16 %v480, %v464
  %v561 = vpack.c.b16 %v481, %v465
  %v562 = vpack.c.b16 %v482, %v466
  %v563 = vpack.c.b16 %v483, %v467
  %v564 = vpack.c.b16 %v484, %v468
  %v565 = vpack.c.b16 %v485, %v469
  %v566 = vpack.c.b16 %v486, %v470
  %v567 = vpack.c.b16 %v487, %v471
  %v568 = vpack.c.b16 %v488, %v472
  %v569 = vpack.c.b16 %v489, %v473
  %v570 = vpack.c.b16 %v490, %v474
  %v571 = vpack.c.b16 %v491, %v475
  %v572 = vpack.c.b16 %v492, %v476
  %v573 = vpack.c.b16 %v493, %v477
  %v574 = vpack.c.b16 %v510, %v494
  %v575 = vpack.c.b16 %v511, %v495
  %v576 = vpack.c.b16 %v512, %v496
  %v577 = vpack.c.b16 %v513, %v497
  %v578 = vpack.c.b16 %v514, %v498
  %v579 = vpack.c.b16 %v515, %v499
  %v580 = vpack.c.b16 %v516, %v500
  %v581 = vpack.c.b16 %v517, %v501
  %v582 = vpack.c.b16 %v518, %v502
  %v583 = vpack.c.b16 %v519, %v503
  %v584 = vpack.c.b16 %v520, %v504
  %v585 = vpack.c.b16 %v521, %v505
  %v586 = vpack.c.b16 %v522, %v506
  %v587 = vpack.c.b16 %v523, %v507
  %v588 = vpack.c.b16 %v524, %v508
  %v589 = vpack.c.b16 %v525, %v509
  %v910 = vunpack.c.l.b16 %v78
  %v911 = vunpack.c.l.b16 %v79
  %v912 = vunpack.c.l.b16 %v80
  %v913 = vunpack.c.l.b16 %v81
  %v914 = vunpack.c.l.b16 %v82
  %v915 = vunpack.c.l.b16 %v83
  %v916 = vunpack.c.l.b16 %v84
  %v917 = vunpack.c.l.b16 %v85
  %v918 = vunpack.c.l.b16 %v86
  %v919 = vunpack.c.l.b16 %v87
  %v920 = vunpack.c.l.b16 %v88
  %v921 = vunpack.c.l.b16 %v89
  %v922 = vunpack.c.l.b16 %v90
  %v923 = vunpack.c.l.b16 %v91
  %v924 = vunpack.c.l.b16 %v92
  %v925 = vunpack.c.l.b16 %v93
  %v926 = vunpack.c.l.b16 %v94
  %v927 = vunpack.c.l.b16 %v95
  %v928 = vunpack.c.l.b16 %v96
  %v929 = vunpack.c.l.b16 %v97
  %v930 = vunpack.c.l.b16 %v98
  %v931 = vunpack.c.l.b16 %v99
  %v932 = vunpack.c.l.b16 %v100
  %v933 = vunpack.c.l.b16 %v101
  %v934 = vunpack.c.l.b16 %v102
  %v935 = vunpack.c.l.b16 %v103
  %v936 = vunpack.c.l.b16 %v104
  %v937 = vunpack.c.l.b16 %v105
  %v938 = vunpack.c.l.b16 %v106
  %v939 = vunpack.c.l.b16 %v107
  %v940 = vunpack.c.l.b16 %v108
  %v941 = vunpack.c.l.b16 %v109
  %v942 = vunpack.c.l.b16 %v110
  %v943 = vunpack.c.l.b16 %v111
  %v944 = vunpack.c.l.b16 %v112
  %v945 = vunpack.c.l.b16 %v113
  %v946 = vunpack.c.l.b16 %v114
  %v947 = vunpack.c.l.b16 %v115
  %v948 = vunpack.c.l.b16 %v116
  %v949 = vunpack.c.l.b16 %v117
  %v950 = vunpack.c.l.b16 %v118
  %v951 = vunpack.c.l.b16 %v119
  %v952 = vunpack.c.l.b16 %v120
  %v953 = vunpack.c.l.b16 %v121
  %v954 = vunpack.c.l.b16 %v122
  %v955 = vunpack.c.l.b16 %v123
  %v956 = vunpack.c.l.b16 %v124
  %v957 = vunpack.c.l.b16 %v125
  %v958 = vunpack.c.l.b16 %v126
  %v959 = vunpack.c.l.b16 %v127
  %v960 = vunpack.c.l.b16 %v128
  %v961 = vunpack.c.l.b16 %v129
  %v962 = vunpack.c.l.b16 %v130
  %v963 = vunpack.c.l.b16 %v131
  %v964 = vunpack.c.l.b16 %v132
  %v965 = vunpack.c.l.b16 %v133
  %v966 = vunpack.c.l.b16 %v134
  %v967 = vunpack.c.l.b16 %v135
  %v968 = vunpack.c.l.b16 %v136
  %v969 = vunpack.c.l.b16 %v137
  %v970 = vunpack.c.l.b16 %v138
  %v971 = vunpack.c.l.b16 %v139
  %v972 = vunpack.c.l.b16 %v140
  %v973 = vunpack.c.l.b16 %v141
  %v974 = vunpack.c.l.b16 %v142
  %v975 = vunpack.c.l.b16 %v143
  %v976 = vunpack.c.l.b16 %v144
  %v977 = vunpack.c.l.b16 %v145
  %v978 = vunpack.c.l.b16 %v146
  %v979 = vunpack.c.l.b16 %v147
  %v980 = vunpack.c.l.b16 %v148
  %v981 = vunpack.c.l.b16 %v149
  %v982 = vunpack.c.l.b16 %v150
  %v983 = vunpack.c.l.b16 %v151
  %v984 = vunpack.c.l.b16 %v152
  %v985 = vunpack.c.l.b16 %v153
  %v986 = vunpack.c.l.b16 %v154
  %v987 = vunpack.c.l.b16 %v155
  %v988 = vunpack.c.l.b16 %v156
  %v989 = vunpack.c.l.b16 %v157
  %v990 = vunpack.c.l.b16 %v158
  %v991 = vunpack.c.l.b16 %v159
  %v992 = vunpack.c.l.b16 %v160
  %v993 = vunpack.c.l.b16 %v161
  %v994 = vunpack.c.l.b16 %v162
  %v995 = vunpack.c.l.b16 %v163
  %v996 = vunpack.c.l.b16 %v164
  %v997 = vunpack.c.l.b16 %v165
  %v998 = vunpack.c.l.b16 %v166
  %v999 = vunpack.c.l.b16 %v167
  %v1000 = vunpack.c.l.b16 %v168
  %v1001 = vunpack.c.l.b16 %v169
  %v1002 = vunpack.c.l.b16 %v170
  %v1003 = vunpack.c.l.b16 %v171
  %v1004 = vunpack.c.l.b16 %v172
  %v1005 = vunpack.c.l.b16 %v173
  %v1006 = vunpack.c.l.b16 %v174
  %v1007 = vunpack.c.l.b16 %v175
  %v1008 = vunpack.c.l.b16 %v176
  %v1009 = vunpack.c.l.b16 %v177
  %v1010 = vunpack.c.l.b16 %v178
  %v1011 = vunpack.c.l.b16 %v179
  %v1012 = vunpack.c.l.b16 %v180
  %v1013 = vunpack.c.l.b16 %v181
  %v1014 = vunpack.c.l.b16 %v182
  %v1015 = vunpack.c.l.b16 %v183
  %v1016 = vunpack.c.l.b16 %v184
  %v1017 = vunpack.c.l.b16 %v185
  %v1018 = vunpack.c.l.b16 %v186
  %v1019 = vunpack.c.l.b16 %v187
  %v1020 = vunpack.c.l.b16 %v188
  %v1021 = vunpack.c.l.b16 %v189
  %v1022 = vunpack.c.l.b16 %v190
  %v1023 = vunpack.c.l.b16 %v191
  %v1024 = vunpack.c.l.b16 %v192
  %v1025 = vunpack.c.l.b16 %v193
  %v1026 = vunpack.c.l.b16 %v194
  %v1027 = vunpack.c.l.b16 %v195
  %v1028 = vunpack.c.l.b16 %v196
  %v1029 = vunpack.c.l.b16 %v197
  %v1030 = vunpack.c.l.b16 %v198
  %v1031 = vunpack.c.l.b16 %v199
  %v1032 = vunpack.c.l.b16 %v200
  %v1033 = vunpack.c.l.b16 %v201
  %v1034 = vunpack.c.l.b16 %v202
  %v1035 = vunpack.c.l.b16 %v203
  %v1036 = vunpack.c.l.b16 %v204
  %v1037 = vunpack.c.l.b16 %v205
  %v1038 = vunpack.c.l.b16 %v206
  %v1039 = vunpack.c.l.b16 %v207
  %v1040 = vunpack.c.l.b16 %v208
  %v1041 = vunpack.c.l.b16 %v209
  %v1042 = vunpack.c.l.b16 %v210
  %v1043 = vunpack.c.l.b16 %v211
  %v1044 = vunpack.c.l.b16 %v212
  %v1045 = vunpack.c.l.b16 %v213
  %v1046 = vunpack.c.l.b16 %v214
  %v1047 = vunpack.c.l.b16 %v215
  %v1048 = vunpack.c.l.b16 %v216
  %v1049 = vunpack.c.l.b16 %v217
  %v1050 = vunpack.c.l.b16 %v218
  %v1051 = vunpack.c.l.b16 %v219
  %v1052 = vunpack.c.l.b16 %v220
  %v1053 = vunpack.c.l.b16 %v221
  %v1054 = vunpack.c.l.b16 %v222
  %v1055 = vunpack.c.l.b16 %v223
  %v1056 = vunpack.c.l.b16 %v224
  %v1057 = vunpack.c.l.b16 %v225
  %v1058 = vunpack.c.l.b16 %v226
  %v1059 = vunpack.c.l.b16 %v227
  %v1060 = vunpack.c.l.b16 %v228
  %v1061 = vunpack.c.l.b16 %v229
  %v1062 = vunpack.c.l.b16 %v230
  %v1063 = vunpack.c.l.b16 %v231
  %v1064 = vunpack.c.l.b16 %v232
  %v1065 = vunpack.c.l.b16 %v233
  %v1066 = vunpack.c.l.b16 %v234
  %v1067 = vunpack.c.l.b16 %v235
  %v1068 = vunpack.c.l.b16 %v236
  %v1069 = vunpack.c.l.b16 %v237
  %v1070 = vunpack.c.l.b16 %v238
  %v1071 = vunpack.c.l.b16 %v239
  %v1072 = vunpack.c.l.b16 %v240
  %v1073 = vunpack.c.l.b16 %v241
  %v1074 = vunpack.c.l.b16 %v242
  %v1075 = vunpack.c.l.b16 %v243
  %v1076 = vunpack.c.l.b16 %v244
  %v1077 = vunpack.c.l.b16 %v245
  %v1078 = vunpack.c.l.b16 %v246
  %v1079 = vunpack.c.l.b16 %v247
  %v1080 = vunpack.c.l.b16 %v248
  %v1081 = vunpack.c.l.b16 %v249
  %v1082 = vunpack.c.l.b16 %v250
  %v1083 = vunpack.c.l.b16 %v251
  %v1084 = vunpack.c.l.b16 %v252
  %v1085 = vunpack.c.l.b16 %v253
  %v1086 = vunpack.c.l.b16 %v254
  %v1087 = vunpack.c.l.b16 %v255
  %v1088 = vunpack.c.l.b16 %v256
  %v1089 = vunpack.c.l.b16 %v257
  %v1090 = vunpack.c.l.b16 %v258
  %v1091 = vunpack.c.l.b16 %v259
  %v1092 = vunpack.c.l.b16 %v260
  %v1093 = vunpack.c.l.b16 %v261
  %v1094 = vunpack.c.l.b16 %v262
  %v1095 = vunpack.c.l.b16 %v263
  %v1096 = vunpack.c.l.b16 %v264
  %v1097 = vunpack.c.l.b16 %v265
  %v1098 = vunpack.c.l.b16 %v266
  %v1099 = vunpack.c.l.b16 %v267
  %v1100 = vunpack.c.l.b16 %v268
  %v1101 = vunpack.c.l.b16 %v269
  %v1102 = vunpack.c.l.b16 %v270
  %v1103 = vunpack.c.l.b16 %v271
  %v1104 = vunpack.c.l.b16 %v272
  %v1105 = vunpack.c.l.b16 %v273
  %v1106 = vunpack.c.l.b16 %v274
  %v1107 = vunpack.c.l.b16 %v275
  %v1108 = vunpack.c.l.b16 %v276
  %v1109 = vunpack.c.l.b16 %v277
  %v1110 = vunpack.c.l.b16 %v278
  %v1111 = vunpack.c.l.b16 %v279
  %v1112 = vunpack.c.l.b16 %v280
  %v1113 = vunpack.c.l.b16 %v281
  %v1114 = vunpack.c.l.b16 %v282
  %v1115 = vunpack.c.l.b16 %v283
  %v1116 = vunpack.c.l.b16 %v284
  %v1117 = vunpack.c.l.b16 %v285
  %v1118 = vunpack.c.l.b16 %v286
  %v1119 = vunpack.c.l.b16 %v287
  %v1120 = vunpack.c.l.b16 %v288
  %v1121 = vunpack.c.l.b16 %v289
  %v1122 = vunpack.c.l.b16 %v290
  %v1123 = vunpack.c.l.b16 %v291
  %v1124 = vunpack.c.l.b16 %v292
  %v1125 = vunpack.c.l.b16 %v293
  %v1126 = vunpack.c.l.b16 %v294
  %v1127 = vunpack.c.l.b16 %v295
  %v1128 = vunpack.c.l.b16 %v296
  %v1129 = vunpack.c.l.b16 %v297
  %v1130 = vunpack.c.l.b16 %v298
  %v1131 = vunpack.c.l.b16 %v299
  %v1132 = vunpack.c.l.b16 %v300
  %v1133 = vunpack.c.l.b16 %v301
  %v1134 = vunpack.c.l.b16 %v302
  %v1135 = vunpack.c.l.b16 %v303
  %v1136 = vunpack.c.l.b16 %v304
  %v1137 = vunpack.c.l.b16 %v305
  %v1138 = vunpack.c.l.b16 %v306
  %v1139 = vunpack.c.l.b16 %v307
  %v1140 = vunpack.c.l.b16 %v308
  %v1141 = vunpack.c.l.b16 %v309
  %v1142 = vunpack.c.l.b16 %v310
  %v1143 = vunpack.c.l.b16 %v311
  %v1144 = vunpack.c.l.b16 %v312
  %v1145 = vunpack.c.l.b16 %v313
  %v1146 = vunpack.c.l.b16 %v314
  %v1147 = vunpack.c.l.b16 %v315
  %v1148 = vunpack.c.l.b16 %v316
  %v1149 = vunpack.c.l.b16 %v317
  %v1150 = vunpack.c.l.b16 %v318
  %v1151 = vunpack.c.l.b16 %v319
  %v1152 = vunpack.c.l.b16 %v320
  %v1153 = vunpack.c.l.b16 %v321
  %v1154 = vunpack.c.l.b16 %v322
  %v1155 = vunpack.c.l.b16 %v323
  %v1156 = vunpack.c.l.b16 %v324
  %v1157 = vunpack.c.l.b16 %v325
  %v1158 = vunpack.c.l.b16 %v326
  %v1159 = vunpack.c.l.b16 %v327
  %v1160 = vunpack.c.l.b16 %v328
  %v1161 = vunpack.c.l.b16 %v329
  %v1162 = vunpack.c.l.b16 %v330
  %v1163 = vunpack.c.l.b16 %v331
  %v1164 = vunpack.c.l.b16 %v332
  %v1165 = vunpack.c.l.b16 %v333
  %v1166 = vpack.c.b16 %v911, %v910
  %v1167 = vpack.c.b16 %v913, %v912
  %v1168 = vpack.c.b16 %v915, %v914
  %v1169 = vpack.c.b16 %v917, %v916
  %v1170 = vpack.c.b16 %v919, %v918
  %v1171 = vpack.c.b16 %v921, %v920
  %v1172 = vpack.c.b16 %v923, %v922
  %v1173 = vpack.c.b16 %v925, %v924
  %v1174 = vpack.c.b16 %v927, %v926
  %v1175 = vpack.c.b16 %v929, %v928
  %v1176 = vpack.c.b16 %v931, %v930
  %v1177 = vpack.c.b16 %v933, %v932
  %v1178 = vpack.c.b16 %v935, %v934
  %v1179 = vpack.c.b16 %v937, %v936
  %v1180 = vpack.c.b16 %v939, %v938
  %v1181 = vpack.c.b16 %v941, %v940
  %v1182 = vpack.c.b16 %v943, %v942
  %v1183 = vpack.c.b16 %v945, %v944
  %v1184 = vpack.c.b16 %v947, %v946
  %v1185 = vpack.c.b16 %v949, %v948
  %v1186 = vpack.c.b16 %v951, %v950
  %v1187 = vpack.c.b16 %v953, %v952
  %v1188 = vpack.c.b16 %v955, %v954
  %v1189 = vpack.c.b16 %v957, %v956
  %v1190 = vpack.c.b16 %v959, %v958
  %v1191 = vpack.c.b16 %v961, %v960
  %v1192 = vpack.c.b16 %v963, %v962
  %v1193 = vpack.c.b16 %v965, %v964
  %v1194 = vpack.c.b16 %v967, %v966
  %v1195 = vpack.c.b16 %v969, %v968
  %v1196 = vpack.c.b16 %v971, %v970
  %v1197 = vpack.c.b16 %v973, %v972
  %v1198 = vpack.c.b16 %v975, %v974
  %v1199 = vpack.c.b16 %v977, %v976
  %v1200 = vpack.c.b16 %v979, %v978
  %v1201 = vpack.c.b16 %v981, %v980
  %v1202 = vpack.c.b16 %v983, %v982
  %v1203 = vpack.c.b16 %v985, %v984
  %v1204 = vpack.c.b16 %v987, %v986
  %v1205 = vpack.c.b16 %v989, %v988
  %v1206 = vpack.c.b16 %v991, %v990
  %v1207 = vpack.c.b16 %v993, %v992
  %v1208 = vpack.c.b16 %v995, %v994
  %v1209 = vpack.c.b16 %v997, %v996
  %v1210 = vpack.c.b16 %v999, %v998
  %v1211 = vpack.c.b16 %v1001, %v1000
  %v1212 = vpack.c.b16 %v1003, %v1002
  %v1213 = vpack.c.b16 %v1005, %v1004
  %v1214 = vpack.c.b16 %v1007, %v1006
  %v1215 = vpack.c.b16 %v1009, %v1008
  %v1216 = vpack.c.b16 %v1011, %v1010
  %v1217 = vpack.c.b16 %v1013, %v1012
  %v1218 = vpack.c.b16 %v1015, %v1014
  %v1219 = vpack.c.b16 %v1017, %v1016
  %v1220 = vpack.c.b16 %v1019, %v1018
  %v1221 = vpack.c.b16 %v1021, %v1020
  %v1222 = vpack.c.b16 %v1023, %v1022
  %v1223 = vpack.c.b16 %v1025, %v1024
  %v1224 = vpack.c.b16 %v1027, %v1026
  %v1225 = vpack.c.b16 %v1029, %v1028
  %v1226 = vpack.c.b16 %v1031, %v1030
  %v1227 = vpack.c.b16 %v1033, %v1032
  %v1228 = vpack.c.b16 %v1035, %v1034
  %v1229 = vpack.c.b16 %v1037, %v1036
  %v1230 = vpack.c.b16 %v1039, %v1038
  %v1231 = vpack.c.b16 %v1041, %v1040
  %v1232 = vpack.c.b16 %v1043, %v1042
  %v1233 = vpack.c.b16 %v1045, %v1044
  %v1234 = vpack.c.b16 %v1047, %v1046
  %v1235 = vpack.c.b16 %v1049, %v1048
  %v1236 = vpack.c.b16 %v1051, %v1050
  %v1237 = vpack.c.b16 %v1053, %v1052
  %v1238 = vpack.c.b16 %v1055, %v1054
  %v1239 = vpack.c.b16 %v1057, %v1056
  %v1240 = vpack.c.b16 %v1059, %v1058
  %v1241 = vpack.c.b16 %v1061, %v1060
  %v1242 = vpack.c.b16 %v1063, %v1062
  %v1243 = vpack.c.b16 %v1065, %v1064
  %v1244 = vpack.c.b16 %v1067, %v1066
  %v1245 = vpack.c.b16 %v1069, %v1068
  %v1246 = vpack.c.b16 %v1071, %v1070
  %v1247 = vpack.c.b16 %v1073, %v1072
  %v1248 = vpack.c.b16 %v1075, %v1074
  %v1249 = vpack.c.b16 %v1077, %v1076
  %v1250 = vpack.c.b16 %v1079, %v1078
  %v1251 = vpack.c.b16 %v1081, %v1080
  %v1252 = vpack.c.b16 %v1083, %v1082
  %v1253 = vpack.c.b16 %v1085, %v1084
  %v1254 = vpack.c.b16 %v1087, %v1086
  %v1255 = vpack.c.b16 %v1089, %v1088
  %v1256 = vpack.c.b16 %v1091, %v1090
  %v1257 = vpack.c.b16 %v1093, %v1092
  %v1258 = vpack.c.b16 %v1095, %v1094
  %v1259 = vpack.c.b16 %v1097, %v1096
  %v1260 = vpack.c.b16 %v1099, %v1098
  %v1261 = vpack.c.b16 %v1101, %v1100
  %v1262 = vpack.c.b16 %v1103, %v1102
  %v1263 = vpack.c.b16 %v1105, %v1104
  %v1264 = vpack.c.b16 %v1107, %v1106
  %v1265 = vpack.c.b16 %v1109, %v1108
  %v1266 = vpack.c.b16 %v1111, %v1110
  %v1267 = vpack.c.b16 %v1113, %v1112
  %v1268 = vpack.c.b16 %v1115, %v1114
  %v1269 = vpack.c.b16 %v1117, %v1116
  %v1270 = vpack.c.b16 %v1119, %v1118
  %v1271 = vpack.c.b16 %v1121, %v1120
  %v1272 = vpack.c.b16 %v1123, %v1122
  %v1273 = vpack.c.b16 %v1125, %v1124
  %v1274 = vpack.c.b16 %v1127, %v1126
  %v1275 = vpack.c.b16 %v1129, %v1128
  %v1276 = vpack.c.b16 %v1131, %v1130
  %v1277 = vpack.c.b16 %v1133, %v1132
  %v1278 = vpack.c.b16 %v1135, %v1134
  %v1279 = vpack.c.b16 %v1137, %v1136
  %v1280 = vpack.c.b16 %v1139, %v1138
  %v1281 = vpack.c.b16 %v1141, %v1140
  %v1282 = vpack.c.b16 %v1143, %v1142
  %v1283 = vpack.c.b16 %v1145, %v1144
  %v1284 = vpack.c.b16 %v1147, %v1146
  %v1285 = vpack.c.b16 %v1149, %v1148
  %v1286 = vpack.c.b16 %v1151, %v1150
  %v1287 = vpack.c.b16 %v1153, %v1152
  %v1288 = vpack.c.b16 %v1155, %v1154
  %v1289 = vpack.c.b16 %v1157, %v1156
  %v1290 = vpack.c.b16 %v1159, %v1158
  %v1291 = vpack.c.b16 %v1161, %v1160
  %v1292 = vpack.c.b16 %v1163, %v1162
  %v1293 = vpack.c.b16 %v1165, %v1164
  %1422 = vmatprep.subr.bf16.mxu0 0
  %1423 = vmatpush1.bf16.msra.mxu0 %v1166
  %1424 = vmatprep.subr.bf16.mxu0 0
  %1425 = vmatpush1.bf16.msra.mxu0 %v1167
  %1426 = vmatprep.subr.bf16.mxu0 0
  %1427 = vmatpush1.bf16.msra.mxu0 %v1168
  %1428 = vmatprep.subr.bf16.mxu0 0
  %1429 = vmatpush1.bf16.msra.mxu0 %v1169
  %1430 = vmatprep.subr.bf16.mxu0 0
  %1431 = vmatpush1.bf16.msra.mxu0 %v1170
  %1432 = vmatprep.subr.bf16.mxu0 0
  %1433 = vmatpush1.bf16.msra.mxu0 %v1171
  %1434 = vmatprep.subr.bf16.mxu0 0
  %1435 = vmatpush1.bf16.msra.mxu0 %v1172
  %1436 = vmatprep.subr.bf16.mxu0 0
  %1437 = vmatpush1.bf16.msra.mxu0 %v1173
  %1438 = vmatprep.subr.bf16.mxu0 0
  %1439 = vmatpush1.bf16.msra.mxu0 %v1174
  %1440 = vmatprep.subr.bf16.mxu0 0
  %1441 = vmatpush1.bf16.msra.mxu0 %v1175
  %1442 = vmatprep.subr.bf16.mxu0 0
  %1443 = vmatpush1.bf16.msra.mxu0 %v1176
  %1444 = vmatprep.subr.bf16.mxu0 0
  %1445 = vmatpush1.bf16.msra.mxu0 %v1177
  %1446 = vmatprep.subr.bf16.mxu0 0
  %1447 = vmatpush1.bf16.msra.mxu0 %v1178
  %1448 = vmatprep.subr.bf16.mxu0 0
  %1449 = vmatpush1.bf16.msra.mxu0 %v1179
  %1450 = vmatprep.subr.bf16.mxu0 0
  %1451 = vmatpush1.bf16.msra.mxu0 %v1180
  %1452 = vmatprep.subr.bf16.mxu0 0
  %1453 = vmatpush1.bf16.msra.mxu0 %v1181
  %1454 = vmatprep.mubr.bf16.mxu0 %v527
  %1455 = vmatmul.mubr.bf16.gmra.mrb[0].mxu0 %v526
  %v1456 = vpop.f32.mrb[0].mxu0
  %v1457 = vadd.f32 0.0, %v1456
  %v1458 = vpop.f32.mrb[0].mxu0
  %v1459 = vpop.f32.mrb[0].mxu0
  %v1460 = vadd.f32 0.0, %v1459
  %v1461 = vpop.f32.mrb[0].mxu0
  %1462 = vmatprep.mubr.bf16.mxu0 %v543
  %1463 = vmatmul.mubr.bf16.gmra.mrb[0].mxu0 %v542
  %v1464 = vpop.f32.mrb[0].mxu0
  %v1465 = vadd.f32 0.0, %v1464
  %v1466 = vpop.f32.mrb[0].mxu0
  %v1467 = vpop.f32.mrb[0].mxu0
  %v1468 = vadd.f32 0.0, %v1467
  %v1469 = vpop.f32.mrb[0].mxu0
  %1470 = vmatprep.mubr.bf16.mxu0 %v559
  %1471 = vmatmul.mubr.bf16.gmra.mrb[0].mxu0 %v558
  %v1472 = vpop.f32.mrb[0].mxu0
  %v1473 = vadd.f32 0.0, %v1472
  %v1474 = vpop.f32.mrb[0].mxu0
  %v1475 = vpop.f32.mrb[0].mxu0
  %v1476 = vadd.f32 0.0, %v1475
  %v1477 = vpop.f32.mrb[0].mxu0
  %1478 = vmatprep.mubr.bf16.mxu0 %v575
  %1479 = vmatmul.mubr.bf16.gmra.mrb[0].mxu0 %v574
  %v1480 = vpop.f32.mrb[0].mxu0
  %v1481 = vadd.f32 0.0, %v1480
  %v1482 = vpop.f32.mrb[0].mxu0
  %v1483 = vpop.f32.mrb[0].mxu0
  %v1484 = vadd.f32 0.0, %v1483
  %v1485 = vpop.f32.mrb[0].mxu0
  %1486 = vdwg.mxu0
  %1487 = vmatprep.subr.bf16.mxu0 0
  %1488 = vmatpush1.bf16.msra.mxu0 %v1182
  %1489 = vmatprep.subr.bf16.mxu0 0
  %1490 = vmatpush1.bf16.msra.mxu0 %v1183
  %1491 = vmatprep.subr.bf16.mxu0 0
  %1492 = vmatpush1.bf16.msra.mxu0 %v1184
  %1493 = vmatprep.subr.bf16.mxu0 0
  %1494 = vmatpush1.bf16.msra.mxu0 %v1185
  %1495 = vmatprep.subr.bf16.mxu0 0
  %1496 = vmatpush1.bf16.msra.mxu0 %v1186
  %1497 = vmatprep.subr.bf16.mxu0 0
  %1498 = vmatpush1.bf16.msra.mxu0 %v1187
  %1499 = vmatprep.subr.bf16.mxu0 0
  %1500 = vmatpush1.bf16.msra.mxu0 %v1188
  %1501 = vmatprep.subr.bf16.mxu0 0
  %1502 = vmatpush1.bf16.msra.mxu0 %v1189
  %1503 = vmatprep.subr.bf16.mxu0 0
  %1504 = vmatpush1.bf16.msra.mxu0 %v1190
  %1505 = vmatprep.subr.bf16.mxu0 0
  %1506 = vmatpush1.bf16.msra.mxu0 %v1191
  %1507 = vmatprep.subr.bf16.mxu0 0
  %1508 = vmatpush1.bf16.msra.mxu0 %v1192
  %1509 = vmatprep.subr.bf16.mxu0 0
  %1510 = vmatpush1.bf16.msra.mxu0 %v1193
  %1511 = vmatprep.subr.bf16.mxu0 0
  %1512 = vmatpush1.bf16.msra.mxu0 %v1194
  %1513 = vmatprep.subr.bf16.mxu0 0
  %1514 = vmatpush1.bf16.msra.mxu0 %v1195
  %1515 = vmatprep.subr.bf16.mxu0 0
  %1516 = vmatpush1.bf16.msra.mxu0 %v1196
  %1517 = vmatprep.subr.bf16.mxu0 0
  %1518 = vmatpush1.bf16.msra.mxu0 %v1197
  %1519 = vmatprep.mubr.bf16.mxu0 %v529
  %1520 = vmatmul.mubr.bf16.gmra.mrb[0].mxu0 %v528
  %v1521 = vpop.f32.mrb[0].mxu0
  %v1522 = vadd.f32 %v1457, %v1521
  %v1523 = vpop.f32.mrb[0].mxu0
  %v1524 = vpop.f32.mrb[0].mxu0
  %v1525 = vadd.f32 %v1460, %v1524
  %v1526 = vpop.f32.mrb[0].mxu0
  %1527 = vmatprep.mubr.bf16.mxu0 %v545
  %1528 = vmatmul.mubr.bf16.gmra.mrb[0].mxu0 %v544
  %v1529 = vpop.f32.mrb[0].mxu0
  %v1530 = vadd.f32 %v1465, %v1529
  %v1531 = vpop.f32.mrb[0].mxu0
  %v1532 = vpop.f32.mrb[0].mxu0
  %v1533 = vadd.f32 %v1468, %v1532
  %v1534 = vpop.f32.mrb[0].mxu0
  %1535 = vmatprep.mubr.bf16.mxu0 %v561
  %1536 = vmatmul.mubr.bf16.gmra.mrb[0].mxu0 %v560
  %v1537 = vpop.f32.mrb[0].mxu0
  %v1538 = vadd.f32 %v1473, %v1537
  %v1539 = vpop.f32.mrb[0].mxu0
  %v1540 = vpop.f32.mrb[0].mxu0
  %v1541 = vadd.f32 %v1476, %v1540
  %v1542 = vpop.f32.mrb[0].mxu0
  %1543 = vmatprep.mubr.bf16.mxu0 %v577
  %1544 = vmatmul.mubr.bf16.gmra.mrb[0].mxu0 %v576
  %v1545 = vpop.f32.mrb[0].mxu0
  %v1546 = vadd.f32 %v1481, %v1545
  %v1547 = vpop.f32.mrb[0].mxu0
  %v1548 = vpop.f32.mrb[0].mxu0
  %v1549 = vadd.f32 %v1484, %v1548
  %v1550 = vpop.f32.mrb[0].mxu0
  %1551 = vdwg.mxu0
  %1552 = vmatprep.subr.bf16.mxu0 0
  %1553 = vmatpush1.bf16.msra.mxu0 %v1198
  %1554 = vmatprep.subr.bf16.mxu0 0
  %1555 = vmatpush1.bf16.msra.mxu0 %v1199
  %1556 = vmatprep.subr.bf16.mxu0 0
  %1557 = vmatpush1.bf16.msra.mxu0 %v1200
  %1558 = vmatprep.subr.bf16.mxu0 0
  %1559 = vmatpush1.bf16.msra.mxu0 %v1201
  %1560 = vmatprep.subr.bf16.mxu0 0
  %1561 = vmatpush1.bf16.msra.mxu0 %v1202
  %1562 = vmatprep.subr.bf16.mxu0 0
  %1563 = vmatpush1.bf16.msra.mxu0 %v1203
  %1564 = vmatprep.subr.bf16.mxu0 0
  %1565 = vmatpush1.bf16.msra.mxu0 %v1204
  %1566 = vmatprep.subr.bf16.mxu0 0
  %1567 = vmatpush1.bf16.msra.mxu0 %v1205
  %1568 = vmatprep.subr.bf16.mxu0 0
  %1569 = vmatpush1.bf16.msra.mxu0 %v1206
  %1570 = vmatprep.subr.bf16.mxu0 0
  %1571 = vmatpush1.bf16.msra.mxu0 %v1207
  %1572 = vmatprep.subr.bf16.mxu0 0
  %1573 = vmatpush1.bf16.msra.mxu0 %v1208
  %1574 = vmatprep.subr.bf16.mxu0 0
  %1575 = vmatpush1.bf16.msra.mxu0 %v1209
  %1576 = vmatprep.subr.bf16.mxu0 0
  %1577 = vmatpush1.bf16.msra.mxu0 %v1210
  %1578 = vmatprep.subr.bf16.mxu0 0
  %1579 = vmatpush1.bf16.msra.mxu0 %v1211
  %1580 = vmatprep.subr.bf16.mxu0 0
  %1581 = vmatpush1.bf16.msra.mxu0 %v1212
  %1582 = vmatprep.subr.bf16.mxu0 0
  %1583 = vmatpush1.bf16.msra.mxu0 %v1213
  %1584 = vmatprep.mubr.bf16.mxu0 %v531
  %1585 = vmatmul.mubr.bf16.gmra.mrb[0].mxu0 %v530
  %v1586 = vpop.f32.mrb[0].mxu0
  %v1587 = vadd.f32 %v1522, %v1586
  %v1588 = vpop.f32.mrb[0].mxu0
  %v1589 = vpop.f32.mrb[0].mxu0
  %v1590 = vadd.f32 %v1525, %v1589
  %v1591 = vpop.f32.mrb[0].mxu0
  %1592 = vmatprep.mubr.bf16.mxu0 %v547
  %1593 = vmatmul.mubr.bf16.gmra.mrb[0].mxu0 %v546
  %v1594 = vpop.f32.mrb[0].mxu0
  %v1595 = vadd.f32 %v1530, %v1594
  %v1596 = vpop.f32.mrb[0].mxu0
  %v1597 = vpop.f32.mrb[0].mxu0
  %v1598 = vadd.f32 %v1533, %v1597
  %v1599 = vpop.f32.mrb[0].mxu0
  %1600 = vmatprep.mubr.bf16.mxu0 %v563
  %1601 = vmatmul.mubr.bf16.gmra.mrb[0].mxu0 %v562
  %v1602 = vpop.f32.mrb[0].mxu0
  %v1603 = vadd.f32 %v1538, %v1602
  %v1604 = vpop.f32.mrb[0].mxu0
  %v1605 = vpop.f32.mrb[0].mxu0
  %v1606 = vadd.f32 %v1541, %v1605
  %v1607 = vpop.f32.mrb[0].mxu0
  %1608 = vmatprep.mubr.bf16.mxu0 %v579
  %1609 = vmatmul.mubr.bf16.gmra.mrb[0].mxu0 %v578
  %v1610 = vpop.f32.mrb[0].mxu0
  %v1611 = vadd.f32 %v1546, %v1610
  %v1612 = vpop.f32.mrb[0].mxu0
  %v1613 = vpop.f32.mrb[0].mxu0
  %v1614 = vadd.f32 %v1549, %v1613
  %v1615 = vpop.f32.mrb[0].mxu0
  %1616 = vdwg.mxu0
  %1617 = vmatprep.subr.bf16.mxu0 0
  %1618 = vmatpush1.bf16.msra.mxu0 %v1214
  %1619 = vmatprep.subr.bf16.mxu0 0
  %1620 = vmatpush1.bf16.msra.mxu0 %v1215
  %1621 = vmatprep.subr.bf16.mxu0 0
  %1622 = vmatpush1.bf16.msra.mxu0 %v1216
  %1623 = vmatprep.subr.bf16.mxu0 0
  %1624 = vmatpush1.bf16.msra.mxu0 %v1217
  %1625 = vmatprep.subr.bf16.mxu0 0
  %1626 = vmatpush1.bf16.msra.mxu0 %v1218
  %1627 = vmatprep.subr.bf16.mxu0 0
  %1628 = vmatpush1.bf16.msra.mxu0 %v1219
  %1629 = vmatprep.subr.bf16.mxu0 0
  %1630 = vmatpush1.bf16.msra.mxu0 %v1220
  %1631 = vmatprep.subr.bf16.mxu0 0
  %1632 = vmatpush1.bf16.msra.mxu0 %v1221
  %1633 = vmatprep.subr.bf16.mxu0 0
  %1634 = vmatpush1.bf16.msra.mxu0 %v1222
  %1635 = vmatprep.subr.bf16.mxu0 0
  %1636 = vmatpush1.bf16.msra.mxu0 %v1223
  %1637 = vmatprep.subr.bf16.mxu0 0
  %1638 = vmatpush1.bf16.msra.mxu0 %v1224
  %1639 = vmatprep.subr.bf16.mxu0 0
  %1640 = vmatpush1.bf16.msra.mxu0 %v1225
  %1641 = vmatprep.subr.bf16.mxu0 0
  %1642 = vmatpush1.bf16.msra.mxu0 %v1226
  %1643 = vmatprep.subr.bf16.mxu0 0
  %1644 = vmatpush1.bf16.msra.mxu0 %v1227
  %1645 = vmatprep.subr.bf16.mxu0 0
  %1646 = vmatpush1.bf16.msra.mxu0 %v1228
  %1647 = vmatprep.subr.bf16.mxu0 0
  %1648 = vmatpush1.bf16.msra.mxu0 %v1229
  %1649 = vmatprep.mubr.bf16.mxu0 %v533
  %1650 = vmatmul.mubr.bf16.gmra.mrb[0].mxu0 %v532
  %v1651 = vpop.f32.mrb[0].mxu0
  %v1652 = vadd.f32 %v1587, %v1651
  %v1653 = vpop.f32.mrb[0].mxu0
  %v1654 = vpop.f32.mrb[0].mxu0
  %v1655 = vadd.f32 %v1590, %v1654
  %v1656 = vpop.f32.mrb[0].mxu0
  %1657 = vmatprep.mubr.bf16.mxu0 %v549
  %1658 = vmatmul.mubr.bf16.gmra.mrb[0].mxu0 %v548
  %v1659 = vpop.f32.mrb[0].mxu0
  %v1660 = vadd.f32 %v1595, %v1659
  %v1661 = vpop.f32.mrb[0].mxu0
  %v1662 = vpop.f32.mrb[0].mxu0
  %v1663 = vadd.f32 %v1598, %v1662
  %v1664 = vpop.f32.mrb[0].mxu0
  %1665 = vmatprep.mubr.bf16.mxu0 %v565
  %1666 = vmatmul.mubr.bf16.gmra.mrb[0].mxu0 %v564
  %v1667 = vpop.f32.mrb[0].mxu0
  %v1668 = vadd.f32 %v1603, %v1667
  %v1669 = vpop.f32.mrb[0].mxu0
  %v1670 = vpop.f32.mrb[0].mxu0
  %v1671 = vadd.f32 %v1606, %v1670
  %v1672 = vpop.f32.mrb[0].mxu0
  %1673 = vmatprep.mubr.bf16.mxu0 %v581
  %1674 = vmatmul.mubr.bf16.gmra.mrb[0].mxu0 %v580
  %v1675 = vpop.f32.mrb[0].mxu0
  %v1676 = vadd.f32 %v1611, %v1675
  %v1677 = vpop.f32.mrb[0].mxu0
  %v1678 = vpop.f32.mrb[0].mxu0
  %v1679 = vadd.f32 %v1614, %v1678
  %v1680 = vpop.f32.mrb[0].mxu0
  %1681 = vdwg.mxu0
  %1682 = vmatprep.subr.bf16.mxu0 0
  %1683 = vmatpush1.bf16.msra.mxu0 %v1230
  %1684 = vmatprep.subr.bf16.mxu0 0
  %1685 = vmatpush1.bf16.msra.mxu0 %v1231
  %1686 = vmatprep.subr.bf16.mxu0 0
  %1687 = vmatpush1.bf16.msra.mxu0 %v1232
  %1688 = vmatprep.subr.bf16.mxu0 0
  %1689 = vmatpush1.bf16.msra.mxu0 %v1233
  %1690 = vmatprep.subr.bf16.mxu0 0
  %1691 = vmatpush1.bf16.msra.mxu0 %v1234
  %1692 = vmatprep.subr.bf16.mxu0 0
  %1693 = vmatpush1.bf16.msra.mxu0 %v1235
  %1694 = vmatprep.subr.bf16.mxu0 0
  %1695 = vmatpush1.bf16.msra.mxu0 %v1236
  %1696 = vmatprep.subr.bf16.mxu0 0
  %1697 = vmatpush1.bf16.msra.mxu0 %v1237
  %1698 = vmatprep.subr.bf16.mxu0 0
  %1699 = vmatpush1.bf16.msra.mxu0 %v1238
  %1700 = vmatprep.subr.bf16.mxu0 0
  %1701 = vmatpush1.bf16.msra.mxu0 %v1239
  %1702 = vmatprep.subr.bf16.mxu0 0
  %1703 = vmatpush1.bf16.msra.mxu0 %v1240
  %1704 = vmatprep.subr.bf16.mxu0 0
  %1705 = vmatpush1.bf16.msra.mxu0 %v1241
  %1706 = vmatprep.subr.bf16.mxu0 0
  %1707 = vmatpush1.bf16.msra.mxu0 %v1242
  %1708 = vmatprep.subr.bf16.mxu0 0
  %1709 = vmatpush1.bf16.msra.mxu0 %v1243
  %1710 = vmatprep.subr.bf16.mxu0 0
  %1711 = vmatpush1.bf16.msra.mxu0 %v1244
  %1712 = vmatprep.subr.bf16.mxu0 0
  %1713 = vmatpush1.bf16.msra.mxu0 %v1245
  %1714 = vmatprep.mubr.bf16.mxu0 %v535
  %1715 = vmatmul.mubr.bf16.gmra.mrb[0].mxu0 %v534
  %v1716 = vpop.f32.mrb[0].mxu0
  %v1717 = vadd.f32 %v1652, %v1716
  %v1718 = vpop.f32.mrb[0].mxu0
  %v1719 = vpop.f32.mrb[0].mxu0
  %v1720 = vadd.f32 %v1655, %v1719
  %v1721 = vpop.f32.mrb[0].mxu0
  %1722 = vmatprep.mubr.bf16.mxu0 %v551
  %1723 = vmatmul.mubr.bf16.gmra.mrb[0].mxu0 %v550
  %v1724 = vpop.f32.mrb[0].mxu0
  %v1725 = vadd.f32 %v1660, %v1724
  %v1726 = vpop.f32.mrb[0].mxu0
  %v1727 = vpop.f32.mrb[0].mxu0
  %v1728 = vadd.f32 %v1663, %v1727
  %v1729 = vpop.f32.mrb[0].mxu0
  %1730 = vmatprep.mubr.bf16.mxu0 %v567
  %1731 = vmatmul.mubr.bf16.gmra.mrb[0].mxu0 %v566
  %v1732 = vpop.f32.mrb[0].mxu0
  %v1733 = vadd.f32 %v1668, %v1732
  %v1734 = vpop.f32.mrb[0].mxu0
  %v1735 = vpop.f32.mrb[0].mxu0
  %v1736 = vadd.f32 %v1671, %v1735
  %v1737 = vpop.f32.mrb[0].mxu0
  %1738 = vmatprep.mubr.bf16.mxu0 %v583
  %1739 = vmatmul.mubr.bf16.gmra.mrb[0].mxu0 %v582
  %v1740 = vpop.f32.mrb[0].mxu0
  %v1741 = vadd.f32 %v1676, %v1740
  %v1742 = vpop.f32.mrb[0].mxu0
  %v1743 = vpop.f32.mrb[0].mxu0
  %v1744 = vadd.f32 %v1679, %v1743
  %v1745 = vpop.f32.mrb[0].mxu0
  %1746 = vdwg.mxu0
  %1747 = vmatprep.subr.bf16.mxu0 0
  %1748 = vmatpush1.bf16.msra.mxu0 %v1246
  %1749 = vmatprep.subr.bf16.mxu0 0
  %1750 = vmatpush1.bf16.msra.mxu0 %v1247
  %1751 = vmatprep.subr.bf16.mxu0 0
  %1752 = vmatpush1.bf16.msra.mxu0 %v1248
  %1753 = vmatprep.subr.bf16.mxu0 0
  %1754 = vmatpush1.bf16.msra.mxu0 %v1249
  %1755 = vmatprep.subr.bf16.mxu0 0
  %1756 = vmatpush1.bf16.msra.mxu0 %v1250
  %1757 = vmatprep.subr.bf16.mxu0 0
  %1758 = vmatpush1.bf16.msra.mxu0 %v1251
  %1759 = vmatprep.subr.bf16.mxu0 0
  %1760 = vmatpush1.bf16.msra.mxu0 %v1252
  %1761 = vmatprep.subr.bf16.mxu0 0
  %1762 = vmatpush1.bf16.msra.mxu0 %v1253
  %1763 = vmatprep.subr.bf16.mxu0 0
  %1764 = vmatpush1.bf16.msra.mxu0 %v1254
  %1765 = vmatprep.subr.bf16.mxu0 0
  %1766 = vmatpush1.bf16.msra.mxu0 %v1255
  %1767 = vmatprep.subr.bf16.mxu0 0
  %1768 = vmatpush1.bf16.msra.mxu0 %v1256
  %1769 = vmatprep.subr.bf16.mxu0 0
  %1770 = vmatpush1.bf16.msra.mxu0 %v1257
  %1771 = vmatprep.subr.bf16.mxu0 0
  %1772 = vmatpush1.bf16.msra.mxu0 %v1258
  %1773 = vmatprep.subr.bf16.mxu0 0
  %1774 = vmatpush1.bf16.msra.mxu0 %v1259
  %1775 = vmatprep.subr.bf16.mxu0 0
  %1776 = vmatpush1.bf16.msra.mxu0 %v1260
  %1777 = vmatprep.subr.bf16.mxu0 0
  %1778 = vmatpush1.bf16.msra.mxu0 %v1261
  %1779 = vmatprep.mubr.bf16.mxu0 %v537
  %1780 = vmatmul.mubr.bf16.gmra.mrb[0].mxu0 %v536
  %v1781 = vpop.f32.mrb[0].mxu0
  %v1782 = vadd.f32 %v1717, %v1781
  %v1783 = vpop.f32.mrb[0].mxu0
  %v1784 = vpop.f32.mrb[0].mxu0
  %v1785 = vadd.f32 %v1720, %v1784
  %v1786 = vpop.f32.mrb[0].mxu0
  %1787 = vmatprep.mubr.bf16.mxu0 %v553
  %1788 = vmatmul.mubr.bf16.gmra.mrb[0].mxu0 %v552
  %v1789 = vpop.f32.mrb[0].mxu0
  %v1790 = vadd.f32 %v1725, %v1789
  %v1791 = vpop.f32.mrb[0].mxu0
  %v1792 = vpop.f32.mrb[0].mxu0
  %v1793 = vadd.f32 %v1728, %v1792
  %v1794 = vpop.f32.mrb[0].mxu0
  %1795 = vmatprep.mubr.bf16.mxu0 %v569
  %1796 = vmatmul.mubr.bf16.gmra.mrb[0].mxu0 %v568
  %v1797 = vpop.f32.mrb[0].mxu0
  %v1798 = vadd.f32 %v1733, %v1797
  %v1799 = vpop.f32.mrb[0].mxu0
  %v1800 = vpop.f32.mrb[0].mxu0
  %v1801 = vadd.f32 %v1736, %v1800
  %v1802 = vpop.f32.mrb[0].mxu0
  %1803 = vmatprep.mubr.bf16.mxu0 %v585
  %1804 = vmatmul.mubr.bf16.gmra.mrb[0].mxu0 %v584
  %v1805 = vpop.f32.mrb[0].mxu0
  %v1806 = vadd.f32 %v1741, %v1805
  %v1807 = vpop.f32.mrb[0].mxu0
  %v1808 = vpop.f32.mrb[0].mxu0
  %v1809 = vadd.f32 %v1744, %v1808
  %v1810 = vpop.f32.mrb[0].mxu0
  %1811 = vdwg.mxu0
  %1812 = vmatprep.subr.bf16.mxu0 0
  %1813 = vmatpush1.bf16.msra.mxu0 %v1262
  %1814 = vmatprep.subr.bf16.mxu0 0
  %1815 = vmatpush1.bf16.msra.mxu0 %v1263
  %1816 = vmatprep.subr.bf16.mxu0 0
  %1817 = vmatpush1.bf16.msra.mxu0 %v1264
  %1818 = vmatprep.subr.bf16.mxu0 0
  %1819 = vmatpush1.bf16.msra.mxu0 %v1265
  %1820 = vmatprep.subr.bf16.mxu0 0
  %1821 = vmatpush1.bf16.msra.mxu0 %v1266
  %1822 = vmatprep.subr.bf16.mxu0 0
  %1823 = vmatpush1.bf16.msra.mxu0 %v1267
  %1824 = vmatprep.subr.bf16.mxu0 0
  %1825 = vmatpush1.bf16.msra.mxu0 %v1268
  %1826 = vmatprep.subr.bf16.mxu0 0
  %1827 = vmatpush1.bf16.msra.mxu0 %v1269
  %1828 = vmatprep.subr.bf16.mxu0 0
  %1829 = vmatpush1.bf16.msra.mxu0 %v1270
  %1830 = vmatprep.subr.bf16.mxu0 0
  %1831 = vmatpush1.bf16.msra.mxu0 %v1271
  %1832 = vmatprep.subr.bf16.mxu0 0
  %1833 = vmatpush1.bf16.msra.mxu0 %v1272
  %1834 = vmatprep.subr.bf16.mxu0 0
  %1835 = vmatpush1.bf16.msra.mxu0 %v1273
  %1836 = vmatprep.subr.bf16.mxu0 0
  %1837 = vmatpush1.bf16.msra.mxu0 %v1274
  %1838 = vmatprep.subr.bf16.mxu0 0
  %1839 = vmatpush1.bf16.msra.mxu0 %v1275
  %1840 = vmatprep.subr.bf16.mxu0 0
  %1841 = vmatpush1.bf16.msra.mxu0 %v1276
  %1842 = vmatprep.subr.bf16.mxu0 0
  %1843 = vmatpush1.bf16.msra.mxu0 %v1277
  %1844 = vmatprep.mubr.bf16.mxu0 %v539
  %1845 = vmatmul.mubr.bf16.gmra.mrb[0].mxu0 %v538
  %v1846 = vpop.f32.mrb[0].mxu0
  %v1847 = vadd.f32 %v1782, %v1846
  %v1848 = vpop.f32.mrb[0].mxu0
  %v1849 = vpop.f32.mrb[0].mxu0
  %v1850 = vadd.f32 %v1785, %v1849
  %v1851 = vpop.f32.mrb[0].mxu0
  %1852 = vmatprep.mubr.bf16.mxu0 %v555
  %1853 = vmatmul.mubr.bf16.gmra.mrb[0].mxu0 %v554
  %v1854 = vpop.f32.mrb[0].mxu0
  %v1855 = vadd.f32 %v1790, %v1854
  %v1856 = vpop.f32.mrb[0].mxu0
  %v1857 = vpop.f32.mrb[0].mxu0
  %v1858 = vadd.f32 %v1793, %v1857
  %v1859 = vpop.f32.mrb[0].mxu0
  %1860 = vmatprep.mubr.bf16.mxu0 %v571
  %1861 = vmatmul.mubr.bf16.gmra.mrb[0].mxu0 %v570
  %v1862 = vpop.f32.mrb[0].mxu0
  %v1863 = vadd.f32 %v1798, %v1862
  %v1864 = vpop.f32.mrb[0].mxu0
  %v1865 = vpop.f32.mrb[0].mxu0
  %v1866 = vadd.f32 %v1801, %v1865
  %v1867 = vpop.f32.mrb[0].mxu0
  %1868 = vmatprep.mubr.bf16.mxu0 %v587
  %1869 = vmatmul.mubr.bf16.gmra.mrb[0].mxu0 %v586
  %v1870 = vpop.f32.mrb[0].mxu0
  %v1871 = vadd.f32 %v1806, %v1870
  %v1872 = vpop.f32.mrb[0].mxu0
  %v1873 = vpop.f32.mrb[0].mxu0
  %v1874 = vadd.f32 %v1809, %v1873
  %v1875 = vpop.f32.mrb[0].mxu0
  %1876 = vdwg.mxu0
  %1877 = vmatprep.subr.bf16.mxu0 0
  %1878 = vmatpush1.bf16.msra.mxu0 %v1278
  %1879 = vmatprep.subr.bf16.mxu0 0
  %1880 = vmatpush1.bf16.msra.mxu0 %v1279
  %1881 = vmatprep.subr.bf16.mxu0 0
  %1882 = vmatpush1.bf16.msra.mxu0 %v1280
  %1883 = vmatprep.subr.bf16.mxu0 0
  %1884 = vmatpush1.bf16.msra.mxu0 %v1281
  %1885 = vmatprep.subr.bf16.mxu0 0
  %1886 = vmatpush1.bf16.msra.mxu0 %v1282
  %1887 = vmatprep.subr.bf16.mxu0 0
  %1888 = vmatpush1.bf16.msra.mxu0 %v1283
  %1889 = vmatprep.subr.bf16.mxu0 0
  %1890 = vmatpush1.bf16.msra.mxu0 %v1284
  %1891 = vmatprep.subr.bf16.mxu0 0
  %1892 = vmatpush1.bf16.msra.mxu0 %v1285
  %1893 = vmatprep.subr.bf16.mxu0 0
  %1894 = vmatpush1.bf16.msra.mxu0 %v1286
  %1895 = vmatprep.subr.bf16.mxu0 0
  %1896 = vmatpush1.bf16.msra.mxu0 %v1287
  %1897 = vmatprep.subr.bf16.mxu0 0
  %1898 = vmatpush1.bf16.msra.mxu0 %v1288
  %1899 = vmatprep.subr.bf16.mxu0 0
  %1900 = vmatpush1.bf16.msra.mxu0 %v1289
  %1901 = vmatprep.subr.bf16.mxu0 0
  %1902 = vmatpush1.bf16.msra.mxu0 %v1290
  %1903 = vmatprep.subr.bf16.mxu0 0
  %1904 = vmatpush1.bf16.msra.mxu0 %v1291
  %1905 = vmatprep.subr.bf16.mxu0 0
  %1906 = vmatpush1.bf16.msra.mxu0 %v1292
  %1907 = vmatprep.subr.bf16.mxu0 0
  %1908 = vmatpush1.bf16.msra.mxu0 %v1293
  %1909 = vmatprep.mubr.bf16.mxu0 %v541
  %1910 = vmatmul.mubr.bf16.gmra.mrb[0].mxu0 %v540
  %v1911 = vpop.f32.mrb[0].mxu0
  %v1912 = vadd.f32 %v1847, %v1911
  %v1913 = vpop.f32.mrb[0].mxu0
  %v1914 = vpop.f32.mrb[0].mxu0
  %v1915 = vadd.f32 %v1850, %v1914
  %v1916 = vpop.f32.mrb[0].mxu0
  %1917 = vmatprep.mubr.bf16.mxu0 %v557
  %1918 = vmatmul.mubr.bf16.gmra.mrb[0].mxu0 %v556
  %v1919 = vpop.f32.mrb[0].mxu0
  %v1920 = vadd.f32 %v1855, %v1919
  %v1921 = vpop.f32.mrb[0].mxu0
  %v1922 = vpop.f32.mrb[0].mxu0
  %v1923 = vadd.f32 %v1858, %v1922
  %v1924 = vpop.f32.mrb[0].mxu0
  %1925 = vmatprep.mubr.bf16.mxu0 %v573
  %1926 = vmatmul.mubr.bf16.gmra.mrb[0].mxu0 %v572
  %v1927 = vpop.f32.mrb[0].mxu0
  %v1928 = vadd.f32 %v1863, %v1927
  %v1929 = vpop.f32.mrb[0].mxu0
  %v1930 = vpop.f32.mrb[0].mxu0
  %v1931 = vadd.f32 %v1866, %v1930
  %v1932 = vpop.f32.mrb[0].mxu0
  %1933 = vmatprep.mubr.bf16.mxu0 %v589
  %1934 = vmatmul.mubr.bf16.gmra.mrb[0].mxu0 %v588
  %v1935 = vpop.f32.mrb[0].mxu0
  %v1936 = vadd.f32 %v1871, %v1935
  %v1937 = vpop.f32.mrb[0].mxu0
  %v1938 = vpop.f32.mrb[0].mxu0
  %v1939 = vadd.f32 %v1874, %v1938
  %v1940 = vpop.f32.mrb[0].mxu0
  %1941 = vdwg.mxu0
  %1942 = vadd.xlane.f32.xlu0 %v1912
  %v1943 = vpop.xlane.xlu0 %1942
  %1944 = vadd.xlane.f32.xlu0 %v1915
  %v1945 = vpop.xlane.xlu0 %1944
  %1946 = vadd.xlane.f32.xlu0 %v1920
  %v1947 = vpop.xlane.xlu0 %1946
  %1948 = vadd.xlane.f32.xlu0 %v1923
  %v1949 = vpop.xlane.xlu0 %1948
  %1950 = vadd.xlane.f32.xlu0 %v1928
  %v1951 = vpop.xlane.xlu0 %1950
  %1952 = vadd.xlane.f32.xlu0 %v1931
  %v1953 = vpop.xlane.xlu0 %1952
  %1954 = vadd.xlane.f32.xlu0 %v1936
  %v1955 = vpop.xlane.xlu0 %1954
  %1956 = vadd.xlane.f32.xlu0 %v1939
  %v1957 = vpop.xlane.xlu0 %1956
  %v1958 = vmul.f32 %v1912, %v1912
  %v1959 = vmul.f32 %v1915, %v1915
  %v1960 = vmul.f32 %v1920, %v1920
  %v1961 = vmul.f32 %v1923, %v1923
  %v1962 = vmul.f32 %v1928, %v1928
  %v1963 = vmul.f32 %v1931, %v1931
  %v1964 = vmul.f32 %v1936, %v1936
  %v1965 = vmul.f32 %v1939, %v1939
  %1966 = vadd.xlane.f32.xlu0 %v1958
  %v1967 = vpop.xlane.xlu0 %1966
  %1968 = vadd.xlane.f32.xlu0 %v1959
  %v1969 = vpop.xlane.xlu0 %1968
  %1970 = vadd.xlane.f32.xlu0 %v1960
  %v1971 = vpop.xlane.xlu0 %1970
  %1972 = vadd.xlane.f32.xlu0 %v1961
  %v1973 = vpop.xlane.xlu0 %1972
  %1974 = vadd.xlane.f32.xlu0 %v1962
  %v1975 = vpop.xlane.xlu0 %1974
  %1976 = vadd.xlane.f32.xlu0 %v1963
  %v1977 = vpop.xlane.xlu0 %1976
  %1978 = vadd.xlane.f32.xlu0 %v1964
  %v1979 = vpop.xlane.xlu0 %1978
  %1980 = vadd.xlane.f32.xlu0 %v1965
  %v1981 = vpop.xlane.xlu0 %1980
  %vm1982 = vcmask 7168
  %v1983 = vsel %vm1982, %v1943, %v1967
  %v1984 = vsel %vm1982, %v1945, %v1969
  %v1985 = vsel %vm1982, %v1947, %v1971
  %v1986 = vsel %vm1982, %v1949, %v1973
  %v1987 = vsel %vm1982, %v1951, %v1975
  %v1988 = vsel %vm1982, %v1953, %v1977
  %v1989 = vsel %vm1982, %v1955, %v1979
  %v1990 = vsel %vm1982, %v1957, %v1981
  %vm1991 = vcmask 15360
  %1992 = vst.msk [vmem:[%s3] sm:$0xff] %vm1991, %v1983
  %1993 = vst.msk [vmem:[%s3 + $0x8] sm:$0xff] %vm1991, %v1984
  %1994 = vst.msk [vmem:[%s3 + $0x10] sm:$0xff] %vm1991, %v1985
  %1995 = vst.msk [vmem:[%s3 + $0x18] sm:$0xff] %vm1991, %v1986
  %1996 = vst.msk [vmem:[%s3 + $0x20] sm:$0xff] %vm1991, %v1987
  %1997 = vst.msk [vmem:[%s3 + $0x28] sm:$0xff] %vm1991, %v1988
  %1998 = vst.msk [vmem:[%s3 + $0x30] sm:$0xff] %vm1991, %v1989
  %1999 = vst.msk [vmem:[%s3 + $0x38] sm:$0xff] %vm1991, %v1990
  %v2000 = vpack.c.bf16 %v1915, %v1912
  %v2001 = vpack.c.bf16 %v1923, %v1920
  %v2002 = vpack.c.bf16 %v1931, %v1928
  %v2003 = vpack.c.bf16 %v1939, %v1936
  %v2008 = vunpack.c.l.b16 %v2000
  %v2009 = vunpack.c.h.b16 %v2000
  %v2010 = vunpack.c.l.b16 %v2001
  %v2011 = vunpack.c.h.b16 %v2001
  %v2012 = vunpack.c.l.b16 %v2002
  %v2013 = vunpack.c.h.b16 %v2002
  %v2014 = vunpack.c.l.b16 %v2003
  %v2015 = vunpack.c.h.b16 %v2003
  %v2016 = vpack.c.b16 %v2008, %v2008
  %v2017 = vpack.c.b16 %v2009, %v2009
  %v2018 = vpack.c.b16 %v2010, %v2010
  %v2019 = vpack.c.b16 %v2011, %v2011
  %v2020 = vpack.c.b16 %v2012, %v2012
  %v2021 = vpack.c.b16 %v2013, %v2013
  %v2022 = vpack.c.b16 %v2014, %v2014
  %v2023 = vpack.c.b16 %v2015, %v2015
  %2032 = vst [vmem:[%s2] sm:$0xf] %v2016
  %2033 = vst [vmem:[%s2 + $0x4] sm:$0xf] %v2017
  %2034 = vst [vmem:[%s2 + $0x8] sm:$0xf] %v2018
  %2035 = vst [vmem:[%s2 + $0xc] sm:$0xf] %v2019
  %2036 = vst [vmem:[%s2 + $0x10] sm:$0xf] %v2020
  %2037 = vst [vmem:[%s2 + $0x14] sm:$0xf] %v2021
  %2038 = vst [vmem:[%s2 + $0x18] sm:$0xf] %v2022
  %2039 = vst [vmem:[%s2 + $0x1c] sm:$0xf] %v2023
  // Predicated region
  $region10: #{patch_discriminator_forward.13} parent=0 // pred_check
    _
  $region11: #{patch_discriminator_forward.13} parent=0 // pred_check_branch
    %2041 = sbr.rel (0) target = $region13
  $region12: #{patch_discriminator_forward.13} parent=0 // pred_region
    _
  $region13: #{patch_discriminator_forward.13} parent=0 // pred_fallthru
    _
  // Predicated region
  $region14: #{patch_discriminator_forward.13} parent=0 // pred_check
    _
  $region15: #{patch_discriminator_forward.13} parent=0 // pred_check_branch
    %2043 = sbr.rel (0) target = $region17
  $region16: #{patch_discriminator_forward.13} parent=0 // pred_region
    _
  $region17: #{patch_discriminator_forward.13} parent=0 // pred_fallthru
    _
  // Predicated region
  $region18: #{patch_discriminator_forward.13} parent=0 // pred_check
    _
  $region19: #{patch_discriminator_forward.13} parent=0 // pred_check_branch
    %2045 = sbr.rel (0) target = $region21
  $region20: #{patch_discriminator_forward.13} parent=0 // pred_region
    _
  $region21: #{patch_discriminator_forward.13} parent=0 // pred_fallthru
    _
  // Predicated region
  $region22: #{patch_discriminator_forward.13} parent=0 // pred_check
    _
  $region23: #{patch_discriminator_forward.13} parent=0 // pred_check_branch
    %2047 = sbr.rel (0) target = $region25
  $region24: #{patch_discriminator_forward.13} parent=0 // pred_region
    _
  $region25: #{patch_discriminator_forward.13} parent=0 // pred_fallthru
    _

// kernel: patch_discriminator_forward.15
$region0: #{patch_discriminator_forward.15}
  #allocation0 [shape = 'u32[]', space=smem, size = 0x4, offset = 0x4, fixed_abs, tag = 'smem constant byte address 0x4 - core index']
  #allocation1 [shape = 'u32[144,128]{1,0:T(1,128)}', space=vmem, size = 0x12000, scoped, tag = 'internal scratch']
  %s0 = inlined_call_operand.vmem [shape: bf16[8,4096], index: 0, kind: input, shape index: {}]
  %s1 = inlined_call_operand.vmem [shape: bf16[4096,128], index: 1, kind: input, shape index: {}]
  %s2 = inlined_call_operand.vmem [shape: f32[8,1], index: 2, kind: input, shape index: {}]
  %s3 = inlined_call_operand.vmem [shape: f32[8,128], index: 3, kind: output, shape index: {}]
  %s4 = sld [smem:[#allocation0]]
  $region22: #{patch_discriminator_forward.15} parent=0
    _
  %s6 = ssub.s32 1, %s4
  %s7 = scalar_select 0, %s6, %s4
  // Predicated region
  $region2: #{patch_discriminator_forward.15} parent=0 // pred_check
    _
  $region3: #{patch_discriminator_forward.15} parent=0 // pred_check_branch
    %9 = sbr.rel (0) target = $region5
  $region4: #{patch_discriminator_forward.15} parent=0 // pred_region
    _
  $region5: #{patch_discriminator_forward.15} parent=0 // pred_fallthru
    _
  // Predicated region
  $region6: #{patch_discriminator_forward.15} parent=0 // pred_check
    _
  $region7: #{patch_discriminator_forward.15} parent=0 // pred_check_branch
    %11 = sbr.rel (0) target = $region9
  $region8: #{patch_discriminator_forward.15} parent=0 // pred_region
    _
  $region9: #{patch_discriminator_forward.15} parent=0 // pred_fallthru
    _
  // Predicated region
  $region10: #{patch_discriminator_forward.15} parent=0 // pred_check
    _
  $region11: #{patch_discriminator_forward.15} parent=0 // pred_check_branch
    %13 = sbr.rel (0) target = $region13
  $region12: #{patch_discriminator_forward.15} parent=0 // pred_region
    _
  $region13: #{patch_discriminator_forward.15} parent=0 // pred_fallthru
    _
  %v15 = vld [vmem:[%s0] sm:$0xff]
  %v16 = vld [vmem:[%s0 + $0x8] sm:$0xff]
  %v17 = vld [vmem:[%s0 + $0x10] sm:$0xff]
  %v18 = vld [vmem:[%s0 + $0x18] sm:$0xff]
  %v19 = vld [vmem:[%s0 + $0x20] sm:$0xff]
  %v20 = vld [vmem:[%s0 + $0x28] sm:$0xff]
  %v21 = vld [vmem:[%s0 + $0x30] sm:$0xff]
  %v22 = vld [vmem:[%s0 + $0x38] sm:$0xff]
  %v23 = vld [vmem:[%s0 + $0x40] sm:$0xff]
  %v24 = vld [vmem:[%s0 + $0x48] sm:$0xff]
  %v25 = vld [vmem:[%s0 + $0x50] sm:$0xff]
  %v26 = vld [vmem:[%s0 + $0x58] sm:$0xff]
  %v27 = vld [vmem:[%s0 + $0x60] sm:$0xff]
  %v28 = vld [vmem:[%s0 + $0x68] sm:$0xff]
  %v29 = vld [vmem:[%s0 + $0x70] sm:$0xff]
  %v30 = vld [vmem:[%s0 + $0x78] sm:$0xff]
  %v31 = vld [vmem:[%s1] sm:$0xf]
  %v32 = vld [vmem:[%s1 + $0x4] sm:$0xf]
  %v33 = vld [vmem:[%s1 + $0x8] sm:$0xf]
  %v34 = vld [vmem:[%s1 + $0xc] sm:$0xf]
  %v35 = vld [vmem:[%s1 + $0x10] sm:$0xf]
  %v36 = vld [vmem:[%s1 + $0x14] sm:$0xf]
  %v37 = vld [vmem:[%s1 + $0x18] sm:$0xf]
  %v38 = vld [vmem:[%s1 + $0x1c] sm:$0xf]
  %v39 = vld [vmem:[%s1 + $0x20] sm:$0xf]
  %v40 = vld [vmem:[%s1 + $0x24] sm:$0xf]
  %v41 = vld [vmem:[%s1 + $0x28] sm:$0xf]
  %v42 = vld [vmem:[%s1 + $0x2c] sm:$0xf]
  %v43 = vld [vmem:[%s1 + $0x30] sm:$0xf]
  %v44 = vld [vmem:[%s1 + $0x34] sm:$0xf]
  %v45 = vld [vmem:[%s1 + $0x38] sm:$0xf]
  %v46 = vld [vmem:[%s1 + $0x3c] sm:$0xf]
  %v47 = vld [vmem:[%s1 + $0x40] sm:$0xf]
  %v48 = vld [vmem:[%s1 + $0x44] sm:$0xf]
  %v49 = vld [vmem:[%s1 + $0x48] sm:$0xf]
  %v50 = vld [vmem:[%s1 + $0x4c] sm:$0xf]
  %v51 = vld [vmem:[%s1 + $0x50] sm:$0xf]
  %v52 = vld [vmem:[%s1 + $0x54] sm:$0xf]
  %v53 = vld [vmem:[%s1 + $0x58] sm:$0xf]
  %v54 = vld [vmem:[%s1 + $0x5c] sm:$0xf]
  %v55 = vld [vmem:[%s1 + $0x60] sm:$0xf]
  %v56 = vld [vmem:[%s1 + $0x64] sm:$0xf]
  %v57 = vld [vmem:[%s1 + $0x68] sm:$0xf]
  %v58 = vld [vmem:[%s1 + $0x6c] sm:$0xf]
  %v59 = vld [vmem:[%s1 + $0x70] sm:$0xf]
  %v60 = vld [vmem:[%s1 + $0x74] sm:$0xf]
  %v61 = vld [vmem:[%s1 + $0x78] sm:$0xf]
  %v62 = vld [vmem:[%s1 + $0x7c] sm:$0xf]
  %v63 = vld [vmem:[%s1 + $0x80] sm:$0xf]
  %v64 = vld [vmem:[%s1 + $0x84] sm:$0xf]
  %v65 = vld [vmem:[%s1 + $0x88] sm:$0xf]
  %v66 = vld [vmem:[%s1 + $0x8c] sm:$0xf]
  %v67 = vld [vmem:[%s1 + $0x90] sm:$0xf]
  %v68 = vld [vmem:[%s1 + $0x94] sm:$0xf]
  %v69 = vld [vmem:[%s1 + $0x98] sm:$0xf]
  %v70 = vld [vmem:[%s1 + $0x9c] sm:$0xf]
  %v71 = vld [vmem:[%s1 + $0xa0] sm:$0xf]
  %v72 = vld [vmem:[%s1 + $0xa4] sm:$0xf]
  %v73 = vld [vmem:[%s1 + $0xa8] sm:$0xf]
  %v74 = vld [vmem:[%s1 + $0xac] sm:$0xf]
  %v75 = vld [vmem:[%s1 + $0xb0] sm:$0xf]
  %v76 = vld [vmem:[%s1 + $0xb4] sm:$0xf]
  %v77 = vld [vmem:[%s1 + $0xb8] sm:$0xf]
  %v78 = vld [vmem:[%s1 + $0xbc] sm:$0xf]
  %v79 = vld [vmem:[%s1 + $0xc0] sm:$0xf]
  %v80 = vld [vmem:[%s1 + $0xc4] sm:$0xf]
  %v81 = vld [vmem:[%s1 + $0xc8] sm:$0xf]
  %v82 = vld [vmem:[%s1 + $0xcc] sm:$0xf]
  %v83 = vld [vmem:[%s1 + $0xd0] sm:$0xf]
  %v84 = vld [vmem:[%s1 + $0xd4] sm:$0xf]
  %v85 = vld [vmem:[%s1 + $0xd8] sm:$0xf]
  %v86 = vld [vmem:[%s1 + $0xdc] sm:$0xf]
  %v87 = vld [vmem:[%s1 + $0xe0] sm:$0xf]
  %v88 = vld [vmem:[%s1 + $0xe4] sm:$0xf]
  %v89 = vld [vmem:[%s1 + $0xe8] sm:$0xf]
  %v90 = vld [vmem:[%s1 + $0xec] sm:$0xf]
  %v91 = vld [vmem:[%s1 + $0xf0] sm:$0xf]
  %v92 = vld [vmem:[%s1 + $0xf4] sm:$0xf]
  %v93 = vld [vmem:[%s1 + $0xf8] sm:$0xf]
  %v94 = vld [vmem:[%s1 + $0xfc] sm:$0xf]
  %v95 = vld [vmem:[%s1 + $0x100] sm:$0xf]
  %v96 = vld [vmem:[%s1 + $0x104] sm:$0xf]
  %v97 = vld [vmem:[%s1 + $0x108] sm:$0xf]
  %v98 = vld [vmem:[%s1 + $0x10c] sm:$0xf]
  %v99 = vld [vmem:[%s1 + $0x110] sm:$0xf]
  %v100 = vld [vmem:[%s1 + $0x114] sm:$0xf]
  %v101 = vld [vmem:[%s1 + $0x118] sm:$0xf]
  %v102 = vld [vmem:[%s1 + $0x11c] sm:$0xf]
  %v103 = vld [vmem:[%s1 + $0x120] sm:$0xf]
  %v104 = vld [vmem:[%s1 + $0x124] sm:$0xf]
  %v105 = vld [vmem:[%s1 + $0x128] sm:$0xf]
  %v106 = vld [vmem:[%s1 + $0x12c] sm:$0xf]
  %v107 = vld [vmem:[%s1 + $0x130] sm:$0xf]
  %v108 = vld [vmem:[%s1 + $0x134] sm:$0xf]
  %v109 = vld [vmem:[%s1 + $0x138] sm:$0xf]
  %v110 = vld [vmem:[%s1 + $0x13c] sm:$0xf]
  %v111 = vld [vmem:[%s1 + $0x140] sm:$0xf]
  %v112 = vld [vmem:[%s1 + $0x144] sm:$0xf]
  %v113 = vld [vmem:[%s1 + $0x148] sm:$0xf]
  %v114 = vld [vmem:[%s1 + $0x14c] sm:$0xf]
  %v115 = vld [vmem:[%s1 + $0x150] sm:$0xf]
  %v116 = vld [vmem:[%s1 + $0x154] sm:$0xf]
  %v117 = vld [vmem:[%s1 + $0x158] sm:$0xf]
  %v118 = vld [vmem:[%s1 + $0x15c] sm:$0xf]
  %v119 = vld [vmem:[%s1 + $0x160] sm:$0xf]
  %v120 = vld [vmem:[%s1 + $0x164] sm:$0xf]
  %v121 = vld [vmem:[%s1 + $0x168] sm:$0xf]
  %v122 = vld [vmem:[%s1 + $0x16c] sm:$0xf]
  %v123 = vld [vmem:[%s1 + $0x170] sm:$0xf]
  %v124 = vld [vmem:[%s1 + $0x174] sm:$0xf]
  %v125 = vld [vmem:[%s1 + $0x178] sm:$0xf]
  %v126 = vld [vmem:[%s1 + $0x17c] sm:$0xf]
  %v127 = vld [vmem:[%s1 + $0x180] sm:$0xf]
  %v128 = vld [vmem:[%s1 + $0x184] sm:$0xf]
  %v129 = vld [vmem:[%s1 + $0x188] sm:$0xf]
  %v130 = vld [vmem:[%s1 + $0x18c] sm:$0xf]
  %v131 = vld [vmem:[%s1 + $0x190] sm:$0xf]
  %v132 = vld [vmem:[%s1 + $0x194] sm:$0xf]
  %v133 = vld [vmem:[%s1 + $0x198] sm:$0xf]
  %v134 = vld [vmem:[%s1 + $0x19c] sm:$0xf]
  %v135 = vld [vmem:[%s1 + $0x1a0] sm:$0xf]
  %v136 = vld [vmem:[%s1 + $0x1a4] sm:$0xf]
  %v137 = vld [vmem:[%s1 + $0x1a8] sm:$0xf]
  %v138 = vld [vmem:[%s1 + $0x1ac] sm:$0xf]
  %v139 = vld [vmem:[%s1 + $0x1b0] sm:$0xf]
  %v140 = vld [vmem:[%s1 + $0x1b4] sm:$0xf]
  %v141 = vld [vmem:[%s1 + $0x1b8] sm:$0xf]
  %v142 = vld [vmem:[%s1 + $0x1bc] sm:$0xf]
  %v143 = vld [vmem:[%s1 + $0x1c0] sm:$0xf]
  %v144 = vld [vmem:[%s1 + $0x1c4] sm:$0xf]
  %v145 = vld [vmem:[%s1 + $0x1c8] sm:$0xf]
  %v146 = vld [vmem:[%s1 + $0x1cc] sm:$0xf]
  %v147 = vld [vmem:[%s1 + $0x1d0] sm:$0xf]
  %v148 = vld [vmem:[%s1 + $0x1d4] sm:$0xf]
  %v149 = vld [vmem:[%s1 + $0x1d8] sm:$0xf]
  %v150 = vld [vmem:[%s1 + $0x1dc] sm:$0xf]
  %v151 = vld [vmem:[%s1 + $0x1e0] sm:$0xf]
  %v152 = vld [vmem:[%s1 + $0x1e4] sm:$0xf]
  %v153 = vld [vmem:[%s1 + $0x1e8] sm:$0xf]
  %v154 = vld [vmem:[%s1 + $0x1ec] sm:$0xf]
  %v155 = vld [vmem:[%s1 + $0x1f0] sm:$0xf]
  %v156 = vld [vmem:[%s1 + $0x1f4] sm:$0xf]
  %v157 = vld [vmem:[%s1 + $0x1f8] sm:$0xf]
  %v158 = vld [vmem:[%s1 + $0x1fc] sm:$0xf]
  %v159 = vld [vmem:[%s1 + $0x200] sm:$0xf]
  %v160 = vld [vmem:[%s1 + $0x204] sm:$0xf]
  %v161 = vld [vmem:[%s1 + $0x208] sm:$0xf]
  %v162 = vld [vmem:[%s1 + $0x20c] sm:$0xf]
  %v163 = vld [vmem:[%s1 + $0x210] sm:$0xf]
  %v164 = vld [vmem:[%s1 + $0x214] sm:$0xf]
  %v165 = vld [vmem:[%s1 + $0x218] sm:$0xf]
  %v166 = vld [vmem:[%s1 + $0x21c] sm:$0xf]
  %v167 = vld [vmem:[%s1 + $0x220] sm:$0xf]
  %v168 = vld [vmem:[%s1 + $0x224] sm:$0xf]
  %v169 = vld [vmem:[%s1 + $0x228] sm:$0xf]
  %v170 = vld [vmem:[%s1 + $0x22c] sm:$0xf]
  %v171 = vld [vmem:[%s1 + $0x230] sm:$0xf]
  %v172 = vld [vmem:[%s1 + $0x234] sm:$0xf]
  %v173 = vld [vmem:[%s1 + $0x238] sm:$0xf]
  %v174 = vld [vmem:[%s1 + $0x23c] sm:$0xf]
  %v175 = vld [vmem:[%s1 + $0x240] sm:$0xf]
  %v176 = vld [vmem:[%s1 + $0x244] sm:$0xf]
  %v177 = vld [vmem:[%s1 + $0x248] sm:$0xf]
  %v178 = vld [vmem:[%s1 + $0x24c] sm:$0xf]
  %v179 = vld [vmem:[%s1 + $0x250] sm:$0xf]
  %v180 = vld [vmem:[%s1 + $0x254] sm:$0xf]
  %v181 = vld [vmem:[%s1 + $0x258] sm:$0xf]
  %v182 = vld [vmem:[%s1 + $0x25c] sm:$0xf]
  %v183 = vld [vmem:[%s1 + $0x260] sm:$0xf]
  %v184 = vld [vmem:[%s1 + $0x264] sm:$0xf]
  %v185 = vld [vmem:[%s1 + $0x268] sm:$0xf]
  %v186 = vld [vmem:[%s1 + $0x26c] sm:$0xf]
  %v187 = vld [vmem:[%s1 + $0x270] sm:$0xf]
  %v188 = vld [vmem:[%s1 + $0x274] sm:$0xf]
  %v189 = vld [vmem:[%s1 + $0x278] sm:$0xf]
  %v190 = vld [vmem:[%s1 + $0x27c] sm:$0xf]
  %v191 = vld [vmem:[%s1 + $0x280] sm:$0xf]
  %v192 = vld [vmem:[%s1 + $0x284] sm:$0xf]
  %v193 = vld [vmem:[%s1 + $0x288] sm:$0xf]
  %v194 = vld [vmem:[%s1 + $0x28c] sm:$0xf]
  %v195 = vld [vmem:[%s1 + $0x290] sm:$0xf]
  %v196 = vld [vmem:[%s1 + $0x294] sm:$0xf]
  %v197 = vld [vmem:[%s1 + $0x298] sm:$0xf]
  %v198 = vld [vmem:[%s1 + $0x29c] sm:$0xf]
  %v199 = vld [vmem:[%s1 + $0x2a0] sm:$0xf]
  %v200 = vld [vmem:[%s1 + $0x2a4] sm:$0xf]
  %v201 = vld [vmem:[%s1 + $0x2a8] sm:$0xf]
  %v202 = vld [vmem:[%s1 + $0x2ac] sm:$0xf]
  %v203 = vld [vmem:[%s1 + $0x2b0] sm:$0xf]
  %v204 = vld [vmem:[%s1 + $0x2b4] sm:$0xf]
  %v205 = vld [vmem:[%s1 + $0x2b8] sm:$0xf]
  %v206 = vld [vmem:[%s1 + $0x2bc] sm:$0xf]
  %v207 = vld [vmem:[%s1 + $0x2c0] sm:$0xf]
  %v208 = vld [vmem:[%s1 + $0x2c4] sm:$0xf]
  %v209 = vld [vmem:[%s1 + $0x2c8] sm:$0xf]
  %v210 = vld [vmem:[%s1 + $0x2cc] sm:$0xf]
  %v211 = vld [vmem:[%s1 + $0x2d0] sm:$0xf]
  %v212 = vld [vmem:[%s1 + $0x2d4] sm:$0xf]
  %v213 = vld [vmem:[%s1 + $0x2d8] sm:$0xf]
  %v214 = vld [vmem:[%s1 + $0x2dc] sm:$0xf]
  %v215 = vld [vmem:[%s1 + $0x2e0] sm:$0xf]
  %v216 = vld [vmem:[%s1 + $0x2e4] sm:$0xf]
  %v217 = vld [vmem:[%s1 + $0x2e8] sm:$0xf]
  %v218 = vld [vmem:[%s1 + $0x2ec] sm:$0xf]
  %v219 = vld [vmem:[%s1 + $0x2f0] sm:$0xf]
  %v220 = vld [vmem:[%s1 + $0x2f4] sm:$0xf]
  %v221 = vld [vmem:[%s1 + $0x2f8] sm:$0xf]
  %v222 = vld [vmem:[%s1 + $0x2fc] sm:$0xf]
  %v223 = vld [vmem:[%s1 + $0x300] sm:$0xf]
  %v224 = vld [vmem:[%s1 + $0x304] sm:$0xf]
  %v225 = vld [vmem:[%s1 + $0x308] sm:$0xf]
  %v226 = vld [vmem:[%s1 + $0x30c] sm:$0xf]
  %v227 = vld [vmem:[%s1 + $0x310] sm:$0xf]
  %v228 = vld [vmem:[%s1 + $0x314] sm:$0xf]
  %v229 = vld [vmem:[%s1 + $0x318] sm:$0xf]
  %v230 = vld [vmem:[%s1 + $0x31c] sm:$0xf]
  %v231 = vld [vmem:[%s1 + $0x320] sm:$0xf]
  %v232 = vld [vmem:[%s1 + $0x324] sm:$0xf]
  %v233 = vld [vmem:[%s1 + $0x328] sm:$0xf]
  %v234 = vld [vmem:[%s1 + $0x32c] sm:$0xf]
  %v235 = vld [vmem:[%s1 + $0x330] sm:$0xf]
  %v236 = vld [vmem:[%s1 + $0x334] sm:$0xf]
  %v237 = vld [vmem:[%s1 + $0x338] sm:$0xf]
  %v238 = vld [vmem:[%s1 + $0x33c] sm:$0xf]
  %v239 = vld [vmem:[%s1 + $0x340] sm:$0xf]
  %v240 = vld [vmem:[%s1 + $0x344] sm:$0xf]
  %v241 = vld [vmem:[%s1 + $0x348] sm:$0xf]
  %v242 = vld [vmem:[%s1 + $0x34c] sm:$0xf]
  %v243 = vld [vmem:[%s1 + $0x350] sm:$0xf]
  %v244 = vld [vmem:[%s1 + $0x354] sm:$0xf]
  %v245 = vld [vmem:[%s1 + $0x358] sm:$0xf]
  %v246 = vld [vmem:[%s1 + $0x35c] sm:$0xf]
  %v247 = vld [vmem:[%s1 + $0x360] sm:$0xf]
  %v248 = vld [vmem:[%s1 + $0x364] sm:$0xf]
  %v249 = vld [vmem:[%s1 + $0x368] sm:$0xf]
  %v250 = vld [vmem:[%s1 + $0x36c] sm:$0xf]
  %v251 = vld [vmem:[%s1 + $0x370] sm:$0xf]
  %v252 = vld [vmem:[%s1 + $0x374] sm:$0xf]
  %v253 = vld [vmem:[%s1 + $0x378] sm:$0xf]
  %v254 = vld [vmem:[%s1 + $0x37c] sm:$0xf]
  %v255 = vld [vmem:[%s1 + $0x380] sm:$0xf]
  %v256 = vld [vmem:[%s1 + $0x384] sm:$0xf]
  %v257 = vld [vmem:[%s1 + $0x388] sm:$0xf]
  %v258 = vld [vmem:[%s1 + $0x38c] sm:$0xf]
  %v259 = vld [vmem:[%s1 + $0x390] sm:$0xf]
  %v260 = vld [vmem:[%s1 + $0x394] sm:$0xf]
  %v261 = vld [vmem:[%s1 + $0x398] sm:$0xf]
  %v262 = vld [vmem:[%s1 + $0x39c] sm:$0xf]
  %v263 = vld [vmem:[%s1 + $0x3a0] sm:$0xf]
  %v264 = vld [vmem:[%s1 + $0x3a4] sm:$0xf]
  %v265 = vld [vmem:[%s1 + $0x3a8] sm:$0xf]
  %v266 = vld [vmem:[%s1 + $0x3ac] sm:$0xf]
  %v267 = vld [vmem:[%s1 + $0x3b0] sm:$0xf]
  %v268 = vld [vmem:[%s1 + $0x3b4] sm:$0xf]
  %v269 = vld [vmem:[%s1 + $0x3b8] sm:$0xf]
  %v270 = vld [vmem:[%s1 + $0x3bc] sm:$0xf]
  %v271 = vld [vmem:[%s1 + $0x3c0] sm:$0xf]
  %v272 = vld [vmem:[%s1 + $0x3c4] sm:$0xf]
  %v273 = vld [vmem:[%s1 + $0x3c8] sm:$0xf]
  %v274 = vld [vmem:[%s1 + $0x3cc] sm:$0xf]
  %v275 = vld [vmem:[%s1 + $0x3d0] sm:$0xf]
  %v276 = vld [vmem:[%s1 + $0x3d4] sm:$0xf]
  %v277 = vld [vmem:[%s1 + $0x3d8] sm:$0xf]
  %v278 = vld [vmem:[%s1 + $0x3dc] sm:$0xf]
  %v279 = vld [vmem:[%s1 + $0x3e0] sm:$0xf]
  %v280 = vld [vmem:[%s1 + $0x3e4] sm:$0xf]
  %v281 = vld [vmem:[%s1 + $0x3e8] sm:$0xf]
  %v282 = vld [vmem:[%s1 + $0x3ec] sm:$0xf]
  %v283 = vld [vmem:[%s1 + $0x3f0] sm:$0xf]
  %v284 = vld [vmem:[%s1 + $0x3f4] sm:$0xf]
  %v285 = vld [vmem:[%s1 + $0x3f8] sm:$0xf]
  %v286 = vld [vmem:[%s1 + $0x3fc] sm:$0xf]
  %v287 = vld [vmem:[%s1 + $0x400] sm:$0xf]
  %v288 = vld [vmem:[%s1 + $0x404] sm:$0xf]
  %v289 = vld [vmem:[%s1 + $0x408] sm:$0xf]
  %v290 = vld [vmem:[%s1 + $0x40c] sm:$0xf]
  %v291 = vld [vmem:[%s1 + $0x410] sm:$0xf]
  %v292 = vld [vmem:[%s1 + $0x414] sm:$0xf]
  %v293 = vld [vmem:[%s1 + $0x418] sm:$0xf]
  %v294 = vld [vmem:[%s1 + $0x41c] sm:$0xf]
  %v295 = vld [vmem:[%s1 + $0x420] sm:$0xf]
  %v296 = vld [vmem:[%s1 + $0x424] sm:$0xf]
  %v297 = vld [vmem:[%s1 + $0x428] sm:$0xf]
  %v298 = vld [vmem:[%s1 + $0x42c] sm:$0xf]
  %v299 = vld [vmem:[%s1 + $0x430] sm:$0xf]
  %v300 = vld [vmem:[%s1 + $0x434] sm:$0xf]
  %v301 = vld [vmem:[%s1 + $0x438] sm:$0xf]
  %v302 = vld [vmem:[%s1 + $0x43c] sm:$0xf]
  %v303 = vld [vmem:[%s1 + $0x440] sm:$0xf]
  %v304 = vld [vmem:[%s1 + $0x444] sm:$0xf]
  %v305 = vld [vmem:[%s1 + $0x448] sm:$0xf]
  %v306 = vld [vmem:[%s1 + $0x44c] sm:$0xf]
  %v307 = vld [vmem:[%s1 + $0x450] sm:$0xf]
  %v308 = vld [vmem:[%s1 + $0x454] sm:$0xf]
  %v309 = vld [vmem:[%s1 + $0x458] sm:$0xf]
  %v310 = vld [vmem:[%s1 + $0x45c] sm:$0xf]
  %v311 = vld [vmem:[%s1 + $0x460] sm:$0xf]
  %v312 = vld [vmem:[%s1 + $0x464] sm:$0xf]
  %v313 = vld [vmem:[%s1 + $0x468] sm:$0xf]
  %v314 = vld [vmem:[%s1 + $0x46c] sm:$0xf]
  %v315 = vld [vmem:[%s1 + $0x470] sm:$0xf]
  %v316 = vld [vmem:[%s1 + $0x474] sm:$0xf]
  %v317 = vld [vmem:[%s1 + $0x478] sm:$0xf]
  %v318 = vld [vmem:[%s1 + $0x47c] sm:$0xf]
  %v319 = vld [vmem:[%s1 + $0x480] sm:$0xf]
  %v320 = vld [vmem:[%s1 + $0x484] sm:$0xf]
  %v321 = vld [vmem:[%s1 + $0x488] sm:$0xf]
  %v322 = vld [vmem:[%s1 + $0x48c] sm:$0xf]
  %v323 = vld [vmem:[%s1 + $0x490] sm:$0xf]
  %v324 = vld [vmem:[%s1 + $0x494] sm:$0xf]
  %v325 = vld [vmem:[%s1 + $0x498] sm:$0xf]
  %v326 = vld [vmem:[%s1 + $0x49c] sm:$0xf]
  %v327 = vld [vmem:[%s1 + $0x4a0] sm:$0xf]
  %v328 = vld [vmem:[%s1 + $0x4a4] sm:$0xf]
  %v329 = vld [vmem:[%s1 + $0x4a8] sm:$0xf]
  %v330 = vld [vmem:[%s1 + $0x4ac] sm:$0xf]
  %v331 = vld [vmem:[%s1 + $0x4b0] sm:$0xf]
  %v332 = vld [vmem:[%s1 + $0x4b4] sm:$0xf]
  %v333 = vld [vmem:[%s1 + $0x4b8] sm:$0xf]
  %v334 = vld [vmem:[%s1 + $0x4bc] sm:$0xf]
  %v335 = vld [vmem:[%s1 + $0x4c0] sm:$0xf]
  %v336 = vld [vmem:[%s1 + $0x4c4] sm:$0xf]
  %v337 = vld [vmem:[%s1 + $0x4c8] sm:$0xf]
  %v338 = vld [vmem:[%s1 + $0x4cc] sm:$0xf]
  %v339 = vld [vmem:[%s1 + $0x4d0] sm:$0xf]
  %v340 = vld [vmem:[%s1 + $0x4d4] sm:$0xf]
  %v341 = vld [vmem:[%s1 + $0x4d8] sm:$0xf]
  %v342 = vld [vmem:[%s1 + $0x4dc] sm:$0xf]
  %v343 = vld [vmem:[%s1 + $0x4e0] sm:$0xf]
  %v344 = vld [vmem:[%s1 + $0x4e4] sm:$0xf]
  %v345 = vld [vmem:[%s1 + $0x4e8] sm:$0xf]
  %v346 = vld [vmem:[%s1 + $0x4ec] sm:$0xf]
  %v347 = vld [vmem:[%s1 + $0x4f0] sm:$0xf]
  %v348 = vld [vmem:[%s1 + $0x4f4] sm:$0xf]
  %v349 = vld [vmem:[%s1 + $0x4f8] sm:$0xf]
  %v350 = vld [vmem:[%s1 + $0x4fc] sm:$0xf]
  %v351 = vld [vmem:[%s1 + $0x500] sm:$0xf]
  %v352 = vld [vmem:[%s1 + $0x504] sm:$0xf]
  %v353 = vld [vmem:[%s1 + $0x508] sm:$0xf]
  %v354 = vld [vmem:[%s1 + $0x50c] sm:$0xf]
  %v355 = vld [vmem:[%s1 + $0x510] sm:$0xf]
  %v356 = vld [vmem:[%s1 + $0x514] sm:$0xf]
  %v357 = vld [vmem:[%s1 + $0x518] sm:$0xf]
  %v358 = vld [vmem:[%s1 + $0x51c] sm:$0xf]
  %v359 = vld [vmem:[%s1 + $0x520] sm:$0xf]
  %v360 = vld [vmem:[%s1 + $0x524] sm:$0xf]
  %v361 = vld [vmem:[%s1 + $0x528] sm:$0xf]
  %v362 = vld [vmem:[%s1 + $0x52c] sm:$0xf]
  %v363 = vld [vmem:[%s1 + $0x530] sm:$0xf]
  %v364 = vld [vmem:[%s1 + $0x534] sm:$0xf]
  %v365 = vld [vmem:[%s1 + $0x538] sm:$0xf]
  %v366 = vld [vmem:[%s1 + $0x53c] sm:$0xf]
  %v367 = vld [vmem:[%s1 + $0x540] sm:$0xf]
  %v368 = vld [vmem:[%s1 + $0x544] sm:$0xf]
  %v369 = vld [vmem:[%s1 + $0x548] sm:$0xf]
  %v370 = vld [vmem:[%s1 + $0x54c] sm:$0xf]
  %v371 = vld [vmem:[%s1 + $0x550] sm:$0xf]
  %v372 = vld [vmem:[%s1 + $0x554] sm:$0xf]
  %v373 = vld [vmem:[%s1 + $0x558] sm:$0xf]
  %v374 = vld [vmem:[%s1 + $0x55c] sm:$0xf]
  %v375 = vld [vmem:[%s1 + $0x560] sm:$0xf]
  %v376 = vld [vmem:[%s1 + $0x564] sm:$0xf]
  %v377 = vld [vmem:[%s1 + $0x568] sm:$0xf]
  %v378 = vld [vmem:[%s1 + $0x56c] sm:$0xf]
  %v379 = vld [vmem:[%s1 + $0x570] sm:$0xf]
  %v380 = vld [vmem:[%s1 + $0x574] sm:$0xf]
  %v381 = vld [vmem:[%s1 + $0x578] sm:$0xf]
  %v382 = vld [vmem:[%s1 + $0x57c] sm:$0xf]
  %v383 = vld [vmem:[%s1 + $0x580] sm:$0xf]
  %v384 = vld [vmem:[%s1 + $0x584] sm:$0xf]
  %v385 = vld [vmem:[%s1 + $0x588] sm:$0xf]
  %v386 = vld [vmem:[%s1 + $0x58c] sm:$0xf]
  %v387 = vld [vmem:[%s1 + $0x590] sm:$0xf]
  %v388 = vld [vmem:[%s1 + $0x594] sm:$0xf]
  %v389 = vld [vmem:[%s1 + $0x598] sm:$0xf]
  %v390 = vld [vmem:[%s1 + $0x59c] sm:$0xf]
  %v391 = vld [vmem:[%s1 + $0x5a0] sm:$0xf]
  %v392 = vld [vmem:[%s1 + $0x5a4] sm:$0xf]
  %v393 = vld [vmem:[%s1 + $0x5a8] sm:$0xf]
  %v394 = vld [vmem:[%s1 + $0x5ac] sm:$0xf]
  %v395 = vld [vmem:[%s1 + $0x5b0] sm:$0xf]
  %v396 = vld [vmem:[%s1 + $0x5b4] sm:$0xf]
  %v397 = vld [vmem:[%s1 + $0x5b8] sm:$0xf]
  %v398 = vld [vmem:[%s1 + $0x5bc] sm:$0xf]
  %v399 = vld [vmem:[%s1 + $0x5c0] sm:$0xf]
  %v400 = vld [vmem:[%s1 + $0x5c4] sm:$0xf]
  %v401 = vld [vmem:[%s1 + $0x5c8] sm:$0xf]
  %v402 = vld [vmem:[%s1 + $0x5cc] sm:$0xf]
  %v403 = vld [vmem:[%s1 + $0x5d0] sm:$0xf]
  %v404 = vld [vmem:[%s1 + $0x5d4] sm:$0xf]
  %v405 = vld [vmem:[%s1 + $0x5d8] sm:$0xf]
  %v406 = vld [vmem:[%s1 + $0x5dc] sm:$0xf]
  %v407 = vld [vmem:[%s1 + $0x5e0] sm:$0xf]
  %v408 = vld [vmem:[%s1 + $0x5e4] sm:$0xf]
  %v409 = vld [vmem:[%s1 + $0x5e8] sm:$0xf]
  %v410 = vld [vmem:[%s1 + $0x5ec] sm:$0xf]
  %v411 = vld [vmem:[%s1 + $0x5f0] sm:$0xf]
  %v412 = vld [vmem:[%s1 + $0x5f4] sm:$0xf]
  %v413 = vld [vmem:[%s1 + $0x5f8] sm:$0xf]
  %v414 = vld [vmem:[%s1 + $0x5fc] sm:$0xf]
  %v415 = vld [vmem:[%s1 + $0x600] sm:$0xf]
  %v416 = vld [vmem:[%s1 + $0x604] sm:$0xf]
  %v417 = vld [vmem:[%s1 + $0x608] sm:$0xf]
  %v418 = vld [vmem:[%s1 + $0x60c] sm:$0xf]
  %v419 = vld [vmem:[%s1 + $0x610] sm:$0xf]
  %v420 = vld [vmem:[%s1 + $0x614] sm:$0xf]
  %v421 = vld [vmem:[%s1 + $0x618] sm:$0xf]
  %v422 = vld [vmem:[%s1 + $0x61c] sm:$0xf]
  %v423 = vld [vmem:[%s1 + $0x620] sm:$0xf]
  %v424 = vld [vmem:[%s1 + $0x624] sm:$0xf]
  %v425 = vld [vmem:[%s1 + $0x628] sm:$0xf]
  %v426 = vld [vmem:[%s1 + $0x62c] sm:$0xf]
  %v427 = vld [vmem:[%s1 + $0x630] sm:$0xf]
  %v428 = vld [vmem:[%s1 + $0x634] sm:$0xf]
  %v429 = vld [vmem:[%s1 + $0x638] sm:$0xf]
  %v430 = vld [vmem:[%s1 + $0x63c] sm:$0xf]
  %v431 = vld [vmem:[%s1 + $0x640] sm:$0xf]
  %v432 = vld [vmem:[%s1 + $0x644] sm:$0xf]
  %v433 = vld [vmem:[%s1 + $0x648] sm:$0xf]
  %v434 = vld [vmem:[%s1 + $0x64c] sm:$0xf]
  %v435 = vld [vmem:[%s1 + $0x650] sm:$0xf]
  %v436 = vld [vmem:[%s1 + $0x654] sm:$0xf]
  %v437 = vld [vmem:[%s1 + $0x658] sm:$0xf]
  %v438 = vld [vmem:[%s1 + $0x65c] sm:$0xf]
  %v439 = vld [vmem:[%s1 + $0x660] sm:$0xf]
  %v440 = vld [vmem:[%s1 + $0x664] sm:$0xf]
  %v441 = vld [vmem:[%s1 + $0x668] sm:$0xf]
  %v442 = vld [vmem:[%s1 + $0x66c] sm:$0xf]
  %v443 = vld [vmem:[%s1 + $0x670] sm:$0xf]
  %v444 = vld [vmem:[%s1 + $0x674] sm:$0xf]
  %v445 = vld [vmem:[%s1 + $0x678] sm:$0xf]
  %v446 = vld [vmem:[%s1 + $0x67c] sm:$0xf]
  %v447 = vld [vmem:[%s1 + $0x680] sm:$0xf]
  %v448 = vld [vmem:[%s1 + $0x684] sm:$0xf]
  %v449 = vld [vmem:[%s1 + $0x688] sm:$0xf]
  %v450 = vld [vmem:[%s1 + $0x68c] sm:$0xf]
  %v451 = vld [vmem:[%s1 + $0x690] sm:$0xf]
  %v452 = vld [vmem:[%s1 + $0x694] sm:$0xf]
  %v453 = vld [vmem:[%s1 + $0x698] sm:$0xf]
  %v454 = vld [vmem:[%s1 + $0x69c] sm:$0xf]
  %v455 = vld [vmem:[%s1 + $0x6a0] sm:$0xf]
  %v456 = vld [vmem:[%s1 + $0x6a4] sm:$0xf]
  %v457 = vld [vmem:[%s1 + $0x6a8] sm:$0xf]
  %v458 = vld [vmem:[%s1 + $0x6ac] sm:$0xf]
  %v459 = vld [vmem:[%s1 + $0x6b0] sm:$0xf]
  %v460 = vld [vmem:[%s1 + $0x6b4] sm:$0xf]
  %v461 = vld [vmem:[%s1 + $0x6b8] sm:$0xf]
  %v462 = vld [vmem:[%s1 + $0x6bc] sm:$0xf]
  %v463 = vld [vmem:[%s1 + $0x6c0] sm:$0xf]
  %v464 = vld [vmem:[%s1 + $0x6c4] sm:$0xf]
  %v465 = vld [vmem:[%s1 + $0x6c8] sm:$0xf]
  %v466 = vld [vmem:[%s1 + $0x6cc] sm:$0xf]
  %v467 = vld [vmem:[%s1 + $0x6d0] sm:$0xf]
  %v468 = vld [vmem:[%s1 + $0x6d4] sm:$0xf]
  %v469 = vld [vmem:[%s1 + $0x6d8] sm:$0xf]
  %v470 = vld [vmem:[%s1 + $0x6dc] sm:$0xf]
  %v471 = vld [vmem:[%s1 + $0x6e0] sm:$0xf]
  %v472 = vld [vmem:[%s1 + $0x6e4] sm:$0xf]
  %v473 = vld [vmem:[%s1 + $0x6e8] sm:$0xf]
  %v474 = vld [vmem:[%s1 + $0x6ec] sm:$0xf]
  %v475 = vld [vmem:[%s1 + $0x6f0] sm:$0xf]
  %v476 = vld [vmem:[%s1 + $0x6f4] sm:$0xf]
  %v477 = vld [vmem:[%s1 + $0x6f8] sm:$0xf]
  %v478 = vld [vmem:[%s1 + $0x6fc] sm:$0xf]
  %v479 = vld [vmem:[%s1 + $0x700] sm:$0xf]
  %v480 = vld [vmem:[%s1 + $0x704] sm:$0xf]
  %v481 = vld [vmem:[%s1 + $0x708] sm:$0xf]
  %v482 = vld [vmem:[%s1 + $0x70c] sm:$0xf]
  %v483 = vld [vmem:[%s1 + $0x710] sm:$0xf]
  %v484 = vld [vmem:[%s1 + $0x714] sm:$0xf]
  %v485 = vld [vmem:[%s1 + $0x718] sm:$0xf]
  %v486 = vld [vmem:[%s1 + $0x71c] sm:$0xf]
  %v487 = vld [vmem:[%s1 + $0x720] sm:$0xf]
  %v488 = vld [vmem:[%s1 + $0x724] sm:$0xf]
  %v489 = vld [vmem:[%s1 + $0x728] sm:$0xf]
  %v490 = vld [vmem:[%s1 + $0x72c] sm:$0xf]
  %v491 = vld [vmem:[%s1 + $0x730] sm:$0xf]
  %v492 = vld [vmem:[%s1 + $0x734] sm:$0xf]
  %v493 = vld [vmem:[%s1 + $0x738] sm:$0xf]
  %v494 = vld [vmem:[%s1 + $0x73c] sm:$0xf]
  %v495 = vld [vmem:[%s1 + $0x740] sm:$0xf]
  %v496 = vld [vmem:[%s1 + $0x744] sm:$0xf]
  %v497 = vld [vmem:[%s1 + $0x748] sm:$0xf]
  %v498 = vld [vmem:[%s1 + $0x74c] sm:$0xf]
  %v499 = vld [vmem:[%s1 + $0x750] sm:$0xf]
  %v500 = vld [vmem:[%s1 + $0x754] sm:$0xf]
  %v501 = vld [vmem:[%s1 + $0x758] sm:$0xf]
  %v502 = vld [vmem:[%s1 + $0x75c] sm:$0xf]
  %v503 = vld [vmem:[%s1 + $0x760] sm:$0xf]
  %v504 = vld [vmem:[%s1 + $0x764] sm:$0xf]
  %v505 = vld [vmem:[%s1 + $0x768] sm:$0xf]
  %v506 = vld [vmem:[%s1 + $0x76c] sm:$0xf]
  %v507 = vld [vmem:[%s1 + $0x770] sm:$0xf]
  %v508 = vld [vmem:[%s1 + $0x774] sm:$0xf]
  %v509 = vld [vmem:[%s1 + $0x778] sm:$0xf]
  %v510 = vld [vmem:[%s1 + $0x77c] sm:$0xf]
  %v511 = vld [vmem:[%s1 + $0x780] sm:$0xf]
  %v512 = vld [vmem:[%s1 + $0x784] sm:$0xf]
  %v513 = vld [vmem:[%s1 + $0x788] sm:$0xf]
  %v514 = vld [vmem:[%s1 + $0x78c] sm:$0xf]
  %v515 = vld [vmem:[%s1 + $0x790] sm:$0xf]
  %v516 = vld [vmem:[%s1 + $0x794] sm:$0xf]
  %v517 = vld [vmem:[%s1 + $0x798] sm:$0xf]
  %v518 = vld [vmem:[%s1 + $0x79c] sm:$0xf]
  %v519 = vld [vmem:[%s1 + $0x7a0] sm:$0xf]
  %v520 = vld [vmem:[%s1 + $0x7a4] sm:$0xf]
  %v521 = vld [vmem:[%s1 + $0x7a8] sm:$0xf]
  %v522 = vld [vmem:[%s1 + $0x7ac] sm:$0xf]
  %v523 = vld [vmem:[%s1 + $0x7b0] sm:$0xf]
  %v524 = vld [vmem:[%s1 + $0x7b4] sm:$0xf]
  %v525 = vld [vmem:[%s1 + $0x7b8] sm:$0xf]
  %v526 = vld [vmem:[%s1 + $0x7bc] sm:$0xf]
  %v527 = vld [vmem:[%s1 + $0x7c0] sm:$0xf]
  %v528 = vld [vmem:[%s1 + $0x7c4] sm:$0xf]
  %v529 = vld [vmem:[%s1 + $0x7c8] sm:$0xf]
  %v530 = vld [vmem:[%s1 + $0x7cc] sm:$0xf]
  %v531 = vld [vmem:[%s1 + $0x7d0] sm:$0xf]
  %v532 = vld [vmem:[%s1 + $0x7d4] sm:$0xf]
  %v533 = vld [vmem:[%s1 + $0x7d8] sm:$0xf]
  %v534 = vld [vmem:[%s1 + $0x7dc] sm:$0xf]
  %v535 = vld [vmem:[%s1 + $0x7e0] sm:$0xf]
  %v536 = vld [vmem:[%s1 + $0x7e4] sm:$0xf]
  %v537 = vld [vmem:[%s1 + $0x7e8] sm:$0xf]
  %v538 = vld [vmem:[%s1 + $0x7ec] sm:$0xf]
  %v539 = vld [vmem:[%s1 + $0x7f0] sm:$0xf]
  %v540 = vld [vmem:[%s1 + $0x7f4] sm:$0xf]
  %v541 = vld [vmem:[%s1 + $0x7f8] sm:$0xf]
  %v542 = vld [vmem:[%s1 + $0x7fc] sm:$0xf]
  %v543 = vld [vmem:[%s2] sm:$0xff]
  %545 = vset.pattern.permute.xlu0 0
  %546 = vperm.xlu0 %545, %v543
  %v547 = vpop.permute.xlu0 %546
  %v565 = vunpack.c.l.b16 %v15
  %v566 = vunpack.c.h.b16 %v15
  %v567 = vunpack.c.l.b16 %v16
  %v568 = vunpack.c.h.b16 %v16
  %v569 = vunpack.c.l.b16 %v17
  %v570 = vunpack.c.h.b16 %v17
  %v571 = vunpack.c.l.b16 %v18
  %v572 = vunpack.c.h.b16 %v18
  %v573 = vunpack.c.l.b16 %v19
  %v574 = vunpack.c.h.b16 %v19
  %v575 = vunpack.c.l.b16 %v20
  %v576 = vunpack.c.h.b16 %v20
  %v577 = vunpack.c.l.b16 %v21
  %v578 = vunpack.c.h.b16 %v21
  %v579 = vunpack.c.l.b16 %v22
  %v580 = vunpack.c.h.b16 %v22
  %v581 = vunpack.c.l.b16 %v23
  %v582 = vunpack.c.h.b16 %v23
  %v583 = vunpack.c.l.b16 %v24
  %v584 = vunpack.c.h.b16 %v24
  %v585 = vunpack.c.l.b16 %v25
  %v586 = vunpack.c.h.b16 %v25
  %v587 = vunpack.c.l.b16 %v26
  %v588 = vunpack.c.h.b16 %v26
  %v589 = vunpack.c.l.b16 %v27
  %v590 = vunpack.c.h.b16 %v27
  %v591 = vunpack.c.l.b16 %v28
  %v592 = vunpack.c.h.b16 %v28
  %v593 = vunpack.c.l.b16 %v29
  %v594 = vunpack.c.h.b16 %v29
  %v595 = vunpack.c.l.b16 %v30
  %v596 = vunpack.c.h.b16 %v30
  %v597 = vpack.c.b16 %v565, %v565
  %v598 = vpack.c.b16 %v566, %v566
  %v599 = vpack.c.b16 %v567, %v567
  %v600 = vpack.c.b16 %v568, %v568
  %v601 = vpack.c.b16 %v569, %v569
  %v602 = vpack.c.b16 %v570, %v570
  %v603 = vpack.c.b16 %v571, %v571
  %v604 = vpack.c.b16 %v572, %v572
  %v605 = vpack.c.b16 %v573, %v573
  %v606 = vpack.c.b16 %v574, %v574
  %v607 = vpack.c.b16 %v575, %v575
  %v608 = vpack.c.b16 %v576, %v576
  %v609 = vpack.c.b16 %v577, %v577
  %v610 = vpack.c.b16 %v578, %v578
  %v611 = vpack.c.b16 %v579, %v579
  %v612 = vpack.c.b16 %v580, %v580
  %v613 = vpack.c.b16 %v581, %v581
  %v614 = vpack.c.b16 %v582, %v582
  %v615 = vpack.c.b16 %v583, %v583
  %v616 = vpack.c.b16 %v584, %v584
  %v617 = vpack.c.b16 %v585, %v585
  %v618 = vpack.c.b16 %v586, %v586
  %v619 = vpack.c.b16 %v587, %v587
  %v620 = vpack.c.b16 %v588, %v588
  %v621 = vpack.c.b16 %v589, %v589
  %v622 = vpack.c.b16 %v590, %v590
  %v623 = vpack.c.b16 %v591, %v591
  %v624 = vpack.c.b16 %v592, %v592
  %v625 = vpack.c.b16 %v593, %v593
  %v626 = vpack.c.b16 %v594, %v594
  %v627 = vpack.c.b16 %v595, %v595
  %v628 = vpack.c.b16 %v596, %v596
  %v1173 = vunpack.c.l.b16 %v31
  %v1174 = vunpack.c.l.b16 %v32
  %v1175 = vunpack.c.l.b16 %v33
  %v1176 = vunpack.c.l.b16 %v34
  %v1177 = vunpack.c.l.b16 %v35
  %v1178 = vunpack.c.l.b16 %v36
  %v1179 = vunpack.c.l.b16 %v37
  %v1180 = vunpack.c.l.b16 %v38
  %v1181 = vunpack.c.l.b16 %v39
  %v1182 = vunpack.c.l.b16 %v40
  %v1183 = vunpack.c.l.b16 %v41
  %v1184 = vunpack.c.l.b16 %v42
  %v1185 = vunpack.c.l.b16 %v43
  %v1186 = vunpack.c.l.b16 %v44
  %v1187 = vunpack.c.l.b16 %v45
  %v1188 = vunpack.c.l.b16 %v46
  %v1189 = vunpack.c.l.b16 %v47
  %v1190 = vunpack.c.l.b16 %v48
  %v1191 = vunpack.c.l.b16 %v49
  %v1192 = vunpack.c.l.b16 %v50
  %v1193 = vunpack.c.l.b16 %v51
  %v1194 = vunpack.c.l.b16 %v52
  %v1195 = vunpack.c.l.b16 %v53
  %v1196 = vunpack.c.l.b16 %v54
  %v1197 = vunpack.c.l.b16 %v55
  %v1198 = vunpack.c.l.b16 %v56
  %v1199 = vunpack.c.l.b16 %v57
  %v1200 = vunpack.c.l.b16 %v58
  %v1201 = vunpack.c.l.b16 %v59
  %v1202 = vunpack.c.l.b16 %v60
  %v1203 = vunpack.c.l.b16 %v61
  %v1204 = vunpack.c.l.b16 %v62
  %v1205 = vunpack.c.l.b16 %v63
  %v1206 = vunpack.c.l.b16 %v64
  %v1207 = vunpack.c.l.b16 %v65
  %v1208 = vunpack.c.l.b16 %v66
  %v1209 = vunpack.c.l.b16 %v67
  %v1210 = vunpack.c.l.b16 %v68
  %v1211 = vunpack.c.l.b16 %v69
  %v1212 = vunpack.c.l.b16 %v70
  %v1213 = vunpack.c.l.b16 %v71
  %v1214 = vunpack.c.l.b16 %v72
  %v1215 = vunpack.c.l.b16 %v73
  %v1216 = vunpack.c.l.b16 %v74
  %v1217 = vunpack.c.l.b16 %v75
  %v1218 = vunpack.c.l.b16 %v76
  %v1219 = vunpack.c.l.b16 %v77
  %v1220 = vunpack.c.l.b16 %v78
  %v1221 = vunpack.c.l.b16 %v79
  %v1222 = vunpack.c.l.b16 %v80
  %v1223 = vunpack.c.l.b16 %v81
  %v1224 = vunpack.c.l.b16 %v82
  %v1225 = vunpack.c.l.b16 %v83
  %v1226 = vunpack.c.l.b16 %v84
  %v1227 = vunpack.c.l.b16 %v85
  %v1228 = vunpack.c.l.b16 %v86
  %v1229 = vunpack.c.l.b16 %v87
  %v1230 = vunpack.c.l.b16 %v88
  %v1231 = vunpack.c.l.b16 %v89
  %v1232 = vunpack.c.l.b16 %v90
  %v1233 = vunpack.c.l.b16 %v91
  %v1234 = vunpack.c.l.b16 %v92
  %v1235 = vunpack.c.l.b16 %v93
  %v1236 = vunpack.c.l.b16 %v94
  %v1237 = vunpack.c.l.b16 %v95
  %v1238 = vunpack.c.l.b16 %v96
  %v1239 = vunpack.c.l.b16 %v97
  %v1240 = vunpack.c.l.b16 %v98
  %v1241 = vunpack.c.l.b16 %v99
  %v1242 = vunpack.c.l.b16 %v100
  %v1243 = vunpack.c.l.b16 %v101
  %v1244 = vunpack.c.l.b16 %v102
  %v1245 = vunpack.c.l.b16 %v103
  %v1246 = vunpack.c.l.b16 %v104
  %v1247 = vunpack.c.l.b16 %v105
  %v1248 = vunpack.c.l.b16 %v106
  %v1249 = vunpack.c.l.b16 %v107
  %v1250 = vunpack.c.l.b16 %v108
  %v1251 = vunpack.c.l.b16 %v109
  %v1252 = vunpack.c.l.b16 %v110
  %v1253 = vunpack.c.l.b16 %v111
  %v1254 = vunpack.c.l.b16 %v112
  %v1255 = vunpack.c.l.b16 %v113
  %v1256 = vunpack.c.l.b16 %v114
  %v1257 = vunpack.c.l.b16 %v115
  %v1258 = vunpack.c.l.b16 %v116
  %v1259 = vunpack.c.l.b16 %v117
  %v1260 = vunpack.c.l.b16 %v118
  %v1261 = vunpack.c.l.b16 %v119
  %v1262 = vunpack.c.l.b16 %v120
  %v1263 = vunpack.c.l.b16 %v121
  %v1264 = vunpack.c.l.b16 %v122
  %v1265 = vunpack.c.l.b16 %v123
  %v1266 = vunpack.c.l.b16 %v124
  %v1267 = vunpack.c.l.b16 %v125
  %v1268 = vunpack.c.l.b16 %v126
  %v1269 = vunpack.c.l.b16 %v127
  %v1270 = vunpack.c.l.b16 %v128
  %v1271 = vunpack.c.l.b16 %v129
  %v1272 = vunpack.c.l.b16 %v130
  %v1273 = vunpack.c.l.b16 %v131
  %v1274 = vunpack.c.l.b16 %v132
  %v1275 = vunpack.c.l.b16 %v133
  %v1276 = vunpack.c.l.b16 %v134
  %v1277 = vunpack.c.l.b16 %v135
  %v1278 = vunpack.c.l.b16 %v136
  %v1279 = vunpack.c.l.b16 %v137
  %v1280 = vunpack.c.l.b16 %v138
  %v1281 = vunpack.c.l.b16 %v139
  %v1282 = vunpack.c.l.b16 %v140
  %v1283 = vunpack.c.l.b16 %v141
  %v1284 = vunpack.c.l.b16 %v142
  %v1285 = vunpack.c.l.b16 %v143
  %v1286 = vunpack.c.l.b16 %v144
  %v1287 = vunpack.c.l.b16 %v145
  %v1288 = vunpack.c.l.b16 %v146
  %v1289 = vunpack.c.l.b16 %v147
  %v1290 = vunpack.c.l.b16 %v148
  %v1291 = vunpack.c.l.b16 %v149
  %v1292 = vunpack.c.l.b16 %v150
  %v1293 = vunpack.c.l.b16 %v151
  %v1294 = vunpack.c.l.b16 %v152
  %v1295 = vunpack.c.l.b16 %v153
  %v1296 = vunpack.c.l.b16 %v154
  %v1297 = vunpack.c.l.b16 %v155
  %v1298 = vunpack.c.l.b16 %v156
  %v1299 = vunpack.c.l.b16 %v157
  %v1300 = vunpack.c.l.b16 %v158
  %v1301 = vunpack.c.l.b16 %v159
  %v1302 = vunpack.c.l.b16 %v160
  %v1303 = vunpack.c.l.b16 %v161
  %v1304 = vunpack.c.l.b16 %v162
  %v1305 = vunpack.c.l.b16 %v163
  %v1306 = vunpack.c.l.b16 %v164
  %v1307 = vunpack.c.l.b16 %v165
  %v1308 = vunpack.c.l.b16 %v166
  %v1309 = vunpack.c.l.b16 %v167
  %v1310 = vunpack.c.l.b16 %v168
  %v1311 = vunpack.c.l.b16 %v169
  %v1312 = vunpack.c.l.b16 %v170
  %v1313 = vunpack.c.l.b16 %v171
  %v1314 = vunpack.c.l.b16 %v172
  %v1315 = vunpack.c.l.b16 %v173
  %v1316 = vunpack.c.l.b16 %v174
  %v1317 = vunpack.c.l.b16 %v175
  %v1318 = vunpack.c.l.b16 %v176
  %v1319 = vunpack.c.l.b16 %v177
  %v1320 = vunpack.c.l.b16 %v178
  %v1321 = vunpack.c.l.b16 %v179
  %v1322 = vunpack.c.l.b16 %v180
  %v1323 = vunpack.c.l.b16 %v181
  %v1324 = vunpack.c.l.b16 %v182
  %v1325 = vunpack.c.l.b16 %v183
  %v1326 = vunpack.c.l.b16 %v184
  %v1327 = vunpack.c.l.b16 %v185
  %v1328 = vunpack.c.l.b16 %v186
  %v1329 = vunpack.c.l.b16 %v187
  %v1330 = vunpack.c.l.b16 %v188
  %v1331 = vunpack.c.l.b16 %v189
  %v1332 = vunpack.c.l.b16 %v190
  %v1333 = vunpack.c.l.b16 %v191
  %v1334 = vunpack.c.l.b16 %v192
  %v1335 = vunpack.c.l.b16 %v193
  %v1336 = vunpack.c.l.b16 %v194
  %v1337 = vunpack.c.l.b16 %v195
  %v1338 = vunpack.c.l.b16 %v196
  %v1339 = vunpack.c.l.b16 %v197
  %v1340 = vunpack.c.l.b16 %v198
  %v1341 = vunpack.c.l.b16 %v199
  %v1342 = vunpack.c.l.b16 %v200
  %v1343 = vunpack.c.l.b16 %v201
  %v1344 = vunpack.c.l.b16 %v202
  %v1345 = vunpack.c.l.b16 %v203
  %v1346 = vunpack.c.l.b16 %v204
  %v1347 = vunpack.c.l.b16 %v205
  %v1348 = vunpack.c.l.b16 %v206
  %v1349 = vunpack.c.l.b16 %v207
  %v1350 = vunpack.c.l.b16 %v208
  %v1351 = vunpack.c.l.b16 %v209
  %v1352 = vunpack.c.l.b16 %v210
  %v1353 = vunpack.c.l.b16 %v211
  %v1354 = vunpack.c.l.b16 %v212
  %v1355 = vunpack.c.l.b16 %v213
  %v1356 = vunpack.c.l.b16 %v214
  %v1357 = vunpack.c.l.b16 %v215
  %v1358 = vunpack.c.l.b16 %v216
  %v1359 = vunpack.c.l.b16 %v217
  %v1360 = vunpack.c.l.b16 %v218
  %v1361 = vunpack.c.l.b16 %v219
  %v1362 = vunpack.c.l.b16 %v220
  %v1363 = vunpack.c.l.b16 %v221
  %v1364 = vunpack.c.l.b16 %v222
  %v1365 = vunpack.c.l.b16 %v223
  %v1366 = vunpack.c.l.b16 %v224
  %v1367 = vunpack.c.l.b16 %v225
  %v1368 = vunpack.c.l.b16 %v226
  %v1369 = vunpack.c.l.b16 %v227
  %v1370 = vunpack.c.l.b16 %v228
  %v1371 = vunpack.c.l.b16 %v229
  %v1372 = vunpack.c.l.b16 %v230
  %v1373 = vunpack.c.l.b16 %v231
  %v1374 = vunpack.c.l.b16 %v232
  %v1375 = vunpack.c.l.b16 %v233
  %v1376 = vunpack.c.l.b16 %v234
  %v1377 = vunpack.c.l.b16 %v235
  %v1378 = vunpack.c.l.b16 %v236
  %v1379 = vunpack.c.l.b16 %v237
  %v1380 = vunpack.c.l.b16 %v238
  %v1381 = vunpack.c.l.b16 %v239
  %v1382 = vunpack.c.l.b16 %v240
  %v1383 = vunpack.c.l.b16 %v241
  %v1384 = vunpack.c.l.b16 %v242
  %v1385 = vunpack.c.l.b16 %v243
  %v1386 = vunpack.c.l.b16 %v244
  %v1387 = vunpack.c.l.b16 %v245
  %v1388 = vunpack.c.l.b16 %v246
  %v1389 = vunpack.c.l.b16 %v247
  %v1390 = vunpack.c.l.b16 %v248
  %v1391 = vunpack.c.l.b16 %v249
  %v1392 = vunpack.c.l.b16 %v250
  %v1393 = vunpack.c.l.b16 %v251
  %v1394 = vunpack.c.l.b16 %v252
  %v1395 = vunpack.c.l.b16 %v253
  %v1396 = vunpack.c.l.b16 %v254
  %v1397 = vunpack.c.l.b16 %v255
  %v1398 = vunpack.c.l.b16 %v256
  %v1399 = vunpack.c.l.b16 %v257
  %v1400 = vunpack.c.l.b16 %v258
  %v1401 = vunpack.c.l.b16 %v259
  %v1402 = vunpack.c.l.b16 %v260
  %v1403 = vunpack.c.l.b16 %v261
  %v1404 = vunpack.c.l.b16 %v262
  %v1405 = vunpack.c.l.b16 %v263
  %v1406 = vunpack.c.l.b16 %v264
  %v1407 = vunpack.c.l.b16 %v265
  %v1408 = vunpack.c.l.b16 %v266
  %v1409 = vunpack.c.l.b16 %v267
  %v1410 = vunpack.c.l.b16 %v268
  %v1411 = vunpack.c.l.b16 %v269
  %v1412 = vunpack.c.l.b16 %v270
  %v1413 = vunpack.c.l.b16 %v271
  %v1414 = vunpack.c.l.b16 %v272
  %v1415 = vunpack.c.l.b16 %v273
  %v1416 = vunpack.c.l.b16 %v274
  %v1417 = vunpack.c.l.b16 %v275
  %v1418 = vunpack.c.l.b16 %v276
  %v1419 = vunpack.c.l.b16 %v277
  %v1420 = vunpack.c.l.b16 %v278
  %v1421 = vunpack.c.l.b16 %v279
  %v1422 = vunpack.c.l.b16 %v280
  %v1423 = vunpack.c.l.b16 %v281
  %v1424 = vunpack.c.l.b16 %v282
  %v1425 = vunpack.c.l.b16 %v283
  %v1426 = vunpack.c.l.b16 %v284
  %v1427 = vunpack.c.l.b16 %v285
  %v1428 = vunpack.c.l.b16 %v286
  %v1429 = vunpack.c.l.b16 %v287
  %v1430 = vunpack.c.l.b16 %v288
  %v1431 = vunpack.c.l.b16 %v289
  %v1432 = vunpack.c.l.b16 %v290
  %v1433 = vunpack.c.l.b16 %v291
  %v1434 = vunpack.c.l.b16 %v292
  %v1435 = vunpack.c.l.b16 %v293
  %v1436 = vunpack.c.l.b16 %v294
  %v1437 = vunpack.c.l.b16 %v295
  %v1438 = vunpack.c.l.b16 %v296
  %v1439 = vunpack.c.l.b16 %v297
  %v1440 = vunpack.c.l.b16 %v298
  %v1441 = vunpack.c.l.b16 %v299
  %v1442 = vunpack.c.l.b16 %v300
  %v1443 = vunpack.c.l.b16 %v301
  %v1444 = vunpack.c.l.b16 %v302
  %v1445 = vunpack.c.l.b16 %v303
  %v1446 = vunpack.c.l.b16 %v304
  %v1447 = vunpack.c.l.b16 %v305
  %v1448 = vunpack.c.l.b16 %v306
  %v1449 = vunpack.c.l.b16 %v307
  %v1450 = vunpack.c.l.b16 %v308
  %v1451 = vunpack.c.l.b16 %v309
  %v1452 = vunpack.c.l.b16 %v310
  %v1453 = vunpack.c.l.b16 %v311
  %v1454 = vunpack.c.l.b16 %v312
  %v1455 = vunpack.c.l.b16 %v313
  %v1456 = vunpack.c.l.b16 %v314
  %v1457 = vunpack.c.l.b16 %v315
  %v1458 = vunpack.c.l.b16 %v316
  %v1459 = vunpack.c.l.b16 %v317
  %v1460 = vunpack.c.l.b16 %v318
  %v1461 = vunpack.c.l.b16 %v319
  %v1462 = vunpack.c.l.b16 %v320
  %v1463 = vunpack.c.l.b16 %v321
  %v1464 = vunpack.c.l.b16 %v322
  %v1465 = vunpack.c.l.b16 %v323
  %v1466 = vunpack.c.l.b16 %v324
  %v1467 = vunpack.c.l.b16 %v325
  %v1468 = vunpack.c.l.b16 %v326
  %v1469 = vunpack.c.l.b16 %v327
  %v1470 = vunpack.c.l.b16 %v328
  %v1471 = vunpack.c.l.b16 %v329
  %v1472 = vunpack.c.l.b16 %v330
  %v1473 = vunpack.c.l.b16 %v331
  %v1474 = vunpack.c.l.b16 %v332
  %v1475 = vunpack.c.l.b16 %v333
  %v1476 = vunpack.c.l.b16 %v334
  %v1477 = vunpack.c.l.b16 %v335
  %v1478 = vunpack.c.l.b16 %v336
  %v1479 = vunpack.c.l.b16 %v337
  %v1480 = vunpack.c.l.b16 %v338
  %v1481 = vunpack.c.l.b16 %v339
  %v1482 = vunpack.c.l.b16 %v340
  %v1483 = vunpack.c.l.b16 %v341
  %v1484 = vunpack.c.l.b16 %v342
  %v1485 = vunpack.c.l.b16 %v343
  %v1486 = vunpack.c.l.b16 %v344
  %v1487 = vunpack.c.l.b16 %v345
  %v1488 = vunpack.c.l.b16 %v346
  %v1489 = vunpack.c.l.b16 %v347
  %v1490 = vunpack.c.l.b16 %v348
  %v1491 = vunpack.c.l.b16 %v349
  %v1492 = vunpack.c.l.b16 %v350
  %v1493 = vunpack.c.l.b16 %v351
  %v1494 = vunpack.c.l.b16 %v352
  %v1495 = vunpack.c.l.b16 %v353
  %v1496 = vunpack.c.l.b16 %v354
  %v1497 = vunpack.c.l.b16 %v355
  %v1498 = vunpack.c.l.b16 %v356
  %v1499 = vunpack.c.l.b16 %v357
  %v1500 = vunpack.c.l.b16 %v358
  %v1501 = vunpack.c.l.b16 %v359
  %v1502 = vunpack.c.l.b16 %v360
  %v1503 = vunpack.c.l.b16 %v361
  %v1504 = vunpack.c.l.b16 %v362
  %v1505 = vunpack.c.l.b16 %v363
  %v1506 = vunpack.c.l.b16 %v364
  %v1507 = vunpack.c.l.b16 %v365
  %v1508 = vunpack.c.l.b16 %v366
  %v1509 = vunpack.c.l.b16 %v367
  %v1510 = vunpack.c.l.b16 %v368
  %v1511 = vunpack.c.l.b16 %v369
  %v1512 = vunpack.c.l.b16 %v370
  %v1513 = vunpack.c.l.b16 %v371
  %v1514 = vunpack.c.l.b16 %v372
  %v1515 = vunpack.c.l.b16 %v373
  %v1516 = vunpack.c.l.b16 %v374
  %v1517 = vunpack.c.l.b16 %v375
  %v1518 = vunpack.c.l.b16 %v376
  %v1519 = vunpack.c.l.b16 %v377
  %v1520 = vunpack.c.l.b16 %v378
  %v1521 = vunpack.c.l.b16 %v379
  %v1522 = vunpack.c.l.b16 %v380
  %v1523 = vunpack.c.l.b16 %v381
  %v1524 = vunpack.c.l.b16 %v382
  %v1525 = vunpack.c.l.b16 %v383
  %v1526 = vunpack.c.l.b16 %v384
  %v1527 = vunpack.c.l.b16 %v385
  %v1528 = vunpack.c.l.b16 %v386
  %v1529 = vunpack.c.l.b16 %v387
  %v1530 = vunpack.c.l.b16 %v388
  %v1531 = vunpack.c.l.b16 %v389
  %v1532 = vunpack.c.l.b16 %v390
  %v1533 = vunpack.c.l.b16 %v391
  %v1534 = vunpack.c.l.b16 %v392
  %v1535 = vunpack.c.l.b16 %v393
  %v1536 = vunpack.c.l.b16 %v394
  %v1537 = vunpack.c.l.b16 %v395
  %v1538 = vunpack.c.l.b16 %v396
  %v1539 = vunpack.c.l.b16 %v397
  %v1540 = vunpack.c.l.b16 %v398
  %v1541 = vunpack.c.l.b16 %v399
  %v1542 = vunpack.c.l.b16 %v400
  %v1543 = vunpack.c.l.b16 %v401
  %v1544 = vunpack.c.l.b16 %v402
  %v1545 = vunpack.c.l.b16 %v403
  %v1546 = vunpack.c.l.b16 %v404
  %v1547 = vunpack.c.l.b16 %v405
  %v1548 = vunpack.c.l.b16 %v406
  %v1549 = vunpack.c.l.b16 %v407
  %v1550 = vunpack.c.l.b16 %v408
  %v1551 = vunpack.c.l.b16 %v409
  %v1552 = vunpack.c.l.b16 %v410
  %v1553 = vunpack.c.l.b16 %v411
  %v1554 = vunpack.c.l.b16 %v412
  %v1555 = vunpack.c.l.b16 %v413
  %v1556 = vunpack.c.l.b16 %v414
  %v1557 = vunpack.c.l.b16 %v415
  %v1558 = vunpack.c.l.b16 %v416
  %v1559 = vunpack.c.l.b16 %v417
  %v1560 = vunpack.c.l.b16 %v418
  %v1561 = vunpack.c.l.b16 %v419
  %v1562 = vunpack.c.l.b16 %v420
  %v1563 = vunpack.c.l.b16 %v421
  %v1564 = vunpack.c.l.b16 %v422
  %v1565 = vunpack.c.l.b16 %v423
  %v1566 = vunpack.c.l.b16 %v424
  %v1567 = vunpack.c.l.b16 %v425
  %v1568 = vunpack.c.l.b16 %v426
  %v1569 = vunpack.c.l.b16 %v427
  %v1570 = vunpack.c.l.b16 %v428
  %v1571 = vunpack.c.l.b16 %v429
  %v1572 = vunpack.c.l.b16 %v430
  %v1573 = vunpack.c.l.b16 %v431
  %v1574 = vunpack.c.l.b16 %v432
  %v1575 = vunpack.c.l.b16 %v433
  %v1576 = vunpack.c.l.b16 %v434
  %v1577 = vunpack.c.l.b16 %v435
  %v1578 = vunpack.c.l.b16 %v436
  %v1579 = vunpack.c.l.b16 %v437
  %v1580 = vunpack.c.l.b16 %v438
  %v1581 = vunpack.c.l.b16 %v439
  %v1582 = vunpack.c.l.b16 %v440
  %v1583 = vunpack.c.l.b16 %v441
  %v1584 = vunpack.c.l.b16 %v442
  %v1585 = vunpack.c.l.b16 %v443
  %v1586 = vunpack.c.l.b16 %v444
  %v1587 = vunpack.c.l.b16 %v445
  %v1588 = vunpack.c.l.b16 %v446
  %v1589 = vunpack.c.l.b16 %v447
  %v1590 = vunpack.c.l.b16 %v448
  %v1591 = vunpack.c.l.b16 %v449
  %v1592 = vunpack.c.l.b16 %v450
  %v1593 = vunpack.c.l.b16 %v451
  %v1594 = vunpack.c.l.b16 %v452
  %v1595 = vunpack.c.l.b16 %v453
  %v1596 = vunpack.c.l.b16 %v454
  %v1597 = vunpack.c.l.b16 %v455
  %v1598 = vunpack.c.l.b16 %v456
  %v1599 = vunpack.c.l.b16 %v457
  %v1600 = vunpack.c.l.b16 %v458
  %v1601 = vunpack.c.l.b16 %v459
  %v1602 = vunpack.c.l.b16 %v460
  %v1603 = vunpack.c.l.b16 %v461
  %v1604 = vunpack.c.l.b16 %v462
  %v1605 = vunpack.c.l.b16 %v463
  %v1606 = vunpack.c.l.b16 %v464
  %v1607 = vunpack.c.l.b16 %v465
  %v1608 = vunpack.c.l.b16 %v466
  %v1609 = vunpack.c.l.b16 %v467
  %v1610 = vunpack.c.l.b16 %v468
  %v1611 = vunpack.c.l.b16 %v469
  %v1612 = vunpack.c.l.b16 %v470
  %v1613 = vunpack.c.l.b16 %v471
  %v1614 = vunpack.c.l.b16 %v472
  %v1615 = vunpack.c.l.b16 %v473
  %v1616 = vunpack.c.l.b16 %v474
  %v1617 = vunpack.c.l.b16 %v475
  %v1618 = vunpack.c.l.b16 %v476
  %v1619 = vunpack.c.l.b16 %v477
  %v1620 = vunpack.c.l.b16 %v478
  %v1621 = vunpack.c.l.b16 %v479
  %v1622 = vunpack.c.l.b16 %v480
  %v1623 = vunpack.c.l.b16 %v481
  %v1624 = vunpack.c.l.b16 %v482
  %v1625 = vunpack.c.l.b16 %v483
  %v1626 = vunpack.c.l.b16 %v484
  %v1627 = vunpack.c.l.b16 %v485
  %v1628 = vunpack.c.l.b16 %v486
  %v1629 = vunpack.c.l.b16 %v487
  %v1630 = vunpack.c.l.b16 %v488
  %v1631 = vunpack.c.l.b16 %v489
  %v1632 = vunpack.c.l.b16 %v490
  %v1633 = vunpack.c.l.b16 %v491
  %v1634 = vunpack.c.l.b16 %v492
  %v1635 = vunpack.c.l.b16 %v493
  %v1636 = vunpack.c.l.b16 %v494
  %v1637 = vunpack.c.l.b16 %v495
  %v1638 = vunpack.c.l.b16 %v496
  %v1639 = vunpack.c.l.b16 %v497
  %v1640 = vunpack.c.l.b16 %v498
  %v1641 = vunpack.c.l.b16 %v499
  %v1642 = vunpack.c.l.b16 %v500
  %v1643 = vunpack.c.l.b16 %v501
  %v1644 = vunpack.c.l.b16 %v502
  %v1645 = vunpack.c.l.b16 %v503
  %v1646 = vunpack.c.l.b16 %v504
  %v1647 = vunpack.c.l.b16 %v505
  %v1648 = vunpack.c.l.b16 %v506
  %v1649 = vunpack.c.l.b16 %v507
  %v1650 = vunpack.c.l.b16 %v508
  %v1651 = vunpack.c.l.b16 %v509
  %v1652 = vunpack.c.l.b16 %v510
  %v1653 = vunpack.c.l.b16 %v511
  %v1654 = vunpack.c.l.b16 %v512
  %v1655 = vunpack.c.l.b16 %v513
  %v1656 = vunpack.c.l.b16 %v514
  %v1657 = vunpack.c.l.b16 %v515
  %v1658 = vunpack.c.l.b16 %v516
  %v1659 = vunpack.c.l.b16 %v517
  %v1660 = vunpack.c.l.b16 %v518
  %v1661 = vunpack.c.l.b16 %v519
  %v1662 = vunpack.c.l.b16 %v520
  %v1663 = vunpack.c.l.b16 %v521
  %v1664 = vunpack.c.l.b16 %v522
  %v1665 = vunpack.c.l.b16 %v523
  %v1666 = vunpack.c.l.b16 %v524
  %v1667 = vunpack.c.l.b16 %v525
  %v1668 = vunpack.c.l.b16 %v526
  %v1669 = vunpack.c.l.b16 %v527
  %v1670 = vunpack.c.l.b16 %v528
  %v1671 = vunpack.c.l.b16 %v529
  %v1672 = vunpack.c.l.b16 %v530
  %v1673 = vunpack.c.l.b16 %v531
  %v1674 = vunpack.c.l.b16 %v532
  %v1675 = vunpack.c.l.b16 %v533
  %v1676 = vunpack.c.l.b16 %v534
  %v1677 = vunpack.c.l.b16 %v535
  %v1678 = vunpack.c.l.b16 %v536
  %v1679 = vunpack.c.l.b16 %v537
  %v1680 = vunpack.c.l.b16 %v538
  %v1681 = vunpack.c.l.b16 %v539
  %v1682 = vunpack.c.l.b16 %v540
  %v1683 = vunpack.c.l.b16 %v541
  %v1684 = vunpack.c.l.b16 %v542
  %v1685 = vpack.c.b16 %v1174, %v1173
  %v1686 = vpack.c.b16 %v1176, %v1175
  %v1687 = vpack.c.b16 %v1178, %v1177
  %v1688 = vpack.c.b16 %v1180, %v1179
  %v1689 = vpack.c.b16 %v1182, %v1181
  %v1690 = vpack.c.b16 %v1184, %v1183
  %v1691 = vpack.c.b16 %v1186, %v1185
  %v1692 = vpack.c.b16 %v1188, %v1187
  %v1693 = vpack.c.b16 %v1190, %v1189
  %v1694 = vpack.c.b16 %v1192, %v1191
  %v1695 = vpack.c.b16 %v1194, %v1193
  %v1696 = vpack.c.b16 %v1196, %v1195
  %v1697 = vpack.c.b16 %v1198, %v1197
  %v1698 = vpack.c.b16 %v1200, %v1199
  %v1699 = vpack.c.b16 %v1202, %v1201
  %v1700 = vpack.c.b16 %v1204, %v1203
  %v1701 = vpack.c.b16 %v1206, %v1205
  %v1702 = vpack.c.b16 %v1208, %v1207
  %v1703 = vpack.c.b16 %v1210, %v1209
  %v1704 = vpack.c.b16 %v1212, %v1211
  %v1705 = vpack.c.b16 %v1214, %v1213
  %v1706 = vpack.c.b16 %v1216, %v1215
  %v1707 = vpack.c.b16 %v1218, %v1217
  %v1708 = vpack.c.b16 %v1220, %v1219
  %v1709 = vpack.c.b16 %v1222, %v1221
  %v1710 = vpack.c.b16 %v1224, %v1223
  %v1711 = vpack.c.b16 %v1226, %v1225
  %v1712 = vpack.c.b16 %v1228, %v1227
  %v1713 = vpack.c.b16 %v1230, %v1229
  %v1714 = vpack.c.b16 %v1232, %v1231
  %v1715 = vpack.c.b16 %v1234, %v1233
  %v1716 = vpack.c.b16 %v1236, %v1235
  %v1717 = vpack.c.b16 %v1238, %v1237
  %v1718 = vpack.c.b16 %v1240, %v1239
  %v1719 = vpack.c.b16 %v1242, %v1241
  %v1720 = vpack.c.b16 %v1244, %v1243
  %v1721 = vpack.c.b16 %v1246, %v1245
  %v1722 = vpack.c.b16 %v1248, %v1247
  %v1723 = vpack.c.b16 %v1250, %v1249
  %v1724 = vpack.c.b16 %v1252, %v1251
  %v1725 = vpack.c.b16 %v1254, %v1253
  %v1726 = vpack.c.b16 %v1256, %v1255
  %v1727 = vpack.c.b16 %v1258, %v1257
  %v1728 = vpack.c.b16 %v1260, %v1259
  %v1729 = vpack.c.b16 %v1262, %v1261
  %v1730 = vpack.c.b16 %v1264, %v1263
  %v1731 = vpack.c.b16 %v1266, %v1265
  %v1732 = vpack.c.b16 %v1268, %v1267
  %v1733 = vpack.c.b16 %v1270, %v1269
  %v1734 = vpack.c.b16 %v1272, %v1271
  %v1735 = vpack.c.b16 %v1274, %v1273
  %v1736 = vpack.c.b16 %v1276, %v1275
  %v1737 = vpack.c.b16 %v1278, %v1277
  %v1738 = vpack.c.b16 %v1280, %v1279
  %v1739 = vpack.c.b16 %v1282, %v1281
  %v1740 = vpack.c.b16 %v1284, %v1283
  %v1741 = vpack.c.b16 %v1286, %v1285
  %v1742 = vpack.c.b16 %v1288, %v1287
  %v1743 = vpack.c.b16 %v1290, %v1289
  %v1744 = vpack.c.b16 %v1292, %v1291
  %v1745 = vpack.c.b16 %v1294, %v1293
  %v1746 = vpack.c.b16 %v1296, %v1295
  %v1747 = vpack.c.b16 %v1298, %v1297
  %v1748 = vpack.c.b16 %v1300, %v1299
  %v1749 = vpack.c.b16 %v1302, %v1301
  %v1750 = vpack.c.b16 %v1304, %v1303
  %v1751 = vpack.c.b16 %v1306, %v1305
  %v1752 = vpack.c.b16 %v1308, %v1307
  %v1753 = vpack.c.b16 %v1310, %v1309
  %v1754 = vpack.c.b16 %v1312, %v1311
  %v1755 = vpack.c.b16 %v1314, %v1313
  %v1756 = vpack.c.b16 %v1316, %v1315
  %v1757 = vpack.c.b16 %v1318, %v1317
  %v1758 = vpack.c.b16 %v1320, %v1319
  %v1759 = vpack.c.b16 %v1322, %v1321
  %v1760 = vpack.c.b16 %v1324, %v1323
  %v1761 = vpack.c.b16 %v1326, %v1325
  %v1762 = vpack.c.b16 %v1328, %v1327
  %v1763 = vpack.c.b16 %v1330, %v1329
  %v1764 = vpack.c.b16 %v1332, %v1331
  %v1765 = vpack.c.b16 %v1334, %v1333
  %v1766 = vpack.c.b16 %v1336, %v1335
  %v1767 = vpack.c.b16 %v1338, %v1337
  %v1768 = vpack.c.b16 %v1340, %v1339
  %v1769 = vpack.c.b16 %v1342, %v1341
  %v1770 = vpack.c.b16 %v1344, %v1343
  %v1771 = vpack.c.b16 %v1346, %v1345
  %v1772 = vpack.c.b16 %v1348, %v1347
  %v1773 = vpack.c.b16 %v1350, %v1349
  %v1774 = vpack.c.b16 %v1352, %v1351
  %v1775 = vpack.c.b16 %v1354, %v1353
  %v1776 = vpack.c.b16 %v1356, %v1355
  %v1777 = vpack.c.b16 %v1358, %v1357
  %v1778 = vpack.c.b16 %v1360, %v1359
  %v1779 = vpack.c.b16 %v1362, %v1361
  %v1780 = vpack.c.b16 %v1364, %v1363
  %v1781 = vpack.c.b16 %v1366, %v1365
  %v1782 = vpack.c.b16 %v1368, %v1367
  %v1783 = vpack.c.b16 %v1370, %v1369
  %v1784 = vpack.c.b16 %v1372, %v1371
  %v1785 = vpack.c.b16 %v1374, %v1373
  %v1786 = vpack.c.b16 %v1376, %v1375
  %v1787 = vpack.c.b16 %v1378, %v1377
  %v1788 = vpack.c.b16 %v1380, %v1379
  %v1789 = vpack.c.b16 %v1382, %v1381
  %v1790 = vpack.c.b16 %v1384, %v1383
  %v1791 = vpack.c.b16 %v1386, %v1385
  %v1792 = vpack.c.b16 %v1388, %v1387
  %v1793 = vpack.c.b16 %v1390, %v1389
  %v1794 = vpack.c.b16 %v1392, %v1391
  %v1795 = vpack.c.b16 %v1394, %v1393
  %v1796 = vpack.c.b16 %v1396, %v1395
  %v1797 = vpack.c.b16 %v1398, %v1397
  %v1798 = vpack.c.b16 %v1400, %v1399
  %v1799 = vpack.c.b16 %v1402, %v1401
  %v1800 = vpack.c.b16 %v1404, %v1403
  %v1801 = vpack.c.b16 %v1406, %v1405
  %v1802 = vpack.c.b16 %v1408, %v1407
  %v1803 = vpack.c.b16 %v1410, %v1409
  %v1804 = vpack.c.b16 %v1412, %v1411
  %v1805 = vpack.c.b16 %v1414, %v1413
  %v1806 = vpack.c.b16 %v1416, %v1415
  %v1807 = vpack.c.b16 %v1418, %v1417
  %v1808 = vpack.c.b16 %v1420, %v1419
  %v1809 = vpack.c.b16 %v1422, %v1421
  %v1810 = vpack.c.b16 %v1424, %v1423
  %v1811 = vpack.c.b16 %v1426, %v1425
  %v1812 = vpack.c.b16 %v1428, %v1427
  %v1813 = vpack.c.b16 %v1430, %v1429
  %v1814 = vpack.c.b16 %v1432, %v1431
  %v1815 = vpack.c.b16 %v1434, %v1433
  %v1816 = vpack.c.b16 %v1436, %v1435
  %v1817 = vpack.c.b16 %v1438, %v1437
  %v1818 = vpack.c.b16 %v1440, %v1439
  %v1819 = vpack.c.b16 %v1442, %v1441
  %v1820 = vpack.c.b16 %v1444, %v1443
  %v1821 = vpack.c.b16 %v1446, %v1445
  %v1822 = vpack.c.b16 %v1448, %v1447
  %v1823 = vpack.c.b16 %v1450, %v1449
  %v1824 = vpack.c.b16 %v1452, %v1451
  %v1825 = vpack.c.b16 %v1454, %v1453
  %v1826 = vpack.c.b16 %v1456, %v1455
  %v1827 = vpack.c.b16 %v1458, %v1457
  %v1828 = vpack.c.b16 %v1460, %v1459
  %v1829 = vpack.c.b16 %v1462, %v1461
  %v1830 = vpack.c.b16 %v1464, %v1463
  %v1831 = vpack.c.b16 %v1466, %v1465
  %v1832 = vpack.c.b16 %v1468, %v1467
  %v1833 = vpack.c.b16 %v1470, %v1469
  %v1834 = vpack.c.b16 %v1472, %v1471
  %v1835 = vpack.c.b16 %v1474, %v1473
  %v1836 = vpack.c.b16 %v1476, %v1475
  %v1837 = vpack.c.b16 %v1478, %v1477
  %v1838 = vpack.c.b16 %v1480, %v1479
  %v1839 = vpack.c.b16 %v1482, %v1481
  %v1840 = vpack.c.b16 %v1484, %v1483
  %v1841 = vpack.c.b16 %v1486, %v1485
  %v1842 = vpack.c.b16 %v1488, %v1487
  %v1843 = vpack.c.b16 %v1490, %v1489
  %v1844 = vpack.c.b16 %v1492, %v1491
  %v1845 = vpack.c.b16 %v1494, %v1493
  %v1846 = vpack.c.b16 %v1496, %v1495
  %v1847 = vpack.c.b16 %v1498, %v1497
  %v1848 = vpack.c.b16 %v1500, %v1499
  %v1849 = vpack.c.b16 %v1502, %v1501
  %v1850 = vpack.c.b16 %v1504, %v1503
  %v1851 = vpack.c.b16 %v1506, %v1505
  %v1852 = vpack.c.b16 %v1508, %v1507
  %v1853 = vpack.c.b16 %v1510, %v1509
  %v1854 = vpack.c.b16 %v1512, %v1511
  %v1855 = vpack.c.b16 %v1514, %v1513
  %v1856 = vpack.c.b16 %v1516, %v1515
  %v1857 = vpack.c.b16 %v1518, %v1517
  %v1858 = vpack.c.b16 %v1520, %v1519
  %v1859 = vpack.c.b16 %v1522, %v1521
  %v1860 = vpack.c.b16 %v1524, %v1523
  %v1861 = vpack.c.b16 %v1526, %v1525
  %v1862 = vpack.c.b16 %v1528, %v1527
  %v1863 = vpack.c.b16 %v1530, %v1529
  %v1864 = vpack.c.b16 %v1532, %v1531
  %v1865 = vpack.c.b16 %v1534, %v1533
  %v1866 = vpack.c.b16 %v1536, %v1535
  %v1867 = vpack.c.b16 %v1538, %v1537
  %v1868 = vpack.c.b16 %v1540, %v1539
  %v1869 = vpack.c.b16 %v1542, %v1541
  %v1870 = vpack.c.b16 %v1544, %v1543
  %v1871 = vpack.c.b16 %v1546, %v1545
  %v1872 = vpack.c.b16 %v1548, %v1547
  %v1873 = vpack.c.b16 %v1550, %v1549
  %v1874 = vpack.c.b16 %v1552, %v1551
  %v1875 = vpack.c.b16 %v1554, %v1553
  %v1876 = vpack.c.b16 %v1556, %v1555
  %v1877 = vpack.c.b16 %v1558, %v1557
  %v1878 = vpack.c.b16 %v1560, %v1559
  %v1879 = vpack.c.b16 %v1562, %v1561
  %v1880 = vpack.c.b16 %v1564, %v1563
  %v1881 = vpack.c.b16 %v1566, %v1565
  %v1882 = vpack.c.b16 %v1568, %v1567
  %v1883 = vpack.c.b16 %v1570, %v1569
  %v1884 = vpack.c.b16 %v1572, %v1571
  %v1885 = vpack.c.b16 %v1574, %v1573
  %v1886 = vpack.c.b16 %v1576, %v1575
  %v1887 = vpack.c.b16 %v1578, %v1577
  %v1888 = vpack.c.b16 %v1580, %v1579
  %v1889 = vpack.c.b16 %v1582, %v1581
  %v1890 = vpack.c.b16 %v1584, %v1583
  %v1891 = vpack.c.b16 %v1586, %v1585
  %v1892 = vpack.c.b16 %v1588, %v1587
  %v1893 = vpack.c.b16 %v1590, %v1589
  %v1894 = vpack.c.b16 %v1592, %v1591
  %v1895 = vpack.c.b16 %v1594, %v1593
  %v1896 = vpack.c.b16 %v1596, %v1595
  %v1897 = vpack.c.b16 %v1598, %v1597
  %v1898 = vpack.c.b16 %v1600, %v1599
  %v1899 = vpack.c.b16 %v1602, %v1601
  %v1900 = vpack.c.b16 %v1604, %v1603
  %v1901 = vpack.c.b16 %v1606, %v1605
  %v1902 = vpack.c.b16 %v1608, %v1607
  %v1903 = vpack.c.b16 %v1610, %v1609
  %v1904 = vpack.c.b16 %v1612, %v1611
  %v1905 = vpack.c.b16 %v1614, %v1613
  %v1906 = vpack.c.b16 %v1616, %v1615
  %v1907 = vpack.c.b16 %v1618, %v1617
  %v1908 = vpack.c.b16 %v1620, %v1619
  %v1909 = vpack.c.b16 %v1622, %v1621
  %v1910 = vpack.c.b16 %v1624, %v1623
  %v1911 = vpack.c.b16 %v1626, %v1625
  %v1912 = vpack.c.b16 %v1628, %v1627
  %v1913 = vpack.c.b16 %v1630, %v1629
  %v1914 = vpack.c.b16 %v1632, %v1631
  %v1915 = vpack.c.b16 %v1634, %v1633
  %v1916 = vpack.c.b16 %v1636, %v1635
  %v1917 = vpack.c.b16 %v1638, %v1637
  %v1918 = vpack.c.b16 %v1640, %v1639
  %v1919 = vpack.c.b16 %v1642, %v1641
  %v1920 = vpack.c.b16 %v1644, %v1643
  %v1921 = vpack.c.b16 %v1646, %v1645
  %v1922 = vpack.c.b16 %v1648, %v1647
  %v1923 = vpack.c.b16 %v1650, %v1649
  %v1924 = vpack.c.b16 %v1652, %v1651
  %v1925 = vpack.c.b16 %v1654, %v1653
  %v1926 = vpack.c.b16 %v1656, %v1655
  %v1927 = vpack.c.b16 %v1658, %v1657
  %v1928 = vpack.c.b16 %v1660, %v1659
  %v1929 = vpack.c.b16 %v1662, %v1661
  %v1930 = vpack.c.b16 %v1664, %v1663
  %v1931 = vpack.c.b16 %v1666, %v1665
  %v1932 = vpack.c.b16 %v1668, %v1667
  %v1933 = vpack.c.b16 %v1670, %v1669
  %v1934 = vpack.c.b16 %v1672, %v1671
  %v1935 = vpack.c.b16 %v1674, %v1673
  %v1936 = vpack.c.b16 %v1676, %v1675
  %v1937 = vpack.c.b16 %v1678, %v1677
  %v1938 = vpack.c.b16 %v1680, %v1679
  %v1939 = vpack.c.b16 %v1682, %v1681
  %v1940 = vpack.c.b16 %v1684, %v1683
  %2197 = vmatprep.subr.bf16.mxu0 0
  %2198 = vmatpush1.bf16.msra.mxu0 %v1685
  %2199 = vmatprep.subr.bf16.mxu0 0
  %2200 = vmatpush1.bf16.msra.mxu0 %v1686
  %2201 = vmatprep.subr.bf16.mxu0 0
  %2202 = vmatpush1.bf16.msra.mxu0 %v1687
  %2203 = vmatprep.subr.bf16.mxu0 0
  %2204 = vmatpush1.bf16.msra.mxu0 %v1688
  %2205 = vmatprep.subr.bf16.mxu0 0
  %2206 = vmatpush1.bf16.msra.mxu0 %v1689
  %2207 = vmatprep.subr.bf16.mxu0 0
  %2208 = vmatpush1.bf16.msra.mxu0 %v1690
  %2209 = vmatprep.subr.bf16.mxu0 0
  %2210 = vmatpush1.bf16.msra.mxu0 %v1691
  %2211 = vmatprep.subr.bf16.mxu0 0
  %2212 = vmatpush1.bf16.msra.mxu0 %v1692
  %2213 = vmatprep.subr.bf16.mxu0 0
  %2214 = vmatpush1.bf16.msra.mxu0 %v1693
  %2215 = vmatprep.subr.bf16.mxu0 0
  %2216 = vmatpush1.bf16.msra.mxu0 %v1694
  %2217 = vmatprep.subr.bf16.mxu0 0
  %2218 = vmatpush1.bf16.msra.mxu0 %v1695
  %2219 = vmatprep.subr.bf16.mxu0 0
  %2220 = vmatpush1.bf16.msra.mxu0 %v1696
  %2221 = vmatprep.subr.bf16.mxu0 0
  %2222 = vmatpush1.bf16.msra.mxu0 %v1697
  %2223 = vmatprep.subr.bf16.mxu0 0
  %2224 = vmatpush1.bf16.msra.mxu0 %v1698
  %2225 = vmatprep.subr.bf16.mxu0 0
  %2226 = vmatpush1.bf16.msra.mxu0 %v1699
  %2227 = vmatprep.subr.bf16.mxu0 0
  %2228 = vmatpush1.bf16.msra.mxu0 %v1700
  %2229 = vmatprep.mubr.bf16.mxu0 %v598
  %2230 = vmatmul.mubr.bf16.gmra.mrb[0].mxu0 %v597
  %v2231 = vpop.f32.mrb[0].mxu0
  %v2232 = vadd.f32 %v547, %v2231
  %v2233 = vpop.f32.mrb[0].mxu0
  %v2234 = vpop.f32.mrb[0].mxu0
  %v2235 = vpop.f32.mrb[0].mxu0
  %2236 = vdwg.mxu0
  %2237 = vmatprep.subr.bf16.mxu0 0
  %2238 = vmatpush1.bf16.msra.mxu0 %v1701
  %2239 = vmatprep.subr.bf16.mxu0 0
  %2240 = vmatpush1.bf16.msra.mxu0 %v1702
  %2241 = vmatprep.subr.bf16.mxu0 0
  %2242 = vmatpush1.bf16.msra.mxu0 %v1703
  %2243 = vmatprep.subr.bf16.mxu0 0
  %2244 = vmatpush1.bf16.msra.mxu0 %v1704
  %2245 = vmatprep.subr.bf16.mxu0 0
  %2246 = vmatpush1.bf16.msra.mxu0 %v1705
  %2247 = vmatprep.subr.bf16.mxu0 0
  %2248 = vmatpush1.bf16.msra.mxu0 %v1706
  %2249 = vmatprep.subr.bf16.mxu0 0
  %2250 = vmatpush1.bf16.msra.mxu0 %v1707
  %2251 = vmatprep.subr.bf16.mxu0 0
  %2252 = vmatpush1.bf16.msra.mxu0 %v1708
  %2253 = vmatprep.subr.bf16.mxu0 0
  %2254 = vmatpush1.bf16.msra.mxu0 %v1709
  %2255 = vmatprep.subr.bf16.mxu0 0
  %2256 = vmatpush1.bf16.msra.mxu0 %v1710
  %2257 = vmatprep.subr.bf16.mxu0 0
  %2258 = vmatpush1.bf16.msra.mxu0 %v1711
  %2259 = vmatprep.subr.bf16.mxu0 0
  %2260 = vmatpush1.bf16.msra.mxu0 %v1712
  %2261 = vmatprep.subr.bf16.mxu0 0
  %2262 = vmatpush1.bf16.msra.mxu0 %v1713
  %2263 = vmatprep.subr.bf16.mxu0 0
  %2264 = vmatpush1.bf16.msra.mxu0 %v1714
  %2265 = vmatprep.subr.bf16.mxu0 0
  %2266 = vmatpush1.bf16.msra.mxu0 %v1715
  %2267 = vmatprep.subr.bf16.mxu0 0
  %2268 = vmatpush1.bf16.msra.mxu0 %v1716
  %2269 = vmatprep.mubr.bf16.mxu0 %v600
  %2270 = vmatmul.mubr.bf16.gmra.mrb[0].mxu0 %v599
  %v2271 = vpop.f32.mrb[0].mxu0
  %v2272 = vadd.f32 %v2232, %v2271
  %v2273 = vpop.f32.mrb[0].mxu0
  %v2274 = vpop.f32.mrb[0].mxu0
  %v2275 = vpop.f32.mrb[0].mxu0
  %2276 = vdwg.mxu0
  %2277 = vmatprep.subr.bf16.mxu0 0
  %2278 = vmatpush1.bf16.msra.mxu0 %v1717
  %2279 = vmatprep.subr.bf16.mxu0 0
  %2280 = vmatpush1.bf16.msra.mxu0 %v1718
  %2281 = vmatprep.subr.bf16.mxu0 0
  %2282 = vmatpush1.bf16.msra.mxu0 %v1719
  %2283 = vmatprep.subr.bf16.mxu0 0
  %2284 = vmatpush1.bf16.msra.mxu0 %v1720
  %2285 = vmatprep.subr.bf16.mxu0 0
  %2286 = vmatpush1.bf16.msra.mxu0 %v1721
  %2287 = vmatprep.subr.bf16.mxu0 0
  %2288 = vmatpush1.bf16.msra.mxu0 %v1722
  %2289 = vmatprep.subr.bf16.mxu0 0
  %2290 = vmatpush1.bf16.msra.mxu0 %v1723
  %2291 = vmatprep.subr.bf16.mxu0 0
  %2292 = vmatpush1.bf16.msra.mxu0 %v1724
  %2293 = vmatprep.subr.bf16.mxu0 0
  %2294 = vmatpush1.bf16.msra.mxu0 %v1725
  %2295 = vmatprep.subr.bf16.mxu0 0
  %2296 = vmatpush1.bf16.msra.mxu0 %v1726
  %2297 = vmatprep.subr.bf16.mxu0 0
  %2298 = vmatpush1.bf16.msra.mxu0 %v1727
  %2299 = vmatprep.subr.bf16.mxu0 0
  %2300 = vmatpush1.bf16.msra.mxu0 %v1728
  %2301 = vmatprep.subr.bf16.mxu0 0
  %2302 = vmatpush1.bf16.msra.mxu0 %v1729
  %2303 = vmatprep.subr.bf16.mxu0 0
  %2304 = vmatpush1.bf16.msra.mxu0 %v1730
  %2305 = vmatprep.subr.bf16.mxu0 0
  %2306 = vmatpush1.bf16.msra.mxu0 %v1731
  %2307 = vmatprep.subr.bf16.mxu0 0
  %2308 = vmatpush1.bf16.msra.mxu0 %v1732
  %2309 = vmatprep.mubr.bf16.mxu0 %v602
  %2310 = vmatmul.mubr.bf16.gmra.mrb[0].mxu0 %v601
  %v2311 = vpop.f32.mrb[0].mxu0
  %v2312 = vadd.f32 %v2272, %v2311
  %v2313 = vpop.f32.mrb[0].mxu0
  %v2314 = vpop.f32.mrb[0].mxu0
  %v2315 = vpop.f32.mrb[0].mxu0
  %2316 = vdwg.mxu0
  %2317 = vmatprep.subr.bf16.mxu0 0
  %2318 = vmatpush1.bf16.msra.mxu0 %v1733
  %2319 = vmatprep.subr.bf16.mxu0 0
  %2320 = vmatpush1.bf16.msra.mxu0 %v1734
  %2321 = vmatprep.subr.bf16.mxu0 0
  %2322 = vmatpush1.bf16.msra.mxu0 %v1735
  %2323 = vmatprep.subr.bf16.mxu0 0
  %2324 = vmatpush1.bf16.msra.mxu0 %v1736
  %2325 = vmatprep.subr.bf16.mxu0 0
  %2326 = vmatpush1.bf16.msra.mxu0 %v1737
  %2327 = vmatprep.subr.bf16.mxu0 0
  %2328 = vmatpush1.bf16.msra.mxu0 %v1738
  %2329 = vmatprep.subr.bf16.mxu0 0
  %2330 = vmatpush1.bf16.msra.mxu0 %v1739
  %2331 = vmatprep.subr.bf16.mxu0 0
  %2332 = vmatpush1.bf16.msra.mxu0 %v1740
  %2333 = vmatprep.subr.bf16.mxu0 0
  %2334 = vmatpush1.bf16.msra.mxu0 %v1741
  %2335 = vmatprep.subr.bf16.mxu0 0
  %2336 = vmatpush1.bf16.msra.mxu0 %v1742
  %2337 = vmatprep.subr.bf16.mxu0 0
  %2338 = vmatpush1.bf16.msra.mxu0 %v1743
  %2339 = vmatprep.subr.bf16.mxu0 0
  %2340 = vmatpush1.bf16.msra.mxu0 %v1744
  %2341 = vmatprep.subr.bf16.mxu0 0
  %2342 = vmatpush1.bf16.msra.mxu0 %v1745
  %2343 = vmatprep.subr.bf16.mxu0 0
  %2344 = vmatpush1.bf16.msra.mxu0 %v1746
  %2345 = vmatprep.subr.bf16.mxu0 0
  %2346 = vmatpush1.bf16.msra.mxu0 %v1747
  %2347 = vmatprep.subr.bf16.mxu0 0
  %2348 = vmatpush1.bf16.msra.mxu0 %v1748
  %2349 = vmatprep.mubr.bf16.mxu0 %v604
  %2350 = vmatmul.mubr.bf16.gmra.mrb[0].mxu0 %v603
  %v2351 = vpop.f32.mrb[0].mxu0
  %v2352 = vadd.f32 %v2312, %v2351
  %v2353 = vpop.f32.mrb[0].mxu0
  %v2354 = vpop.f32.mrb[0].mxu0
  %v2355 = vpop.f32.mrb[0].mxu0
  %2356 = vdwg.mxu0
  %2357 = vmatprep.subr.bf16.mxu0 0
  %2358 = vmatpush1.bf16.msra.mxu0 %v1749
  %2359 = vmatprep.subr.bf16.mxu0 0
  %2360 = vmatpush1.bf16.msra.mxu0 %v1750
  %2361 = vmatprep.subr.bf16.mxu0 0
  %2362 = vmatpush1.bf16.msra.mxu0 %v1751
  %2363 = vmatprep.subr.bf16.mxu0 0
  %2364 = vmatpush1.bf16.msra.mxu0 %v1752
  %2365 = vmatprep.subr.bf16.mxu0 0
  %2366 = vmatpush1.bf16.msra.mxu0 %v1753
  %2367 = vmatprep.subr.bf16.mxu0 0
  %2368 = vmatpush1.bf16.msra.mxu0 %v1754
  %2369 = vmatprep.subr.bf16.mxu0 0
  %2370 = vmatpush1.bf16.msra.mxu0 %v1755
  %2371 = vmatprep.subr.bf16.mxu0 0
  %2372 = vmatpush1.bf16.msra.mxu0 %v1756
  %2373 = vmatprep.subr.bf16.mxu0 0
  %2374 = vmatpush1.bf16.msra.mxu0 %v1757
  %2375 = vmatprep.subr.bf16.mxu0 0
  %2376 = vmatpush1.bf16.msra.mxu0 %v1758
  %2377 = vmatprep.subr.bf16.mxu0 0
  %2378 = vmatpush1.bf16.msra.mxu0 %v1759
  %2379 = vmatprep.subr.bf16.mxu0 0
  %2380 = vmatpush1.bf16.msra.mxu0 %v1760
  %2381 = vmatprep.subr.bf16.mxu0 0
  %2382 = vmatpush1.bf16.msra.mxu0 %v1761
  %2383 = vmatprep.subr.bf16.mxu0 0
  %2384 = vmatpush1.bf16.msra.mxu0 %v1762
  %2385 = vmatprep.subr.bf16.mxu0 0
  %2386 = vmatpush1.bf16.msra.mxu0 %v1763
  %2387 = vmatprep.subr.bf16.mxu0 0
  %2388 = vmatpush1.bf16.msra.mxu0 %v1764
  %2389 = vmatprep.mubr.bf16.mxu0 %v606
  %2390 = vmatmul.mubr.bf16.gmra.mrb[0].mxu0 %v605
  %v2391 = vpop.f32.mrb[0].mxu0
  %v2392 = vadd.f32 %v2352, %v2391
  %v2393 = vpop.f32.mrb[0].mxu0
  %v2394 = vpop.f32.mrb[0].mxu0
  %v2395 = vpop.f32.mrb[0].mxu0
  %2396 = vdwg.mxu0
  %2397 = vmatprep.subr.bf16.mxu0 0
  %2398 = vmatpush1.bf16.msra.mxu0 %v1765
  %2399 = vmatprep.subr.bf16.mxu0 0
  %2400 = vmatpush1.bf16.msra.mxu0 %v1766
  %2401 = vmatprep.subr.bf16.mxu0 0
  %2402 = vmatpush1.bf16.msra.mxu0 %v1767
  %2403 = vmatprep.subr.bf16.mxu0 0
  %2404 = vmatpush1.bf16.msra.mxu0 %v1768
  %2405 = vmatprep.subr.bf16.mxu0 0
  %2406 = vmatpush1.bf16.msra.mxu0 %v1769
  %2407 = vmatprep.subr.bf16.mxu0 0
  %2408 = vmatpush1.bf16.msra.mxu0 %v1770
  %2409 = vmatprep.subr.bf16.mxu0 0
  %2410 = vmatpush1.bf16.msra.mxu0 %v1771
  %2411 = vmatprep.subr.bf16.mxu0 0
  %2412 = vmatpush1.bf16.msra.mxu0 %v1772
  %2413 = vmatprep.subr.bf16.mxu0 0
  %2414 = vmatpush1.bf16.msra.mxu0 %v1773
  %2415 = vmatprep.subr.bf16.mxu0 0
  %2416 = vmatpush1.bf16.msra.mxu0 %v1774
  %2417 = vmatprep.subr.bf16.mxu0 0
  %2418 = vmatpush1.bf16.msra.mxu0 %v1775
  %2419 = vmatprep.subr.bf16.mxu0 0
  %2420 = vmatpush1.bf16.msra.mxu0 %v1776
  %2421 = vmatprep.subr.bf16.mxu0 0
  %2422 = vmatpush1.bf16.msra.mxu0 %v1777
  %2423 = vmatprep.subr.bf16.mxu0 0
  %2424 = vmatpush1.bf16.msra.mxu0 %v1778
  %2425 = vmatprep.subr.bf16.mxu0 0
  %2426 = vmatpush1.bf16.msra.mxu0 %v1779
  %2427 = vmatprep.subr.bf16.mxu0 0
  %2428 = vmatpush1.bf16.msra.mxu0 %v1780
  %2429 = vmatprep.mubr.bf16.mxu0 %v608
  %2430 = vmatmul.mubr.bf16.gmra.mrb[0].mxu0 %v607
  %v2431 = vpop.f32.mrb[0].mxu0
  %v2432 = vadd.f32 %v2392, %v2431
  %v2433 = vpop.f32.mrb[0].mxu0
  %v2434 = vpop.f32.mrb[0].mxu0
  %v2435 = vpop.f32.mrb[0].mxu0
  %2436 = vdwg.mxu0
  %2437 = vmatprep.subr.bf16.mxu0 0
  %2438 = vmatpush1.bf16.msra.mxu0 %v1781
  %2439 = vmatprep.subr.bf16.mxu0 0
  %2440 = vmatpush1.bf16.msra.mxu0 %v1782
  %2441 = vmatprep.subr.bf16.mxu0 0
  %2442 = vmatpush1.bf16.msra.mxu0 %v1783
  %2443 = vmatprep.subr.bf16.mxu0 0
  %2444 = vmatpush1.bf16.msra.mxu0 %v1784
  %2445 = vmatprep.subr.bf16.mxu0 0
  %2446 = vmatpush1.bf16.msra.mxu0 %v1785
  %2447 = vmatprep.subr.bf16.mxu0 0
  %2448 = vmatpush1.bf16.msra.mxu0 %v1786
  %2449 = vmatprep.subr.bf16.mxu0 0
  %2450 = vmatpush1.bf16.msra.mxu0 %v1787
  %2451 = vmatprep.subr.bf16.mxu0 0
  %2452 = vmatpush1.bf16.msra.mxu0 %v1788
  %2453 = vmatprep.subr.bf16.mxu0 0
  %2454 = vmatpush1.bf16.msra.mxu0 %v1789
  %2455 = vmatprep.subr.bf16.mxu0 0
  %2456 = vmatpush1.bf16.msra.mxu0 %v1790
  %2457 = vmatprep.subr.bf16.mxu0 0
  %2458 = vmatpush1.bf16.msra.mxu0 %v1791
  %2459 = vmatprep.subr.bf16.mxu0 0
  %2460 = vmatpush1.bf16.msra.mxu0 %v1792
  %2461 = vmatprep.subr.bf16.mxu0 0
  %2462 = vmatpush1.bf16.msra.mxu0 %v1793
  %2463 = vmatprep.subr.bf16.mxu0 0
  %2464 = vmatpush1.bf16.msra.mxu0 %v1794
  %2465 = vmatprep.subr.bf16.mxu0 0
  %2466 = vmatpush1.bf16.msra.mxu0 %v1795
  %2467 = vmatprep.subr.bf16.mxu0 0
  %2468 = vmatpush1.bf16.msra.mxu0 %v1796
  %2469 = vmatprep.mubr.bf16.mxu0 %v610
  %2470 = vmatmul.mubr.bf16.gmra.mrb[0].mxu0 %v609
  %v2471 = vpop.f32.mrb[0].mxu0
  %v2472 = vadd.f32 %v2432, %v2471
  %v2473 = vpop.f32.mrb[0].mxu0
  %v2474 = vpop.f32.mrb[0].mxu0
  %v2475 = vpop.f32.mrb[0].mxu0
  %2476 = vdwg.mxu0
  %2477 = vmatprep.subr.bf16.mxu0 0
  %2478 = vmatpush1.bf16.msra.mxu0 %v1797
  %2479 = vmatprep.subr.bf16.mxu0 0
  %2480 = vmatpush1.bf16.msra.mxu0 %v1798
  %2481 = vmatprep.subr.bf16.mxu0 0
  %2482 = vmatpush1.bf16.msra.mxu0 %v1799
  %2483 = vmatprep.subr.bf16.mxu0 0
  %2484 = vmatpush1.bf16.msra.mxu0 %v1800
  %2485 = vmatprep.subr.bf16.mxu0 0
  %2486 = vmatpush1.bf16.msra.mxu0 %v1801
  %2487 = vmatprep.subr.bf16.mxu0 0
  %2488 = vmatpush1.bf16.msra.mxu0 %v1802
  %2489 = vmatprep.subr.bf16.mxu0 0
  %2490 = vmatpush1.bf16.msra.mxu0 %v1803
  %2491 = vmatprep.subr.bf16.mxu0 0
  %2492 = vmatpush1.bf16.msra.mxu0 %v1804
  %2493 = vmatprep.subr.bf16.mxu0 0
  %2494 = vmatpush1.bf16.msra.mxu0 %v1805
  %2495 = vmatprep.subr.bf16.mxu0 0
  %2496 = vmatpush1.bf16.msra.mxu0 %v1806
  %2497 = vmatprep.subr.bf16.mxu0 0
  %2498 = vmatpush1.bf16.msra.mxu0 %v1807
  %2499 = vmatprep.subr.bf16.mxu0 0
  %2500 = vmatpush1.bf16.msra.mxu0 %v1808
  %2501 = vmatprep.subr.bf16.mxu0 0
  %2502 = vmatpush1.bf16.msra.mxu0 %v1809
  %2503 = vmatprep.subr.bf16.mxu0 0
  %2504 = vmatpush1.bf16.msra.mxu0 %v1810
  %2505 = vmatprep.subr.bf16.mxu0 0
  %2506 = vmatpush1.bf16.msra.mxu0 %v1811
  %2507 = vmatprep.subr.bf16.mxu0 0
  %2508 = vmatpush1.bf16.msra.mxu0 %v1812
  %2509 = vmatprep.mubr.bf16.mxu0 %v612
  %2510 = vmatmul.mubr.bf16.gmra.mrb[0].mxu0 %v611
  %v2511 = vpop.f32.mrb[0].mxu0
  %v2512 = vadd.f32 %v2472, %v2511
  %v2513 = vpop.f32.mrb[0].mxu0
  %v2514 = vpop.f32.mrb[0].mxu0
  %v2515 = vpop.f32.mrb[0].mxu0
  %2516 = vdwg.mxu0
  %2517 = vmatprep.subr.bf16.mxu0 0
  %2518 = vmatpush1.bf16.msra.mxu0 %v1813
  %2519 = vmatprep.subr.bf16.mxu0 0
  %2520 = vmatpush1.bf16.msra.mxu0 %v1814
  %2521 = vmatprep.subr.bf16.mxu0 0
  %2522 = vmatpush1.bf16.msra.mxu0 %v1815
  %2523 = vmatprep.subr.bf16.mxu0 0
  %2524 = vmatpush1.bf16.msra.mxu0 %v1816
  %2525 = vmatprep.subr.bf16.mxu0 0
  %2526 = vmatpush1.bf16.msra.mxu0 %v1817
  %2527 = vmatprep.subr.bf16.mxu0 0
  %2528 = vmatpush1.bf16.msra.mxu0 %v1818
  %2529 = vmatprep.subr.bf16.mxu0 0
  %2530 = vmatpush1.bf16.msra.mxu0 %v1819
  %2531 = vmatprep.subr.bf16.mxu0 0
  %2532 = vmatpush1.bf16.msra.mxu0 %v1820
  %2533 = vmatprep.subr.bf16.mxu0 0
  %2534 = vmatpush1.bf16.msra.mxu0 %v1821
  %2535 = vmatprep.subr.bf16.mxu0 0
  %2536 = vmatpush1.bf16.msra.mxu0 %v1822
  %2537 = vmatprep.subr.bf16.mxu0 0
  %2538 = vmatpush1.bf16.msra.mxu0 %v1823
  %2539 = vmatprep.subr.bf16.mxu0 0
  %2540 = vmatpush1.bf16.msra.mxu0 %v1824
  %2541 = vmatprep.subr.bf16.mxu0 0
  %2542 = vmatpush1.bf16.msra.mxu0 %v1825
  %2543 = vmatprep.subr.bf16.mxu0 0
  %2544 = vmatpush1.bf16.msra.mxu0 %v1826
  %2545 = vmatprep.subr.bf16.mxu0 0
  %2546 = vmatpush1.bf16.msra.mxu0 %v1827
  %2547 = vmatprep.subr.bf16.mxu0 0
  %2548 = vmatpush1.bf16.msra.mxu0 %v1828
  %2549 = vmatprep.mubr.bf16.mxu0 %v614
  %2550 = vmatmul.mubr.bf16.gmra.mrb[0].mxu0 %v613
  %v2551 = vpop.f32.mrb[0].mxu0
  %v2552 = vadd.f32 %v2512, %v2551
  %v2553 = vpop.f32.mrb[0].mxu0
  %v2554 = vpop.f32.mrb[0].mxu0
  %v2555 = vpop.f32.mrb[0].mxu0
  %2556 = vdwg.mxu0
  %2557 = vmatprep.subr.bf16.mxu0 0
  %2558 = vmatpush1.bf16.msra.mxu0 %v1829
  %2559 = vmatprep.subr.bf16.mxu0 0
  %2560 = vmatpush1.bf16.msra.mxu0 %v1830
  %2561 = vmatprep.subr.bf16.mxu0 0
  %2562 = vmatpush1.bf16.msra.mxu0 %v1831
  %2563 = vmatprep.subr.bf16.mxu0 0
  %2564 = vmatpush1.bf16.msra.mxu0 %v1832
  %2565 = vmatprep.subr.bf16.mxu0 0
  %2566 = vmatpush1.bf16.msra.mxu0 %v1833
  %2567 = vmatprep.subr.bf16.mxu0 0
  %2568 = vmatpush1.bf16.msra.mxu0 %v1834
  %2569 = vmatprep.subr.bf16.mxu0 0
  %2570 = vmatpush1.bf16.msra.mxu0 %v1835
  %2571 = vmatprep.subr.bf16.mxu0 0
  %2572 = vmatpush1.bf16.msra.mxu0 %v1836
  %2573 = vmatprep.subr.bf16.mxu0 0
  %2574 = vmatpush1.bf16.msra.mxu0 %v1837
  %2575 = vmatprep.subr.bf16.mxu0 0
  %2576 = vmatpush1.bf16.msra.mxu0 %v1838
  %2577 = vmatprep.subr.bf16.mxu0 0
  %2578 = vmatpush1.bf16.msra.mxu0 %v1839
  %2579 = vmatprep.subr.bf16.mxu0 0
  %2580 = vmatpush1.bf16.msra.mxu0 %v1840
  %2581 = vmatprep.subr.bf16.mxu0 0
  %2582 = vmatpush1.bf16.msra.mxu0 %v1841
  %2583 = vmatprep.subr.bf16.mxu0 0
  %2584 = vmatpush1.bf16.msra.mxu0 %v1842
  %2585 = vmatprep.subr.bf16.mxu0 0
  %2586 = vmatpush1.bf16.msra.mxu0 %v1843
  %2587 = vmatprep.subr.bf16.mxu0 0
  %2588 = vmatpush1.bf16.msra.mxu0 %v1844
  %2589 = vmatprep.mubr.bf16.mxu0 %v616
  %2590 = vmatmul.mubr.bf16.gmra.mrb[0].mxu0 %v615
  %v2591 = vpop.f32.mrb[0].mxu0
  %v2592 = vadd.f32 %v2552, %v2591
  %v2593 = vpop.f32.mrb[0].mxu0
  %v2594 = vpop.f32.mrb[0].mxu0
  %v2595 = vpop.f32.mrb[0].mxu0
  %2596 = vdwg.mxu0
  %2597 = vmatprep.subr.bf16.mxu0 0
  %2598 = vmatpush1.bf16.msra.mxu0 %v1845
  %2599 = vmatprep.subr.bf16.mxu0 0
  %2600 = vmatpush1.bf16.msra.mxu0 %v1846
  %2601 = vmatprep.subr.bf16.mxu0 0
  %2602 = vmatpush1.bf16.msra.mxu0 %v1847
  %2603 = vmatprep.subr.bf16.mxu0 0
  %2604 = vmatpush1.bf16.msra.mxu0 %v1848
  %2605 = vmatprep.subr.bf16.mxu0 0
  %2606 = vmatpush1.bf16.msra.mxu0 %v1849
  %2607 = vmatprep.subr.bf16.mxu0 0
  %2608 = vmatpush1.bf16.msra.mxu0 %v1850
  %2609 = vmatprep.subr.bf16.mxu0 0
  %2610 = vmatpush1.bf16.msra.mxu0 %v1851
  %2611 = vmatprep.subr.bf16.mxu0 0
  %2612 = vmatpush1.bf16.msra.mxu0 %v1852
  %2613 = vmatprep.subr.bf16.mxu0 0
  %2614 = vmatpush1.bf16.msra.mxu0 %v1853
  %2615 = vmatprep.subr.bf16.mxu0 0
  %2616 = vmatpush1.bf16.msra.mxu0 %v1854
  %2617 = vmatprep.subr.bf16.mxu0 0
  %2618 = vmatpush1.bf16.msra.mxu0 %v1855
  %2619 = vmatprep.subr.bf16.mxu0 0
  %2620 = vmatpush1.bf16.msra.mxu0 %v1856
  %2621 = vmatprep.subr.bf16.mxu0 0
  %2622 = vmatpush1.bf16.msra.mxu0 %v1857
  %2623 = vmatprep.subr.bf16.mxu0 0
  %2624 = vmatpush1.bf16.msra.mxu0 %v1858
  %2625 = vmatprep.subr.bf16.mxu0 0
  %2626 = vmatpush1.bf16.msra.mxu0 %v1859
  %2627 = vmatprep.subr.bf16.mxu0 0
  %2628 = vmatpush1.bf16.msra.mxu0 %v1860
  %2629 = vmatprep.mubr.bf16.mxu0 %v618
  %2630 = vmatmul.mubr.bf16.gmra.mrb[0].mxu0 %v617
  %v2631 = vpop.f32.mrb[0].mxu0
  %v2632 = vadd.f32 %v2592, %v2631
  %v2633 = vpop.f32.mrb[0].mxu0
  %v2634 = vpop.f32.mrb[0].mxu0
  %v2635 = vpop.f32.mrb[0].mxu0
  %2636 = vdwg.mxu0
  %2637 = vmatprep.subr.bf16.mxu0 0
  %2638 = vmatpush1.bf16.msra.mxu0 %v1861
  %2639 = vmatprep.subr.bf16.mxu0 0
  %2640 = vmatpush1.bf16.msra.mxu0 %v1862
  %2641 = vmatprep.subr.bf16.mxu0 0
  %2642 = vmatpush1.bf16.msra.mxu0 %v1863
  %2643 = vmatprep.subr.bf16.mxu0 0
  %2644 = vmatpush1.bf16.msra.mxu0 %v1864
  %2645 = vmatprep.subr.bf16.mxu0 0
  %2646 = vmatpush1.bf16.msra.mxu0 %v1865
  %2647 = vmatprep.subr.bf16.mxu0 0
  %2648 = vmatpush1.bf16.msra.mxu0 %v1866
  %2649 = vmatprep.subr.bf16.mxu0 0
  %2650 = vmatpush1.bf16.msra.mxu0 %v1867
  %2651 = vmatprep.subr.bf16.mxu0 0
  %2652 = vmatpush1.bf16.msra.mxu0 %v1868
  %2653 = vmatprep.subr.bf16.mxu0 0
  %2654 = vmatpush1.bf16.msra.mxu0 %v1869
  %2655 = vmatprep.subr.bf16.mxu0 0
  %2656 = vmatpush1.bf16.msra.mxu0 %v1870
  %2657 = vmatprep.subr.bf16.mxu0 0
  %2658 = vmatpush1.bf16.msra.mxu0 %v1871
  %2659 = vmatprep.subr.bf16.mxu0 0
  %2660 = vmatpush1.bf16.msra.mxu0 %v1872
  %2661 = vmatprep.subr.bf16.mxu0 0
  %2662 = vmatpush1.bf16.msra.mxu0 %v1873
  %2663 = vmatprep.subr.bf16.mxu0 0
  %2664 = vmatpush1.bf16.msra.mxu0 %v1874
  %2665 = vmatprep.subr.bf16.mxu0 0
  %2666 = vmatpush1.bf16.msra.mxu0 %v1875
  %2667 = vmatprep.subr.bf16.mxu0 0
  %2668 = vmatpush1.bf16.msra.mxu0 %v1876
  %2669 = vmatprep.mubr.bf16.mxu0 %v620
  %2670 = vmatmul.mubr.bf16.gmra.mrb[0].mxu0 %v619
  %v2671 = vpop.f32.mrb[0].mxu0
  %v2672 = vadd.f32 %v2632, %v2671
  %v2673 = vpop.f32.mrb[0].mxu0
  %v2674 = vpop.f32.mrb[0].mxu0
  %v2675 = vpop.f32.mrb[0].mxu0
  %2676 = vdwg.mxu0
  %2677 = vmatprep.subr.bf16.mxu0 0
  %2678 = vmatpush1.bf16.msra.mxu0 %v1877
  %2679 = vmatprep.subr.bf16.mxu0 0
  %2680 = vmatpush1.bf16.msra.mxu0 %v1878
  %2681 = vmatprep.subr.bf16.mxu0 0
  %2682 = vmatpush1.bf16.msra.mxu0 %v1879
  %2683 = vmatprep.subr.bf16.mxu0 0
  %2684 = vmatpush1.bf16.msra.mxu0 %v1880
  %2685 = vmatprep.subr.bf16.mxu0 0
  %2686 = vmatpush1.bf16.msra.mxu0 %v1881
  %2687 = vmatprep.subr.bf16.mxu0 0
  %2688 = vmatpush1.bf16.msra.mxu0 %v1882
  %2689 = vmatprep.subr.bf16.mxu0 0
  %2690 = vmatpush1.bf16.msra.mxu0 %v1883
  %2691 = vmatprep.subr.bf16.mxu0 0
  %2692 = vmatpush1.bf16.msra.mxu0 %v1884
  %2693 = vmatprep.subr.bf16.mxu0 0
  %2694 = vmatpush1.bf16.msra.mxu0 %v1885
  %2695 = vmatprep.subr.bf16.mxu0 0
  %2696 = vmatpush1.bf16.msra.mxu0 %v1886
  %2697 = vmatprep.subr.bf16.mxu0 0
  %2698 = vmatpush1.bf16.msra.mxu0 %v1887
  %2699 = vmatprep.subr.bf16.mxu0 0
  %2700 = vmatpush1.bf16.msra.mxu0 %v1888
  %2701 = vmatprep.subr.bf16.mxu0 0
  %2702 = vmatpush1.bf16.msra.mxu0 %v1889
  %2703 = vmatprep.subr.bf16.mxu0 0
  %2704 = vmatpush1.bf16.msra.mxu0 %v1890
  %2705 = vmatprep.subr.bf16.mxu0 0
  %2706 = vmatpush1.bf16.msra.mxu0 %v1891
  %2707 = vmatprep.subr.bf16.mxu0 0
  %2708 = vmatpush1.bf16.msra.mxu0 %v1892
  %2709 = vmatprep.mubr.bf16.mxu0 %v622
  %2710 = vmatmul.mubr.bf16.gmra.mrb[0].mxu0 %v621
  %v2711 = vpop.f32.mrb[0].mxu0
  %v2712 = vadd.f32 %v2672, %v2711
  %v2713 = vpop.f32.mrb[0].mxu0
  %v2714 = vpop.f32.mrb[0].mxu0
  %v2715 = vpop.f32.mrb[0].mxu0
  %2716 = vdwg.mxu0
  %2717 = vmatprep.subr.bf16.mxu0 0
  %2718 = vmatpush1.bf16.msra.mxu0 %v1893
  %2719 = vmatprep.subr.bf16.mxu0 0
  %2720 = vmatpush1.bf16.msra.mxu0 %v1894
  %2721 = vmatprep.subr.bf16.mxu0 0
  %2722 = vmatpush1.bf16.msra.mxu0 %v1895
  %2723 = vmatprep.subr.bf16.mxu0 0
  %2724 = vmatpush1.bf16.msra.mxu0 %v1896
  %2725 = vmatprep.subr.bf16.mxu0 0
  %2726 = vmatpush1.bf16.msra.mxu0 %v1897
  %2727 = vmatprep.subr.bf16.mxu0 0
  %2728 = vmatpush1.bf16.msra.mxu0 %v1898
  %2729 = vmatprep.subr.bf16.mxu0 0
  %2730 = vmatpush1.bf16.msra.mxu0 %v1899
  %2731 = vmatprep.subr.bf16.mxu0 0
  %2732 = vmatpush1.bf16.msra.mxu0 %v1900
  %2733 = vmatprep.subr.bf16.mxu0 0
  %2734 = vmatpush1.bf16.msra.mxu0 %v1901
  %2735 = vmatprep.subr.bf16.mxu0 0
  %2736 = vmatpush1.bf16.msra.mxu0 %v1902
  %2737 = vmatprep.subr.bf16.mxu0 0
  %2738 = vmatpush1.bf16.msra.mxu0 %v1903
  %2739 = vmatprep.subr.bf16.mxu0 0
  %2740 = vmatpush1.bf16.msra.mxu0 %v1904
  %2741 = vmatprep.subr.bf16.mxu0 0
  %2742 = vmatpush1.bf16.msra.mxu0 %v1905
  %2743 = vmatprep.subr.bf16.mxu0 0
  %2744 = vmatpush1.bf16.msra.mxu0 %v1906
  %2745 = vmatprep.subr.bf16.mxu0 0
  %2746 = vmatpush1.bf16.msra.mxu0 %v1907
  %2747 = vmatprep.subr.bf16.mxu0 0
  %2748 = vmatpush1.bf16.msra.mxu0 %v1908
  %2749 = vmatprep.mubr.bf16.mxu0 %v624
  %2750 = vmatmul.mubr.bf16.gmra.mrb[0].mxu0 %v623
  %v2751 = vpop.f32.mrb[0].mxu0
  %v2752 = vadd.f32 %v2712, %v2751
  %v2753 = vpop.f32.mrb[0].mxu0
  %v2754 = vpop.f32.mrb[0].mxu0
  %v2755 = vpop.f32.mrb[0].mxu0
  %2756 = vdwg.mxu0
  %2757 = vmatprep.subr.bf16.mxu0 0
  %2758 = vmatpush1.bf16.msra.mxu0 %v1909
  %2759 = vmatprep.subr.bf16.mxu0 0
  %2760 = vmatpush1.bf16.msra.mxu0 %v1910
  %2761 = vmatprep.subr.bf16.mxu0 0
  %2762 = vmatpush1.bf16.msra.mxu0 %v1911
  %2763 = vmatprep.subr.bf16.mxu0 0
  %2764 = vmatpush1.bf16.msra.mxu0 %v1912
  %2765 = vmatprep.subr.bf16.mxu0 0
  %2766 = vmatpush1.bf16.msra.mxu0 %v1913
  %2767 = vmatprep.subr.bf16.mxu0 0
  %2768 = vmatpush1.bf16.msra.mxu0 %v1914
  %2769 = vmatprep.subr.bf16.mxu0 0
  %2770 = vmatpush1.bf16.msra.mxu0 %v1915
  %2771 = vmatprep.subr.bf16.mxu0 0
  %2772 = vmatpush1.bf16.msra.mxu0 %v1916
  %2773 = vmatprep.subr.bf16.mxu0 0
  %2774 = vmatpush1.bf16.msra.mxu0 %v1917
  %2775 = vmatprep.subr.bf16.mxu0 0
  %2776 = vmatpush1.bf16.msra.mxu0 %v1918
  %2777 = vmatprep.subr.bf16.mxu0 0
  %2778 = vmatpush1.bf16.msra.mxu0 %v1919
  %2779 = vmatprep.subr.bf16.mxu0 0
  %2780 = vmatpush1.bf16.msra.mxu0 %v1920
  %2781 = vmatprep.subr.bf16.mxu0 0
  %2782 = vmatpush1.bf16.msra.mxu0 %v1921
  %2783 = vmatprep.subr.bf16.mxu0 0
  %2784 = vmatpush1.bf16.msra.mxu0 %v1922
  %2785 = vmatprep.subr.bf16.mxu0 0
  %2786 = vmatpush1.bf16.msra.mxu0 %v1923
  %2787 = vmatprep.subr.bf16.mxu0 0
  %2788 = vmatpush1.bf16.msra.mxu0 %v1924
  %2789 = vmatprep.mubr.bf16.mxu0 %v626
  %2790 = vmatmul.mubr.bf16.gmra.mrb[0].mxu0 %v625
  %v2791 = vpop.f32.mrb[0].mxu0
  %v2792 = vadd.f32 %v2752, %v2791
  %v2793 = vpop.f32.mrb[0].mxu0
  %v2794 = vpop.f32.mrb[0].mxu0
  %v2795 = vpop.f32.mrb[0].mxu0
  %2796 = vdwg.mxu0
  %2797 = vmatprep.subr.bf16.mxu0 0
  %2798 = vmatpush1.bf16.msra.mxu0 %v1925
  %2799 = vmatprep.subr.bf16.mxu0 0
  %2800 = vmatpush1.bf16.msra.mxu0 %v1926
  %2801 = vmatprep.subr.bf16.mxu0 0
  %2802 = vmatpush1.bf16.msra.mxu0 %v1927
  %2803 = vmatprep.subr.bf16.mxu0 0
  %2804 = vmatpush1.bf16.msra.mxu0 %v1928
  %2805 = vmatprep.subr.bf16.mxu0 0
  %2806 = vmatpush1.bf16.msra.mxu0 %v1929
  %2807 = vmatprep.subr.bf16.mxu0 0
  %2808 = vmatpush1.bf16.msra.mxu0 %v1930
  %2809 = vmatprep.subr.bf16.mxu0 0
  %2810 = vmatpush1.bf16.msra.mxu0 %v1931
  %2811 = vmatprep.subr.bf16.mxu0 0
  %2812 = vmatpush1.bf16.msra.mxu0 %v1932
  %2813 = vmatprep.subr.bf16.mxu0 0
  %2814 = vmatpush1.bf16.msra.mxu0 %v1933
  %2815 = vmatprep.subr.bf16.mxu0 0
  %2816 = vmatpush1.bf16.msra.mxu0 %v1934
  %2817 = vmatprep.subr.bf16.mxu0 0
  %2818 = vmatpush1.bf16.msra.mxu0 %v1935
  %2819 = vmatprep.subr.bf16.mxu0 0
  %2820 = vmatpush1.bf16.msra.mxu0 %v1936
  %2821 = vmatprep.subr.bf16.mxu0 0
  %2822 = vmatpush1.bf16.msra.mxu0 %v1937
  %2823 = vmatprep.subr.bf16.mxu0 0
  %2824 = vmatpush1.bf16.msra.mxu0 %v1938
  %2825 = vmatprep.subr.bf16.mxu0 0
  %2826 = vmatpush1.bf16.msra.mxu0 %v1939
  %2827 = vmatprep.subr.bf16.mxu0 0
  %2828 = vmatpush1.bf16.msra.mxu0 %v1940
  %2829 = vmatprep.mubr.bf16.mxu0 %v628
  %2830 = vmatmul.mubr.bf16.gmra.mrb[0].mxu0 %v627
  %v2831 = vpop.f32.mrb[0].mxu0
  %v2832 = vadd.f32 %v2792, %v2831
  %v2833 = vpop.f32.mrb[0].mxu0
  %v2834 = vpop.f32.mrb[0].mxu0
  %v2835 = vpop.f32.mrb[0].mxu0
  %2836 = vdwg.mxu0
  %v2837 = vsub.f32 0.0, %v2832
  %v2838 = vmul.f32 %v2837, 1.442695
  %v2839 = vpow.pop %v2838
  %v2840 = vadd.f32 %v2839, 1.0
  %v2841 = vrcp.pop %v2840
  %2842 = vst [vmem:[%s3] sm:$0xff] %v2841
  // Predicated region
  $region14: #{patch_discriminator_forward.15} parent=0 // pred_check
    _
  $region15: #{patch_discriminator_forward.15} parent=0 // pred_check_branch
    %2844 = sbr.rel (0) target = $region17
  $region16: #{patch_discriminator_forward.15} parent=0 // pred_region
    _
  $region17: #{patch_discriminator_forward.15} parent=0 // pred_fallthru
    _
  // Predicated region
  $region18: #{patch_discriminator_forward.15} parent=0 // pred_check
    _
  $region19: #{patch_discriminator_forward.15} parent=0 // pred_check_branch
    %2846 = sbr.rel (0) target = $region21
  $region20: #{patch_discriminator_forward.15} parent=0 // pred_region
    _
  $region21: #{patch_discriminator_forward.15} parent=0 // pred_fallthru
    _

</llo_original>
